<compile_context>
chip_gen: v7x
topology: tpu7x:2x2x1
jax: 0.10.0
libtpu: 0.0.40
codegen_flags: <defaults>
</compile_context>

<pallas_src>
import functools
import jax
import jax.numpy as jnp
from jax.experimental import pallas as pl
from jax.experimental.pallas import tpu as pltpu


def _cdiv(a, b):
    return -(-a // b)


def _round_up(x, m):
    return _cdiv(x, m) * m


# ----------------------------------------------------------------------------
# Pallas kernel: tiled matmul (bf16 MXU, f32 accumulate) + fused bias + ReLU
# ----------------------------------------------------------------------------
def _conv_mm_kernel(a_ref, b_ref, bias_ref, o_ref, acc_ref, *, relu):
    k = pl.program_id(1)

    @pl.when(k == 0)
    def _():
        acc_ref[...] = jnp.zeros_like(acc_ref)

    acc_ref[...] += jnp.dot(a_ref[...], b_ref[...],
                            preferred_element_type=jnp.float32)

    @pl.when(k == pl.num_programs(1) - 1)
    def _():
        out = acc_ref[...] + bias_ref[...]
        if relu:
            out = jnp.maximum(out, 0.0)
        o_ref[...] = out.astype(o_ref.dtype)


def matmul_bias_act(a, b, bias, *, relu, tk):
    """a:(M,Kp) bf16 @ b:(Kp,N) bf16 + bias:(1,N) f32 -> (M,N) f32.

    Kp must be a multiple of tk (the caller builds A already K-aligned, so no
    padded copy of the large im2col matrix is ever materialized). N is kept
    whole so the output stores are lane-dense and no N padding is needed.
    """
    M, Kp = a.shape
    Kp2, N = b.shape
    assert Kp == Kp2 and Kp % tk == 0
    nk = Kp // tk
    # Full-dim M block when small (always legal); otherwise 512-row tiles.
    tm = M if M <= 512 else 512
    grid = (_cdiv(M, tm), nk)

    flops = 2 * M * N * Kp
    bytes_accessed = (M * Kp + Kp * N) * 2 + N * 4 + M * N * 4

    return pl.pallas_call(
        functools.partial(_conv_mm_kernel, relu=relu),
        out_shape=jax.ShapeDtypeStruct((M, N), jnp.float32),
        grid_spec=pltpu.PrefetchScalarGridSpec(
            num_scalar_prefetch=0,
            grid=grid,
            in_specs=[
                pl.BlockSpec((tm, tk), lambda i, k: (i, k)),
                pl.BlockSpec((tk, N), lambda i, k: (k, 0)),
                pl.BlockSpec((1, N), lambda i, k: (0, 0)),
            ],
            out_specs=pl.BlockSpec((tm, N), lambda i, k: (i, 0)),
            scratch_shapes=[pltpu.VMEM((tm, N), jnp.float32)],
        ),
        compiler_params=pltpu.CompilerParams(
            dimension_semantics=("parallel", "arbitrary")),
        cost_estimate=pl.CostEstimate(flops=flops, transcendentals=0,
                                      bytes_accessed=bytes_accessed),
    )(a, b, bias)


def _pick_k_tiling(K, tk_max=2048):
    """Return (Kp, tk): Kp >= K, Kp % tk == 0, tk a multiple of 128, tk<=~2K."""
    kp0 = _round_up(K, 128)
    nk = _cdiv(kp0, tk_max)
    tk = _round_up(_cdiv(kp0, nk), 128)
    return nk * tk, tk


# ----------------------------------------------------------------------------
# Conv2d (PyTorch weight layout (Cout, Cin, KH, KW)) via im2col + Pallas matmul
# ----------------------------------------------------------------------------
def conv2d_nhwc(x, w, b, *, stride, padding, relu):
    n, h, w_in, cin = x.shape
    cout, _, kh, kw = w.shape

    # Cast once to bf16 before patch extraction: halves the HBM traffic of the
    # (duplicated) im2col matrix and feeds the MXU at bf16 rate.
    x_bf = x.astype(jnp.bfloat16)
    xp = jnp.pad(x_bf, ((0, 0), (padding, padding), (padding, padding), (0, 0)))
    hp, wp = h + 2 * padding, w_in + 2 * padding
    oh = (hp - kh) // stride + 1
    ow = (wp - kw) // stride + 1

    K = kh * kw * cin
    Kp, tk = _pick_k_tiling(K)

    # TODO(synk): for the stride-1 3x3/5x5 convs the im2col below still
    # duplicates the activation kh*kw times in HBM; fusing the window walk into
    # the kernel's reduction axis would remove that traffic entirely.
    patches = []
    for i in range(kh):
        for j in range(kw):
            patches.append(xp[:, i:i + stride * (oh - 1) + 1:stride,
                              j:j + stride * (ow - 1) + 1:stride, :])
    if Kp > K:  # fold K padding into the single im2col materialization
        patches.append(jnp.zeros((n, oh, ow, Kp - K), jnp.bfloat16))
    a = jnp.concatenate(patches, axis=-1).reshape(n * oh * ow, Kp)

    wmat = jnp.transpose(w, (2, 3, 1, 0)).reshape(K, cout).astype(jnp.bfloat16)
    if Kp > K:
        wmat = jnp.pad(wmat, ((0, Kp - K), (0, 0)))  # tiny, zeros match A's pad
    bias = b.astype(jnp.float32).reshape(1, cout)

    out = matmul_bias_act(a, wmat, bias, relu=relu, tk=tk)
    return out.reshape(n, oh, ow, cout)


# ----------------------------------------------------------------------------
# Pallas kernel: max-reduction over pooling windows, tiled per image
# ----------------------------------------------------------------------------
def _maxpool_kernel(x_ref, o_ref):
    o_ref[...] = jnp.max(x_ref[...], axis=0)


def maxpool2d_nhwc(x, *, ksize=3, stride=2):
    n, h, w, c = x.shape
    oh = (h - ksize) // stride + 1
    ow = (w - ksize) // stride + 1
    kk = ksize * ksize

    wins = []
    for i in range(ksize):
        for j in range(ksize):
            wins.append(x[:, i:i + stride * (oh - 1) + 1:stride,
                          j:j + stride * (ow - 1) + 1:stride, :])
    # Single materialization; no -inf padding and no channel padding (blocks
    # whose last dims equal the full array dims are legal).
    stacked = jnp.stack(wins, axis=0).reshape(kk, n, oh * ow, c)

    out = pl.pallas_call(
        _maxpool_kernel,
        out_shape=jax.ShapeDtypeStruct((n, oh * ow, c), x.dtype),
        grid_spec=pltpu.PrefetchScalarGridSpec(
            num_scalar_prefetch=0,
            grid=(n,),
            in_specs=[pl.BlockSpec((kk, 1, oh * ow, c),
                                   lambda bidx: (0, bidx, 0, 0))],
            out_specs=pl.BlockSpec((1, oh * ow, c), lambda bidx: (bidx, 0, 0)),
        ),
        compiler_params=pltpu.CompilerParams(dimension_semantics=("parallel",)),
    )(stacked)
    return out.reshape(n, oh, ow, c)


# ----------------------------------------------------------------------------
# AlexNet.forward == self.features(x)  (avgpool / classifier never executed)
# ----------------------------------------------------------------------------
def alexnet_features(x_nchw, params):
    x = jnp.transpose(x_nchw, (0, 2, 3, 1))  # NCHW -> NHWC
    (w1, b1), (w2, b2), (w3, b3), (w4, b4), (w5, b5) = params
    x = conv2d_nhwc(x, w1, b1, stride=4, padding=2, relu=True)
    x = maxpool2d_nhwc(x, ksize=3, stride=2)
    x = conv2d_nhwc(x, w2, b2, stride=1, padding=2, relu=True)
    x = maxpool2d_nhwc(x, ksize=3, stride=2)
    x = conv2d_nhwc(x, w3, b3, stride=1, padding=1, relu=True)
    x = conv2d_nhwc(x, w4, b4, stride=1, padding=1, relu=True)
    x = conv2d_nhwc(x, w5, b5, stride=1, padding=1, relu=True)
    x = maxpool2d_nhwc(x, ksize=3, stride=2)
    return jnp.transpose(x, (0, 3, 1, 2))  # NHWC -> NCHW
    # TODO(synk): avgpool/classifier (Dropout, Linear) are defined in __init__
    # but unused by forward(); intentionally not implemented.


def init_params(key):
    conv_shapes = [
        (64, 3, 11, 11),
        (192, 64, 5, 5),
        (384, 192, 3, 3),
        (256, 384, 3, 3),
        (256, 256, 3, 3),
    ]
    params = []
    for shp in conv_shapes:
        key, k1, k2 = jax.random.split(key, 3)
        fan_in = shp[1] * shp[2] * shp[3]
        w = jax.random.normal(k1, shp, jnp.float32) * (2.0 / fan_in) ** 0.5
        b = jax.random.normal(k2, (shp[0],), jnp.float32) * 0.01
        params.append((w, b))
    return params


if __name__ == "__main__":
    key = jax.random.PRNGKey(0)
    pkey, xkey = jax.random.split(key)
    params = init_params(pkey)
    # Smallest spatial size that survives the strided convs / pools: 63x63
    # -> conv1: 15x15 -> pool: 7x7 -> pool: 3x3 -> pool: 1x1
    x = jax.random.normal(xkey, (2, 3, 63, 63), jnp.float32)  # NCHW
    fwd = jax.jit(alexnet_features)
    out = fwd(x, params)
    out = jax.block_until_ready(out)
    assert out.shape == (2, 256, 1, 1), out.shape
    print("KERNEL_OK")
</pallas_src>

<mosaic_0001>
module attributes {stable_mosaic.version = 11 : i64} {
  func.func @_conv_mm_kernel(%arg0: i32, %arg1: i32, %arg2: memref<450x384xbf16, #tpu.memory_space<vmem>>, %arg3: memref<384x64xbf16, #tpu.memory_space<vmem>>, %arg4: memref<1x64xf32, #tpu.memory_space<vmem>>, %arg5: memref<450x64xf32, #tpu.memory_space<vmem>>, %arg6: memref<450x64xf32, #tpu.memory_space<vmem>>) attributes {dimension_semantics = [#tpu.dimension_semantics<parallel>, #tpu.dimension_semantics<arbitrary>], iteration_bounds = array<i64: 1, 1>, scalar_prefetch = 0 : i64, scratch_operands = 1 : i64, tpu.core_type = #tpu.core_type<tc>, window_params = [{transform_indices = @transform_0, window_bounds = array<i64: 450, 384>}, {transform_indices = @transform_1, window_bounds = array<i64: 384, 64>}, {pipeline_mode = #tpu.pipeline_mode<synchronous>, transform_indices = @transform_2, window_bounds = array<i64: 1, 64>}, {transform_indices = @transform_3, window_bounds = array<i64: 450, 64>}]} {
    %c0_i32 = arith.constant 0 : i32
    %0 = arith.cmpi eq, %arg1, %c0_i32 : i32
    %1 = arith.extui %0 : i1 to i32
    %c0_i32_0 = arith.constant 0 : i32
    %2 = arith.cmpi ne, %1, %c0_i32_0 : i32
    scf.if %2 {
      %cst_10 = arith.constant 0.000000e+00 : f32
      %12 = vector.broadcast %cst_10 : f32 to vector<450x64xf32>
      %c0_11 = arith.constant 0 : index
      %c0_12 = arith.constant 0 : index
      %13 = vector.load %arg6[%c0_11, %c0_12] : memref<450x64xf32, #tpu.memory_space<vmem>>, vector<450x64xf32>
      tpu.vector_store %arg6[%c0_11, %c0_12], %12 {strides = array<i32>} : memref<450x64xf32, #tpu.memory_space<vmem>>, vector<450x64xf32>,
    } else {
    }
    %c0 = arith.constant 0 : index
    %c0_1 = arith.constant 0 : index
    %3 = vector.load %arg6[%c0, %c0_1] : memref<450x64xf32, #tpu.memory_space<vmem>>, vector<450x64xf32>
    %c0_2 = arith.constant 0 : index
    %c0_3 = arith.constant 0 : index
    %4 = vector.load %arg2[%c0_2, %c0_3] : memref<450x384xbf16, #tpu.memory_space<vmem>>, vector<450x384xbf16>
    %c0_4 = arith.constant 0 : index
    %c0_5 = arith.constant 0 : index
    %5 = vector.load %arg3[%c0_4, %c0_5] : memref<384x64xbf16, #tpu.memory_space<vmem>>, vector<384x64xbf16>
    %cst = arith.constant dense<0.000000e+00> : vector<450x64xf32>
    %6 = tpu.matmul %4, %5, %cst {dimension_numbers = #tpu.dot_dimension_numbers<[1], [0], [0], [1], [0, 0, 1, 1], [], []>} : vector<450x384xbf16>, vector<384x64xbf16>, vector<450x64xf32> -> vector<450x64xf32>
    %7 = arith.addf %3, %6 : vector<450x64xf32>
    %c0_6 = arith.constant 0 : index
    %c0_7 = arith.constant 0 : index
    %8 = vector.load %arg6[%c0_6, %c0_7] : memref<450x64xf32, #tpu.memory_space<vmem>>, vector<450x64xf32>
    tpu.vector_store %arg6[%c0_6, %c0_7], %7 {strides = array<i32>} : memref<450x64xf32, #tpu.memory_space<vmem>>, vector<450x64xf32>,
    %c0_i32_8 = arith.constant 0 : i32
    %9 = arith.cmpi eq, %arg1, %c0_i32_8 : i32
    %10 = arith.extui %9 : i1 to i32
    %c0_i32_9 = arith.constant 0 : i32
    %11 = arith.cmpi ne, %10, %c0_i32_9 : i32
    scf.if %11 {
      %c0_10 = arith.constant 0 : index
      %c0_11 = arith.constant 0 : index
      %12 = vector.load %arg6[%c0_10, %c0_11] : memref<450x64xf32, #tpu.memory_space<vmem>>, vector<450x64xf32>
      %c0_12 = arith.constant 0 : index
      %c0_13 = arith.constant 0 : index
      %13 = vector.load %arg4[%c0_12, %c0_13] : memref<1x64xf32, #tpu.memory_space<vmem>>, vector<1x64xf32>
      %14 = vector.broadcast %13 : vector<1x64xf32> to vector<450x64xf32>
      %15 = arith.addf %12, %14 : vector<450x64xf32>
      %cst_14 = arith.constant 0.000000e+00 : f32
      %16 = vector.broadcast %cst_14 : f32 to vector<450x64xf32>
      %17 = arith.maximumf %15, %16 : vector<450x64xf32>
      %c0_15 = arith.constant 0 : index
      %c0_16 = arith.constant 0 : index
      %18 = vector.load %arg5[%c0_15, %c0_16] : memref<450x64xf32, #tpu.memory_space<vmem>>, vector<450x64xf32>
      tpu.vector_store %arg5[%c0_15, %c0_16], %17 {strides = array<i32>} : memref<450x64xf32, #tpu.memory_space<vmem>>, vector<450x64xf32>,
    } else {
    }
    return
  }
  func.func @transform_0(%arg0: i32, %arg1: i32) -> (i32, i32) {
    %c0_i32 = arith.constant 0 : i32
    return %arg0, %arg1 : i32, i32
  }
  func.func @transform_1(%arg0: i32, %arg1: i32) -> (i32, i32) {
    %c0_i32 = arith.constant 0 : i32
    %c0_i32_0 = arith.constant 0 : i32
    return %arg1, %c0_i32 : i32, i32
  }
  func.func @transform_2(%arg0: i32, %arg1: i32) -> (i32, i32) {
    %c0_i32 = arith.constant 0 : i32
    %c0_i32_0 = arith.constant 0 : i32
    %c0_i32_1 = arith.constant 0 : i32
    return %c0_i32, %c0_i32_0 : i32, i32
  }
  func.func @transform_3(%arg0: i32, %arg1: i32) -> (i32, i32) {
    %c0_i32 = arith.constant 0 : i32
    %c0_i32_0 = arith.constant 0 : i32
    return %arg0, %c0_i32 : i32, i32
  }
}

module attributes {stable_mosaic.version = 11 : i64} {
  func.func @_maxpool_kernel(%arg0: i32, %arg1: memref<9x1x49x64xf32, #tpu.memory_space<vmem>>, %arg2: memref<1x49x64xf32, #tpu.memory_space<vmem>>) attributes {dimension_semantics = [#tpu.dimension_semantics<parallel>], iteration_bounds = array<i64: 2>, scalar_prefetch = 0 : i64, scratch_operands = 0 : i64, tpu.core_type = #tpu.core_type<tc>, window_params = [{transform_indices = @transform_0, window_bounds = array<i64: 9, 1, 49, 64>}, {transform_indices = @transform_1, window_bounds = array<i64: 1, 49, 64>}]} {
    %c0 = arith.constant 0 : index
    %c0_0 = arith.constant 0 : index
    %c0_1 = arith.constant 0 : index
    %c0_2 = arith.constant 0 : index
    %0 = vector.load %arg1[%c0, %c0_0, %c0_1, %c0_2] : memref<9x1x49x64xf32, #tpu.memory_space<vmem>>, vector<9x1x49x64xf32>
    %cst = arith.constant dense<0xFF800000> : vector<1x49x64xf32>
    %1 = vector.multi_reduction <maximumf>, %0, %cst [0] : vector<9x1x49x64xf32> to vector<1x49x64xf32>
    %c0_3 = arith.constant 0 : index
    %c0_4 = arith.constant 0 : index
    %c0_5 = arith.constant 0 : index
    %2 = vector.load %arg2[%c0_3, %c0_4, %c0_5] : memref<1x49x64xf32, #tpu.memory_space<vmem>>, vector<1x49x64xf32>
    tpu.vector_store %arg2[%c0_3, %c0_4, %c0_5], %1 {strides = array<i32>} : memref<1x49x64xf32, #tpu.memory_space<vmem>>, vector<1x49x64xf32>,
    return
  }
  func.func @transform_0(%arg0: i32) -> (i32, i32, i32, i32) {
    %c0_i32 = arith.constant 0 : i32
    %c0_i32_0 = arith.constant 0 : i32
    %c0_i32_1 = arith.constant 0 : i32
    %c0_i32_2 = arith.constant 0 : i32
    return %c0_i32, %arg0, %c0_i32_0, %c0_i32_1 : i32, i32, i32, i32
  }
  func.func @transform_1(%arg0: i32) -> (i32, i32, i32) {
    %c0_i32 = arith.constant 0 : i32
    %c0_i32_0 = arith.constant 0 : i32
    %c0_i32_1 = arith.constant 0 : i32
    return %arg0, %c0_i32, %c0_i32_0 : i32, i32, i32
  }
}

module attributes {stable_mosaic.version = 11 : i64} {
  func.func @_conv_mm_kernel(%arg0: i32, %arg1: i32, %arg2: memref<98x1664xbf16, #tpu.memory_space<vmem>>, %arg3: memref<1664x192xbf16, #tpu.memory_space<vmem>>, %arg4: memref<1x192xf32, #tpu.memory_space<vmem>>, %arg5: memref<98x192xf32, #tpu.memory_space<vmem>>, %arg6: memref<98x192xf32, #tpu.memory_space<vmem>>) attributes {dimension_semantics = [#tpu.dimension_semantics<parallel>, #tpu.dimension_semantics<arbitrary>], iteration_bounds = array<i64: 1, 1>, scalar_prefetch = 0 : i64, scratch_operands = 1 : i64, tpu.core_type = #tpu.core_type<tc>, window_params = [{transform_indices = @transform_0, window_bounds = array<i64: 98, 1664>}, {transform_indices = @transform_1, window_bounds = array<i64: 1664, 192>}, {pipeline_mode = #tpu.pipeline_mode<synchronous>, transform_indices = @transform_2, window_bounds = array<i64: 1, 192>}, {transform_indices = @transform_3, window_bounds = array<i64: 98, 192>}]} {
    %c0_i32 = arith.constant 0 : i32
    %0 = arith.cmpi eq, %arg1, %c0_i32 : i32
    %1 = arith.extui %0 : i1 to i32
    %c0_i32_0 = arith.constant 0 : i32
    %2 = arith.cmpi ne, %1, %c0_i32_0 : i32
    scf.if %2 {
      %cst_10 = arith.constant 0.000000e+00 : f32
      %12 = vector.broadcast %cst_10 : f32 to vector<98x192xf32>
      %c0_11 = arith.constant 0 : index
      %c0_12 = arith.constant 0 : index
      %13 = vector.load %arg6[%c0_11, %c0_12] : memref<98x192xf32, #tpu.memory_space<vmem>>, vector<98x192xf32>
      tpu.vector_store %arg6[%c0_11, %c0_12], %12 {strides = array<i32>} : memref<98x192xf32, #tpu.memory_space<vmem>>, vector<98x192xf32>,
    } else {
    }
    %c0 = arith.constant 0 : index
    %c0_1 = arith.constant 0 : index
    %3 = vector.load %arg6[%c0, %c0_1] : memref<98x192xf32, #tpu.memory_space<vmem>>, vector<98x192xf32>
    %c0_2 = arith.constant 0 : index
    %c0_3 = arith.constant 0 : index
    %4 = vector.load %arg2[%c0_2, %c0_3] : memref<98x1664xbf16, #tpu.memory_space<vmem>>, vector<98x1664xbf16>
    %c0_4 = arith.constant 0 : index
    %c0_5 = arith.constant 0 : index
    %5 = vector.load %arg3[%c0_4, %c0_5] : memref<1664x192xbf16, #tpu.memory_space<vmem>>, vector<1664x192xbf16>
    %cst = arith.constant dense<0.000000e+00> : vector<98x192xf32>
    %6 = tpu.matmul %4, %5, %cst {dimension_numbers = #tpu.dot_dimension_numbers<[1], [0], [0], [1], [0, 0, 1, 1], [], []>} : vector<98x1664xbf16>, vector<1664x192xbf16>, vector<98x192xf32> -> vector<98x192xf32>
    %7 = arith.addf %3, %6 : vector<98x192xf32>
    %c0_6 = arith.constant 0 : index
    %c0_7 = arith.constant 0 : index
    %8 = vector.load %arg6[%c0_6, %c0_7] : memref<98x192xf32, #tpu.memory_space<vmem>>, vector<98x192xf32>
    tpu.vector_store %arg6[%c0_6, %c0_7], %7 {strides = array<i32>} : memref<98x192xf32, #tpu.memory_space<vmem>>, vector<98x192xf32>,
    %c0_i32_8 = arith.constant 0 : i32
    %9 = arith.cmpi eq, %arg1, %c0_i32_8 : i32
    %10 = arith.extui %9 : i1 to i32
    %c0_i32_9 = arith.constant 0 : i32
    %11 = arith.cmpi ne, %10, %c0_i32_9 : i32
    scf.if %11 {
      %c0_10 = arith.constant 0 : index
      %c0_11 = arith.constant 0 : index
      %12 = vector.load %arg6[%c0_10, %c0_11] : memref<98x192xf32, #tpu.memory_space<vmem>>, vector<98x192xf32>
      %c0_12 = arith.constant 0 : index
      %c0_13 = arith.constant 0 : index
      %13 = vector.load %arg4[%c0_12, %c0_13] : memref<1x192xf32, #tpu.memory_space<vmem>>, vector<1x192xf32>
      %14 = vector.broadcast %13 : vector<1x192xf32> to vector<98x192xf32>
      %15 = arith.addf %12, %14 : vector<98x192xf32>
      %cst_14 = arith.constant 0.000000e+00 : f32
      %16 = vector.broadcast %cst_14 : f32 to vector<98x192xf32>
      %17 = arith.maximumf %15, %16 : vector<98x192xf32>
      %c0_15 = arith.constant 0 : index
      %c0_16 = arith.constant 0 : index
      %18 = vector.load %arg5[%c0_15, %c0_16] : memref<98x192xf32, #tpu.memory_space<vmem>>, vector<98x192xf32>
      tpu.vector_store %arg5[%c0_15, %c0_16], %17 {strides = array<i32>} : memref<98x192xf32, #tpu.memory_space<vmem>>, vector<98x192xf32>,
    } else {
    }
    return
  }
  func.func @transform_0(%arg0: i32, %arg1: i32) -> (i32, i32) {
    %c0_i32 = arith.constant 0 : i32
    return %arg0, %arg1 : i32, i32
  }
  func.func @transform_1(%arg0: i32, %arg1: i32) -> (i32, i32) {
    %c0_i32 = arith.constant 0 : i32
    %c0_i32_0 = arith.constant 0 : i32
    return %arg1, %c0_i32 : i32, i32
  }
  func.func @transform_2(%arg0: i32, %arg1: i32) -> (i32, i32) {
    %c0_i32 = arith.constant 0 : i32
    %c0_i32_0 = arith.constant 0 : i32
    %c0_i32_1 = arith.constant 0 : i32
    return %c0_i32, %c0_i32_0 : i32, i32
  }
  func.func @transform_3(%arg0: i32, %arg1: i32) -> (i32, i32) {
    %c0_i32 = arith.constant 0 : i32
    %c0_i32_0 = arith.constant 0 : i32
    return %arg0, %c0_i32 : i32, i32
  }
}

module attributes {stable_mosaic.version = 11 : i64} {
  func.func @_maxpool_kernel(%arg0: i32, %arg1: memref<9x1x9x192xf32, #tpu.memory_space<vmem>>, %arg2: memref<1x9x192xf32, #tpu.memory_space<vmem>>) attributes {dimension_semantics = [#tpu.dimension_semantics<parallel>], iteration_bounds = array<i64: 2>, scalar_prefetch = 0 : i64, scratch_operands = 0 : i64, tpu.core_type = #tpu.core_type<tc>, window_params = [{transform_indices = @transform_0, window_bounds = array<i64: 9, 1, 9, 192>}, {transform_indices = @transform_1, window_bounds = array<i64: 1, 9, 192>}]} {
    %c0 = arith.constant 0 : index
    %c0_0 = arith.constant 0 : index
    %c0_1 = arith.constant 0 : index
    %c0_2 = arith.constant 0 : index
    %0 = vector.load %arg1[%c0, %c0_0, %c0_1, %c0_2] : memref<9x1x9x192xf32, #tpu.memory_space<vmem>>, vector<9x1x9x192xf32>
    %cst = arith.constant dense<0xFF800000> : vector<1x9x192xf32>
    %1 = vector.multi_reduction <maximumf>, %0, %cst [0] : vector<9x1x9x192xf32> to vector<1x9x192xf32>
    %c0_3 = arith.constant 0 : index
    %c0_4 = arith.constant 0 : index
    %c0_5 = arith.constant 0 : index
    %2 = vector.load %arg2[%c0_3, %c0_4, %c0_5] : memref<1x9x192xf32, #tpu.memory_space<vmem>>, vector<1x9x192xf32>
    tpu.vector_store %arg2[%c0_3, %c0_4, %c0_5], %1 {strides = array<i32>} : memref<1x9x192xf32, #tpu.memory_space<vmem>>, vector<1x9x192xf32>,
    return
  }
  func.func @transform_0(%arg0: i32) -> (i32, i32, i32, i32) {
    %c0_i32 = arith.constant 0 : i32
    %c0_i32_0 = arith.constant 0 : i32
    %c0_i32_1 = arith.constant 0 : i32
    %c0_i32_2 = arith.constant 0 : i32
    return %c0_i32, %arg0, %c0_i32_0, %c0_i32_1 : i32, i32, i32, i32
  }
  func.func @transform_1(%arg0: i32) -> (i32, i32, i32) {
    %c0_i32 = arith.constant 0 : i32
    %c0_i32_0 = arith.constant 0 : i32
    %c0_i32_1 = arith.constant 0 : i32
    return %arg0, %c0_i32, %c0_i32_0 : i32, i32, i32
  }
}

module attributes {stable_mosaic.version = 11 : i64} {
  func.func @_conv_mm_kernel(%arg0: i32, %arg1: i32, %arg2: memref<18x1792xbf16, #tpu.memory_space<vmem>>, %arg3: memref<1792x384xbf16, #tpu.memory_space<vmem>>, %arg4: memref<1x384xf32, #tpu.memory_space<vmem>>, %arg5: memref<18x384xf32, #tpu.memory_space<vmem>>, %arg6: memref<18x384xf32, #tpu.memory_space<vmem>>) attributes {dimension_semantics = [#tpu.dimension_semantics<parallel>, #tpu.dimension_semantics<arbitrary>], iteration_bounds = array<i64: 1, 1>, scalar_prefetch = 0 : i64, scratch_operands = 1 : i64, tpu.core_type = #tpu.core_type<tc>, window_params = [{transform_indices = @transform_0, window_bounds = array<i64: 18, 1792>}, {transform_indices = @transform_1, window_bounds = array<i64: 1792, 384>}, {pipeline_mode = #tpu.pipeline_mode<synchronous>, transform_indices = @transform_2, window_bounds = array<i64: 1, 384>}, {transform_indices = @transform_3, window_bounds = array<i64: 18, 384>}]} {
    %c0_i32 = arith.constant 0 : i32
    %0 = arith.cmpi eq, %arg1, %c0_i32 : i32
    %1 = arith.extui %0 : i1 to i32
    %c0_i32_0 = arith.constant 0 : i32
    %2 = arith.cmpi ne, %1, %c0_i32_0 : i32
    scf.if %2 {
      %cst_10 = arith.constant 0.000000e+00 : f32
      %12 = vector.broadcast %cst_10 : f32 to vector<18x384xf32>
      %c0_11 = arith.constant 0 : index
      %c0_12 = arith.constant 0 : index
      %13 = vector.load %arg6[%c0_11, %c0_12] : memref<18x384xf32, #tpu.memory_space<vmem>>, vector<18x384xf32>
      tpu.vector_store %arg6[%c0_11, %c0_12], %12 {strides = array<i32>} : memref<18x384xf32, #tpu.memory_space<vmem>>, vector<18x384xf32>,
    } else {
    }
    %c0 = arith.constant 0 : index
    %c0_1 = arith.constant 0 : index
    %3 = vector.load %arg6[%c0, %c0_1] : memref<18x384xf32, #tpu.memory_space<vmem>>, vector<18x384xf32>
    %c0_2 = arith.constant 0 : index
    %c0_3 = arith.constant 0 : index
    %4 = vector.load %arg2[%c0_2, %c0_3] : memref<18x1792xbf16, #tpu.memory_space<vmem>>, vector<18x1792xbf16>
    %c0_4 = arith.constant 0 : index
    %c0_5 = arith.constant 0 : index
    %5 = vector.load %arg3[%c0_4, %c0_5] : memref<1792x384xbf16, #tpu.memory_space<vmem>>, vector<1792x384xbf16>
    %cst = arith.constant dense<0.000000e+00> : vector<18x384xf32>
    %6 = tpu.matmul %4, %5, %cst {dimension_numbers = #tpu.dot_dimension_numbers<[1], [0], [0], [1], [0, 0, 1, 1], [], []>} : vector<18x1792xbf16>, vector<1792x384xbf16>, vector<18x384xf32> -> vector<18x384xf32>
    %7 = arith.addf %3, %6 : vector<18x384xf32>
    %c0_6 = arith.constant 0 : index
    %c0_7 = arith.constant 0 : index
    %8 = vector.load %arg6[%c0_6, %c0_7] : memref<18x384xf32, #tpu.memory_space<vmem>>, vector<18x384xf32>
    tpu.vector_store %arg6[%c0_6, %c0_7], %7 {strides = array<i32>} : memref<18x384xf32, #tpu.memory_space<vmem>>, vector<18x384xf32>,
    %c0_i32_8 = arith.constant 0 : i32
    %9 = arith.cmpi eq, %arg1, %c0_i32_8 : i32
    %10 = arith.extui %9 : i1 to i32
    %c0_i32_9 = arith.constant 0 : i32
    %11 = arith.cmpi ne, %10, %c0_i32_9 : i32
    scf.if %11 {
      %c0_10 = arith.constant 0 : index
      %c0_11 = arith.constant 0 : index
      %12 = vector.load %arg6[%c0_10, %c0_11] : memref<18x384xf32, #tpu.memory_space<vmem>>, vector<18x384xf32>
      %c0_12 = arith.constant 0 : index
      %c0_13 = arith.constant 0 : index
      %13 = vector.load %arg4[%c0_12, %c0_13] : memref<1x384xf32, #tpu.memory_space<vmem>>, vector<1x384xf32>
      %14 = vector.broadcast %13 : vector<1x384xf32> to vector<18x384xf32>
      %15 = arith.addf %12, %14 : vector<18x384xf32>
      %cst_14 = arith.constant 0.000000e+00 : f32
      %16 = vector.broadcast %cst_14 : f32 to vector<18x384xf32>
      %17 = arith.maximumf %15, %16 : vector<18x384xf32>
      %c0_15 = arith.constant 0 : index
      %c0_16 = arith.constant 0 : index
      %18 = vector.load %arg5[%c0_15, %c0_16] : memref<18x384xf32, #tpu.memory_space<vmem>>, vector<18x384xf32>
      tpu.vector_store %arg5[%c0_15, %c0_16], %17 {strides = array<i32>} : memref<18x384xf32, #tpu.memory_space<vmem>>, vector<18x384xf32>,
    } else {
    }
    return
  }
  func.func @transform_0(%arg0: i32, %arg1: i32) -> (i32, i32) {
    %c0_i32 = arith.constant 0 : i32
    return %arg0, %arg1 : i32, i32
  }
  func.func @transform_1(%arg0: i32, %arg1: i32) -> (i32, i32) {
    %c0_i32 = arith.constant 0 : i32
    %c0_i32_0 = arith.constant 0 : i32
    return %arg1, %c0_i32 : i32, i32
  }
  func.func @transform_2(%arg0: i32, %arg1: i32) -> (i32, i32) {
    %c0_i32 = arith.constant 0 : i32
    %c0_i32_0 = arith.constant 0 : i32
    %c0_i32_1 = arith.constant 0 : i32
    return %c0_i32, %c0_i32_0 : i32, i32
  }
  func.func @transform_3(%arg0: i32, %arg1: i32) -> (i32, i32) {
    %c0_i32 = arith.constant 0 : i32
    %c0_i32_0 = arith.constant 0 : i32
    return %arg0, %c0_i32 : i32, i32
  }
}

module attributes {stable_mosaic.version = 11 : i64} {
  func.func @_conv_mm_kernel(%arg0: i32, %arg1: i32, %arg2: memref<18x1792xbf16, #tpu.memory_space<vmem>>, %arg3: memref<1792x256xbf16, #tpu.memory_space<vmem>>, %arg4: memref<1x256xf32, #tpu.memory_space<vmem>>, %arg5: memref<18x256xf32, #tpu.memory_space<vmem>>, %arg6: memref<18x256xf32, #tpu.memory_space<vmem>>) attributes {dimension_semantics = [#tpu.dimension_semantics<parallel>, #tpu.dimension_semantics<arbitrary>], iteration_bounds = array<i64: 1, 2>, scalar_prefetch = 0 : i64, scratch_operands = 1 : i64, tpu.core_type = #tpu.core_type<tc>, window_params = [{transform_indices = @transform_0, window_bounds = array<i64: 18, 1792>}, {transform_indices = @transform_1, window_bounds = array<i64: 1792, 256>}, {pipeline_mode = #tpu.pipeline_mode<synchronous>, transform_indices = @transform_2, window_bounds = array<i64: 1, 256>}, {transform_indices = @transform_3, window_bounds = array<i64: 18, 256>}]} {
    %c0_i32 = arith.constant 0 : i32
    %0 = arith.cmpi eq, %arg1, %c0_i32 : i32
    %1 = arith.extui %0 : i1 to i32
    %c0_i32_0 = arith.constant 0 : i32
    %2 = arith.cmpi ne, %1, %c0_i32_0 : i32
    scf.if %2 {
      %cst_9 = arith.constant 0.000000e+00 : f32
      %12 = vector.broadcast %cst_9 : f32 to vector<18x256xf32>
      %c0_10 = arith.constant 0 : index
      %c0_11 = arith.constant 0 : index
      %13 = vector.load %arg6[%c0_10, %c0_11] : memref<18x256xf32, #tpu.memory_space<vmem>>, vector<18x256xf32>
      tpu.vector_store %arg6[%c0_10, %c0_11], %12 {strides = array<i32>} : memref<18x256xf32, #tpu.memory_space<vmem>>, vector<18x256xf32>,
    } else {
    }
    %c0 = arith.constant 0 : index
    %c0_1 = arith.constant 0 : index
    %3 = vector.load %arg6[%c0, %c0_1] : memref<18x256xf32, #tpu.memory_space<vmem>>, vector<18x256xf32>
    %c0_2 = arith.constant 0 : index
    %c0_3 = arith.constant 0 : index
    %4 = vector.load %arg2[%c0_2, %c0_3] : memref<18x1792xbf16, #tpu.memory_space<vmem>>, vector<18x1792xbf16>
    %c0_4 = arith.constant 0 : index
    %c0_5 = arith.constant 0 : index
    %5 = vector.load %arg3[%c0_4, %c0_5] : memref<1792x256xbf16, #tpu.memory_space<vmem>>, vector<1792x256xbf16>
    %cst = arith.constant dense<0.000000e+00> : vector<18x256xf32>
    %6 = tpu.matmul %4, %5, %cst {dimension_numbers = #tpu.dot_dimension_numbers<[1], [0], [0], [1], [0, 0, 1, 1], [], []>} : vector<18x1792xbf16>, vector<1792x256xbf16>, vector<18x256xf32> -> vector<18x256xf32>
    %7 = arith.addf %3, %6 : vector<18x256xf32>
    %c0_6 = arith.constant 0 : index
    %c0_7 = arith.constant 0 : index
    %8 = vector.load %arg6[%c0_6, %c0_7] : memref<18x256xf32, #tpu.memory_space<vmem>>, vector<18x256xf32>
    tpu.vector_store %arg6[%c0_6, %c0_7], %7 {strides = array<i32>} : memref<18x256xf32, #tpu.memory_space<vmem>>, vector<18x256xf32>,
    %c1_i32 = arith.constant 1 : i32
    %9 = arith.cmpi eq, %arg1, %c1_i32 : i32
    %10 = arith.extui %9 : i1 to i32
    %c0_i32_8 = arith.constant 0 : i32
    %11 = arith.cmpi ne, %10, %c0_i32_8 : i32
    scf.if %11 {
      %c0_9 = arith.constant 0 : index
      %c0_10 = arith.constant 0 : index
      %12 = vector.load %arg6[%c0_9, %c0_10] : memref<18x256xf32, #tpu.memory_space<vmem>>, vector<18x256xf32>
      %c0_11 = arith.constant 0 : index
      %c0_12 = arith.constant 0 : index
      %13 = vector.load %arg4[%c0_11, %c0_12] : memref<1x256xf32, #tpu.memory_space<vmem>>, vector<1x256xf32>
      %14 = vector.broadcast %13 : vector<1x256xf32> to vector<18x256xf32>
      %15 = arith.addf %12, %14 : vector<18x256xf32>
      %cst_13 = arith.constant 0.000000e+00 : f32
      %16 = vector.broadcast %cst_13 : f32 to vector<18x256xf32>
      %17 = arith.maximumf %15, %16 : vector<18x256xf32>
      %c0_14 = arith.constant 0 : index
      %c0_15 = arith.constant 0 : index
      %18 = vector.load %arg5[%c0_14, %c0_15] : memref<18x256xf32, #tpu.memory_space<vmem>>, vector<18x256xf32>
      tpu.vector_store %arg5[%c0_14, %c0_15], %17 {strides = array<i32>} : memref<18x256xf32, #tpu.memory_space<vmem>>, vector<18x256xf32>,
    } else {
    }
    return
  }
  func.func @transform_0(%arg0: i32, %arg1: i32) -> (i32, i32) {
    %c0_i32 = arith.constant 0 : i32
    return %arg0, %arg1 : i32, i32
  }
  func.func @transform_1(%arg0: i32, %arg1: i32) -> (i32, i32) {
    %c0_i32 = arith.constant 0 : i32
    %c0_i32_0 = arith.constant 0 : i32
    return %arg1, %c0_i32 : i32, i32
  }
  func.func @transform_2(%arg0: i32, %arg1: i32) -> (i32, i32) {
    %c0_i32 = arith.constant 0 : i32
    %c0_i32_0 = arith.constant 0 : i32
    %c0_i32_1 = arith.constant 0 : i32
    return %c0_i32, %c0_i32_0 : i32, i32
  }
  func.func @transform_3(%arg0: i32, %arg1: i32) -> (i32, i32) {
    %c0_i32 = arith.constant 0 : i32
    %c0_i32_0 = arith.constant 0 : i32
    return %arg0, %c0_i32 : i32, i32
  }
}

module attributes {stable_mosaic.version = 11 : i64} {
  func.func @_conv_mm_kernel(%arg0: i32, %arg1: i32, %arg2: memref<18x1152xbf16, #tpu.memory_space<vmem>>, %arg3: memref<1152x256xbf16, #tpu.memory_space<vmem>>, %arg4: memref<1x256xf32, #tpu.memory_space<vmem>>, %arg5: memref<18x256xf32, #tpu.memory_space<vmem>>, %arg6: memref<18x256xf32, #tpu.memory_space<vmem>>) attributes {dimension_semantics = [#tpu.dimension_semantics<parallel>, #tpu.dimension_semantics<arbitrary>], iteration_bounds = array<i64: 1, 2>, scalar_prefetch = 0 : i64, scratch_operands = 1 : i64, tpu.core_type = #tpu.core_type<tc>, window_params = [{transform_indices = @transform_0, window_bounds = array<i64: 18, 1152>}, {transform_indices = @transform_1, window_bounds = array<i64: 1152, 256>}, {pipeline_mode = #tpu.pipeline_mode<synchronous>, transform_indices = @transform_2, window_bounds = array<i64: 1, 256>}, {transform_indices = @transform_3, window_bounds = array<i64: 18, 256>}]} {
    %c0_i32 = arith.constant 0 : i32
    %0 = arith.cmpi eq, %arg1, %c0_i32 : i32
    %1 = arith.extui %0 : i1 to i32
    %c0_i32_0 = arith.constant 0 : i32
    %2 = arith.cmpi ne, %1, %c0_i32_0 : i32
    scf.if %2 {
      %cst_9 = arith.constant 0.000000e+00 : f32
      %12 = vector.broadcast %cst_9 : f32 to vector<18x256xf32>
      %c0_10 = arith.constant 0 : index
      %c0_11 = arith.constant 0 : index
      %13 = vector.load %arg6[%c0_10, %c0_11] : memref<18x256xf32, #tpu.memory_space<vmem>>, vector<18x256xf32>
      tpu.vector_store %arg6[%c0_10, %c0_11], %12 {strides = array<i32>} : memref<18x256xf32, #tpu.memory_space<vmem>>, vector<18x256xf32>,
    } else {
    }
    %c0 = arith.constant 0 : index
    %c0_1 = arith.constant 0 : index
    %3 = vector.load %arg6[%c0, %c0_1] : memref<18x256xf32, #tpu.memory_space<vmem>>, vector<18x256xf32>
    %c0_2 = arith.constant 0 : index
    %c0_3 = arith.constant 0 : index
    %4 = vector.load %arg2[%c0_2, %c0_3] : memref<18x1152xbf16, #tpu.memory_space<vmem>>, vector<18x1152xbf16>
    %c0_4 = arith.constant 0 : index
    %c0_5 = arith.constant 0 : index
    %5 = vector.load %arg3[%c0_4, %c0_5] : memref<1152x256xbf16, #tpu.memory_space<vmem>>, vector<1152x256xbf16>
    %cst = arith.constant dense<0.000000e+00> : vector<18x256xf32>
    %6 = tpu.matmul %4, %5, %cst {dimension_numbers = #tpu.dot_dimension_numbers<[1], [0], [0], [1], [0, 0, 1, 1], [], []>} : vector<18x1152xbf16>, vector<1152x256xbf16>, vector<18x256xf32> -> vector<18x256xf32>
    %7 = arith.addf %3, %6 : vector<18x256xf32>
    %c0_6 = arith.constant 0 : index
    %c0_7 = arith.constant 0 : index
    %8 = vector.load %arg6[%c0_6, %c0_7] : memref<18x256xf32, #tpu.memory_space<vmem>>, vector<18x256xf32>
    tpu.vector_store %arg6[%c0_6, %c0_7], %7 {strides = array<i32>} : memref<18x256xf32, #tpu.memory_space<vmem>>, vector<18x256xf32>,
    %c1_i32 = arith.constant 1 : i32
    %9 = arith.cmpi eq, %arg1, %c1_i32 : i32
    %10 = arith.extui %9 : i1 to i32
    %c0_i32_8 = arith.constant 0 : i32
    %11 = arith.cmpi ne, %10, %c0_i32_8 : i32
    scf.if %11 {
      %c0_9 = arith.constant 0 : index
      %c0_10 = arith.constant 0 : index
      %12 = vector.load %arg6[%c0_9, %c0_10] : memref<18x256xf32, #tpu.memory_space<vmem>>, vector<18x256xf32>
      %c0_11 = arith.constant 0 : index
      %c0_12 = arith.constant 0 : index
      %13 = vector.load %arg4[%c0_11, %c0_12] : memref<1x256xf32, #tpu.memory_space<vmem>>, vector<1x256xf32>
      %14 = vector.broadcast %13 : vector<1x256xf32> to vector<18x256xf32>
      %15 = arith.addf %12, %14 : vector<18x256xf32>
      %cst_13 = arith.constant 0.000000e+00 : f32
      %16 = vector.broadcast %cst_13 : f32 to vector<18x256xf32>
      %17 = arith.maximumf %15, %16 : vector<18x256xf32>
      %c0_14 = arith.constant 0 : index
      %c0_15 = arith.constant 0 : index
      %18 = vector.load %arg5[%c0_14, %c0_15] : memref<18x256xf32, #tpu.memory_space<vmem>>, vector<18x256xf32>
      tpu.vector_store %arg5[%c0_14, %c0_15], %17 {strides = array<i32>} : memref<18x256xf32, #tpu.memory_space<vmem>>, vector<18x256xf32>,
    } else {
    }
    return
  }
  func.func @transform_0(%arg0: i32, %arg1: i32) -> (i32, i32) {
    %c0_i32 = arith.constant 0 : i32
    return %arg0, %arg1 : i32, i32
  }
  func.func @transform_1(%arg0: i32, %arg1: i32) -> (i32, i32) {
    %c0_i32 = arith.constant 0 : i32
    %c0_i32_0 = arith.constant 0 : i32
    return %arg1, %c0_i32 : i32, i32
  }
  func.func @transform_2(%arg0: i32, %arg1: i32) -> (i32, i32) {
    %c0_i32 = arith.constant 0 : i32
    %c0_i32_0 = arith.constant 0 : i32
    %c0_i32_1 = arith.constant 0 : i32
    return %c0_i32, %c0_i32_0 : i32, i32
  }
  func.func @transform_3(%arg0: i32, %arg1: i32) -> (i32, i32) {
    %c0_i32 = arith.constant 0 : i32
    %c0_i32_0 = arith.constant 0 : i32
    return %arg0, %c0_i32 : i32, i32
  }
}

module attributes {stable_mosaic.version = 11 : i64} {
  func.func @_maxpool_kernel(%arg0: i32, %arg1: memref<9x1x1x256xf32, #tpu.memory_space<vmem>>, %arg2: memref<1x1x256xf32, #tpu.memory_space<vmem>>) attributes {dimension_semantics = [#tpu.dimension_semantics<parallel>], iteration_bounds = array<i64: 2>, scalar_prefetch = 0 : i64, scratch_operands = 0 : i64, tpu.core_type = #tpu.core_type<tc>, window_params = [{transform_indices = @transform_0, window_bounds = array<i64: 9, 1, 1, 256>}, {transform_indices = @transform_1, window_bounds = array<i64: 1, 1, 256>}]} {
    %c0 = arith.constant 0 : index
    %c0_0 = arith.constant 0 : index
    %c0_1 = arith.constant 0 : index
    %c0_2 = arith.constant 0 : index
    %0 = vector.load %arg1[%c0, %c0_0, %c0_1, %c0_2] : memref<9x1x1x256xf32, #tpu.memory_space<vmem>>, vector<9x1x1x256xf32>
    %cst = arith.constant dense<0xFF800000> : vector<1x1x256xf32>
    %1 = vector.multi_reduction <maximumf>, %0, %cst [0] : vector<9x1x1x256xf32> to vector<1x1x256xf32>
    %c0_3 = arith.constant 0 : index
    %c0_4 = arith.constant 0 : index
    %c0_5 = arith.constant 0 : index
    %2 = vector.load %arg2[%c0_3, %c0_4, %c0_5] : memref<1x1x256xf32, #tpu.memory_space<vmem>>, vector<1x1x256xf32>
    tpu.vector_store %arg2[%c0_3, %c0_4, %c0_5], %1 {strides = array<i32>} : memref<1x1x256xf32, #tpu.memory_space<vmem>>, vector<1x1x256xf32>,
    return
  }
  func.func @transform_0(%arg0: i32) -> (i32, i32, i32, i32) {
    %c0_i32 = arith.constant 0 : i32
    %c0_i32_0 = arith.constant 0 : i32
    %c0_i32_1 = arith.constant 0 : i32
    %c0_i32_2 = arith.constant 0 : i32
    return %c0_i32, %arg0, %c0_i32_0, %c0_i32_1 : i32, i32, i32, i32
  }
  func.func @transform_1(%arg0: i32) -> (i32, i32, i32) {
    %c0_i32 = arith.constant 0 : i32
    %c0_i32_0 = arith.constant 0 : i32
    %c0_i32_1 = arith.constant 0 : i32
    return %arg0, %c0_i32, %c0_i32_0 : i32, i32, i32
  }
}

</mosaic_0001>

<llo_original>
// kernel: alexnet_features.8
$region0: #{alexnet_features.8}
  #allocation0 [shape = 'u32[]', space=smem, size = 0x4, offset = 0x4, fixed_abs, tag = 'smem constant byte address 0x4 - core index']
  #allocation1 [shape = 'u32[144,128]{1,0:T(1,128)}', space=vmem, size = 0x12000, scoped, tag = 'internal scratch']
  #allocation2 [shape = 'f32[450,64]{1,0:T(8,128)}', space=vmem, size = 0x39000, scoped, tag = 'scratch operand']
  %s0 = inlined_call_operand.vmem [shape: bf16[450,384], index: 0, kind: input, shape index: {}]
  %s1 = inlined_call_operand.vmem [shape: bf16[384,64], index: 1, kind: input, shape index: {}]
  %s2 = inlined_call_operand.vmem [shape: f32[1,64], index: 2, kind: input, shape index: {}]
  %s3 = inlined_call_operand.vmem [shape: f32[450,64], index: 3, kind: output, shape index: {}]
  %s4 = sld [smem:[#allocation0]]
  $region30: #{alexnet_features.8} parent=0
    _
  %s6 = ssub.s32 1, %s4
  %s7 = scalar_select 0, %s6, %s4
  // Predicated region
  $region2: #{alexnet_features.8} parent=0 // pred_check
    _
  $region3: #{alexnet_features.8} parent=0 // pred_check_branch
    %9 = sbr.rel (0) target = $region5
  $region4: #{alexnet_features.8} parent=0 // pred_region
    _
  $region5: #{alexnet_features.8} parent=0 // pred_fallthru
    _
  // Predicated region
  $region6: #{alexnet_features.8} parent=0 // pred_check
    _
  $region7: #{alexnet_features.8} parent=0 // pred_check_branch
    %11 = sbr.rel (0) target = $region9
  $region8: #{alexnet_features.8} parent=0 // pred_region
    _
  $region9: #{alexnet_features.8} parent=0 // pred_fallthru
    _
  // Predicated region
  $region10: #{alexnet_features.8} parent=0 // pred_check
    _
  $region11: #{alexnet_features.8} parent=0 // pred_check_branch
    %13 = sbr.rel (0) target = $region13
  $region12: #{alexnet_features.8} parent=0 // pred_region
    _
  $region13: #{alexnet_features.8} parent=0 // pred_fallthru
    _
  %p15 = scmp.eq.s32.totalorder 0, 0
  // Predicated region
  $region14: #{alexnet_features.8} parent=0 // pred_check
    %p16 = pneg %p15
  $region15: #{alexnet_features.8} parent=0 // pred_check_branch
    %18 = sbr.rel (%p16) target = $region17
  $region16: #{alexnet_features.8} parent=0 // pred_region
    %vm19 = vcmask 523264
    %20 = vst.msk [vmem:[#allocation2] sm:$0xff] %vm19, 0.0
    %21 = vst.msk [vmem:[#allocation2 + $0x8] sm:$0xff] %vm19, 0.0
    %22 = vst.msk [vmem:[#allocation2 + $0x10] sm:$0xff] %vm19, 0.0
    %23 = vst.msk [vmem:[#allocation2 + $0x18] sm:$0xff] %vm19, 0.0
    %24 = vst.msk [vmem:[#allocation2 + $0x20] sm:$0xff] %vm19, 0.0
    %25 = vst.msk [vmem:[#allocation2 + $0x28] sm:$0xff] %vm19, 0.0
    %26 = vst.msk [vmem:[#allocation2 + $0x30] sm:$0xff] %vm19, 0.0
    %27 = vst.msk [vmem:[#allocation2 + $0x38] sm:$0xff] %vm19, 0.0
    %28 = vst.msk [vmem:[#allocation2 + $0x40] sm:$0xff] %vm19, 0.0
    %29 = vst.msk [vmem:[#allocation2 + $0x48] sm:$0xff] %vm19, 0.0
    %30 = vst.msk [vmem:[#allocation2 + $0x50] sm:$0xff] %vm19, 0.0
    %31 = vst.msk [vmem:[#allocation2 + $0x58] sm:$0xff] %vm19, 0.0
    %32 = vst.msk [vmem:[#allocation2 + $0x60] sm:$0xff] %vm19, 0.0
    %33 = vst.msk [vmem:[#allocation2 + $0x68] sm:$0xff] %vm19, 0.0
    %34 = vst.msk [vmem:[#allocation2 + $0x70] sm:$0xff] %vm19, 0.0
    %35 = vst.msk [vmem:[#allocation2 + $0x78] sm:$0xff] %vm19, 0.0
    %36 = vst.msk [vmem:[#allocation2 + $0x80] sm:$0xff] %vm19, 0.0
    %37 = vst.msk [vmem:[#allocation2 + $0x88] sm:$0xff] %vm19, 0.0
    %38 = vst.msk [vmem:[#allocation2 + $0x90] sm:$0xff] %vm19, 0.0
    %39 = vst.msk [vmem:[#allocation2 + $0x98] sm:$0xff] %vm19, 0.0
    %40 = vst.msk [vmem:[#allocation2 + $0xa0] sm:$0xff] %vm19, 0.0
    %41 = vst.msk [vmem:[#allocation2 + $0xa8] sm:$0xff] %vm19, 0.0
    %42 = vst.msk [vmem:[#allocation2 + $0xb0] sm:$0xff] %vm19, 0.0
    %43 = vst.msk [vmem:[#allocation2 + $0xb8] sm:$0xff] %vm19, 0.0
    %44 = vst.msk [vmem:[#allocation2 + $0xc0] sm:$0xff] %vm19, 0.0
    %45 = vst.msk [vmem:[#allocation2 + $0xc8] sm:$0xff] %vm19, 0.0
    %46 = vst.msk [vmem:[#allocation2 + $0xd0] sm:$0xff] %vm19, 0.0
    %47 = vst.msk [vmem:[#allocation2 + $0xd8] sm:$0xff] %vm19, 0.0
    %48 = vst.msk [vmem:[#allocation2 + $0xe0] sm:$0xff] %vm19, 0.0
    %49 = vst.msk [vmem:[#allocation2 + $0xe8] sm:$0xff] %vm19, 0.0
    %50 = vst.msk [vmem:[#allocation2 + $0xf0] sm:$0xff] %vm19, 0.0
    %51 = vst.msk [vmem:[#allocation2 + $0xf8] sm:$0xff] %vm19, 0.0
    %52 = vst.msk [vmem:[#allocation2 + $0x100] sm:$0xff] %vm19, 0.0
    %53 = vst.msk [vmem:[#allocation2 + $0x108] sm:$0xff] %vm19, 0.0
    %54 = vst.msk [vmem:[#allocation2 + $0x110] sm:$0xff] %vm19, 0.0
    %55 = vst.msk [vmem:[#allocation2 + $0x118] sm:$0xff] %vm19, 0.0
    %56 = vst.msk [vmem:[#allocation2 + $0x120] sm:$0xff] %vm19, 0.0
    %57 = vst.msk [vmem:[#allocation2 + $0x128] sm:$0xff] %vm19, 0.0
    %58 = vst.msk [vmem:[#allocation2 + $0x130] sm:$0xff] %vm19, 0.0
    %59 = vst.msk [vmem:[#allocation2 + $0x138] sm:$0xff] %vm19, 0.0
    %60 = vst.msk [vmem:[#allocation2 + $0x140] sm:$0xff] %vm19, 0.0
    %61 = vst.msk [vmem:[#allocation2 + $0x148] sm:$0xff] %vm19, 0.0
    %62 = vst.msk [vmem:[#allocation2 + $0x150] sm:$0xff] %vm19, 0.0
    %63 = vst.msk [vmem:[#allocation2 + $0x158] sm:$0xff] %vm19, 0.0
    %64 = vst.msk [vmem:[#allocation2 + $0x160] sm:$0xff] %vm19, 0.0
    %65 = vst.msk [vmem:[#allocation2 + $0x168] sm:$0xff] %vm19, 0.0
    %66 = vst.msk [vmem:[#allocation2 + $0x170] sm:$0xff] %vm19, 0.0
    %67 = vst.msk [vmem:[#allocation2 + $0x178] sm:$0xff] %vm19, 0.0
    %68 = vst.msk [vmem:[#allocation2 + $0x180] sm:$0xff] %vm19, 0.0
    %69 = vst.msk [vmem:[#allocation2 + $0x188] sm:$0xff] %vm19, 0.0
    %70 = vst.msk [vmem:[#allocation2 + $0x190] sm:$0xff] %vm19, 0.0
    %71 = vst.msk [vmem:[#allocation2 + $0x198] sm:$0xff] %vm19, 0.0
    %72 = vst.msk [vmem:[#allocation2 + $0x1a0] sm:$0xff] %vm19, 0.0
    %73 = vst.msk [vmem:[#allocation2 + $0x1a8] sm:$0xff] %vm19, 0.0
    %74 = vst.msk [vmem:[#allocation2 + $0x1b0] sm:$0xff] %vm19, 0.0
    %75 = vst.msk [vmem:[#allocation2 + $0x1b8] sm:$0xff] %vm19, 0.0
    %vm76 = vcmask 517120
    %77 = vst.msk [vmem:[#allocation2 + $0x1c0] sm:$0x3] %vm76, 0.0
  $region17: #{alexnet_features.8} parent=0 // pred_fallthru
    _
  %v78 = vld [vmem:[#allocation2] sm:$0xff]
  %v79 = vld [vmem:[#allocation2 + $0x8] sm:$0xff]
  %v80 = vld [vmem:[#allocation2 + $0x10] sm:$0xff]
  %v81 = vld [vmem:[#allocation2 + $0x18] sm:$0xff]
  %v82 = vld [vmem:[#allocation2 + $0x20] sm:$0xff]
  %v83 = vld [vmem:[#allocation2 + $0x28] sm:$0xff]
  %v84 = vld [vmem:[#allocation2 + $0x30] sm:$0xff]
  %v85 = vld [vmem:[#allocation2 + $0x38] sm:$0xff]
  %v86 = vld [vmem:[#allocation2 + $0x40] sm:$0xff]
  %v87 = vld [vmem:[#allocation2 + $0x48] sm:$0xff]
  %v88 = vld [vmem:[#allocation2 + $0x50] sm:$0xff]
  %v89 = vld [vmem:[#allocation2 + $0x58] sm:$0xff]
  %v90 = vld [vmem:[#allocation2 + $0x60] sm:$0xff]
  %v91 = vld [vmem:[#allocation2 + $0x68] sm:$0xff]
  %v92 = vld [vmem:[#allocation2 + $0x70] sm:$0xff]
  %v93 = vld [vmem:[#allocation2 + $0x78] sm:$0xff]
  %v94 = vld [vmem:[#allocation2 + $0x80] sm:$0xff]
  %v95 = vld [vmem:[#allocation2 + $0x88] sm:$0xff]
  %v96 = vld [vmem:[#allocation2 + $0x90] sm:$0xff]
  %v97 = vld [vmem:[#allocation2 + $0x98] sm:$0xff]
  %v98 = vld [vmem:[#allocation2 + $0xa0] sm:$0xff]
  %v99 = vld [vmem:[#allocation2 + $0xa8] sm:$0xff]
  %v100 = vld [vmem:[#allocation2 + $0xb0] sm:$0xff]
  %v101 = vld [vmem:[#allocation2 + $0xb8] sm:$0xff]
  %v102 = vld [vmem:[#allocation2 + $0xc0] sm:$0xff]
  %v103 = vld [vmem:[#allocation2 + $0xc8] sm:$0xff]
  %v104 = vld [vmem:[#allocation2 + $0xd0] sm:$0xff]
  %v105 = vld [vmem:[#allocation2 + $0xd8] sm:$0xff]
  %v106 = vld [vmem:[#allocation2 + $0xe0] sm:$0xff]
  %v107 = vld [vmem:[#allocation2 + $0xe8] sm:$0xff]
  %v108 = vld [vmem:[#allocation2 + $0xf0] sm:$0xff]
  %v109 = vld [vmem:[#allocation2 + $0xf8] sm:$0xff]
  %v110 = vld [vmem:[#allocation2 + $0x100] sm:$0xff]
  %v111 = vld [vmem:[#allocation2 + $0x108] sm:$0xff]
  %v112 = vld [vmem:[#allocation2 + $0x110] sm:$0xff]
  %v113 = vld [vmem:[#allocation2 + $0x118] sm:$0xff]
  %v114 = vld [vmem:[#allocation2 + $0x120] sm:$0xff]
  %v115 = vld [vmem:[#allocation2 + $0x128] sm:$0xff]
  %v116 = vld [vmem:[#allocation2 + $0x130] sm:$0xff]
  %v117 = vld [vmem:[#allocation2 + $0x138] sm:$0xff]
  %v118 = vld [vmem:[#allocation2 + $0x140] sm:$0xff]
  %v119 = vld [vmem:[#allocation2 + $0x148] sm:$0xff]
  %v120 = vld [vmem:[#allocation2 + $0x150] sm:$0xff]
  %v121 = vld [vmem:[#allocation2 + $0x158] sm:$0xff]
  %v122 = vld [vmem:[#allocation2 + $0x160] sm:$0xff]
  %v123 = vld [vmem:[#allocation2 + $0x168] sm:$0xff]
  %v124 = vld [vmem:[#allocation2 + $0x170] sm:$0xff]
  %v125 = vld [vmem:[#allocation2 + $0x178] sm:$0xff]
  %v126 = vld [vmem:[#allocation2 + $0x180] sm:$0xff]
  %v127 = vld [vmem:[#allocation2 + $0x188] sm:$0xff]
  %v128 = vld [vmem:[#allocation2 + $0x190] sm:$0xff]
  %v129 = vld [vmem:[#allocation2 + $0x198] sm:$0xff]
  %v130 = vld [vmem:[#allocation2 + $0x1a0] sm:$0xff]
  %v131 = vld [vmem:[#allocation2 + $0x1a8] sm:$0xff]
  %v132 = vld [vmem:[#allocation2 + $0x1b0] sm:$0xff]
  %v133 = vld [vmem:[#allocation2 + $0x1b8] sm:$0xff]
  %v134 = vld [vmem:[#allocation2 + $0x1c0] sm:$0x3]
  %v135 = vld [vmem:[%s0] sm:$0xff]
  %v136 = vld [vmem:[%s0 + $0x8] sm:$0xf]
  %v137 = vld [vmem:[%s0 + $0xc] sm:$0xff]
  %v138 = vld [vmem:[%s0 + $0x14] sm:$0xf]
  %v139 = vld [vmem:[%s0 + $0x18] sm:$0xff]
  %v140 = vld [vmem:[%s0 + $0x20] sm:$0xf]
  %v141 = vld [vmem:[%s0 + $0x24] sm:$0xff]
  %v142 = vld [vmem:[%s0 + $0x2c] sm:$0xf]
  %v143 = vld [vmem:[%s0 + $0x30] sm:$0xff]
  %v144 = vld [vmem:[%s0 + $0x38] sm:$0xf]
  %v145 = vld [vmem:[%s0 + $0x3c] sm:$0xff]
  %v146 = vld [vmem:[%s0 + $0x44] sm:$0xf]
  %v147 = vld [vmem:[%s0 + $0x48] sm:$0xff]
  %v148 = vld [vmem:[%s0 + $0x50] sm:$0xf]
  %v149 = vld [vmem:[%s0 + $0x54] sm:$0xff]
  %v150 = vld [vmem:[%s0 + $0x5c] sm:$0xf]
  %v151 = vld [vmem:[%s0 + $0x60] sm:$0xff]
  %v152 = vld [vmem:[%s0 + $0x68] sm:$0xf]
  %v153 = vld [vmem:[%s0 + $0x6c] sm:$0xff]
  %v154 = vld [vmem:[%s0 + $0x74] sm:$0xf]
  %v155 = vld [vmem:[%s0 + $0x78] sm:$0xff]
  %v156 = vld [vmem:[%s0 + $0x80] sm:$0xf]
  %v157 = vld [vmem:[%s0 + $0x84] sm:$0xff]
  %v158 = vld [vmem:[%s0 + $0x8c] sm:$0xf]
  %v159 = vld [vmem:[%s0 + $0x90] sm:$0xff]
  %v160 = vld [vmem:[%s0 + $0x98] sm:$0xf]
  %v161 = vld [vmem:[%s0 + $0x9c] sm:$0xff]
  %v162 = vld [vmem:[%s0 + $0xa4] sm:$0xf]
  %v163 = vld [vmem:[%s0 + $0xa8] sm:$0xff]
  %v164 = vld [vmem:[%s0 + $0xb0] sm:$0xf]
  %v165 = vld [vmem:[%s0 + $0xb4] sm:$0xff]
  %v166 = vld [vmem:[%s0 + $0xbc] sm:$0xf]
  %v167 = vld [vmem:[%s0 + $0xc0] sm:$0xff]
  %v168 = vld [vmem:[%s0 + $0xc8] sm:$0xf]
  %v169 = vld [vmem:[%s0 + $0xcc] sm:$0xff]
  %v170 = vld [vmem:[%s0 + $0xd4] sm:$0xf]
  %v171 = vld [vmem:[%s0 + $0xd8] sm:$0xff]
  %v172 = vld [vmem:[%s0 + $0xe0] sm:$0xf]
  %v173 = vld [vmem:[%s0 + $0xe4] sm:$0xff]
  %v174 = vld [vmem:[%s0 + $0xec] sm:$0xf]
  %v175 = vld [vmem:[%s0 + $0xf0] sm:$0xff]
  %v176 = vld [vmem:[%s0 + $0xf8] sm:$0xf]
  %v177 = vld [vmem:[%s0 + $0xfc] sm:$0xff]
  %v178 = vld [vmem:[%s0 + $0x104] sm:$0xf]
  %v179 = vld [vmem:[%s0 + $0x108] sm:$0xff]
  %v180 = vld [vmem:[%s0 + $0x110] sm:$0xf]
  %v181 = vld [vmem:[%s0 + $0x114] sm:$0xff]
  %v182 = vld [vmem:[%s0 + $0x11c] sm:$0xf]
  %v183 = vld [vmem:[%s0 + $0x120] sm:$0xff]
  %v184 = vld [vmem:[%s0 + $0x128] sm:$0xf]
  %v185 = vld [vmem:[%s0 + $0x12c] sm:$0xff]
  %v186 = vld [vmem:[%s0 + $0x134] sm:$0xf]
  %v187 = vld [vmem:[%s0 + $0x138] sm:$0xff]
  %v188 = vld [vmem:[%s0 + $0x140] sm:$0xf]
  %v189 = vld [vmem:[%s0 + $0x144] sm:$0xff]
  %v190 = vld [vmem:[%s0 + $0x14c] sm:$0xf]
  %v191 = vld [vmem:[%s0 + $0x150] sm:$0xff]
  %v192 = vld [vmem:[%s0 + $0x158] sm:$0xf]
  %v193 = vld [vmem:[%s0 + $0x15c] sm:$0xff]
  %v194 = vld [vmem:[%s0 + $0x164] sm:$0xf]
  %v195 = vld [vmem:[%s0 + $0x168] sm:$0xff]
  %v196 = vld [vmem:[%s0 + $0x170] sm:$0xf]
  %v197 = vld [vmem:[%s0 + $0x174] sm:$0xff]
  %v198 = vld [vmem:[%s0 + $0x17c] sm:$0xf]
  %v199 = vld [vmem:[%s0 + $0x180] sm:$0xff]
  %v200 = vld [vmem:[%s0 + $0x188] sm:$0xf]
  %v201 = vld [vmem:[%s0 + $0x18c] sm:$0xff]
  %v202 = vld [vmem:[%s0 + $0x194] sm:$0xf]
  %v203 = vld [vmem:[%s0 + $0x198] sm:$0xff]
  %v204 = vld [vmem:[%s0 + $0x1a0] sm:$0xf]
  %v205 = vld [vmem:[%s0 + $0x1a4] sm:$0xff]
  %v206 = vld [vmem:[%s0 + $0x1ac] sm:$0xf]
  %v207 = vld [vmem:[%s0 + $0x1b0] sm:$0xff]
  %v208 = vld [vmem:[%s0 + $0x1b8] sm:$0xf]
  %v209 = vld [vmem:[%s0 + $0x1bc] sm:$0xff]
  %v210 = vld [vmem:[%s0 + $0x1c4] sm:$0xf]
  %v211 = vld [vmem:[%s0 + $0x1c8] sm:$0xff]
  %v212 = vld [vmem:[%s0 + $0x1d0] sm:$0xf]
  %v213 = vld [vmem:[%s0 + $0x1d4] sm:$0xff]
  %v214 = vld [vmem:[%s0 + $0x1dc] sm:$0xf]
  %v215 = vld [vmem:[%s0 + $0x1e0] sm:$0xff]
  %v216 = vld [vmem:[%s0 + $0x1e8] sm:$0xf]
  %v217 = vld [vmem:[%s0 + $0x1ec] sm:$0xff]
  %v218 = vld [vmem:[%s0 + $0x1f4] sm:$0xf]
  %v219 = vld [vmem:[%s0 + $0x1f8] sm:$0xff]
  %v220 = vld [vmem:[%s0 + $0x200] sm:$0xf]
  %v221 = vld [vmem:[%s0 + $0x204] sm:$0xff]
  %v222 = vld [vmem:[%s0 + $0x20c] sm:$0xf]
  %v223 = vld [vmem:[%s0 + $0x210] sm:$0xff]
  %v224 = vld [vmem:[%s0 + $0x218] sm:$0xf]
  %v225 = vld [vmem:[%s0 + $0x21c] sm:$0xff]
  %v226 = vld [vmem:[%s0 + $0x224] sm:$0xf]
  %v227 = vld [vmem:[%s0 + $0x228] sm:$0xff]
  %v228 = vld [vmem:[%s0 + $0x230] sm:$0xf]
  %v229 = vld [vmem:[%s0 + $0x234] sm:$0xff]
  %v230 = vld [vmem:[%s0 + $0x23c] sm:$0xf]
  %v231 = vld [vmem:[%s0 + $0x240] sm:$0xff]
  %v232 = vld [vmem:[%s0 + $0x248] sm:$0xf]
  %v233 = vld [vmem:[%s0 + $0x24c] sm:$0xff]
  %v234 = vld [vmem:[%s0 + $0x254] sm:$0xf]
  %v235 = vld [vmem:[%s0 + $0x258] sm:$0xff]
  %v236 = vld [vmem:[%s0 + $0x260] sm:$0xf]
  %v237 = vld [vmem:[%s0 + $0x264] sm:$0xff]
  %v238 = vld [vmem:[%s0 + $0x26c] sm:$0xf]
  %v239 = vld [vmem:[%s0 + $0x270] sm:$0xff]
  %v240 = vld [vmem:[%s0 + $0x278] sm:$0xf]
  %v241 = vld [vmem:[%s0 + $0x27c] sm:$0xff]
  %v242 = vld [vmem:[%s0 + $0x284] sm:$0xf]
  %v243 = vld [vmem:[%s0 + $0x288] sm:$0xff]
  %v244 = vld [vmem:[%s0 + $0x290] sm:$0xf]
  %v245 = vld [vmem:[%s0 + $0x294] sm:$0xff]
  %v246 = vld [vmem:[%s0 + $0x29c] sm:$0xf]
  %v247 = vld [vmem:[%s0 + $0x2a0] sm:$0x11]
  %v248 = vld [vmem:[%s0 + $0x2a8] sm:$0x1]
  %v249 = vld [vmem:[%s1] sm:$0xf]
  %v250 = vld [vmem:[%s1 + $0x4] sm:$0xf]
  %v251 = vld [vmem:[%s1 + $0x8] sm:$0xf]
  %v252 = vld [vmem:[%s1 + $0xc] sm:$0xf]
  %v253 = vld [vmem:[%s1 + $0x10] sm:$0xf]
  %v254 = vld [vmem:[%s1 + $0x14] sm:$0xf]
  %v255 = vld [vmem:[%s1 + $0x18] sm:$0xf]
  %v256 = vld [vmem:[%s1 + $0x1c] sm:$0xf]
  %v257 = vld [vmem:[%s1 + $0x20] sm:$0xf]
  %v258 = vld [vmem:[%s1 + $0x24] sm:$0xf]
  %v259 = vld [vmem:[%s1 + $0x28] sm:$0xf]
  %v260 = vld [vmem:[%s1 + $0x2c] sm:$0xf]
  %v261 = vld [vmem:[%s1 + $0x30] sm:$0xf]
  %v262 = vld [vmem:[%s1 + $0x34] sm:$0xf]
  %v263 = vld [vmem:[%s1 + $0x38] sm:$0xf]
  %v264 = vld [vmem:[%s1 + $0x3c] sm:$0xf]
  %v265 = vld [vmem:[%s1 + $0x40] sm:$0xf]
  %v266 = vld [vmem:[%s1 + $0x44] sm:$0xf]
  %v267 = vld [vmem:[%s1 + $0x48] sm:$0xf]
  %v268 = vld [vmem:[%s1 + $0x4c] sm:$0xf]
  %v269 = vld [vmem:[%s1 + $0x50] sm:$0xf]
  %v270 = vld [vmem:[%s1 + $0x54] sm:$0xf]
  %v271 = vld [vmem:[%s1 + $0x58] sm:$0xf]
  %v272 = vld [vmem:[%s1 + $0x5c] sm:$0xf]
  %v273 = vld [vmem:[%s1 + $0x60] sm:$0xf]
  %v274 = vld [vmem:[%s1 + $0x64] sm:$0xf]
  %v275 = vld [vmem:[%s1 + $0x68] sm:$0xf]
  %v276 = vld [vmem:[%s1 + $0x6c] sm:$0xf]
  %v277 = vld [vmem:[%s1 + $0x70] sm:$0xf]
  %v278 = vld [vmem:[%s1 + $0x74] sm:$0xf]
  %v279 = vld [vmem:[%s1 + $0x78] sm:$0xf]
  %v280 = vld [vmem:[%s1 + $0x7c] sm:$0xf]
  %v281 = vld [vmem:[%s1 + $0x80] sm:$0xf]
  %v282 = vld [vmem:[%s1 + $0x84] sm:$0xf]
  %v283 = vld [vmem:[%s1 + $0x88] sm:$0xf]
  %v284 = vld [vmem:[%s1 + $0x8c] sm:$0xf]
  %v285 = vld [vmem:[%s1 + $0x90] sm:$0xf]
  %v286 = vld [vmem:[%s1 + $0x94] sm:$0xf]
  %v287 = vld [vmem:[%s1 + $0x98] sm:$0xf]
  %v288 = vld [vmem:[%s1 + $0x9c] sm:$0xf]
  %v289 = vld [vmem:[%s1 + $0xa0] sm:$0xf]
  %v290 = vld [vmem:[%s1 + $0xa4] sm:$0xf]
  %v291 = vld [vmem:[%s1 + $0xa8] sm:$0xf]
  %v292 = vld [vmem:[%s1 + $0xac] sm:$0xf]
  %v293 = vld [vmem:[%s1 + $0xb0] sm:$0xf]
  %v294 = vld [vmem:[%s1 + $0xb4] sm:$0xf]
  %v295 = vld [vmem:[%s1 + $0xb8] sm:$0xf]
  %v296 = vld [vmem:[%s1 + $0xbc] sm:$0xf]
  %v411 = vunpack.c.l.b16 %v135
  %v412 = vunpack.c.h.b16 %v135
  %v413 = vunpack.c.l.b16 %v136
  %v414 = vunpack.c.l.b16 %v137
  %v415 = vunpack.c.h.b16 %v137
  %v416 = vunpack.c.l.b16 %v138
  %v417 = vunpack.c.l.b16 %v139
  %v418 = vunpack.c.h.b16 %v139
  %v419 = vunpack.c.l.b16 %v140
  %v420 = vunpack.c.l.b16 %v141
  %v421 = vunpack.c.h.b16 %v141
  %v422 = vunpack.c.l.b16 %v142
  %v423 = vunpack.c.l.b16 %v143
  %v424 = vunpack.c.h.b16 %v143
  %v425 = vunpack.c.l.b16 %v144
  %v426 = vunpack.c.l.b16 %v145
  %v427 = vunpack.c.h.b16 %v145
  %v428 = vunpack.c.l.b16 %v146
  %v429 = vunpack.c.l.b16 %v147
  %v430 = vunpack.c.h.b16 %v147
  %v431 = vunpack.c.l.b16 %v148
  %v432 = vunpack.c.l.b16 %v149
  %v433 = vunpack.c.h.b16 %v149
  %v434 = vunpack.c.l.b16 %v150
  %v435 = vunpack.c.l.b16 %v151
  %v436 = vunpack.c.h.b16 %v151
  %v437 = vunpack.c.l.b16 %v152
  %v438 = vunpack.c.l.b16 %v153
  %v439 = vunpack.c.h.b16 %v153
  %v440 = vunpack.c.l.b16 %v154
  %v441 = vunpack.c.l.b16 %v155
  %v442 = vunpack.c.h.b16 %v155
  %v443 = vunpack.c.l.b16 %v156
  %v444 = vunpack.c.l.b16 %v157
  %v445 = vunpack.c.h.b16 %v157
  %v446 = vunpack.c.l.b16 %v158
  %v447 = vunpack.c.l.b16 %v159
  %v448 = vunpack.c.h.b16 %v159
  %v449 = vunpack.c.l.b16 %v160
  %v450 = vunpack.c.l.b16 %v161
  %v451 = vunpack.c.h.b16 %v161
  %v452 = vunpack.c.l.b16 %v162
  %v453 = vunpack.c.l.b16 %v163
  %v454 = vunpack.c.h.b16 %v163
  %v455 = vunpack.c.l.b16 %v164
  %v456 = vunpack.c.l.b16 %v165
  %v457 = vunpack.c.h.b16 %v165
  %v458 = vunpack.c.l.b16 %v166
  %v459 = vunpack.c.l.b16 %v167
  %v460 = vunpack.c.h.b16 %v167
  %v461 = vunpack.c.l.b16 %v168
  %v462 = vunpack.c.l.b16 %v169
  %v463 = vunpack.c.h.b16 %v169
  %v464 = vunpack.c.l.b16 %v170
  %v465 = vunpack.c.l.b16 %v171
  %v466 = vunpack.c.h.b16 %v171
  %v467 = vunpack.c.l.b16 %v172
  %v468 = vunpack.c.l.b16 %v173
  %v469 = vunpack.c.h.b16 %v173
  %v470 = vunpack.c.l.b16 %v174
  %v471 = vunpack.c.l.b16 %v175
  %v472 = vunpack.c.h.b16 %v175
  %v473 = vunpack.c.l.b16 %v176
  %v474 = vunpack.c.l.b16 %v177
  %v475 = vunpack.c.h.b16 %v177
  %v476 = vunpack.c.l.b16 %v178
  %v477 = vunpack.c.l.b16 %v179
  %v478 = vunpack.c.h.b16 %v179
  %v479 = vunpack.c.l.b16 %v180
  %v480 = vunpack.c.l.b16 %v181
  %v481 = vunpack.c.h.b16 %v181
  %v482 = vunpack.c.l.b16 %v182
  %v483 = vunpack.c.l.b16 %v183
  %v484 = vunpack.c.h.b16 %v183
  %v485 = vunpack.c.l.b16 %v184
  %v486 = vunpack.c.l.b16 %v185
  %v487 = vunpack.c.h.b16 %v185
  %v488 = vunpack.c.l.b16 %v186
  %v489 = vunpack.c.l.b16 %v187
  %v490 = vunpack.c.h.b16 %v187
  %v491 = vunpack.c.l.b16 %v188
  %v492 = vunpack.c.l.b16 %v189
  %v493 = vunpack.c.h.b16 %v189
  %v494 = vunpack.c.l.b16 %v190
  %v495 = vunpack.c.l.b16 %v191
  %v496 = vunpack.c.h.b16 %v191
  %v497 = vunpack.c.l.b16 %v192
  %v498 = vunpack.c.l.b16 %v193
  %v499 = vunpack.c.h.b16 %v193
  %v500 = vunpack.c.l.b16 %v194
  %v501 = vunpack.c.l.b16 %v195
  %v502 = vunpack.c.h.b16 %v195
  %v503 = vunpack.c.l.b16 %v196
  %v504 = vunpack.c.l.b16 %v197
  %v505 = vunpack.c.h.b16 %v197
  %v506 = vunpack.c.l.b16 %v198
  %v507 = vunpack.c.l.b16 %v199
  %v508 = vunpack.c.h.b16 %v199
  %v509 = vunpack.c.l.b16 %v200
  %v510 = vunpack.c.l.b16 %v201
  %v511 = vunpack.c.h.b16 %v201
  %v512 = vunpack.c.l.b16 %v202
  %v513 = vunpack.c.l.b16 %v203
  %v514 = vunpack.c.h.b16 %v203
  %v515 = vunpack.c.l.b16 %v204
  %v516 = vunpack.c.l.b16 %v205
  %v517 = vunpack.c.h.b16 %v205
  %v518 = vunpack.c.l.b16 %v206
  %v519 = vunpack.c.l.b16 %v207
  %v520 = vunpack.c.h.b16 %v207
  %v521 = vunpack.c.l.b16 %v208
  %v522 = vunpack.c.l.b16 %v209
  %v523 = vunpack.c.h.b16 %v209
  %v524 = vunpack.c.l.b16 %v210
  %v525 = vunpack.c.l.b16 %v211
  %v526 = vunpack.c.h.b16 %v211
  %v527 = vunpack.c.l.b16 %v212
  %v528 = vunpack.c.l.b16 %v213
  %v529 = vunpack.c.h.b16 %v213
  %v530 = vunpack.c.l.b16 %v214
  %v531 = vunpack.c.l.b16 %v215
  %v532 = vunpack.c.h.b16 %v215
  %v533 = vunpack.c.l.b16 %v216
  %v534 = vunpack.c.l.b16 %v217
  %v535 = vunpack.c.h.b16 %v217
  %v536 = vunpack.c.l.b16 %v218
  %v537 = vunpack.c.l.b16 %v219
  %v538 = vunpack.c.h.b16 %v219
  %v539 = vunpack.c.l.b16 %v220
  %v540 = vunpack.c.l.b16 %v221
  %v541 = vunpack.c.h.b16 %v221
  %v542 = vunpack.c.l.b16 %v222
  %v543 = vunpack.c.l.b16 %v223
  %v544 = vunpack.c.h.b16 %v223
  %v545 = vunpack.c.l.b16 %v224
  %v546 = vunpack.c.l.b16 %v225
  %v547 = vunpack.c.h.b16 %v225
  %v548 = vunpack.c.l.b16 %v226
  %v549 = vunpack.c.l.b16 %v227
  %v550 = vunpack.c.h.b16 %v227
  %v551 = vunpack.c.l.b16 %v228
  %v552 = vunpack.c.l.b16 %v229
  %v553 = vunpack.c.h.b16 %v229
  %v554 = vunpack.c.l.b16 %v230
  %v555 = vunpack.c.l.b16 %v231
  %v556 = vunpack.c.h.b16 %v231
  %v557 = vunpack.c.l.b16 %v232
  %v558 = vunpack.c.l.b16 %v233
  %v559 = vunpack.c.h.b16 %v233
  %v560 = vunpack.c.l.b16 %v234
  %v561 = vunpack.c.l.b16 %v235
  %v562 = vunpack.c.h.b16 %v235
  %v563 = vunpack.c.l.b16 %v236
  %v564 = vunpack.c.l.b16 %v237
  %v565 = vunpack.c.h.b16 %v237
  %v566 = vunpack.c.l.b16 %v238
  %v567 = vunpack.c.l.b16 %v239
  %v568 = vunpack.c.h.b16 %v239
  %v569 = vunpack.c.l.b16 %v240
  %v570 = vunpack.c.l.b16 %v241
  %v571 = vunpack.c.h.b16 %v241
  %v572 = vunpack.c.l.b16 %v242
  %v573 = vunpack.c.l.b16 %v243
  %v574 = vunpack.c.h.b16 %v243
  %v575 = vunpack.c.l.b16 %v244
  %v576 = vunpack.c.l.b16 %v245
  %v577 = vunpack.c.h.b16 %v245
  %v578 = vunpack.c.l.b16 %v246
  %v579 = vunpack.c.l.b16 %v247
  %v580 = vunpack.c.h.b16 %v247
  %v581 = vunpack.c.l.b16 %v248
  %v582 = vpack.c.b16 %v414, %v411
  %v583 = vpack.c.b16 %v415, %v412
  %v584 = vpack.c.b16 %v416, %v413
  %v585 = vpack.c.b16 %v420, %v417
  %v586 = vpack.c.b16 %v421, %v418
  %v587 = vpack.c.b16 %v422, %v419
  %v588 = vpack.c.b16 %v426, %v423
  %v589 = vpack.c.b16 %v427, %v424
  %v590 = vpack.c.b16 %v428, %v425
  %v591 = vpack.c.b16 %v432, %v429
  %v592 = vpack.c.b16 %v433, %v430
  %v593 = vpack.c.b16 %v434, %v431
  %v594 = vpack.c.b16 %v438, %v435
  %v595 = vpack.c.b16 %v439, %v436
  %v596 = vpack.c.b16 %v440, %v437
  %v597 = vpack.c.b16 %v444, %v441
  %v598 = vpack.c.b16 %v445, %v442
  %v599 = vpack.c.b16 %v446, %v443
  %v600 = vpack.c.b16 %v450, %v447
  %v601 = vpack.c.b16 %v451, %v448
  %v602 = vpack.c.b16 %v452, %v449
  %v603 = vpack.c.b16 %v456, %v453
  %v604 = vpack.c.b16 %v457, %v454
  %v605 = vpack.c.b16 %v458, %v455
  %v606 = vpack.c.b16 %v462, %v459
  %v607 = vpack.c.b16 %v463, %v460
  %v608 = vpack.c.b16 %v464, %v461
  %v609 = vpack.c.b16 %v468, %v465
  %v610 = vpack.c.b16 %v469, %v466
  %v611 = vpack.c.b16 %v470, %v467
  %v612 = vpack.c.b16 %v474, %v471
  %v613 = vpack.c.b16 %v475, %v472
  %v614 = vpack.c.b16 %v476, %v473
  %v615 = vpack.c.b16 %v480, %v477
  %v616 = vpack.c.b16 %v481, %v478
  %v617 = vpack.c.b16 %v482, %v479
  %v618 = vpack.c.b16 %v486, %v483
  %v619 = vpack.c.b16 %v487, %v484
  %v620 = vpack.c.b16 %v488, %v485
  %v621 = vpack.c.b16 %v492, %v489
  %v622 = vpack.c.b16 %v493, %v490
  %v623 = vpack.c.b16 %v494, %v491
  %v624 = vpack.c.b16 %v498, %v495
  %v625 = vpack.c.b16 %v499, %v496
  %v626 = vpack.c.b16 %v500, %v497
  %v627 = vpack.c.b16 %v504, %v501
  %v628 = vpack.c.b16 %v505, %v502
  %v629 = vpack.c.b16 %v506, %v503
  %v630 = vpack.c.b16 %v510, %v507
  %v631 = vpack.c.b16 %v511, %v508
  %v632 = vpack.c.b16 %v512, %v509
  %v633 = vpack.c.b16 %v516, %v513
  %v634 = vpack.c.b16 %v517, %v514
  %v635 = vpack.c.b16 %v518, %v515
  %v636 = vpack.c.b16 %v522, %v519
  %v637 = vpack.c.b16 %v523, %v520
  %v638 = vpack.c.b16 %v524, %v521
  %v639 = vpack.c.b16 %v528, %v525
  %v640 = vpack.c.b16 %v529, %v526
  %v641 = vpack.c.b16 %v530, %v527
  %v642 = vpack.c.b16 %v534, %v531
  %v643 = vpack.c.b16 %v535, %v532
  %v644 = vpack.c.b16 %v536, %v533
  %v645 = vpack.c.b16 %v540, %v537
  %v646 = vpack.c.b16 %v541, %v538
  %v647 = vpack.c.b16 %v542, %v539
  %v648 = vpack.c.b16 %v546, %v543
  %v649 = vpack.c.b16 %v547, %v544
  %v650 = vpack.c.b16 %v548, %v545
  %v651 = vpack.c.b16 %v552, %v549
  %v652 = vpack.c.b16 %v553, %v550
  %v653 = vpack.c.b16 %v554, %v551
  %v654 = vpack.c.b16 %v558, %v555
  %v655 = vpack.c.b16 %v559, %v556
  %v656 = vpack.c.b16 %v560, %v557
  %v657 = vpack.c.b16 %v564, %v561
  %v658 = vpack.c.b16 %v565, %v562
  %v659 = vpack.c.b16 %v566, %v563
  %v660 = vpack.c.b16 %v570, %v567
  %v661 = vpack.c.b16 %v571, %v568
  %v662 = vpack.c.b16 %v572, %v569
  %v663 = vpack.c.b16 %v576, %v573
  %v664 = vpack.c.b16 %v577, %v574
  %v665 = vpack.c.b16 %v578, %v575
  %v666 = vpack.c.b16 %v579, %v579
  %v667 = vpack.c.b16 %v580, %v580
  %v668 = vpack.c.b16 %v581, %v581
  %v804 = vunpack.c.l.b16 %v249
  %v805 = vunpack.c.l.b16 %v250
  %v806 = vunpack.c.l.b16 %v251
  %v807 = vunpack.c.l.b16 %v252
  %v808 = vunpack.c.l.b16 %v253
  %v809 = vunpack.c.l.b16 %v254
  %v810 = vunpack.c.l.b16 %v255
  %v811 = vunpack.c.l.b16 %v256
  %v812 = vunpack.c.l.b16 %v257
  %v813 = vunpack.c.l.b16 %v258
  %v814 = vunpack.c.l.b16 %v259
  %v815 = vunpack.c.l.b16 %v260
  %v816 = vunpack.c.l.b16 %v261
  %v817 = vunpack.c.l.b16 %v262
  %v818 = vunpack.c.l.b16 %v263
  %v819 = vunpack.c.l.b16 %v264
  %v820 = vunpack.c.l.b16 %v265
  %v821 = vunpack.c.l.b16 %v266
  %v822 = vunpack.c.l.b16 %v267
  %v823 = vunpack.c.l.b16 %v268
  %v824 = vunpack.c.l.b16 %v269
  %v825 = vunpack.c.l.b16 %v270
  %v826 = vunpack.c.l.b16 %v271
  %v827 = vunpack.c.l.b16 %v272
  %v828 = vunpack.c.l.b16 %v273
  %v829 = vunpack.c.l.b16 %v274
  %v830 = vunpack.c.l.b16 %v275
  %v831 = vunpack.c.l.b16 %v276
  %v832 = vunpack.c.l.b16 %v277
  %v833 = vunpack.c.l.b16 %v278
  %v834 = vunpack.c.l.b16 %v279
  %v835 = vunpack.c.l.b16 %v280
  %v836 = vunpack.c.l.b16 %v281
  %v837 = vunpack.c.l.b16 %v282
  %v838 = vunpack.c.l.b16 %v283
  %v839 = vunpack.c.l.b16 %v284
  %v840 = vunpack.c.l.b16 %v285
  %v841 = vunpack.c.l.b16 %v286
  %v842 = vunpack.c.l.b16 %v287
  %v843 = vunpack.c.l.b16 %v288
  %v844 = vunpack.c.l.b16 %v289
  %v845 = vunpack.c.l.b16 %v290
  %v846 = vunpack.c.l.b16 %v291
  %v847 = vunpack.c.l.b16 %v292
  %v848 = vunpack.c.l.b16 %v293
  %v849 = vunpack.c.l.b16 %v294
  %v850 = vunpack.c.l.b16 %v295
  %v851 = vunpack.c.l.b16 %v296
  %v852 = vpack.c.b16 %v805, %v804
  %v853 = vpack.c.b16 %v807, %v806
  %v854 = vpack.c.b16 %v809, %v808
  %v855 = vpack.c.b16 %v811, %v810
  %v856 = vpack.c.b16 %v813, %v812
  %v857 = vpack.c.b16 %v815, %v814
  %v858 = vpack.c.b16 %v817, %v816
  %v859 = vpack.c.b16 %v819, %v818
  %v860 = vpack.c.b16 %v821, %v820
  %v861 = vpack.c.b16 %v823, %v822
  %v862 = vpack.c.b16 %v825, %v824
  %v863 = vpack.c.b16 %v827, %v826
  %v864 = vpack.c.b16 %v829, %v828
  %v865 = vpack.c.b16 %v831, %v830
  %v866 = vpack.c.b16 %v833, %v832
  %v867 = vpack.c.b16 %v835, %v834
  %v868 = vpack.c.b16 %v837, %v836
  %v869 = vpack.c.b16 %v839, %v838
  %v870 = vpack.c.b16 %v841, %v840
  %v871 = vpack.c.b16 %v843, %v842
  %v872 = vpack.c.b16 %v845, %v844
  %v873 = vpack.c.b16 %v847, %v846
  %v874 = vpack.c.b16 %v849, %v848
  %v875 = vpack.c.b16 %v851, %v850
  %900 = vmatprep.subr.bf16.mxu0 0
  %901 = vmatpush1.bf16.msra.mxu0 %v852
  %902 = vmatprep.subr.bf16.mxu0 0
  %903 = vmatpush1.bf16.msra.mxu0 %v853
  %904 = vmatprep.subr.bf16.mxu0 0
  %905 = vmatpush1.bf16.msra.mxu0 %v854
  %906 = vmatprep.subr.bf16.mxu0 0
  %907 = vmatpush1.bf16.msra.mxu0 %v855
  %908 = vmatprep.subr.bf16.mxu0 0
  %909 = vmatpush1.bf16.msra.mxu0 %v856
  %910 = vmatprep.subr.bf16.mxu0 0
  %911 = vmatpush1.bf16.msra.mxu0 %v857
  %912 = vmatprep.subr.bf16.mxu0 0
  %913 = vmatpush1.bf16.msra.mxu0 %v858
  %914 = vmatprep.subr.bf16.mxu0 0
  %915 = vmatpush1.bf16.msra.mxu0 %v859
  %916 = vmatprep.subr.bf16.mxu0 0
  %917 = vmatpush1.bf16.msra.mxu0 %v860
  %918 = vmatprep.subr.bf16.mxu0 0
  %919 = vmatpush1.bf16.msra.mxu0 %v861
  %920 = vmatprep.subr.bf16.mxu0 0
  %921 = vmatpush1.bf16.msra.mxu0 %v862
  %922 = vmatprep.subr.bf16.mxu0 0
  %923 = vmatpush1.bf16.msra.mxu0 %v863
  %924 = vmatprep.subr.bf16.mxu0 0
  %925 = vmatpush1.bf16.msra.mxu0 %v864
  %926 = vmatprep.subr.bf16.mxu0 0
  %927 = vmatpush1.bf16.msra.mxu0 %v865
  %928 = vmatprep.subr.bf16.mxu0 0
  %929 = vmatpush1.bf16.msra.mxu0 %v866
  %930 = vmatprep.subr.bf16.mxu0 0
  %931 = vmatpush1.bf16.msra.mxu0 %v867
  %932 = vmatprep.mubr.bf16.mxu0 %v583
  %933 = vmatmul.mubr.bf16.gmra.mrb[0].mxu0 %v582
  %v934 = vpop.f32.mrb[0].mxu0
  %v935 = vadd.f32 0.0, %v934
  %v936 = vpop.f32.mrb[0].mxu0
  %v937 = vpop.f32.mrb[0].mxu0
  %v938 = vadd.f32 0.0, %v937
  %v939 = vpop.f32.mrb[0].mxu0
  %940 = vmatprep.mubr.bf16.mxu0 %v586
  %941 = vmatmul.mubr.bf16.gmra.mrb[0].mxu0 %v585
  %v942 = vpop.f32.mrb[0].mxu0
  %v943 = vadd.f32 0.0, %v942
  %v944 = vpop.f32.mrb[0].mxu0
  %v945 = vpop.f32.mrb[0].mxu0
  %v946 = vadd.f32 0.0, %v945
  %v947 = vpop.f32.mrb[0].mxu0
  %948 = vmatprep.mubr.bf16.mxu0 %v589
  %949 = vmatmul.mubr.bf16.gmra.mrb[0].mxu0 %v588
  %v950 = vpop.f32.mrb[0].mxu0
  %v951 = vadd.f32 0.0, %v950
  %v952 = vpop.f32.mrb[0].mxu0
  %v953 = vpop.f32.mrb[0].mxu0
  %v954 = vadd.f32 0.0, %v953
  %v955 = vpop.f32.mrb[0].mxu0
  %956 = vmatprep.mubr.bf16.mxu0 %v592
  %957 = vmatmul.mubr.bf16.gmra.mrb[0].mxu0 %v591
  %v958 = vpop.f32.mrb[0].mxu0
  %v959 = vadd.f32 0.0, %v958
  %v960 = vpop.f32.mrb[0].mxu0
  %v961 = vpop.f32.mrb[0].mxu0
  %v962 = vadd.f32 0.0, %v961
  %v963 = vpop.f32.mrb[0].mxu0
  %964 = vmatprep.mubr.bf16.mxu0 %v595
  %965 = vmatmul.mubr.bf16.gmra.mrb[0].mxu0 %v594
  %v966 = vpop.f32.mrb[0].mxu0
  %v967 = vadd.f32 0.0, %v966
  %v968 = vpop.f32.mrb[0].mxu0
  %v969 = vpop.f32.mrb[0].mxu0
  %v970 = vadd.f32 0.0, %v969
  %v971 = vpop.f32.mrb[0].mxu0
  %972 = vmatprep.mubr.bf16.mxu0 %v598
  %973 = vmatmul.mubr.bf16.gmra.mrb[0].mxu0 %v597
  %v974 = vpop.f32.mrb[0].mxu0
  %v975 = vadd.f32 0.0, %v974
  %v976 = vpop.f32.mrb[0].mxu0
  %v977 = vpop.f32.mrb[0].mxu0
  %v978 = vadd.f32 0.0, %v977
  %v979 = vpop.f32.mrb[0].mxu0
  %980 = vmatprep.mubr.bf16.mxu0 %v601
  %981 = vmatmul.mubr.bf16.gmra.mrb[0].mxu0 %v600
  %v982 = vpop.f32.mrb[0].mxu0
  %v983 = vadd.f32 0.0, %v982
  %v984 = vpop.f32.mrb[0].mxu0
  %v985 = vpop.f32.mrb[0].mxu0
  %v986 = vadd.f32 0.0, %v985
  %v987 = vpop.f32.mrb[0].mxu0
  %988 = vmatprep.mubr.bf16.mxu0 %v604
  %989 = vmatmul.mubr.bf16.gmra.mrb[0].mxu0 %v603
  %v990 = vpop.f32.mrb[0].mxu0
  %v991 = vadd.f32 0.0, %v990
  %v992 = vpop.f32.mrb[0].mxu0
  %v993 = vpop.f32.mrb[0].mxu0
  %v994 = vadd.f32 0.0, %v993
  %v995 = vpop.f32.mrb[0].mxu0
  %996 = vmatprep.mubr.bf16.mxu0 %v607
  %997 = vmatmul.mubr.bf16.gmra.mrb[0].mxu0 %v606
  %v998 = vpop.f32.mrb[0].mxu0
  %v999 = vadd.f32 0.0, %v998
  %v1000 = vpop.f32.mrb[0].mxu0
  %v1001 = vpop.f32.mrb[0].mxu0
  %v1002 = vadd.f32 0.0, %v1001
  %v1003 = vpop.f32.mrb[0].mxu0
  %1004 = vmatprep.mubr.bf16.mxu0 %v610
  %1005 = vmatmul.mubr.bf16.gmra.mrb[0].mxu0 %v609
  %v1006 = vpop.f32.mrb[0].mxu0
  %v1007 = vadd.f32 0.0, %v1006
  %v1008 = vpop.f32.mrb[0].mxu0
  %v1009 = vpop.f32.mrb[0].mxu0
  %v1010 = vadd.f32 0.0, %v1009
  %v1011 = vpop.f32.mrb[0].mxu0
  %1012 = vmatprep.mubr.bf16.mxu0 %v613
  %1013 = vmatmul.mubr.bf16.gmra.mrb[0].mxu0 %v612
  %v1014 = vpop.f32.mrb[0].mxu0
  %v1015 = vadd.f32 0.0, %v1014
  %v1016 = vpop.f32.mrb[0].mxu0
  %v1017 = vpop.f32.mrb[0].mxu0
  %v1018 = vadd.f32 0.0, %v1017
  %v1019 = vpop.f32.mrb[0].mxu0
  %1020 = vmatprep.mubr.bf16.mxu0 %v616
  %1021 = vmatmul.mubr.bf16.gmra.mrb[0].mxu0 %v615
  %v1022 = vpop.f32.mrb[0].mxu0
  %v1023 = vadd.f32 0.0, %v1022
  %v1024 = vpop.f32.mrb[0].mxu0
  %v1025 = vpop.f32.mrb[0].mxu0
  %v1026 = vadd.f32 0.0, %v1025
  %v1027 = vpop.f32.mrb[0].mxu0
  %1028 = vmatprep.mubr.bf16.mxu0 %v619
  %1029 = vmatmul.mubr.bf16.gmra.mrb[0].mxu0 %v618
  %v1030 = vpop.f32.mrb[0].mxu0
  %v1031 = vadd.f32 0.0, %v1030
  %v1032 = vpop.f32.mrb[0].mxu0
  %v1033 = vpop.f32.mrb[0].mxu0
  %v1034 = vadd.f32 0.0, %v1033
  %v1035 = vpop.f32.mrb[0].mxu0
  %1036 = vmatprep.mubr.bf16.mxu0 %v622
  %1037 = vmatmul.mubr.bf16.gmra.mrb[0].mxu0 %v621
  %v1038 = vpop.f32.mrb[0].mxu0
  %v1039 = vadd.f32 0.0, %v1038
  %v1040 = vpop.f32.mrb[0].mxu0
  %v1041 = vpop.f32.mrb[0].mxu0
  %v1042 = vadd.f32 0.0, %v1041
  %v1043 = vpop.f32.mrb[0].mxu0
  %1044 = vmatprep.mubr.bf16.mxu0 %v625
  %1045 = vmatmul.mubr.bf16.gmra.mrb[0].mxu0 %v624
  %v1046 = vpop.f32.mrb[0].mxu0
  %v1047 = vadd.f32 0.0, %v1046
  %v1048 = vpop.f32.mrb[0].mxu0
  %v1049 = vpop.f32.mrb[0].mxu0
  %v1050 = vadd.f32 0.0, %v1049
  %v1051 = vpop.f32.mrb[0].mxu0
  %1052 = vmatprep.mubr.bf16.mxu0 %v628
  %1053 = vmatmul.mubr.bf16.gmra.mrb[0].mxu0 %v627
  %v1054 = vpop.f32.mrb[0].mxu0
  %v1055 = vadd.f32 0.0, %v1054
  %v1056 = vpop.f32.mrb[0].mxu0
  %v1057 = vpop.f32.mrb[0].mxu0
  %v1058 = vadd.f32 0.0, %v1057
  %v1059 = vpop.f32.mrb[0].mxu0
  %1060 = vmatprep.mubr.bf16.mxu0 %v631
  %1061 = vmatmul.mubr.bf16.gmra.mrb[0].mxu0 %v630
  %v1062 = vpop.f32.mrb[0].mxu0
  %v1063 = vadd.f32 0.0, %v1062
  %v1064 = vpop.f32.mrb[0].mxu0
  %v1065 = vpop.f32.mrb[0].mxu0
  %v1066 = vadd.f32 0.0, %v1065
  %v1067 = vpop.f32.mrb[0].mxu0
  %1068 = vmatprep.mubr.bf16.mxu0 %v634
  %1069 = vmatmul.mubr.bf16.gmra.mrb[0].mxu0 %v633
  %v1070 = vpop.f32.mrb[0].mxu0
  %v1071 = vadd.f32 0.0, %v1070
  %v1072 = vpop.f32.mrb[0].mxu0
  %v1073 = vpop.f32.mrb[0].mxu0
  %v1074 = vadd.f32 0.0, %v1073
  %v1075 = vpop.f32.mrb[0].mxu0
  %1076 = vmatprep.mubr.bf16.mxu0 %v637
  %1077 = vmatmul.mubr.bf16.gmra.mrb[0].mxu0 %v636
  %v1078 = vpop.f32.mrb[0].mxu0
  %v1079 = vadd.f32 0.0, %v1078
  %v1080 = vpop.f32.mrb[0].mxu0
  %v1081 = vpop.f32.mrb[0].mxu0
  %v1082 = vadd.f32 0.0, %v1081
  %v1083 = vpop.f32.mrb[0].mxu0
  %1084 = vmatprep.mubr.bf16.mxu0 %v640
  %1085 = vmatmul.mubr.bf16.gmra.mrb[0].mxu0 %v639
  %v1086 = vpop.f32.mrb[0].mxu0
  %v1087 = vadd.f32 0.0, %v1086
  %v1088 = vpop.f32.mrb[0].mxu0
  %v1089 = vpop.f32.mrb[0].mxu0
  %v1090 = vadd.f32 0.0, %v1089
  %v1091 = vpop.f32.mrb[0].mxu0
  %1092 = vmatprep.mubr.bf16.mxu0 %v643
  %1093 = vmatmul.mubr.bf16.gmra.mrb[0].mxu0 %v642
  %v1094 = vpop.f32.mrb[0].mxu0
  %v1095 = vadd.f32 0.0, %v1094
  %v1096 = vpop.f32.mrb[0].mxu0
  %v1097 = vpop.f32.mrb[0].mxu0
  %v1098 = vadd.f32 0.0, %v1097
  %v1099 = vpop.f32.mrb[0].mxu0
  %1100 = vmatprep.mubr.bf16.mxu0 %v646
  %1101 = vmatmul.mubr.bf16.gmra.mrb[0].mxu0 %v645
  %v1102 = vpop.f32.mrb[0].mxu0
  %v1103 = vadd.f32 0.0, %v1102
  %v1104 = vpop.f32.mrb[0].mxu0
  %v1105 = vpop.f32.mrb[0].mxu0
  %v1106 = vadd.f32 0.0, %v1105
  %v1107 = vpop.f32.mrb[0].mxu0
  %1108 = vmatprep.mubr.bf16.mxu0 %v649
  %1109 = vmatmul.mubr.bf16.gmra.mrb[0].mxu0 %v648
  %v1110 = vpop.f32.mrb[0].mxu0
  %v1111 = vadd.f32 0.0, %v1110
  %v1112 = vpop.f32.mrb[0].mxu0
  %v1113 = vpop.f32.mrb[0].mxu0
  %v1114 = vadd.f32 0.0, %v1113
  %v1115 = vpop.f32.mrb[0].mxu0
  %1116 = vmatprep.mubr.bf16.mxu0 %v652
  %1117 = vmatmul.mubr.bf16.gmra.mrb[0].mxu0 %v651
  %v1118 = vpop.f32.mrb[0].mxu0
  %v1119 = vadd.f32 0.0, %v1118
  %v1120 = vpop.f32.mrb[0].mxu0
  %v1121 = vpop.f32.mrb[0].mxu0
  %v1122 = vadd.f32 0.0, %v1121
  %v1123 = vpop.f32.mrb[0].mxu0
  %1124 = vmatprep.mubr.bf16.mxu0 %v655
  %1125 = vmatmul.mubr.bf16.gmra.mrb[0].mxu0 %v654
  %v1126 = vpop.f32.mrb[0].mxu0
  %v1127 = vadd.f32 0.0, %v1126
  %v1128 = vpop.f32.mrb[0].mxu0
  %v1129 = vpop.f32.mrb[0].mxu0
  %v1130 = vadd.f32 0.0, %v1129
  %v1131 = vpop.f32.mrb[0].mxu0
  %1132 = vmatprep.mubr.bf16.mxu0 %v658
  %1133 = vmatmul.mubr.bf16.gmra.mrb[0].mxu0 %v657
  %v1134 = vpop.f32.mrb[0].mxu0
  %v1135 = vadd.f32 0.0, %v1134
  %v1136 = vpop.f32.mrb[0].mxu0
  %v1137 = vpop.f32.mrb[0].mxu0
  %v1138 = vadd.f32 0.0, %v1137
  %v1139 = vpop.f32.mrb[0].mxu0
  %1140 = vmatprep.mubr.bf16.mxu0 %v661
  %1141 = vmatmul.mubr.bf16.gmra.mrb[0].mxu0 %v660
  %v1142 = vpop.f32.mrb[0].mxu0
  %v1143 = vadd.f32 0.0, %v1142
  %v1144 = vpop.f32.mrb[0].mxu0
  %v1145 = vpop.f32.mrb[0].mxu0
  %v1146 = vadd.f32 0.0, %v1145
  %v1147 = vpop.f32.mrb[0].mxu0
  %1148 = vmatprep.mubr.bf16.mxu0 %v664
  %1149 = vmatmul.mubr.bf16.gmra.mrb[0].mxu0 %v663
  %v1150 = vpop.f32.mrb[0].mxu0
  %v1151 = vadd.f32 0.0, %v1150
  %v1152 = vpop.f32.mrb[0].mxu0
  %v1153 = vpop.f32.mrb[0].mxu0
  %v1154 = vadd.f32 0.0, %v1153
  %v1155 = vpop.f32.mrb[0].mxu0
  %1156 = vmatprep.mubr.bf16.mxu0 %v667
  %1157 = vmatmul.mubr.bf16.gmra.mrb[0].mxu0 %v666
  %v1158 = vpop.f32.mrb[0].mxu0
  %v1159 = vadd.f32 0.0, %v1158
  %v1160 = vpop.f32.mrb[0].mxu0
  %v1161 = vpop.f32.mrb[0].mxu0
  %v1162 = vpop.f32.mrb[0].mxu0
  %1163 = vdwg.mxu0
  %1164 = vmatprep.subr.bf16.mxu0 0
  %1165 = vmatpush1.bf16.msra.mxu0 %v868
  %1166 = vmatprep.subr.bf16.mxu0 0
  %1167 = vmatpush1.bf16.msra.mxu0 %v869
  %1168 = vmatprep.subr.bf16.mxu0 0
  %1169 = vmatpush1.bf16.msra.mxu0 %v870
  %1170 = vmatprep.subr.bf16.mxu0 0
  %1171 = vmatpush1.bf16.msra.mxu0 %v871
  %1172 = vmatprep.subr.bf16.mxu0 0
  %1173 = vmatpush1.bf16.msra.mxu0 %v872
  %1174 = vmatprep.subr.bf16.mxu0 0
  %1175 = vmatpush1.bf16.msra.mxu0 %v873
  %1176 = vmatprep.subr.bf16.mxu0 0
  %1177 = vmatpush1.bf16.msra.mxu0 %v874
  %1178 = vmatprep.subr.bf16.mxu0 0
  %1179 = vmatpush1.bf16.msra.mxu0 %v875
  %1180 = vmatprep.subr.bf16.mxu0 0
  %1181 = vmatpush1.bf16.msra.mxu0 0
  %1182 = vmatprep.subr.bf16.mxu0 0
  %1183 = vmatpush1.bf16.msra.mxu0 0
  %1184 = vmatprep.subr.bf16.mxu0 0
  %1185 = vmatpush1.bf16.msra.mxu0 0
  %1186 = vmatprep.subr.bf16.mxu0 0
  %1187 = vmatpush1.bf16.msra.mxu0 0
  %1188 = vmatprep.subr.bf16.mxu0 0
  %1189 = vmatpush1.bf16.msra.mxu0 0
  %1190 = vmatprep.subr.bf16.mxu0 0
  %1191 = vmatpush1.bf16.msra.mxu0 0
  %1192 = vmatprep.subr.bf16.mxu0 0
  %1193 = vmatpush1.bf16.msra.mxu0 0
  %1194 = vmatprep.subr.bf16.mxu0 0
  %1195 = vmatpush1.bf16.msra.mxu0 0
  %1196 = vmatprep.mubr.bf16.mxu0 0
  %1197 = vmatmul.mubr.bf16.gmra.mrb[0].mxu0 %v584
  %v1198 = vpop.f32.mrb[0].mxu0
  %v1199 = vadd.f32 %v935, %v1198
  %v1200 = vpop.f32.mrb[0].mxu0
  %v1201 = vpop.f32.mrb[0].mxu0
  %v1202 = vadd.f32 %v938, %v1201
  %v1203 = vpop.f32.mrb[0].mxu0
  %1204 = vmatprep.mubr.bf16.mxu0 0
  %1205 = vmatmul.mubr.bf16.gmra.mrb[0].mxu0 %v587
  %v1206 = vpop.f32.mrb[0].mxu0
  %v1207 = vadd.f32 %v943, %v1206
  %v1208 = vpop.f32.mrb[0].mxu0
  %v1209 = vpop.f32.mrb[0].mxu0
  %v1210 = vadd.f32 %v946, %v1209
  %v1211 = vpop.f32.mrb[0].mxu0
  %1212 = vmatprep.mubr.bf16.mxu0 0
  %1213 = vmatmul.mubr.bf16.gmra.mrb[0].mxu0 %v590
  %v1214 = vpop.f32.mrb[0].mxu0
  %v1215 = vadd.f32 %v951, %v1214
  %v1216 = vpop.f32.mrb[0].mxu0
  %v1217 = vpop.f32.mrb[0].mxu0
  %v1218 = vadd.f32 %v954, %v1217
  %v1219 = vpop.f32.mrb[0].mxu0
  %1220 = vmatprep.mubr.bf16.mxu0 0
  %1221 = vmatmul.mubr.bf16.gmra.mrb[0].mxu0 %v593
  %v1222 = vpop.f32.mrb[0].mxu0
  %v1223 = vadd.f32 %v959, %v1222
  %v1224 = vpop.f32.mrb[0].mxu0
  %v1225 = vpop.f32.mrb[0].mxu0
  %v1226 = vadd.f32 %v962, %v1225
  %v1227 = vpop.f32.mrb[0].mxu0
  %1228 = vmatprep.mubr.bf16.mxu0 0
  %1229 = vmatmul.mubr.bf16.gmra.mrb[0].mxu0 %v596
  %v1230 = vpop.f32.mrb[0].mxu0
  %v1231 = vadd.f32 %v967, %v1230
  %v1232 = vpop.f32.mrb[0].mxu0
  %v1233 = vpop.f32.mrb[0].mxu0
  %v1234 = vadd.f32 %v970, %v1233
  %v1235 = vpop.f32.mrb[0].mxu0
  %1236 = vmatprep.mubr.bf16.mxu0 0
  %1237 = vmatmul.mubr.bf16.gmra.mrb[0].mxu0 %v599
  %v1238 = vpop.f32.mrb[0].mxu0
  %v1239 = vadd.f32 %v975, %v1238
  %v1240 = vpop.f32.mrb[0].mxu0
  %v1241 = vpop.f32.mrb[0].mxu0
  %v1242 = vadd.f32 %v978, %v1241
  %v1243 = vpop.f32.mrb[0].mxu0
  %1244 = vmatprep.mubr.bf16.mxu0 0
  %1245 = vmatmul.mubr.bf16.gmra.mrb[0].mxu0 %v602
  %v1246 = vpop.f32.mrb[0].mxu0
  %v1247 = vadd.f32 %v983, %v1246
  %v1248 = vpop.f32.mrb[0].mxu0
  %v1249 = vpop.f32.mrb[0].mxu0
  %v1250 = vadd.f32 %v986, %v1249
  %v1251 = vpop.f32.mrb[0].mxu0
  %1252 = vmatprep.mubr.bf16.mxu0 0
  %1253 = vmatmul.mubr.bf16.gmra.mrb[0].mxu0 %v605
  %v1254 = vpop.f32.mrb[0].mxu0
  %v1255 = vadd.f32 %v991, %v1254
  %v1256 = vpop.f32.mrb[0].mxu0
  %v1257 = vpop.f32.mrb[0].mxu0
  %v1258 = vadd.f32 %v994, %v1257
  %v1259 = vpop.f32.mrb[0].mxu0
  %1260 = vmatprep.mubr.bf16.mxu0 0
  %1261 = vmatmul.mubr.bf16.gmra.mrb[0].mxu0 %v608
  %v1262 = vpop.f32.mrb[0].mxu0
  %v1263 = vadd.f32 %v999, %v1262
  %v1264 = vpop.f32.mrb[0].mxu0
  %v1265 = vpop.f32.mrb[0].mxu0
  %v1266 = vadd.f32 %v1002, %v1265
  %v1267 = vpop.f32.mrb[0].mxu0
  %1268 = vmatprep.mubr.bf16.mxu0 0
  %1269 = vmatmul.mubr.bf16.gmra.mrb[0].mxu0 %v611
  %v1270 = vpop.f32.mrb[0].mxu0
  %v1271 = vadd.f32 %v1007, %v1270
  %v1272 = vpop.f32.mrb[0].mxu0
  %v1273 = vpop.f32.mrb[0].mxu0
  %v1274 = vadd.f32 %v1010, %v1273
  %v1275 = vpop.f32.mrb[0].mxu0
  %1276 = vmatprep.mubr.bf16.mxu0 0
  %1277 = vmatmul.mubr.bf16.gmra.mrb[0].mxu0 %v614
  %v1278 = vpop.f32.mrb[0].mxu0
  %v1279 = vadd.f32 %v1015, %v1278
  %v1280 = vpop.f32.mrb[0].mxu0
  %v1281 = vpop.f32.mrb[0].mxu0
  %v1282 = vadd.f32 %v1018, %v1281
  %v1283 = vpop.f32.mrb[0].mxu0
  %1284 = vmatprep.mubr.bf16.mxu0 0
  %1285 = vmatmul.mubr.bf16.gmra.mrb[0].mxu0 %v617
  %v1286 = vpop.f32.mrb[0].mxu0
  %v1287 = vadd.f32 %v1023, %v1286
  %v1288 = vpop.f32.mrb[0].mxu0
  %v1289 = vpop.f32.mrb[0].mxu0
  %v1290 = vadd.f32 %v1026, %v1289
  %v1291 = vpop.f32.mrb[0].mxu0
  %1292 = vmatprep.mubr.bf16.mxu0 0
  %1293 = vmatmul.mubr.bf16.gmra.mrb[0].mxu0 %v620
  %v1294 = vpop.f32.mrb[0].mxu0
  %v1295 = vadd.f32 %v1031, %v1294
  %v1296 = vpop.f32.mrb[0].mxu0
  %v1297 = vpop.f32.mrb[0].mxu0
  %v1298 = vadd.f32 %v1034, %v1297
  %v1299 = vpop.f32.mrb[0].mxu0
  %1300 = vmatprep.mubr.bf16.mxu0 0
  %1301 = vmatmul.mubr.bf16.gmra.mrb[0].mxu0 %v623
  %v1302 = vpop.f32.mrb[0].mxu0
  %v1303 = vadd.f32 %v1039, %v1302
  %v1304 = vpop.f32.mrb[0].mxu0
  %v1305 = vpop.f32.mrb[0].mxu0
  %v1306 = vadd.f32 %v1042, %v1305
  %v1307 = vpop.f32.mrb[0].mxu0
  %1308 = vmatprep.mubr.bf16.mxu0 0
  %1309 = vmatmul.mubr.bf16.gmra.mrb[0].mxu0 %v626
  %v1310 = vpop.f32.mrb[0].mxu0
  %v1311 = vadd.f32 %v1047, %v1310
  %v1312 = vpop.f32.mrb[0].mxu0
  %v1313 = vpop.f32.mrb[0].mxu0
  %v1314 = vadd.f32 %v1050, %v1313
  %v1315 = vpop.f32.mrb[0].mxu0
  %1316 = vmatprep.mubr.bf16.mxu0 0
  %1317 = vmatmul.mubr.bf16.gmra.mrb[0].mxu0 %v629
  %v1318 = vpop.f32.mrb[0].mxu0
  %v1319 = vadd.f32 %v1055, %v1318
  %v1320 = vpop.f32.mrb[0].mxu0
  %v1321 = vpop.f32.mrb[0].mxu0
  %v1322 = vadd.f32 %v1058, %v1321
  %v1323 = vpop.f32.mrb[0].mxu0
  %1324 = vmatprep.mubr.bf16.mxu0 0
  %1325 = vmatmul.mubr.bf16.gmra.mrb[0].mxu0 %v632
  %v1326 = vpop.f32.mrb[0].mxu0
  %v1327 = vadd.f32 %v1063, %v1326
  %v1328 = vpop.f32.mrb[0].mxu0
  %v1329 = vpop.f32.mrb[0].mxu0
  %v1330 = vadd.f32 %v1066, %v1329
  %v1331 = vpop.f32.mrb[0].mxu0
  %1332 = vmatprep.mubr.bf16.mxu0 0
  %1333 = vmatmul.mubr.bf16.gmra.mrb[0].mxu0 %v635
  %v1334 = vpop.f32.mrb[0].mxu0
  %v1335 = vadd.f32 %v1071, %v1334
  %v1336 = vpop.f32.mrb[0].mxu0
  %v1337 = vpop.f32.mrb[0].mxu0
  %v1338 = vadd.f32 %v1074, %v1337
  %v1339 = vpop.f32.mrb[0].mxu0
  %1340 = vmatprep.mubr.bf16.mxu0 0
  %1341 = vmatmul.mubr.bf16.gmra.mrb[0].mxu0 %v638
  %v1342 = vpop.f32.mrb[0].mxu0
  %v1343 = vadd.f32 %v1079, %v1342
  %v1344 = vpop.f32.mrb[0].mxu0
  %v1345 = vpop.f32.mrb[0].mxu0
  %v1346 = vadd.f32 %v1082, %v1345
  %v1347 = vpop.f32.mrb[0].mxu0
  %1348 = vmatprep.mubr.bf16.mxu0 0
  %1349 = vmatmul.mubr.bf16.gmra.mrb[0].mxu0 %v641
  %v1350 = vpop.f32.mrb[0].mxu0
  %v1351 = vadd.f32 %v1087, %v1350
  %v1352 = vpop.f32.mrb[0].mxu0
  %v1353 = vpop.f32.mrb[0].mxu0
  %v1354 = vadd.f32 %v1090, %v1353
  %v1355 = vpop.f32.mrb[0].mxu0
  %1356 = vmatprep.mubr.bf16.mxu0 0
  %1357 = vmatmul.mubr.bf16.gmra.mrb[0].mxu0 %v644
  %v1358 = vpop.f32.mrb[0].mxu0
  %v1359 = vadd.f32 %v1095, %v1358
  %v1360 = vpop.f32.mrb[0].mxu0
  %v1361 = vpop.f32.mrb[0].mxu0
  %v1362 = vadd.f32 %v1098, %v1361
  %v1363 = vpop.f32.mrb[0].mxu0
  %1364 = vmatprep.mubr.bf16.mxu0 0
  %1365 = vmatmul.mubr.bf16.gmra.mrb[0].mxu0 %v647
  %v1366 = vpop.f32.mrb[0].mxu0
  %v1367 = vadd.f32 %v1103, %v1366
  %v1368 = vpop.f32.mrb[0].mxu0
  %v1369 = vpop.f32.mrb[0].mxu0
  %v1370 = vadd.f32 %v1106, %v1369
  %v1371 = vpop.f32.mrb[0].mxu0
  %1372 = vmatprep.mubr.bf16.mxu0 0
  %1373 = vmatmul.mubr.bf16.gmra.mrb[0].mxu0 %v650
  %v1374 = vpop.f32.mrb[0].mxu0
  %v1375 = vadd.f32 %v1111, %v1374
  %v1376 = vpop.f32.mrb[0].mxu0
  %v1377 = vpop.f32.mrb[0].mxu0
  %v1378 = vadd.f32 %v1114, %v1377
  %v1379 = vpop.f32.mrb[0].mxu0
  %1380 = vmatprep.mubr.bf16.mxu0 0
  %1381 = vmatmul.mubr.bf16.gmra.mrb[0].mxu0 %v653
  %v1382 = vpop.f32.mrb[0].mxu0
  %v1383 = vadd.f32 %v1119, %v1382
  %v1384 = vpop.f32.mrb[0].mxu0
  %v1385 = vpop.f32.mrb[0].mxu0
  %v1386 = vadd.f32 %v1122, %v1385
  %v1387 = vpop.f32.mrb[0].mxu0
  %1388 = vmatprep.mubr.bf16.mxu0 0
  %1389 = vmatmul.mubr.bf16.gmra.mrb[0].mxu0 %v656
  %v1390 = vpop.f32.mrb[0].mxu0
  %v1391 = vadd.f32 %v1127, %v1390
  %v1392 = vpop.f32.mrb[0].mxu0
  %v1393 = vpop.f32.mrb[0].mxu0
  %v1394 = vadd.f32 %v1130, %v1393
  %v1395 = vpop.f32.mrb[0].mxu0
  %1396 = vmatprep.mubr.bf16.mxu0 0
  %1397 = vmatmul.mubr.bf16.gmra.mrb[0].mxu0 %v659
  %v1398 = vpop.f32.mrb[0].mxu0
  %v1399 = vadd.f32 %v1135, %v1398
  %v1400 = vpop.f32.mrb[0].mxu0
  %v1401 = vpop.f32.mrb[0].mxu0
  %v1402 = vadd.f32 %v1138, %v1401
  %v1403 = vpop.f32.mrb[0].mxu0
  %1404 = vmatprep.mubr.bf16.mxu0 0
  %1405 = vmatmul.mubr.bf16.gmra.mrb[0].mxu0 %v662
  %v1406 = vpop.f32.mrb[0].mxu0
  %v1407 = vadd.f32 %v1143, %v1406
  %v1408 = vpop.f32.mrb[0].mxu0
  %v1409 = vpop.f32.mrb[0].mxu0
  %v1410 = vadd.f32 %v1146, %v1409
  %v1411 = vpop.f32.mrb[0].mxu0
  %1412 = vmatprep.mubr.bf16.mxu0 0
  %1413 = vmatmul.mubr.bf16.gmra.mrb[0].mxu0 %v665
  %v1414 = vpop.f32.mrb[0].mxu0
  %v1415 = vadd.f32 %v1151, %v1414
  %v1416 = vpop.f32.mrb[0].mxu0
  %v1417 = vpop.f32.mrb[0].mxu0
  %v1418 = vadd.f32 %v1154, %v1417
  %v1419 = vpop.f32.mrb[0].mxu0
  %1420 = vmatprep.mubr.bf16.mxu0 0
  %1421 = vmatmul.mubr.bf16.gmra.mrb[0].mxu0 %v668
  %v1422 = vpop.f32.mrb[0].mxu0
  %v1423 = vadd.f32 %v1159, %v1422
  %v1424 = vpop.f32.mrb[0].mxu0
  %v1425 = vpop.f32.mrb[0].mxu0
  %v1426 = vpop.f32.mrb[0].mxu0
  %1427 = vdwg.mxu0
  %v1428 = vadd.f32 %v78, %v1199
  %v1429 = vadd.f32 %v79, %v1202
  %v1430 = vadd.f32 %v80, %v1207
  %v1431 = vadd.f32 %v81, %v1210
  %v1432 = vadd.f32 %v82, %v1215
  %v1433 = vadd.f32 %v83, %v1218
  %v1434 = vadd.f32 %v84, %v1223
  %v1435 = vadd.f32 %v85, %v1226
  %v1436 = vadd.f32 %v86, %v1231
  %v1437 = vadd.f32 %v87, %v1234
  %v1438 = vadd.f32 %v88, %v1239
  %v1439 = vadd.f32 %v89, %v1242
  %v1440 = vadd.f32 %v90, %v1247
  %v1441 = vadd.f32 %v91, %v1250
  %v1442 = vadd.f32 %v92, %v1255
  %v1443 = vadd.f32 %v93, %v1258
  %v1444 = vadd.f32 %v94, %v1263
  %v1445 = vadd.f32 %v95, %v1266
  %v1446 = vadd.f32 %v96, %v1271
  %v1447 = vadd.f32 %v97, %v1274
  %v1448 = vadd.f32 %v98, %v1279
  %v1449 = vadd.f32 %v99, %v1282
  %v1450 = vadd.f32 %v100, %v1287
  %v1451 = vadd.f32 %v101, %v1290
  %v1452 = vadd.f32 %v102, %v1295
  %v1453 = vadd.f32 %v103, %v1298
  %v1454 = vadd.f32 %v104, %v1303
  %v1455 = vadd.f32 %v105, %v1306
  %v1456 = vadd.f32 %v106, %v1311
  %v1457 = vadd.f32 %v107, %v1314
  %v1458 = vadd.f32 %v108, %v1319
  %v1459 = vadd.f32 %v109, %v1322
  %v1460 = vadd.f32 %v110, %v1327
  %v1461 = vadd.f32 %v111, %v1330
  %v1462 = vadd.f32 %v112, %v1335
  %v1463 = vadd.f32 %v113, %v1338
  %v1464 = vadd.f32 %v114, %v1343
  %v1465 = vadd.f32 %v115, %v1346
  %v1466 = vadd.f32 %v116, %v1351
  %v1467 = vadd.f32 %v117, %v1354
  %v1468 = vadd.f32 %v118, %v1359
  %v1469 = vadd.f32 %v119, %v1362
  %v1470 = vadd.f32 %v120, %v1367
  %v1471 = vadd.f32 %v121, %v1370
  %v1472 = vadd.f32 %v122, %v1375
  %v1473 = vadd.f32 %v123, %v1378
  %v1474 = vadd.f32 %v124, %v1383
  %v1475 = vadd.f32 %v125, %v1386
  %v1476 = vadd.f32 %v126, %v1391
  %v1477 = vadd.f32 %v127, %v1394
  %v1478 = vadd.f32 %v128, %v1399
  %v1479 = vadd.f32 %v129, %v1402
  %v1480 = vadd.f32 %v130, %v1407
  %v1481 = vadd.f32 %v131, %v1410
  %v1482 = vadd.f32 %v132, %v1415
  %v1483 = vadd.f32 %v133, %v1418
  %v1484 = vadd.f32 %v134, %v1423
  %vm1485 = vcmask 523264
  %1486 = vst.msk [vmem:[#allocation2] sm:$0xff] %vm1485, %v1428
  %1487 = vst.msk [vmem:[#allocation2 + $0x8] sm:$0xff] %vm1485, %v1429
  %1488 = vst.msk [vmem:[#allocation2 + $0x10] sm:$0xff] %vm1485, %v1430
  %1489 = vst.msk [vmem:[#allocation2 + $0x18] sm:$0xff] %vm1485, %v1431
  %1490 = vst.msk [vmem:[#allocation2 + $0x20] sm:$0xff] %vm1485, %v1432
  %1491 = vst.msk [vmem:[#allocation2 + $0x28] sm:$0xff] %vm1485, %v1433
  %1492 = vst.msk [vmem:[#allocation2 + $0x30] sm:$0xff] %vm1485, %v1434
  %1493 = vst.msk [vmem:[#allocation2 + $0x38] sm:$0xff] %vm1485, %v1435
  %1494 = vst.msk [vmem:[#allocation2 + $0x40] sm:$0xff] %vm1485, %v1436
  %1495 = vst.msk [vmem:[#allocation2 + $0x48] sm:$0xff] %vm1485, %v1437
  %1496 = vst.msk [vmem:[#allocation2 + $0x50] sm:$0xff] %vm1485, %v1438
  %1497 = vst.msk [vmem:[#allocation2 + $0x58] sm:$0xff] %vm1485, %v1439
  %1498 = vst.msk [vmem:[#allocation2 + $0x60] sm:$0xff] %vm1485, %v1440
  %1499 = vst.msk [vmem:[#allocation2 + $0x68] sm:$0xff] %vm1485, %v1441
  %1500 = vst.msk [vmem:[#allocation2 + $0x70] sm:$0xff] %vm1485, %v1442
  %1501 = vst.msk [vmem:[#allocation2 + $0x78] sm:$0xff] %vm1485, %v1443
  %1502 = vst.msk [vmem:[#allocation2 + $0x80] sm:$0xff] %vm1485, %v1444
  %1503 = vst.msk [vmem:[#allocation2 + $0x88] sm:$0xff] %vm1485, %v1445
  %1504 = vst.msk [vmem:[#allocation2 + $0x90] sm:$0xff] %vm1485, %v1446
  %1505 = vst.msk [vmem:[#allocation2 + $0x98] sm:$0xff] %vm1485, %v1447
  %1506 = vst.msk [vmem:[#allocation2 + $0xa0] sm:$0xff] %vm1485, %v1448
  %1507 = vst.msk [vmem:[#allocation2 + $0xa8] sm:$0xff] %vm1485, %v1449
  %1508 = vst.msk [vmem:[#allocation2 + $0xb0] sm:$0xff] %vm1485, %v1450
  %1509 = vst.msk [vmem:[#allocation2 + $0xb8] sm:$0xff] %vm1485, %v1451
  %1510 = vst.msk [vmem:[#allocation2 + $0xc0] sm:$0xff] %vm1485, %v1452
  %1511 = vst.msk [vmem:[#allocation2 + $0xc8] sm:$0xff] %vm1485, %v1453
  %1512 = vst.msk [vmem:[#allocation2 + $0xd0] sm:$0xff] %vm1485, %v1454
  %1513 = vst.msk [vmem:[#allocation2 + $0xd8] sm:$0xff] %vm1485, %v1455
  %1514 = vst.msk [vmem:[#allocation2 + $0xe0] sm:$0xff] %vm1485, %v1456
  %1515 = vst.msk [vmem:[#allocation2 + $0xe8] sm:$0xff] %vm1485, %v1457
  %1516 = vst.msk [vmem:[#allocation2 + $0xf0] sm:$0xff] %vm1485, %v1458
  %1517 = vst.msk [vmem:[#allocation2 + $0xf8] sm:$0xff] %vm1485, %v1459
  %1518 = vst.msk [vmem:[#allocation2 + $0x100] sm:$0xff] %vm1485, %v1460
  %1519 = vst.msk [vmem:[#allocation2 + $0x108] sm:$0xff] %vm1485, %v1461
  %1520 = vst.msk [vmem:[#allocation2 + $0x110] sm:$0xff] %vm1485, %v1462
  %1521 = vst.msk [vmem:[#allocation2 + $0x118] sm:$0xff] %vm1485, %v1463
  %1522 = vst.msk [vmem:[#allocation2 + $0x120] sm:$0xff] %vm1485, %v1464
  %1523 = vst.msk [vmem:[#allocation2 + $0x128] sm:$0xff] %vm1485, %v1465
  %1524 = vst.msk [vmem:[#allocation2 + $0x130] sm:$0xff] %vm1485, %v1466
  %1525 = vst.msk [vmem:[#allocation2 + $0x138] sm:$0xff] %vm1485, %v1467
  %1526 = vst.msk [vmem:[#allocation2 + $0x140] sm:$0xff] %vm1485, %v1468
  %1527 = vst.msk [vmem:[#allocation2 + $0x148] sm:$0xff] %vm1485, %v1469
  %1528 = vst.msk [vmem:[#allocation2 + $0x150] sm:$0xff] %vm1485, %v1470
  %1529 = vst.msk [vmem:[#allocation2 + $0x158] sm:$0xff] %vm1485, %v1471
  %1530 = vst.msk [vmem:[#allocation2 + $0x160] sm:$0xff] %vm1485, %v1472
  %1531 = vst.msk [vmem:[#allocation2 + $0x168] sm:$0xff] %vm1485, %v1473
  %1532 = vst.msk [vmem:[#allocation2 + $0x170] sm:$0xff] %vm1485, %v1474
  %1533 = vst.msk [vmem:[#allocation2 + $0x178] sm:$0xff] %vm1485, %v1475
  %1534 = vst.msk [vmem:[#allocation2 + $0x180] sm:$0xff] %vm1485, %v1476
  %1535 = vst.msk [vmem:[#allocation2 + $0x188] sm:$0xff] %vm1485, %v1477
  %1536 = vst.msk [vmem:[#allocation2 + $0x190] sm:$0xff] %vm1485, %v1478
  %1537 = vst.msk [vmem:[#allocation2 + $0x198] sm:$0xff] %vm1485, %v1479
  %1538 = vst.msk [vmem:[#allocation2 + $0x1a0] sm:$0xff] %vm1485, %v1480
  %1539 = vst.msk [vmem:[#allocation2 + $0x1a8] sm:$0xff] %vm1485, %v1481
  %1540 = vst.msk [vmem:[#allocation2 + $0x1b0] sm:$0xff] %vm1485, %v1482
  %1541 = vst.msk [vmem:[#allocation2 + $0x1b8] sm:$0xff] %vm1485, %v1483
  %vm1542 = vcmask 517120
  %1543 = vst.msk [vmem:[#allocation2 + $0x1c0] sm:$0x3] %vm1542, %v1484
  // Predicated region
  $region18: #{alexnet_features.8} parent=0 // pred_check
    %p1544 = pneg %p15
  $region19: #{alexnet_features.8} parent=0 // pred_check_branch
    %1546 = sbr.rel (%p1544) target = $region21
  $region20: #{alexnet_features.8} parent=0 // pred_region
    %v1547 = vld [vmem:[#allocation2] sm:$0xff]
    %v1548 = vld [vmem:[#allocation2 + $0x8] sm:$0xff]
    %v1549 = vld [vmem:[#allocation2 + $0x10] sm:$0xff]
    %v1550 = vld [vmem:[#allocation2 + $0x18] sm:$0xff]
    %v1551 = vld [vmem:[#allocation2 + $0x20] sm:$0xff]
    %v1552 = vld [vmem:[#allocation2 + $0x28] sm:$0xff]
    %v1553 = vld [vmem:[#allocation2 + $0x30] sm:$0xff]
    %v1554 = vld [vmem:[#allocation2 + $0x38] sm:$0xff]
    %v1555 = vld [vmem:[#allocation2 + $0x40] sm:$0xff]
    %v1556 = vld [vmem:[#allocation2 + $0x48] sm:$0xff]
    %v1557 = vld [vmem:[#allocation2 + $0x50] sm:$0xff]
    %v1558 = vld [vmem:[#allocation2 + $0x58] sm:$0xff]
    %v1559 = vld [vmem:[#allocation2 + $0x60] sm:$0xff]
    %v1560 = vld [vmem:[#allocation2 + $0x68] sm:$0xff]
    %v1561 = vld [vmem:[#allocation2 + $0x70] sm:$0xff]
    %v1562 = vld [vmem:[#allocation2 + $0x78] sm:$0xff]
    %v1563 = vld [vmem:[#allocation2 + $0x80] sm:$0xff]
    %v1564 = vld [vmem:[#allocation2 + $0x88] sm:$0xff]
    %v1565 = vld [vmem:[#allocation2 + $0x90] sm:$0xff]
    %v1566 = vld [vmem:[#allocation2 + $0x98] sm:$0xff]
    %v1567 = vld [vmem:[#allocation2 + $0xa0] sm:$0xff]
    %v1568 = vld [vmem:[#allocation2 + $0xa8] sm:$0xff]
    %v1569 = vld [vmem:[#allocation2 + $0xb0] sm:$0xff]
    %v1570 = vld [vmem:[#allocation2 + $0xb8] sm:$0xff]
    %v1571 = vld [vmem:[#allocation2 + $0xc0] sm:$0xff]
    %v1572 = vld [vmem:[#allocation2 + $0xc8] sm:$0xff]
    %v1573 = vld [vmem:[#allocation2 + $0xd0] sm:$0xff]
    %v1574 = vld [vmem:[#allocation2 + $0xd8] sm:$0xff]
    %v1575 = vld [vmem:[#allocation2 + $0xe0] sm:$0xff]
    %v1576 = vld [vmem:[#allocation2 + $0xe8] sm:$0xff]
    %v1577 = vld [vmem:[#allocation2 + $0xf0] sm:$0xff]
    %v1578 = vld [vmem:[#allocation2 + $0xf8] sm:$0xff]
    %v1579 = vld [vmem:[#allocation2 + $0x100] sm:$0xff]
    %v1580 = vld [vmem:[#allocation2 + $0x108] sm:$0xff]
    %v1581 = vld [vmem:[#allocation2 + $0x110] sm:$0xff]
    %v1582 = vld [vmem:[#allocation2 + $0x118] sm:$0xff]
    %v1583 = vld [vmem:[#allocation2 + $0x120] sm:$0xff]
    %v1584 = vld [vmem:[#allocation2 + $0x128] sm:$0xff]
    %v1585 = vld [vmem:[#allocation2 + $0x130] sm:$0xff]
    %v1586 = vld [vmem:[#allocation2 + $0x138] sm:$0xff]
    %v1587 = vld [vmem:[#allocation2 + $0x140] sm:$0xff]
    %v1588 = vld [vmem:[#allocation2 + $0x148] sm:$0xff]
    %v1589 = vld [vmem:[#allocation2 + $0x150] sm:$0xff]
    %v1590 = vld [vmem:[#allocation2 + $0x158] sm:$0xff]
    %v1591 = vld [vmem:[#allocation2 + $0x160] sm:$0xff]
    %v1592 = vld [vmem:[#allocation2 + $0x168] sm:$0xff]
    %v1593 = vld [vmem:[#allocation2 + $0x170] sm:$0xff]
    %v1594 = vld [vmem:[#allocation2 + $0x178] sm:$0xff]
    %v1595 = vld [vmem:[#allocation2 + $0x180] sm:$0xff]
    %v1596 = vld [vmem:[#allocation2 + $0x188] sm:$0xff]
    %v1597 = vld [vmem:[#allocation2 + $0x190] sm:$0xff]
    %v1598 = vld [vmem:[#allocation2 + $0x198] sm:$0xff]
    %v1599 = vld [vmem:[#allocation2 + $0x1a0] sm:$0xff]
    %v1600 = vld [vmem:[#allocation2 + $0x1a8] sm:$0xff]
    %v1601 = vld [vmem:[#allocation2 + $0x1b0] sm:$0xff]
    %v1602 = vld [vmem:[#allocation2 + $0x1b8] sm:$0xff]
    %v1603 = vld [vmem:[#allocation2 + $0x1c0] sm:$0x3]
    %v1604 = vld [vmem:[%s2] sm:$0x1]
    %v1606 = vlaneseq
    %v1607 = vshrl.u32 %v1606, 7
    %v1608 = vsub.s32 0, %v1607
    %v1609 = vrot.slane %v1604, %v1608
    %v1611 = vadd.f32 %v1547, %v1609
    %v1612 = vadd.f32 %v1548, %v1609
    %v1613 = vadd.f32 %v1549, %v1609
    %v1614 = vadd.f32 %v1550, %v1609
    %v1615 = vadd.f32 %v1551, %v1609
    %v1616 = vadd.f32 %v1552, %v1609
    %v1617 = vadd.f32 %v1553, %v1609
    %v1618 = vadd.f32 %v1554, %v1609
    %v1619 = vadd.f32 %v1555, %v1609
    %v1620 = vadd.f32 %v1556, %v1609
    %v1621 = vadd.f32 %v1557, %v1609
    %v1622 = vadd.f32 %v1558, %v1609
    %v1623 = vadd.f32 %v1559, %v1609
    %v1624 = vadd.f32 %v1560, %v1609
    %v1625 = vadd.f32 %v1561, %v1609
    %v1626 = vadd.f32 %v1562, %v1609
    %v1627 = vadd.f32 %v1563, %v1609
    %v1628 = vadd.f32 %v1564, %v1609
    %v1629 = vadd.f32 %v1565, %v1609
    %v1630 = vadd.f32 %v1566, %v1609
    %v1631 = vadd.f32 %v1567, %v1609
    %v1632 = vadd.f32 %v1568, %v1609
    %v1633 = vadd.f32 %v1569, %v1609
    %v1634 = vadd.f32 %v1570, %v1609
    %v1635 = vadd.f32 %v1571, %v1609
    %v1636 = vadd.f32 %v1572, %v1609
    %v1637 = vadd.f32 %v1573, %v1609
    %v1638 = vadd.f32 %v1574, %v1609
    %v1639 = vadd.f32 %v1575, %v1609
    %v1640 = vadd.f32 %v1576, %v1609
    %v1641 = vadd.f32 %v1577, %v1609
    %v1642 = vadd.f32 %v1578, %v1609
    %v1643 = vadd.f32 %v1579, %v1609
    %v1644 = vadd.f32 %v1580, %v1609
    %v1645 = vadd.f32 %v1581, %v1609
    %v1646 = vadd.f32 %v1582, %v1609
    %v1647 = vadd.f32 %v1583, %v1609
    %v1648 = vadd.f32 %v1584, %v1609
    %v1649 = vadd.f32 %v1585, %v1609
    %v1650 = vadd.f32 %v1586, %v1609
    %v1651 = vadd.f32 %v1587, %v1609
    %v1652 = vadd.f32 %v1588, %v1609
    %v1653 = vadd.f32 %v1589, %v1609
    %v1654 = vadd.f32 %v1590, %v1609
    %v1655 = vadd.f32 %v1591, %v1609
    %v1656 = vadd.f32 %v1592, %v1609
    %v1657 = vadd.f32 %v1593, %v1609
    %v1658 = vadd.f32 %v1594, %v1609
    %v1659 = vadd.f32 %v1595, %v1609
    %v1660 = vadd.f32 %v1596, %v1609
    %v1661 = vadd.f32 %v1597, %v1609
    %v1662 = vadd.f32 %v1598, %v1609
    %v1663 = vadd.f32 %v1599, %v1609
    %v1664 = vadd.f32 %v1600, %v1609
    %v1665 = vadd.f32 %v1601, %v1609
    %v1666 = vadd.f32 %v1602, %v1609
    %v1667 = vadd.f32 %v1603, %v1609
    %v1668 = vmax.f32 %v1611, 0.0
    %v1669 = vmax.f32 %v1612, 0.0
    %v1670 = vmax.f32 %v1613, 0.0
    %v1671 = vmax.f32 %v1614, 0.0
    %v1672 = vmax.f32 %v1615, 0.0
    %v1673 = vmax.f32 %v1616, 0.0
    %v1674 = vmax.f32 %v1617, 0.0
    %v1675 = vmax.f32 %v1618, 0.0
    %v1676 = vmax.f32 %v1619, 0.0
    %v1677 = vmax.f32 %v1620, 0.0
    %v1678 = vmax.f32 %v1621, 0.0
    %v1679 = vmax.f32 %v1622, 0.0
    %v1680 = vmax.f32 %v1623, 0.0
    %v1681 = vmax.f32 %v1624, 0.0
    %v1682 = vmax.f32 %v1625, 0.0
    %v1683 = vmax.f32 %v1626, 0.0
    %v1684 = vmax.f32 %v1627, 0.0
    %v1685 = vmax.f32 %v1628, 0.0
    %v1686 = vmax.f32 %v1629, 0.0
    %v1687 = vmax.f32 %v1630, 0.0
    %v1688 = vmax.f32 %v1631, 0.0
    %v1689 = vmax.f32 %v1632, 0.0
    %v1690 = vmax.f32 %v1633, 0.0
    %v1691 = vmax.f32 %v1634, 0.0
    %v1692 = vmax.f32 %v1635, 0.0
    %v1693 = vmax.f32 %v1636, 0.0
    %v1694 = vmax.f32 %v1637, 0.0
    %v1695 = vmax.f32 %v1638, 0.0
    %v1696 = vmax.f32 %v1639, 0.0
    %v1697 = vmax.f32 %v1640, 0.0
    %v1698 = vmax.f32 %v1641, 0.0
    %v1699 = vmax.f32 %v1642, 0.0
    %v1700 = vmax.f32 %v1643, 0.0
    %v1701 = vmax.f32 %v1644, 0.0
    %v1702 = vmax.f32 %v1645, 0.0
    %v1703 = vmax.f32 %v1646, 0.0
    %v1704 = vmax.f32 %v1647, 0.0
    %v1705 = vmax.f32 %v1648, 0.0
    %v1706 = vmax.f32 %v1649, 0.0
    %v1707 = vmax.f32 %v1650, 0.0
    %v1708 = vmax.f32 %v1651, 0.0
    %v1709 = vmax.f32 %v1652, 0.0
    %v1710 = vmax.f32 %v1653, 0.0
    %v1711 = vmax.f32 %v1654, 0.0
    %v1712 = vmax.f32 %v1655, 0.0
    %v1713 = vmax.f32 %v1656, 0.0
    %v1714 = vmax.f32 %v1657, 0.0
    %v1715 = vmax.f32 %v1658, 0.0
    %v1716 = vmax.f32 %v1659, 0.0
    %v1717 = vmax.f32 %v1660, 0.0
    %v1718 = vmax.f32 %v1661, 0.0
    %v1719 = vmax.f32 %v1662, 0.0
    %v1720 = vmax.f32 %v1663, 0.0
    %v1721 = vmax.f32 %v1664, 0.0
    %v1722 = vmax.f32 %v1665, 0.0
    %v1723 = vmax.f32 %v1666, 0.0
    %v1724 = vmax.f32 %v1667, 0.0
    %1725 = vst.msk [vmem:[%s3] sm:$0xff] %vm1485, %v1668
    %1726 = vst.msk [vmem:[%s3 + $0x8] sm:$0xff] %vm1485, %v1669
    %1727 = vst.msk [vmem:[%s3 + $0x10] sm:$0xff] %vm1485, %v1670
    %1728 = vst.msk [vmem:[%s3 + $0x18] sm:$0xff] %vm1485, %v1671
    %1729 = vst.msk [vmem:[%s3 + $0x20] sm:$0xff] %vm1485, %v1672
    %1730 = vst.msk [vmem:[%s3 + $0x28] sm:$0xff] %vm1485, %v1673
    %1731 = vst.msk [vmem:[%s3 + $0x30] sm:$0xff] %vm1485, %v1674
    %1732 = vst.msk [vmem:[%s3 + $0x38] sm:$0xff] %vm1485, %v1675
    %1733 = vst.msk [vmem:[%s3 + $0x40] sm:$0xff] %vm1485, %v1676
    %1734 = vst.msk [vmem:[%s3 + $0x48] sm:$0xff] %vm1485, %v1677
    %1735 = vst.msk [vmem:[%s3 + $0x50] sm:$0xff] %vm1485, %v1678
    %1736 = vst.msk [vmem:[%s3 + $0x58] sm:$0xff] %vm1485, %v1679
    %1737 = vst.msk [vmem:[%s3 + $0x60] sm:$0xff] %vm1485, %v1680
    %1738 = vst.msk [vmem:[%s3 + $0x68] sm:$0xff] %vm1485, %v1681
    %1739 = vst.msk [vmem:[%s3 + $0x70] sm:$0xff] %vm1485, %v1682
    %1740 = vst.msk [vmem:[%s3 + $0x78] sm:$0xff] %vm1485, %v1683
    %1741 = vst.msk [vmem:[%s3 + $0x80] sm:$0xff] %vm1485, %v1684
    %1742 = vst.msk [vmem:[%s3 + $0x88] sm:$0xff] %vm1485, %v1685
    %1743 = vst.msk [vmem:[%s3 + $0x90] sm:$0xff] %vm1485, %v1686
    %1744 = vst.msk [vmem:[%s3 + $0x98] sm:$0xff] %vm1485, %v1687
    %1745 = vst.msk [vmem:[%s3 + $0xa0] sm:$0xff] %vm1485, %v1688
    %1746 = vst.msk [vmem:[%s3 + $0xa8] sm:$0xff] %vm1485, %v1689
    %1747 = vst.msk [vmem:[%s3 + $0xb0] sm:$0xff] %vm1485, %v1690
    %1748 = vst.msk [vmem:[%s3 + $0xb8] sm:$0xff] %vm1485, %v1691
    %1749 = vst.msk [vmem:[%s3 + $0xc0] sm:$0xff] %vm1485, %v1692
    %1750 = vst.msk [vmem:[%s3 + $0xc8] sm:$0xff] %vm1485, %v1693
    %1751 = vst.msk [vmem:[%s3 + $0xd0] sm:$0xff] %vm1485, %v1694
    %1752 = vst.msk [vmem:[%s3 + $0xd8] sm:$0xff] %vm1485, %v1695
    %1753 = vst.msk [vmem:[%s3 + $0xe0] sm:$0xff] %vm1485, %v1696
    %1754 = vst.msk [vmem:[%s3 + $0xe8] sm:$0xff] %vm1485, %v1697
    %1755 = vst.msk [vmem:[%s3 + $0xf0] sm:$0xff] %vm1485, %v1698
    %1756 = vst.msk [vmem:[%s3 + $0xf8] sm:$0xff] %vm1485, %v1699
    %1757 = vst.msk [vmem:[%s3 + $0x100] sm:$0xff] %vm1485, %v1700
    %1758 = vst.msk [vmem:[%s3 + $0x108] sm:$0xff] %vm1485, %v1701
    %1759 = vst.msk [vmem:[%s3 + $0x110] sm:$0xff] %vm1485, %v1702
    %1760 = vst.msk [vmem:[%s3 + $0x118] sm:$0xff] %vm1485, %v1703
    %1761 = vst.msk [vmem:[%s3 + $0x120] sm:$0xff] %vm1485, %v1704
    %1762 = vst.msk [vmem:[%s3 + $0x128] sm:$0xff] %vm1485, %v1705
    %1763 = vst.msk [vmem:[%s3 + $0x130] sm:$0xff] %vm1485, %v1706
    %1764 = vst.msk [vmem:[%s3 + $0x138] sm:$0xff] %vm1485, %v1707
    %1765 = vst.msk [vmem:[%s3 + $0x140] sm:$0xff] %vm1485, %v1708
    %1766 = vst.msk [vmem:[%s3 + $0x148] sm:$0xff] %vm1485, %v1709
    %1767 = vst.msk [vmem:[%s3 + $0x150] sm:$0xff] %vm1485, %v1710
    %1768 = vst.msk [vmem:[%s3 + $0x158] sm:$0xff] %vm1485, %v1711
    %1769 = vst.msk [vmem:[%s3 + $0x160] sm:$0xff] %vm1485, %v1712
    %1770 = vst.msk [vmem:[%s3 + $0x168] sm:$0xff] %vm1485, %v1713
    %1771 = vst.msk [vmem:[%s3 + $0x170] sm:$0xff] %vm1485, %v1714
    %1772 = vst.msk [vmem:[%s3 + $0x178] sm:$0xff] %vm1485, %v1715
    %1773 = vst.msk [vmem:[%s3 + $0x180] sm:$0xff] %vm1485, %v1716
    %1774 = vst.msk [vmem:[%s3 + $0x188] sm:$0xff] %vm1485, %v1717
    %1775 = vst.msk [vmem:[%s3 + $0x190] sm:$0xff] %vm1485, %v1718
    %1776 = vst.msk [vmem:[%s3 + $0x198] sm:$0xff] %vm1485, %v1719
    %1777 = vst.msk [vmem:[%s3 + $0x1a0] sm:$0xff] %vm1485, %v1720
    %1778 = vst.msk [vmem:[%s3 + $0x1a8] sm:$0xff] %vm1485, %v1721
    %1779 = vst.msk [vmem:[%s3 + $0x1b0] sm:$0xff] %vm1485, %v1722
    %1780 = vst.msk [vmem:[%s3 + $0x1b8] sm:$0xff] %vm1485, %v1723
    %1781 = vst.msk [vmem:[%s3 + $0x1c0] sm:$0x3] %vm1542, %v1724
  $region21: #{alexnet_features.8} parent=0 // pred_fallthru
    _
  // Predicated region
  $region22: #{alexnet_features.8} parent=0 // pred_check
    _
  $region23: #{alexnet_features.8} parent=0 // pred_check_branch
    %1783 = sbr.rel (0) target = $region25
  $region24: #{alexnet_features.8} parent=0 // pred_region
    _
  $region25: #{alexnet_features.8} parent=0 // pred_fallthru
    _
  // Predicated region
  $region26: #{alexnet_features.8} parent=0 // pred_check
    _
  $region27: #{alexnet_features.8} parent=0 // pred_check_branch
    %1785 = sbr.rel (0) target = $region29
  $region28: #{alexnet_features.8} parent=0 // pred_region
    _
  $region29: #{alexnet_features.8} parent=0 // pred_fallthru
    _

// kernel: alexnet_features.9
$region0: #{alexnet_features.9}
  #allocation0 [shape = 'u32[]', space=smem, size = 0x4, offset = 0x4, fixed_abs, tag = 'smem constant byte address 0x4 - core index']
  #allocation1 [shape = 'u32[144,128]{1,0:T(1,128)}', space=vmem, size = 0x12000, scoped, tag = 'internal scratch']
  %s0 = inlined_call_operand.vmem [shape: f32[9,2,49,64], index: 0, kind: input, shape index: {}]
  %s1 = inlined_call_operand.vmem [shape: f32[2,49,64], index: 1, kind: output, shape index: {}]
  %s2 = sld [smem:[#allocation0]]
  $region75: #{alexnet_features.9} parent=0
    _
  %s4 = ssub.s32 1, %s2
  %s5 = scalar_select 0, %s4, %s2
  $region1: #{alexnet_features.9} parent=0
    #allocation2 [shape = 'u8[516096]{0}', space=vmem, size = 0x7e000, scoped, tag = 'input window, operand 0']
    loop: start=0, step=1, limit=4
    $region2: #{alexnet_features.9} parent=1 // loop_pre_header
      _
    $region3: #{alexnet_features.9} parent=1 // loop_header
      %s7 = sphi 0, %s11
      %p8 = scmp.ge.s32.totalorder %s7, 4
      %s17 = sphi 0, %s19
      %s20 = sphi 0, %s17
      %s21 = sphi 0, %s20
      %s37 = sphi 0, %s21
      %s43 = sphi 0, %s45
      %s46 = sphi 0, %s43
      %s47 = sphi 0, %s46
      %s63 = sphi 0, %s47
    $region4: #{alexnet_features.9} parent=1 // loop_header_branch
      %10 = sbr.rel (%p8) target = $region8
    $region5: #{alexnet_features.9} parent=1 // loop_body
      %s12 = ssub.s32 %s7, 1
      %s13 = ssub.s32 %s7, 2
      %s14 = sadd.s32 %s7, 1
      %s15 = ssub.s32 %s7, %s14
      %p16 = scmp.eq.s32.totalorder %s15, 0
      %s18 = sadd.s32 %s17, 1
      %s19 = scalar_select %p16, %s17, %s18
      %p22 = pneg %p16
      %p23 = scmp.eq.s32.totalorder %s7, 1
      %p24 = por %p22, %p23
      %p25 = scmp.ne.s32.totalorder %s17, %s20
      %p26 = scmp.eq.s32.totalorder %s7, 0
      %p27 = por %p25, %p26
      %p28 = scmp.ne.s32.totalorder %s17, %s20
      %p29 = scmp.eq.s32.totalorder %s12, 1
      %p30 = por %p28, %p29
      %p31 = scmp.ne.s32.totalorder %s20, %s21
      %p32 = scmp.eq.s32.totalorder %s12, 0
      %p33 = por %p31, %p32
      %p34 = scmp.ne.s32.totalorder %s20, %s21
      %p35 = scmp.eq.s32.totalorder %s13, 1
      %p36 = por %p34, %p35
      %p38 = scmp.ne.s32.totalorder %s21, %s37
      %p39 = scmp.eq.s32.totalorder %s13, 0
      %p40 = por %p38, %p39
      %s41 = ssub.s32 %s7, %s14
      %p42 = scmp.eq.s32.totalorder %s41, 0
      %s44 = sadd.s32 %s43, 1
      %s45 = scalar_select %p42, %s43, %s44
      %p48 = pneg %p42
      %p49 = scmp.eq.s32.totalorder %s7, 1
      %p50 = por %p48, %p49
      %p51 = scmp.ne.s32.totalorder %s43, %s46
      %p52 = scmp.eq.s32.totalorder %s7, 0
      %p53 = por %p51, %p52
      %p54 = scmp.ne.s32.totalorder %s43, %s46
      %p55 = scmp.eq.s32.totalorder %s12, 1
      %p56 = por %p54, %p55
      %p57 = scmp.ne.s32.totalorder %s46, %s47
      %p58 = scmp.eq.s32.totalorder %s12, 0
      %p59 = por %p57, %p58
      %p60 = scmp.ne.s32.totalorder %s46, %s47
      %p61 = scmp.eq.s32.totalorder %s13, 1
      %p62 = por %p60, %p61
      %p64 = scmp.ne.s32.totalorder %s47, %s63
      %p65 = scmp.eq.s32.totalorder %s13, 0
      %p66 = por %p64, %p65
      %p67 = scmp.le.s32.totalorder 1, %s7
      %p68 = scmp.lt.s32.totalorder %s7, 3
      %p69 = pnand %p67, %p68
      %p70 = pneg %p69
      // Predicated region
      $region9: #{alexnet_features.9} parent=5 // pred_check
        _
      $region10: #{alexnet_features.9} parent=5 // pred_check_branch
        %72 = sbr.rel (%p69) target = $region12
      $region11: #{alexnet_features.9} parent=5 // pred_region
        %s73 = ssub.s32 %s7, 1
      $region12: #{alexnet_features.9} parent=5 // pred_fallthru
        _
      %p74 = scmp.lt.s32.totalorder %s7, 2
      // Predicated region
      $region13: #{alexnet_features.9} parent=5 // pred_check
        %p75 = pneg %p74
      $region14: #{alexnet_features.9} parent=5 // pred_check_branch
        %77 = sbr.rel (%p75) target = $region16
      $region15: #{alexnet_features.9} parent=5 // pred_region
        // Predicated region
        $region17: #{alexnet_features.9} parent=15 // pred_check
          %p78 = pneg %p27
        $region18: #{alexnet_features.9} parent=15 // pred_check_branch
          %80 = sbr.rel (%p78) target = $region20
        $region19: #{alexnet_features.9} parent=15 // pred_region
          %s81 = sand.u32 %s17, 1
          %s82 = sand.u32 %s17, 1
          %s83 = smul.addr %s82, 504
          %s84 = scalar_lea.vmem [#allocation2], %s83
          %s85 = smul.addr %s7, 7
          %s86 = smul.addr %s85, 8
          %s87 = scalar_lea.vmem %s0, %s86
          // Predicated region
          $region21: #{alexnet_features.9} parent=19 // pred_check
            _
          $region22: #{alexnet_features.9} parent=19 // pred_check_branch
            %89 = sbr.rel (0) target = $region24
          $region23: #{alexnet_features.9} parent=19 // pred_region
            // Predicated region
            $region25: #{alexnet_features.9} parent=23 // pred_check
              _
            $region26: #{alexnet_features.9} parent=23 // pred_check_branch
              %91 = sbr.rel (0) target = $region28
            $region27: #{alexnet_features.9} parent=23 // pred_region
              // Predicated region
              $region40: #{alexnet_features.9} parent=27 // pred_check
                _
              $region41: #{alexnet_features.9} parent=27 // pred_check_branch
                %230 = sbr.rel (0) target = $region43
              $region42: #{alexnet_features.9} parent=27 // pred_region
                loop: start=0, step=1, limit=1
                $region44: #{alexnet_features.9} parent=42 // loop_pre_header
                  _
                $region45: #{alexnet_features.9} parent=42 // loop_header
                  %s232 = sphi 0, %s236
                  %p233 = scmp.ge.s32.totalorder %s232, 1
                  %s237 = sphi %s87, %s87
                  %s238 = sphi %s84, %s84
                $region46: #{alexnet_features.9} parent=42 // loop_header_branch
                  %235 = sbr.rel (%p233) target = $region50
                $region47: #{alexnet_features.9} parent=42 // loop_body
                  %v239 = vld [vmem:[%s237] sm:$0xff]
                  %240 = vst [vmem:[%s238] sm:$0xff] %v239
                  %v241 = vld [vmem:[%s237 + $0x8] sm:$0xff]
                  %242 = vst [vmem:[%s238 + $0x8] sm:$0xff] %v241
                  %v243 = vld [vmem:[%s237 + $0x10] sm:$0xff]
                  %244 = vst [vmem:[%s238 + $0x10] sm:$0xff] %v243
                  %v245 = vld [vmem:[%s237 + $0x18] sm:$0xff]
                  %246 = vst [vmem:[%s238 + $0x18] sm:$0xff] %v245
                  %v247 = vld [vmem:[%s237 + $0x20] sm:$0xff]
                  %248 = vst [vmem:[%s238 + $0x20] sm:$0xff] %v247
                  %v249 = vld [vmem:[%s237 + $0x28] sm:$0xff]
                  %250 = vst [vmem:[%s238 + $0x28] sm:$0xff] %v249
                  %v251 = vld [vmem:[%s237 + $0x30] sm:$0xff]
                  %252 = vst [vmem:[%s238 + $0x30] sm:$0xff] %v251
                  %v253 = vld [vmem:[%s237 + $0x70] sm:$0xff]
                  %254 = vst [vmem:[%s238 + $0x38] sm:$0xff] %v253
                  %v255 = vld [vmem:[%s237 + $0x78] sm:$0xff]
                  %256 = vst [vmem:[%s238 + $0x40] sm:$0xff] %v255
                  %v257 = vld [vmem:[%s237 + $0x80] sm:$0xff]
                  %258 = vst [vmem:[%s238 + $0x48] sm:$0xff] %v257
                  %v259 = vld [vmem:[%s237 + $0x88] sm:$0xff]
                  %260 = vst [vmem:[%s238 + $0x50] sm:$0xff] %v259
                  %v261 = vld [vmem:[%s237 + $0x90] sm:$0xff]
                  %262 = vst [vmem:[%s238 + $0x58] sm:$0xff] %v261
                  %v263 = vld [vmem:[%s237 + $0x98] sm:$0xff]
                  %264 = vst [vmem:[%s238 + $0x60] sm:$0xff] %v263
                  %v265 = vld [vmem:[%s237 + $0xa0] sm:$0xff]
                  %266 = vst [vmem:[%s238 + $0x68] sm:$0xff] %v265
                  %v267 = vld [vmem:[%s237 + $0xe0] sm:$0xff]
                  %268 = vst [vmem:[%s238 + $0x70] sm:$0xff] %v267
                  %v269 = vld [vmem:[%s237 + $0xe8] sm:$0xff]
                  %270 = vst [vmem:[%s238 + $0x78] sm:$0xff] %v269
                  %v271 = vld [vmem:[%s237 + $0xf0] sm:$0xff]
                  %272 = vst [vmem:[%s238 + $0x80] sm:$0xff] %v271
                  %v273 = vld [vmem:[%s237 + $0xf8] sm:$0xff]
                  %274 = vst [vmem:[%s238 + $0x88] sm:$0xff] %v273
                  %v275 = vld [vmem:[%s237 + $0x100] sm:$0xff]
                  %276 = vst [vmem:[%s238 + $0x90] sm:$0xff] %v275
                  %v277 = vld [vmem:[%s237 + $0x108] sm:$0xff]
                  %278 = vst [vmem:[%s238 + $0x98] sm:$0xff] %v277
                  %v279 = vld [vmem:[%s237 + $0x110] sm:$0xff]
                  %280 = vst [vmem:[%s238 + $0xa0] sm:$0xff] %v279
                  %v281 = vld [vmem:[%s237 + $0x150] sm:$0xff]
                  %282 = vst [vmem:[%s238 + $0xa8] sm:$0xff] %v281
                  %v283 = vld [vmem:[%s237 + $0x158] sm:$0xff]
                  %284 = vst [vmem:[%s238 + $0xb0] sm:$0xff] %v283
                  %v285 = vld [vmem:[%s237 + $0x160] sm:$0xff]
                  %286 = vst [vmem:[%s238 + $0xb8] sm:$0xff] %v285
                  %v287 = vld [vmem:[%s237 + $0x168] sm:$0xff]
                  %288 = vst [vmem:[%s238 + $0xc0] sm:$0xff] %v287
                  %v289 = vld [vmem:[%s237 + $0x170] sm:$0xff]
                  %290 = vst [vmem:[%s238 + $0xc8] sm:$0xff] %v289
                  %v291 = vld [vmem:[%s237 + $0x178] sm:$0xff]
                  %292 = vst [vmem:[%s238 + $0xd0] sm:$0xff] %v291
                  %v293 = vld [vmem:[%s237 + $0x180] sm:$0xff]
                  %294 = vst [vmem:[%s238 + $0xd8] sm:$0xff] %v293
                  %v295 = vld [vmem:[%s237 + $0x1c0] sm:$0xff]
                  %296 = vst [vmem:[%s238 + $0xe0] sm:$0xff] %v295
                  %v297 = vld [vmem:[%s237 + $0x1c8] sm:$0xff]
                  %298 = vst [vmem:[%s238 + $0xe8] sm:$0xff] %v297
                  %v299 = vld [vmem:[%s237 + $0x1d0] sm:$0xff]
                  %300 = vst [vmem:[%s238 + $0xf0] sm:$0xff] %v299
                  %v301 = vld [vmem:[%s237 + $0x1d8] sm:$0xff]
                  %302 = vst [vmem:[%s238 + $0xf8] sm:$0xff] %v301
                  %v303 = vld [vmem:[%s237 + $0x1e0] sm:$0xff]
                  %304 = vst [vmem:[%s238 + $0x100] sm:$0xff] %v303
                  %v305 = vld [vmem:[%s237 + $0x1e8] sm:$0xff]
                  %306 = vst [vmem:[%s238 + $0x108] sm:$0xff] %v305
                  %v307 = vld [vmem:[%s237 + $0x1f0] sm:$0xff]
                  %308 = vst [vmem:[%s238 + $0x110] sm:$0xff] %v307
                  %v309 = vld [vmem:[%s237 + $0x230] sm:$0xff]
                  %310 = vst [vmem:[%s238 + $0x118] sm:$0xff] %v309
                  %v311 = vld [vmem:[%s237 + $0x238] sm:$0xff]
                  %312 = vst [vmem:[%s238 + $0x120] sm:$0xff] %v311
                  %v313 = vld [vmem:[%s237 + $0x240] sm:$0xff]
                  %314 = vst [vmem:[%s238 + $0x128] sm:$0xff] %v313
                  %v315 = vld [vmem:[%s237 + $0x248] sm:$0xff]
                  %316 = vst [vmem:[%s238 + $0x130] sm:$0xff] %v315
                  %v317 = vld [vmem:[%s237 + $0x250] sm:$0xff]
                  %318 = vst [vmem:[%s238 + $0x138] sm:$0xff] %v317
                  %v319 = vld [vmem:[%s237 + $0x258] sm:$0xff]
                  %320 = vst [vmem:[%s238 + $0x140] sm:$0xff] %v319
                  %v321 = vld [vmem:[%s237 + $0x260] sm:$0xff]
                  %322 = vst [vmem:[%s238 + $0x148] sm:$0xff] %v321
                  %v323 = vld [vmem:[%s237 + $0x2a0] sm:$0xff]
                  %324 = vst [vmem:[%s238 + $0x150] sm:$0xff] %v323
                  %v325 = vld [vmem:[%s237 + $0x2a8] sm:$0xff]
                  %326 = vst [vmem:[%s238 + $0x158] sm:$0xff] %v325
                  %v327 = vld [vmem:[%s237 + $0x2b0] sm:$0xff]
                  %328 = vst [vmem:[%s238 + $0x160] sm:$0xff] %v327
                  %v329 = vld [vmem:[%s237 + $0x2b8] sm:$0xff]
                  %330 = vst [vmem:[%s238 + $0x168] sm:$0xff] %v329
                  %v331 = vld [vmem:[%s237 + $0x2c0] sm:$0xff]
                  %332 = vst [vmem:[%s238 + $0x170] sm:$0xff] %v331
                  %v333 = vld [vmem:[%s237 + $0x2c8] sm:$0xff]
                  %334 = vst [vmem:[%s238 + $0x178] sm:$0xff] %v333
                  %v335 = vld [vmem:[%s237 + $0x2d0] sm:$0xff]
                  %336 = vst [vmem:[%s238 + $0x180] sm:$0xff] %v335
                  %v337 = vld [vmem:[%s237 + $0x310] sm:$0xff]
                  %338 = vst [vmem:[%s238 + $0x188] sm:$0xff] %v337
                  %v339 = vld [vmem:[%s237 + $0x318] sm:$0xff]
                  %340 = vst [vmem:[%s238 + $0x190] sm:$0xff] %v339
                  %v341 = vld [vmem:[%s237 + $0x320] sm:$0xff]
                  %342 = vst [vmem:[%s238 + $0x198] sm:$0xff] %v341
                  %v343 = vld [vmem:[%s237 + $0x328] sm:$0xff]
                  %344 = vst [vmem:[%s238 + $0x1a0] sm:$0xff] %v343
                  %v345 = vld [vmem:[%s237 + $0x330] sm:$0xff]
                  %346 = vst [vmem:[%s238 + $0x1a8] sm:$0xff] %v345
                  %v347 = vld [vmem:[%s237 + $0x338] sm:$0xff]
                  %348 = vst [vmem:[%s238 + $0x1b0] sm:$0xff] %v347
                  %v349 = vld [vmem:[%s237 + $0x340] sm:$0xff]
                  %350 = vst [vmem:[%s238 + $0x1b8] sm:$0xff] %v349
                  %v351 = vld [vmem:[%s237 + $0x380] sm:$0xff]
                  %352 = vst [vmem:[%s238 + $0x1c0] sm:$0xff] %v351
                  %v353 = vld [vmem:[%s237 + $0x388] sm:$0xff]
                  %354 = vst [vmem:[%s238 + $0x1c8] sm:$0xff] %v353
                  %v355 = vld [vmem:[%s237 + $0x390] sm:$0xff]
                  %356 = vst [vmem:[%s238 + $0x1d0] sm:$0xff] %v355
                  %v357 = vld [vmem:[%s237 + $0x398] sm:$0xff]
                  %358 = vst [vmem:[%s238 + $0x1d8] sm:$0xff] %v357
                  %v359 = vld [vmem:[%s237 + $0x3a0] sm:$0xff]
                  %360 = vst [vmem:[%s238 + $0x1e0] sm:$0xff] %v359
                  %v361 = vld [vmem:[%s237 + $0x3a8] sm:$0xff]
                  %362 = vst [vmem:[%s238 + $0x1e8] sm:$0xff] %v361
                  %v363 = vld [vmem:[%s237 + $0x3b0] sm:$0xff]
                  %364 = vst [vmem:[%s238 + $0x1f0] sm:$0xff] %v363
                $region48: #{alexnet_features.9} parent=42 // loop_footer
                  %s236 = sadd.s32 1, %s232
                $region49: #{alexnet_features.9} parent=42 // loop_footer_branch
                  %231 = sbr.rel target = $region45
                $region50: #{alexnet_features.9} parent=42 // loop_exit
                  _
              $region43: #{alexnet_features.9} parent=27 // pred_fallthru
                _
              // Predicated region
              $region51: #{alexnet_features.9} parent=27 // pred_check
                _
              $region52: #{alexnet_features.9} parent=27 // pred_check_branch
                %366 = sbr.rel target = $region54
              $region53: #{alexnet_features.9} parent=27 // pred_region
                _
              $region54: #{alexnet_features.9} parent=27 // pred_fallthru
                _
            $region28: #{alexnet_features.9} parent=23 // pred_fallthru
              _
            // Predicated region
            $region29: #{alexnet_features.9} parent=23 // pred_check
              _
            $region30: #{alexnet_features.9} parent=23 // pred_check_branch
              %93 = sbr.rel target = $region32
            $region31: #{alexnet_features.9} parent=23 // pred_region
              loop: start=0, step=1, limit=1
              $region33: #{alexnet_features.9} parent=31 // loop_pre_header
                _
              $region34: #{alexnet_features.9} parent=31 // loop_header
                %s96 = sphi 0, %s100
                %p97 = scmp.ge.s32.totalorder %s96, 1
                %s101 = sphi %s87, %s87
                %s102 = sphi %s84, %s84
              $region35: #{alexnet_features.9} parent=31 // loop_header_branch
                %99 = sbr.rel (%p97) target = $region39
              $region36: #{alexnet_features.9} parent=31 // loop_body
                %v103 = vld [vmem:[%s101] sm:$0xff]
                %104 = vst [vmem:[%s102] sm:$0xff] %v103
                %v105 = vld [vmem:[%s101 + $0x8] sm:$0xff]
                %106 = vst [vmem:[%s102 + $0x8] sm:$0xff] %v105
                %v107 = vld [vmem:[%s101 + $0x10] sm:$0xff]
                %108 = vst [vmem:[%s102 + $0x10] sm:$0xff] %v107
                %v109 = vld [vmem:[%s101 + $0x18] sm:$0xff]
                %110 = vst [vmem:[%s102 + $0x18] sm:$0xff] %v109
                %v111 = vld [vmem:[%s101 + $0x20] sm:$0xff]
                %112 = vst [vmem:[%s102 + $0x20] sm:$0xff] %v111
                %v113 = vld [vmem:[%s101 + $0x28] sm:$0xff]
                %114 = vst [vmem:[%s102 + $0x28] sm:$0xff] %v113
                %v115 = vld [vmem:[%s101 + $0x30] sm:$0xff]
                %116 = vst [vmem:[%s102 + $0x30] sm:$0xff] %v115
                %v117 = vld [vmem:[%s101 + $0x70] sm:$0xff]
                %118 = vst [vmem:[%s102 + $0x38] sm:$0xff] %v117
                %v119 = vld [vmem:[%s101 + $0x78] sm:$0xff]
                %120 = vst [vmem:[%s102 + $0x40] sm:$0xff] %v119
                %v121 = vld [vmem:[%s101 + $0x80] sm:$0xff]
                %122 = vst [vmem:[%s102 + $0x48] sm:$0xff] %v121
                %v123 = vld [vmem:[%s101 + $0x88] sm:$0xff]
                %124 = vst [vmem:[%s102 + $0x50] sm:$0xff] %v123
                %v125 = vld [vmem:[%s101 + $0x90] sm:$0xff]
                %126 = vst [vmem:[%s102 + $0x58] sm:$0xff] %v125
                %v127 = vld [vmem:[%s101 + $0x98] sm:$0xff]
                %128 = vst [vmem:[%s102 + $0x60] sm:$0xff] %v127
                %v129 = vld [vmem:[%s101 + $0xa0] sm:$0xff]
                %130 = vst [vmem:[%s102 + $0x68] sm:$0xff] %v129
                %v131 = vld [vmem:[%s101 + $0xe0] sm:$0xff]
                %132 = vst [vmem:[%s102 + $0x70] sm:$0xff] %v131
                %v133 = vld [vmem:[%s101 + $0xe8] sm:$0xff]
                %134 = vst [vmem:[%s102 + $0x78] sm:$0xff] %v133
                %v135 = vld [vmem:[%s101 + $0xf0] sm:$0xff]
                %136 = vst [vmem:[%s102 + $0x80] sm:$0xff] %v135
                %v137 = vld [vmem:[%s101 + $0xf8] sm:$0xff]
                %138 = vst [vmem:[%s102 + $0x88] sm:$0xff] %v137
                %v139 = vld [vmem:[%s101 + $0x100] sm:$0xff]
                %140 = vst [vmem:[%s102 + $0x90] sm:$0xff] %v139
                %v141 = vld [vmem:[%s101 + $0x108] sm:$0xff]
                %142 = vst [vmem:[%s102 + $0x98] sm:$0xff] %v141
                %v143 = vld [vmem:[%s101 + $0x110] sm:$0xff]
                %144 = vst [vmem:[%s102 + $0xa0] sm:$0xff] %v143
                %v145 = vld [vmem:[%s101 + $0x150] sm:$0xff]
                %146 = vst [vmem:[%s102 + $0xa8] sm:$0xff] %v145
                %v147 = vld [vmem:[%s101 + $0x158] sm:$0xff]
                %148 = vst [vmem:[%s102 + $0xb0] sm:$0xff] %v147
                %v149 = vld [vmem:[%s101 + $0x160] sm:$0xff]
                %150 = vst [vmem:[%s102 + $0xb8] sm:$0xff] %v149
                %v151 = vld [vmem:[%s101 + $0x168] sm:$0xff]
                %152 = vst [vmem:[%s102 + $0xc0] sm:$0xff] %v151
                %v153 = vld [vmem:[%s101 + $0x170] sm:$0xff]
                %154 = vst [vmem:[%s102 + $0xc8] sm:$0xff] %v153
                %v155 = vld [vmem:[%s101 + $0x178] sm:$0xff]
                %156 = vst [vmem:[%s102 + $0xd0] sm:$0xff] %v155
                %v157 = vld [vmem:[%s101 + $0x180] sm:$0xff]
                %158 = vst [vmem:[%s102 + $0xd8] sm:$0xff] %v157
                %v159 = vld [vmem:[%s101 + $0x1c0] sm:$0xff]
                %160 = vst [vmem:[%s102 + $0xe0] sm:$0xff] %v159
                %v161 = vld [vmem:[%s101 + $0x1c8] sm:$0xff]
                %162 = vst [vmem:[%s102 + $0xe8] sm:$0xff] %v161
                %v163 = vld [vmem:[%s101 + $0x1d0] sm:$0xff]
                %164 = vst [vmem:[%s102 + $0xf0] sm:$0xff] %v163
                %v165 = vld [vmem:[%s101 + $0x1d8] sm:$0xff]
                %166 = vst [vmem:[%s102 + $0xf8] sm:$0xff] %v165
                %v167 = vld [vmem:[%s101 + $0x1e0] sm:$0xff]
                %168 = vst [vmem:[%s102 + $0x100] sm:$0xff] %v167
                %v169 = vld [vmem:[%s101 + $0x1e8] sm:$0xff]
                %170 = vst [vmem:[%s102 + $0x108] sm:$0xff] %v169
                %v171 = vld [vmem:[%s101 + $0x1f0] sm:$0xff]
                %172 = vst [vmem:[%s102 + $0x110] sm:$0xff] %v171
                %v173 = vld [vmem:[%s101 + $0x230] sm:$0xff]
                %174 = vst [vmem:[%s102 + $0x118] sm:$0xff] %v173
                %v175 = vld [vmem:[%s101 + $0x238] sm:$0xff]
                %176 = vst [vmem:[%s102 + $0x120] sm:$0xff] %v175
                %v177 = vld [vmem:[%s101 + $0x240] sm:$0xff]
                %178 = vst [vmem:[%s102 + $0x128] sm:$0xff] %v177
                %v179 = vld [vmem:[%s101 + $0x248] sm:$0xff]
                %180 = vst [vmem:[%s102 + $0x130] sm:$0xff] %v179
                %v181 = vld [vmem:[%s101 + $0x250] sm:$0xff]
                %182 = vst [vmem:[%s102 + $0x138] sm:$0xff] %v181
                %v183 = vld [vmem:[%s101 + $0x258] sm:$0xff]
                %184 = vst [vmem:[%s102 + $0x140] sm:$0xff] %v183
                %v185 = vld [vmem:[%s101 + $0x260] sm:$0xff]
                %186 = vst [vmem:[%s102 + $0x148] sm:$0xff] %v185
                %v187 = vld [vmem:[%s101 + $0x2a0] sm:$0xff]
                %188 = vst [vmem:[%s102 + $0x150] sm:$0xff] %v187
                %v189 = vld [vmem:[%s101 + $0x2a8] sm:$0xff]
                %190 = vst [vmem:[%s102 + $0x158] sm:$0xff] %v189
                %v191 = vld [vmem:[%s101 + $0x2b0] sm:$0xff]
                %192 = vst [vmem:[%s102 + $0x160] sm:$0xff] %v191
                %v193 = vld [vmem:[%s101 + $0x2b8] sm:$0xff]
                %194 = vst [vmem:[%s102 + $0x168] sm:$0xff] %v193
                %v195 = vld [vmem:[%s101 + $0x2c0] sm:$0xff]
                %196 = vst [vmem:[%s102 + $0x170] sm:$0xff] %v195
                %v197 = vld [vmem:[%s101 + $0x2c8] sm:$0xff]
                %198 = vst [vmem:[%s102 + $0x178] sm:$0xff] %v197
                %v199 = vld [vmem:[%s101 + $0x2d0] sm:$0xff]
                %200 = vst [vmem:[%s102 + $0x180] sm:$0xff] %v199
                %v201 = vld [vmem:[%s101 + $0x310] sm:$0xff]
                %202 = vst [vmem:[%s102 + $0x188] sm:$0xff] %v201
                %v203 = vld [vmem:[%s101 + $0x318] sm:$0xff]
                %204 = vst [vmem:[%s102 + $0x190] sm:$0xff] %v203
                %v205 = vld [vmem:[%s101 + $0x320] sm:$0xff]
                %206 = vst [vmem:[%s102 + $0x198] sm:$0xff] %v205
                %v207 = vld [vmem:[%s101 + $0x328] sm:$0xff]
                %208 = vst [vmem:[%s102 + $0x1a0] sm:$0xff] %v207
                %v209 = vld [vmem:[%s101 + $0x330] sm:$0xff]
                %210 = vst [vmem:[%s102 + $0x1a8] sm:$0xff] %v209
                %v211 = vld [vmem:[%s101 + $0x338] sm:$0xff]
                %212 = vst [vmem:[%s102 + $0x1b0] sm:$0xff] %v211
                %v213 = vld [vmem:[%s101 + $0x340] sm:$0xff]
                %214 = vst [vmem:[%s102 + $0x1b8] sm:$0xff] %v213
                %v215 = vld [vmem:[%s101 + $0x380] sm:$0xff]
                %216 = vst [vmem:[%s102 + $0x1c0] sm:$0xff] %v215
                %v217 = vld [vmem:[%s101 + $0x388] sm:$0xff]
                %218 = vst [vmem:[%s102 + $0x1c8] sm:$0xff] %v217
                %v219 = vld [vmem:[%s101 + $0x390] sm:$0xff]
                %220 = vst [vmem:[%s102 + $0x1d0] sm:$0xff] %v219
                %v221 = vld [vmem:[%s101 + $0x398] sm:$0xff]
                %222 = vst [vmem:[%s102 + $0x1d8] sm:$0xff] %v221
                %v223 = vld [vmem:[%s101 + $0x3a0] sm:$0xff]
                %224 = vst [vmem:[%s102 + $0x1e0] sm:$0xff] %v223
                %v225 = vld [vmem:[%s101 + $0x3a8] sm:$0xff]
                %226 = vst [vmem:[%s102 + $0x1e8] sm:$0xff] %v225
                %v227 = vld [vmem:[%s101 + $0x3b0] sm:$0xff]
                %228 = vst [vmem:[%s102 + $0x1f0] sm:$0xff] %v227
              $region37: #{alexnet_features.9} parent=31 // loop_footer
                %s100 = sadd.s32 1, %s96
              $region38: #{alexnet_features.9} parent=31 // loop_footer_branch
                %95 = sbr.rel target = $region34
              $region39: #{alexnet_features.9} parent=31 // loop_exit
                _
            $region32: #{alexnet_features.9} parent=23 // pred_fallthru
              _
          $region24: #{alexnet_features.9} parent=19 // pred_fallthru
            _
          %367 = vnop
        $region20: #{alexnet_features.9} parent=15 // pred_fallthru
          _
      $region16: #{alexnet_features.9} parent=5 // pred_fallthru
        _
      %p368 = scmp.le.s32.totalorder 1, %s7
      %p369 = scmp.lt.s32.totalorder %s7, 3
      %p370 = pnand %p368, %p369
      %p371 = pneg %p370
      // Predicated region
      $region55: #{alexnet_features.9} parent=5 // pred_check
        _
      $region56: #{alexnet_features.9} parent=5 // pred_check_branch
        %373 = sbr.rel (%p370) target = $region58
      $region57: #{alexnet_features.9} parent=5 // pred_region
        %s374 = ssub.s32 %s7, 1
        %s375 = sand.u32 %s20, 1
        %s376 = sand.u32 %s20, 1
        %s377 = smul.addr %s376, 504
        %s378 = scalar_lea.vmem [#allocation2], %s377
        // Predicated region
        $region59: #{alexnet_features.9} parent=57 // pred_check
          %p379 = pneg %p33
        $region60: #{alexnet_features.9} parent=57 // pred_check_branch
          %381 = sbr.rel (%p379) target = $region62
        $region61: #{alexnet_features.9} parent=57 // pred_region
          _
        $region62: #{alexnet_features.9} parent=57 // pred_fallthru
          _
        %s382 = sand.u32 %s20, 1
        %s383 = sand.u32 %s20, 1
        %s384 = smul.addr %s383, 504
        %s385 = scalar_lea.vmem [#allocation2], %s384
        %p386 = pneg %p33
        %p387 = pneg %p30
        %p388 = pneg %p59
        %p389 = pneg %p56
        %p390 = scmp.lt.s32.totalorder %s12, 1
        %s391 = scalar_select %p390, %s12, 1
        %s392 = smul.addr %s391, 7
        %s393 = smul.addr %s392, 8
        %s394 = scalar_lea.vmem %s1, %s393
        %p395 = scmp.lt.s32.totalorder %s12, 1
        %s396 = scalar_select %p395, %s12, 1
        %s397 = smul.addr %s396, 7
        %s398 = smul.addr %s397, 8
        %s399 = scalar_lea.vmem %s1, %s398
        %v400 = vld [vmem:[%s378] sm:$0xff]
        %v401 = vld [vmem:[%s378 + $0x8] sm:$0xff]
        %v402 = vld [vmem:[%s378 + $0x10] sm:$0xff]
        %v403 = vld [vmem:[%s378 + $0x18] sm:$0xff]
        %v404 = vld [vmem:[%s378 + $0x20] sm:$0xff]
        %v405 = vld [vmem:[%s378 + $0x28] sm:$0xff]
        %v406 = vld [vmem:[%s378 + $0x30] sm:$0x1]
        %v407 = vld [vmem:[%s378 + $0x38] sm:$0xff]
        %v408 = vld [vmem:[%s378 + $0x40] sm:$0xff]
        %v409 = vld [vmem:[%s378 + $0x48] sm:$0xff]
        %v410 = vld [vmem:[%s378 + $0x50] sm:$0xff]
        %v411 = vld [vmem:[%s378 + $0x58] sm:$0xff]
        %v412 = vld [vmem:[%s378 + $0x60] sm:$0xff]
        %v413 = vld [vmem:[%s378 + $0x68] sm:$0x1]
        %v414 = vld [vmem:[%s378 + $0x70] sm:$0xff]
        %v415 = vld [vmem:[%s378 + $0x78] sm:$0xff]
        %v416 = vld [vmem:[%s378 + $0x80] sm:$0xff]
        %v417 = vld [vmem:[%s378 + $0x88] sm:$0xff]
        %v418 = vld [vmem:[%s378 + $0x90] sm:$0xff]
        %v419 = vld [vmem:[%s378 + $0x98] sm:$0xff]
        %v420 = vld [vmem:[%s378 + $0xa0] sm:$0x1]
        %v421 = vld [vmem:[%s378 + $0xa8] sm:$0xff]
        %v422 = vld [vmem:[%s378 + $0xb0] sm:$0xff]
        %v423 = vld [vmem:[%s378 + $0xb8] sm:$0xff]
        %v424 = vld [vmem:[%s378 + $0xc0] sm:$0xff]
        %v425 = vld [vmem:[%s378 + $0xc8] sm:$0xff]
        %v426 = vld [vmem:[%s378 + $0xd0] sm:$0xff]
        %v427 = vld [vmem:[%s378 + $0xd8] sm:$0x1]
        %v428 = vld [vmem:[%s378 + $0xe0] sm:$0xff]
        %v429 = vld [vmem:[%s378 + $0xe8] sm:$0xff]
        %v430 = vld [vmem:[%s378 + $0xf0] sm:$0xff]
        %v431 = vld [vmem:[%s378 + $0xf8] sm:$0xff]
        %v432 = vld [vmem:[%s378 + $0x100] sm:$0xff]
        %v433 = vld [vmem:[%s378 + $0x108] sm:$0xff]
        %v434 = vld [vmem:[%s378 + $0x110] sm:$0x1]
        %v435 = vld [vmem:[%s378 + $0x118] sm:$0xff]
        %v436 = vld [vmem:[%s378 + $0x120] sm:$0xff]
        %v437 = vld [vmem:[%s378 + $0x128] sm:$0xff]
        %v438 = vld [vmem:[%s378 + $0x130] sm:$0xff]
        %v439 = vld [vmem:[%s378 + $0x138] sm:$0xff]
        %v440 = vld [vmem:[%s378 + $0x140] sm:$0xff]
        %v441 = vld [vmem:[%s378 + $0x148] sm:$0x1]
        %v442 = vld [vmem:[%s378 + $0x150] sm:$0xff]
        %v443 = vld [vmem:[%s378 + $0x158] sm:$0xff]
        %v444 = vld [vmem:[%s378 + $0x160] sm:$0xff]
        %v445 = vld [vmem:[%s378 + $0x168] sm:$0xff]
        %v446 = vld [vmem:[%s378 + $0x170] sm:$0xff]
        %v447 = vld [vmem:[%s378 + $0x178] sm:$0xff]
        %v448 = vld [vmem:[%s378 + $0x180] sm:$0x1]
        %v449 = vld [vmem:[%s378 + $0x188] sm:$0xff]
        %v450 = vld [vmem:[%s378 + $0x190] sm:$0xff]
        %v451 = vld [vmem:[%s378 + $0x198] sm:$0xff]
        %v452 = vld [vmem:[%s378 + $0x1a0] sm:$0xff]
        %v453 = vld [vmem:[%s378 + $0x1a8] sm:$0xff]
        %v454 = vld [vmem:[%s378 + $0x1b0] sm:$0xff]
        %v455 = vld [vmem:[%s378 + $0x1b8] sm:$0x1]
        %v456 = vld [vmem:[%s378 + $0x1c0] sm:$0xff]
        %v457 = vld [vmem:[%s378 + $0x1c8] sm:$0xff]
        %v458 = vld [vmem:[%s378 + $0x1d0] sm:$0xff]
        %v459 = vld [vmem:[%s378 + $0x1d8] sm:$0xff]
        %v460 = vld [vmem:[%s378 + $0x1e0] sm:$0xff]
        %v461 = vld [vmem:[%s378 + $0x1e8] sm:$0xff]
        %v462 = vld [vmem:[%s378 + $0x1f0] sm:$0x1]
        %vm463 = vcmask 523264
        %v464 = vsel %vm463, %v400, -inf
        %v465 = vsel %vm463, %v407, -inf
        %v466 = vmax.f32 %v464, %v465
        %v467 = vsel %vm463, %v414, -inf
        %v468 = vmax.f32 %v466, %v467
        %v469 = vsel %vm463, %v421, -inf
        %v470 = vmax.f32 %v468, %v469
        %v471 = vsel %vm463, %v428, -inf
        %v472 = vmax.f32 %v470, %v471
        %v473 = vsel %vm463, %v435, -inf
        %v474 = vmax.f32 %v472, %v473
        %v475 = vsel %vm463, %v442, -inf
        %v476 = vmax.f32 %v474, %v475
        %v477 = vsel %vm463, %v449, -inf
        %v478 = vmax.f32 %v476, %v477
        %v479 = vsel %vm463, %v456, -inf
        %v480 = vmax.f32 %v478, %v479
        %v481 = vsel %vm463, %v401, -inf
        %v482 = vsel %vm463, %v408, -inf
        %v483 = vmax.f32 %v481, %v482
        %v484 = vsel %vm463, %v415, -inf
        %v485 = vmax.f32 %v483, %v484
        %v486 = vsel %vm463, %v422, -inf
        %v487 = vmax.f32 %v485, %v486
        %v488 = vsel %vm463, %v429, -inf
        %v489 = vmax.f32 %v487, %v488
        %v490 = vsel %vm463, %v436, -inf
        %v491 = vmax.f32 %v489, %v490
        %v492 = vsel %vm463, %v443, -inf
        %v493 = vmax.f32 %v491, %v492
        %v494 = vsel %vm463, %v450, -inf
        %v495 = vmax.f32 %v493, %v494
        %v496 = vsel %vm463, %v457, -inf
        %v497 = vmax.f32 %v495, %v496
        %v498 = vsel %vm463, %v402, -inf
        %v499 = vsel %vm463, %v409, -inf
        %v500 = vmax.f32 %v498, %v499
        %v501 = vsel %vm463, %v416, -inf
        %v502 = vmax.f32 %v500, %v501
        %v503 = vsel %vm463, %v423, -inf
        %v504 = vmax.f32 %v502, %v503
        %v505 = vsel %vm463, %v430, -inf
        %v506 = vmax.f32 %v504, %v505
        %v507 = vsel %vm463, %v437, -inf
        %v508 = vmax.f32 %v506, %v507
        %v509 = vsel %vm463, %v444, -inf
        %v510 = vmax.f32 %v508, %v509
        %v511 = vsel %vm463, %v451, -inf
        %v512 = vmax.f32 %v510, %v511
        %v513 = vsel %vm463, %v458, -inf
        %v514 = vmax.f32 %v512, %v513
        %v515 = vsel %vm463, %v403, -inf
        %v516 = vsel %vm463, %v410, -inf
        %v517 = vmax.f32 %v515, %v516
        %v518 = vsel %vm463, %v417, -inf
        %v519 = vmax.f32 %v517, %v518
        %v520 = vsel %vm463, %v424, -inf
        %v521 = vmax.f32 %v519, %v520
        %v522 = vsel %vm463, %v431, -inf
        %v523 = vmax.f32 %v521, %v522
        %v524 = vsel %vm463, %v438, -inf
        %v525 = vmax.f32 %v523, %v524
        %v526 = vsel %vm463, %v445, -inf
        %v527 = vmax.f32 %v525, %v526
        %v528 = vsel %vm463, %v452, -inf
        %v529 = vmax.f32 %v527, %v528
        %v530 = vsel %vm463, %v459, -inf
        %v531 = vmax.f32 %v529, %v530
        %v532 = vsel %vm463, %v404, -inf
        %v533 = vsel %vm463, %v411, -inf
        %v534 = vmax.f32 %v532, %v533
        %v535 = vsel %vm463, %v418, -inf
        %v536 = vmax.f32 %v534, %v535
        %v537 = vsel %vm463, %v425, -inf
        %v538 = vmax.f32 %v536, %v537
        %v539 = vsel %vm463, %v432, -inf
        %v540 = vmax.f32 %v538, %v539
        %v541 = vsel %vm463, %v439, -inf
        %v542 = vmax.f32 %v540, %v541
        %v543 = vsel %vm463, %v446, -inf
        %v544 = vmax.f32 %v542, %v543
        %v545 = vsel %vm463, %v453, -inf
        %v546 = vmax.f32 %v544, %v545
        %v547 = vsel %vm463, %v460, -inf
        %v548 = vmax.f32 %v546, %v547
        %v549 = vsel %vm463, %v405, -inf
        %v550 = vsel %vm463, %v412, -inf
        %v551 = vmax.f32 %v549, %v550
        %v552 = vsel %vm463, %v419, -inf
        %v553 = vmax.f32 %v551, %v552
        %v554 = vsel %vm463, %v426, -inf
        %v555 = vmax.f32 %v553, %v554
        %v556 = vsel %vm463, %v433, -inf
        %v557 = vmax.f32 %v555, %v556
        %v558 = vsel %vm463, %v440, -inf
        %v559 = vmax.f32 %v557, %v558
        %v560 = vsel %vm463, %v447, -inf
        %v561 = vmax.f32 %v559, %v560
        %v562 = vsel %vm463, %v454, -inf
        %v563 = vmax.f32 %v561, %v562
        %v564 = vsel %vm463, %v461, -inf
        %v565 = vmax.f32 %v563, %v564
        %vm566 = vcmask 516096
        %v567 = vsel %vm566, %v406, -inf
        %v568 = vsel %vm566, %v413, -inf
        %v569 = vmax.f32 %v567, %v568
        %v570 = vsel %vm566, %v420, -inf
        %v571 = vmax.f32 %v569, %v570
        %v572 = vsel %vm566, %v427, -inf
        %v573 = vmax.f32 %v571, %v572
        %v574 = vsel %vm566, %v434, -inf
        %v575 = vmax.f32 %v573, %v574
        %v576 = vsel %vm566, %v441, -inf
        %v577 = vmax.f32 %v575, %v576
        %v578 = vsel %vm566, %v448, -inf
        %v579 = vmax.f32 %v577, %v578
        %v580 = vsel %vm566, %v455, -inf
        %v581 = vmax.f32 %v579, %v580
        %v582 = vsel %vm566, %v462, -inf
        %v583 = vmax.f32 %v581, %v582
        %584 = vst.msk [vmem:[%s399] sm:$0xff] %vm463, %v480
        %585 = vst.msk [vmem:[%s399 + $0x8] sm:$0xff] %vm463, %v497
        %586 = vst.msk [vmem:[%s399 + $0x10] sm:$0xff] %vm463, %v514
        %587 = vst.msk [vmem:[%s399 + $0x18] sm:$0xff] %vm463, %v531
        %588 = vst.msk [vmem:[%s399 + $0x20] sm:$0xff] %vm463, %v548
        %589 = vst.msk [vmem:[%s399 + $0x28] sm:$0xff] %vm463, %v565
        %590 = vst.msk [vmem:[%s399 + $0x30] sm:$0x1] %vm566, %v583
        %p591 = scmp.lt.s32.totalorder %s12, 1
        %s592 = scalar_select %p591, %s12, 1
        %s593 = smul.addr %s592, 7
        %s594 = smul.addr %s593, 8
        %s595 = scalar_lea.vmem %s1, %s594
        // Predicated region
        $region63: #{alexnet_features.9} parent=57 // pred_check
          %p596 = pneg %p56
        $region64: #{alexnet_features.9} parent=57 // pred_check_branch
          %598 = sbr.rel (%p596) target = $region66
        $region65: #{alexnet_features.9} parent=57 // pred_region
          _
        $region66: #{alexnet_features.9} parent=57 // pred_fallthru
          _
      $region58: #{alexnet_features.9} parent=5 // pred_fallthru
        _
      %p599 = scmp.le.s32.totalorder 2, %s7
      // Predicated region
      $region67: #{alexnet_features.9} parent=5 // pred_check
        %p600 = pneg %p599
      $region68: #{alexnet_features.9} parent=5 // pred_check_branch
        %602 = sbr.rel (%p600) target = $region70
      $region69: #{alexnet_features.9} parent=5 // pred_region
        %s603 = ssub.s32 %s7, 2
        // Predicated region
        $region71: #{alexnet_features.9} parent=69 // pred_check
          %p604 = pneg %p62
        $region72: #{alexnet_features.9} parent=69 // pred_check_branch
          %606 = sbr.rel (%p604) target = $region74
        $region73: #{alexnet_features.9} parent=69 // pred_region
          %p607 = scmp.lt.s32.totalorder %s13, 1
          %s608 = scalar_select %p607, %s13, 1
          %s609 = smul.addr %s608, 7
          %s610 = smul.addr %s609, 8
          %s611 = scalar_lea.vmem %s1, %s610
        $region74: #{alexnet_features.9} parent=69 // pred_fallthru
          _
      $region70: #{alexnet_features.9} parent=5 // pred_fallthru
        _
    $region6: #{alexnet_features.9} parent=1 // loop_footer
      %s11 = sadd.s32 1, %s7
    $region7: #{alexnet_features.9} parent=1 // loop_footer_branch
      %6 = sbr.rel target = $region3
    $region8: #{alexnet_features.9} parent=1 // loop_exit
      _

// kernel: alexnet_features.11
$region0: #{alexnet_features.11}
  #allocation0 [shape = 'u32[]', space=smem, size = 0x4, offset = 0x4, fixed_abs, tag = 'smem constant byte address 0x4 - core index']
  #allocation1 [shape = 'u32[144,128]{1,0:T(1,128)}', space=vmem, size = 0x12000, scoped, tag = 'internal scratch']
  %s0 = inlined_call_operand.vmem [shape: f32[9,2,9,192], index: 0, kind: input, shape index: {}]
  %s1 = inlined_call_operand.vmem [shape: f32[2,9,192], index: 1, kind: output, shape index: {}]
  %s2 = sld [smem:[#allocation0]]
  $region60: #{alexnet_features.11} parent=0
    _
  %s4 = ssub.s32 1, %s2
  %s5 = scalar_select 0, %s4, %s2
  $region1: #{alexnet_features.11} parent=0
    #allocation2 [shape = 'u8[294912]{0}', space=vmem, size = 0x48000, scoped, tag = 'input window, operand 0']
    loop: start=0, step=1, limit=4
    $region2: #{alexnet_features.11} parent=1 // loop_pre_header
      _
    $region3: #{alexnet_features.11} parent=1 // loop_header
      %s7 = sphi 0, %s11
      %p8 = scmp.ge.s32.totalorder %s7, 4
      %s17 = sphi 0, %s19
      %s20 = sphi 0, %s17
      %s21 = sphi 0, %s20
      %s37 = sphi 0, %s21
      %s43 = sphi 0, %s45
      %s46 = sphi 0, %s43
      %s47 = sphi 0, %s46
      %s63 = sphi 0, %s47
    $region4: #{alexnet_features.11} parent=1 // loop_header_branch
      %10 = sbr.rel (%p8) target = $region8
    $region5: #{alexnet_features.11} parent=1 // loop_body
      %s12 = ssub.s32 %s7, 1
      %s13 = ssub.s32 %s7, 2
      %s14 = sadd.s32 %s7, 1
      %s15 = ssub.s32 %s7, %s14
      %p16 = scmp.eq.s32.totalorder %s15, 0
      %s18 = sadd.s32 %s17, 1
      %s19 = scalar_select %p16, %s17, %s18
      %p22 = pneg %p16
      %p23 = scmp.eq.s32.totalorder %s7, 1
      %p24 = por %p22, %p23
      %p25 = scmp.ne.s32.totalorder %s17, %s20
      %p26 = scmp.eq.s32.totalorder %s7, 0
      %p27 = por %p25, %p26
      %p28 = scmp.ne.s32.totalorder %s17, %s20
      %p29 = scmp.eq.s32.totalorder %s12, 1
      %p30 = por %p28, %p29
      %p31 = scmp.ne.s32.totalorder %s20, %s21
      %p32 = scmp.eq.s32.totalorder %s12, 0
      %p33 = por %p31, %p32
      %p34 = scmp.ne.s32.totalorder %s20, %s21
      %p35 = scmp.eq.s32.totalorder %s13, 1
      %p36 = por %p34, %p35
      %p38 = scmp.ne.s32.totalorder %s21, %s37
      %p39 = scmp.eq.s32.totalorder %s13, 0
      %p40 = por %p38, %p39
      %s41 = ssub.s32 %s7, %s14
      %p42 = scmp.eq.s32.totalorder %s41, 0
      %s44 = sadd.s32 %s43, 1
      %s45 = scalar_select %p42, %s43, %s44
      %p48 = pneg %p42
      %p49 = scmp.eq.s32.totalorder %s7, 1
      %p50 = por %p48, %p49
      %p51 = scmp.ne.s32.totalorder %s43, %s46
      %p52 = scmp.eq.s32.totalorder %s7, 0
      %p53 = por %p51, %p52
      %p54 = scmp.ne.s32.totalorder %s43, %s46
      %p55 = scmp.eq.s32.totalorder %s12, 1
      %p56 = por %p54, %p55
      %p57 = scmp.ne.s32.totalorder %s46, %s47
      %p58 = scmp.eq.s32.totalorder %s12, 0
      %p59 = por %p57, %p58
      %p60 = scmp.ne.s32.totalorder %s46, %s47
      %p61 = scmp.eq.s32.totalorder %s13, 1
      %p62 = por %p60, %p61
      %p64 = scmp.ne.s32.totalorder %s47, %s63
      %p65 = scmp.eq.s32.totalorder %s13, 0
      %p66 = por %p64, %p65
      %p67 = scmp.le.s32.totalorder 1, %s7
      %p68 = scmp.lt.s32.totalorder %s7, 3
      %p69 = pnand %p67, %p68
      %p70 = pneg %p69
      // Predicated region
      $region9: #{alexnet_features.11} parent=5 // pred_check
        _
      $region10: #{alexnet_features.11} parent=5 // pred_check_branch
        %72 = sbr.rel (%p69) target = $region12
      $region11: #{alexnet_features.11} parent=5 // pred_region
        %s73 = ssub.s32 %s7, 1
      $region12: #{alexnet_features.11} parent=5 // pred_fallthru
        _
      %p74 = scmp.lt.s32.totalorder %s7, 2
      // Predicated region
      $region13: #{alexnet_features.11} parent=5 // pred_check
        %p75 = pneg %p74
      $region14: #{alexnet_features.11} parent=5 // pred_check_branch
        %77 = sbr.rel (%p75) target = $region16
      $region15: #{alexnet_features.11} parent=5 // pred_region
        // Predicated region
        $region17: #{alexnet_features.11} parent=15 // pred_check
          %p78 = pneg %p27
        $region18: #{alexnet_features.11} parent=15 // pred_check_branch
          %80 = sbr.rel (%p78) target = $region20
        $region19: #{alexnet_features.11} parent=15 // pred_region
          %s81 = sand.u32 %s17, 1
          %s82 = sand.u32 %s17, 1
          %s83 = smul.addr %s82, 288
          %s84 = scalar_lea.vmem [#allocation2], %s83
          %s85 = smul.addr %s7, 4
          %s86 = smul.addr %s85, 8
          %s87 = scalar_lea.vmem %s0, %s86
          // Predicated region
          $region21: #{alexnet_features.11} parent=19 // pred_check
            _
          $region22: #{alexnet_features.11} parent=19 // pred_check_branch
            %89 = sbr.rel (0) target = $region24
          $region23: #{alexnet_features.11} parent=19 // pred_region
            // Predicated region
            $region25: #{alexnet_features.11} parent=23 // pred_check
              _
            $region26: #{alexnet_features.11} parent=23 // pred_check_branch
              %91 = sbr.rel (0) target = $region28
            $region27: #{alexnet_features.11} parent=23 // pred_region
              loop: start=0, step=1, limit=1
              $region29: #{alexnet_features.11} parent=27 // loop_pre_header
                _
              $region30: #{alexnet_features.11} parent=27 // loop_header
                %s93 = sphi 0, %s97
                %p94 = scmp.ge.s32.totalorder %s93, 1
                %s98 = sphi %s87, %s87
                %s99 = sphi %s84, %s84
              $region31: #{alexnet_features.11} parent=27 // loop_header_branch
                %96 = sbr.rel (%p94) target = $region35
              $region32: #{alexnet_features.11} parent=27 // loop_body
                %v100 = vld [vmem:[%s98] sm:$0xff]
                %101 = vst [vmem:[%s99] sm:$0xff] %v100
                %v102 = vld [vmem:[%s98 + $0x8] sm:$0xff]
                %103 = vst [vmem:[%s99 + $0x8] sm:$0xff] %v102
                %v104 = vld [vmem:[%s98 + $0x10] sm:$0xff]
                %105 = vst [vmem:[%s99 + $0x10] sm:$0xff] %v104
                %v106 = vld [vmem:[%s98 + $0x18] sm:$0xff]
                %107 = vst [vmem:[%s99 + $0x18] sm:$0xff] %v106
                %v108 = vld [vmem:[%s98 + $0x40] sm:$0xff]
                %109 = vst [vmem:[%s99 + $0x20] sm:$0xff] %v108
                %v110 = vld [vmem:[%s98 + $0x48] sm:$0xff]
                %111 = vst [vmem:[%s99 + $0x28] sm:$0xff] %v110
                %v112 = vld [vmem:[%s98 + $0x50] sm:$0xff]
                %113 = vst [vmem:[%s99 + $0x30] sm:$0xff] %v112
                %v114 = vld [vmem:[%s98 + $0x58] sm:$0xff]
                %115 = vst [vmem:[%s99 + $0x38] sm:$0xff] %v114
                %v116 = vld [vmem:[%s98 + $0x80] sm:$0xff]
                %117 = vst [vmem:[%s99 + $0x40] sm:$0xff] %v116
                %v118 = vld [vmem:[%s98 + $0x88] sm:$0xff]
                %119 = vst [vmem:[%s99 + $0x48] sm:$0xff] %v118
                %v120 = vld [vmem:[%s98 + $0x90] sm:$0xff]
                %121 = vst [vmem:[%s99 + $0x50] sm:$0xff] %v120
                %v122 = vld [vmem:[%s98 + $0x98] sm:$0xff]
                %123 = vst [vmem:[%s99 + $0x58] sm:$0xff] %v122
                %v124 = vld [vmem:[%s98 + $0xc0] sm:$0xff]
                %125 = vst [vmem:[%s99 + $0x60] sm:$0xff] %v124
                %v126 = vld [vmem:[%s98 + $0xc8] sm:$0xff]
                %127 = vst [vmem:[%s99 + $0x68] sm:$0xff] %v126
                %v128 = vld [vmem:[%s98 + $0xd0] sm:$0xff]
                %129 = vst [vmem:[%s99 + $0x70] sm:$0xff] %v128
                %v130 = vld [vmem:[%s98 + $0xd8] sm:$0xff]
                %131 = vst [vmem:[%s99 + $0x78] sm:$0xff] %v130
                %v132 = vld [vmem:[%s98 + $0x100] sm:$0xff]
                %133 = vst [vmem:[%s99 + $0x80] sm:$0xff] %v132
                %v134 = vld [vmem:[%s98 + $0x108] sm:$0xff]
                %135 = vst [vmem:[%s99 + $0x88] sm:$0xff] %v134
                %v136 = vld [vmem:[%s98 + $0x110] sm:$0xff]
                %137 = vst [vmem:[%s99 + $0x90] sm:$0xff] %v136
                %v138 = vld [vmem:[%s98 + $0x118] sm:$0xff]
                %139 = vst [vmem:[%s99 + $0x98] sm:$0xff] %v138
                %v140 = vld [vmem:[%s98 + $0x140] sm:$0xff]
                %141 = vst [vmem:[%s99 + $0xa0] sm:$0xff] %v140
                %v142 = vld [vmem:[%s98 + $0x148] sm:$0xff]
                %143 = vst [vmem:[%s99 + $0xa8] sm:$0xff] %v142
                %v144 = vld [vmem:[%s98 + $0x150] sm:$0xff]
                %145 = vst [vmem:[%s99 + $0xb0] sm:$0xff] %v144
                %v146 = vld [vmem:[%s98 + $0x158] sm:$0xff]
                %147 = vst [vmem:[%s99 + $0xb8] sm:$0xff] %v146
                %v148 = vld [vmem:[%s98 + $0x180] sm:$0xff]
                %149 = vst [vmem:[%s99 + $0xc0] sm:$0xff] %v148
                %v150 = vld [vmem:[%s98 + $0x188] sm:$0xff]
                %151 = vst [vmem:[%s99 + $0xc8] sm:$0xff] %v150
                %v152 = vld [vmem:[%s98 + $0x190] sm:$0xff]
                %153 = vst [vmem:[%s99 + $0xd0] sm:$0xff] %v152
                %v154 = vld [vmem:[%s98 + $0x198] sm:$0xff]
                %155 = vst [vmem:[%s99 + $0xd8] sm:$0xff] %v154
                %v156 = vld [vmem:[%s98 + $0x1c0] sm:$0xff]
                %157 = vst [vmem:[%s99 + $0xe0] sm:$0xff] %v156
                %v158 = vld [vmem:[%s98 + $0x1c8] sm:$0xff]
                %159 = vst [vmem:[%s99 + $0xe8] sm:$0xff] %v158
                %v160 = vld [vmem:[%s98 + $0x1d0] sm:$0xff]
                %161 = vst [vmem:[%s99 + $0xf0] sm:$0xff] %v160
                %v162 = vld [vmem:[%s98 + $0x1d8] sm:$0xff]
                %163 = vst [vmem:[%s99 + $0xf8] sm:$0xff] %v162
                %v164 = vld [vmem:[%s98 + $0x200] sm:$0xff]
                %165 = vst [vmem:[%s99 + $0x100] sm:$0xff] %v164
                %v166 = vld [vmem:[%s98 + $0x208] sm:$0xff]
                %167 = vst [vmem:[%s99 + $0x108] sm:$0xff] %v166
                %v168 = vld [vmem:[%s98 + $0x210] sm:$0xff]
                %169 = vst [vmem:[%s99 + $0x110] sm:$0xff] %v168
                %v170 = vld [vmem:[%s98 + $0x218] sm:$0xff]
                %171 = vst [vmem:[%s99 + $0x118] sm:$0xff] %v170
              $region33: #{alexnet_features.11} parent=27 // loop_footer
                %s97 = sadd.s32 1, %s93
              $region34: #{alexnet_features.11} parent=27 // loop_footer_branch
                %92 = sbr.rel target = $region30
              $region35: #{alexnet_features.11} parent=27 // loop_exit
                _
            $region28: #{alexnet_features.11} parent=23 // pred_fallthru
              _
            // Predicated region
            $region36: #{alexnet_features.11} parent=23 // pred_check
              _
            $region37: #{alexnet_features.11} parent=23 // pred_check_branch
              %173 = sbr.rel target = $region39
            $region38: #{alexnet_features.11} parent=23 // pred_region
              _
            $region39: #{alexnet_features.11} parent=23 // pred_fallthru
              _
          $region24: #{alexnet_features.11} parent=19 // pred_fallthru
            _
          %174 = vnop
        $region20: #{alexnet_features.11} parent=15 // pred_fallthru
          _
      $region16: #{alexnet_features.11} parent=5 // pred_fallthru
        _
      %p175 = scmp.le.s32.totalorder 1, %s7
      %p176 = scmp.lt.s32.totalorder %s7, 3
      %p177 = pnand %p175, %p176
      %p178 = pneg %p177
      // Predicated region
      $region40: #{alexnet_features.11} parent=5 // pred_check
        _
      $region41: #{alexnet_features.11} parent=5 // pred_check_branch
        %180 = sbr.rel (%p177) target = $region43
      $region42: #{alexnet_features.11} parent=5 // pred_region
        %s181 = ssub.s32 %s7, 1
        %s182 = sand.u32 %s20, 1
        %s183 = sand.u32 %s20, 1
        %s184 = smul.addr %s183, 288
        %s185 = scalar_lea.vmem [#allocation2], %s184
        // Predicated region
        $region44: #{alexnet_features.11} parent=42 // pred_check
          %p186 = pneg %p33
        $region45: #{alexnet_features.11} parent=42 // pred_check_branch
          %188 = sbr.rel (%p186) target = $region47
        $region46: #{alexnet_features.11} parent=42 // pred_region
          _
        $region47: #{alexnet_features.11} parent=42 // pred_fallthru
          _
        %s189 = sand.u32 %s20, 1
        %s190 = sand.u32 %s20, 1
        %s191 = smul.addr %s190, 288
        %s192 = scalar_lea.vmem [#allocation2], %s191
        %p193 = pneg %p33
        %p194 = pneg %p30
        %p195 = pneg %p59
        %p196 = pneg %p56
        %p197 = scmp.lt.s32.totalorder %s12, 1
        %s198 = scalar_select %p197, %s12, 1
        %s199 = smul.addr %s198, 4
        %s200 = smul.addr %s199, 8
        %s201 = scalar_lea.vmem %s1, %s200
        %p202 = scmp.lt.s32.totalorder %s12, 1
        %s203 = scalar_select %p202, %s12, 1
        %s204 = smul.addr %s203, 4
        %s205 = smul.addr %s204, 8
        %s206 = scalar_lea.vmem %s1, %s205
        %v207 = vld [vmem:[%s185] sm:$0xff]
        %v208 = vld [vmem:[%s185 + $0x8] sm:$0xff]
        %v209 = vld [vmem:[%s185 + $0x10] sm:$0x1]
        %v210 = vld [vmem:[%s185 + $0x18] sm:$0x1]
        %v211 = vld [vmem:[%s185 + $0x20] sm:$0xff]
        %v212 = vld [vmem:[%s185 + $0x28] sm:$0xff]
        %v213 = vld [vmem:[%s185 + $0x30] sm:$0x1]
        %v214 = vld [vmem:[%s185 + $0x38] sm:$0x1]
        %v215 = vld [vmem:[%s185 + $0x40] sm:$0xff]
        %v216 = vld [vmem:[%s185 + $0x48] sm:$0xff]
        %v217 = vld [vmem:[%s185 + $0x50] sm:$0x1]
        %v218 = vld [vmem:[%s185 + $0x58] sm:$0x1]
        %v219 = vld [vmem:[%s185 + $0x60] sm:$0xff]
        %v220 = vld [vmem:[%s185 + $0x68] sm:$0xff]
        %v221 = vld [vmem:[%s185 + $0x70] sm:$0x1]
        %v222 = vld [vmem:[%s185 + $0x78] sm:$0x1]
        %v223 = vld [vmem:[%s185 + $0x80] sm:$0xff]
        %v224 = vld [vmem:[%s185 + $0x88] sm:$0xff]
        %v225 = vld [vmem:[%s185 + $0x90] sm:$0x1]
        %v226 = vld [vmem:[%s185 + $0x98] sm:$0x1]
        %v227 = vld [vmem:[%s185 + $0xa0] sm:$0xff]
        %v228 = vld [vmem:[%s185 + $0xa8] sm:$0xff]
        %v229 = vld [vmem:[%s185 + $0xb0] sm:$0x1]
        %v230 = vld [vmem:[%s185 + $0xb8] sm:$0x1]
        %v231 = vld [vmem:[%s185 + $0xc0] sm:$0xff]
        %v232 = vld [vmem:[%s185 + $0xc8] sm:$0xff]
        %v233 = vld [vmem:[%s185 + $0xd0] sm:$0x1]
        %v234 = vld [vmem:[%s185 + $0xd8] sm:$0x1]
        %v235 = vld [vmem:[%s185 + $0xe0] sm:$0xff]
        %v236 = vld [vmem:[%s185 + $0xe8] sm:$0xff]
        %v237 = vld [vmem:[%s185 + $0xf0] sm:$0x1]
        %v238 = vld [vmem:[%s185 + $0xf8] sm:$0x1]
        %v239 = vld [vmem:[%s185 + $0x100] sm:$0xff]
        %v240 = vld [vmem:[%s185 + $0x108] sm:$0xff]
        %v241 = vld [vmem:[%s185 + $0x110] sm:$0x1]
        %v242 = vld [vmem:[%s185 + $0x118] sm:$0x1]
        %v243 = vmax.f32 %v207, %v211
        %v244 = vmax.f32 %v243, %v215
        %v245 = vmax.f32 %v244, %v219
        %v246 = vmax.f32 %v245, %v223
        %v247 = vmax.f32 %v246, %v227
        %v248 = vmax.f32 %v247, %v231
        %v249 = vmax.f32 %v248, %v235
        %v250 = vmax.f32 %v249, %v239
        %vm251 = vcmask 523264
        %v252 = vsel %vm251, %v208, -inf
        %v253 = vsel %vm251, %v212, -inf
        %v254 = vmax.f32 %v252, %v253
        %v255 = vsel %vm251, %v216, -inf
        %v256 = vmax.f32 %v254, %v255
        %v257 = vsel %vm251, %v220, -inf
        %v258 = vmax.f32 %v256, %v257
        %v259 = vsel %vm251, %v224, -inf
        %v260 = vmax.f32 %v258, %v259
        %v261 = vsel %vm251, %v228, -inf
        %v262 = vmax.f32 %v260, %v261
        %v263 = vsel %vm251, %v232, -inf
        %v264 = vmax.f32 %v262, %v263
        %v265 = vsel %vm251, %v236, -inf
        %v266 = vmax.f32 %v264, %v265
        %v267 = vsel %vm251, %v240, -inf
        %v268 = vmax.f32 %v266, %v267
        %vm269 = vcmask 1040384
        %v270 = vsel %vm269, %v209, -inf
        %v271 = vsel %vm269, %v213, -inf
        %v272 = vmax.f32 %v270, %v271
        %v273 = vsel %vm269, %v217, -inf
        %v274 = vmax.f32 %v272, %v273
        %v275 = vsel %vm269, %v221, -inf
        %v276 = vmax.f32 %v274, %v275
        %v277 = vsel %vm269, %v225, -inf
        %v278 = vmax.f32 %v276, %v277
        %v279 = vsel %vm269, %v229, -inf
        %v280 = vmax.f32 %v278, %v279
        %v281 = vsel %vm269, %v233, -inf
        %v282 = vmax.f32 %v280, %v281
        %v283 = vsel %vm269, %v237, -inf
        %v284 = vmax.f32 %v282, %v283
        %v285 = vsel %vm269, %v241, -inf
        %v286 = vmax.f32 %v284, %v285
        %vm287 = vcmask 516096
        %v288 = vsel %vm287, %v210, -inf
        %v289 = vsel %vm287, %v214, -inf
        %v290 = vmax.f32 %v288, %v289
        %v291 = vsel %vm287, %v218, -inf
        %v292 = vmax.f32 %v290, %v291
        %v293 = vsel %vm287, %v222, -inf
        %v294 = vmax.f32 %v292, %v293
        %v295 = vsel %vm287, %v226, -inf
        %v296 = vmax.f32 %v294, %v295
        %v297 = vsel %vm287, %v230, -inf
        %v298 = vmax.f32 %v296, %v297
        %v299 = vsel %vm287, %v234, -inf
        %v300 = vmax.f32 %v298, %v299
        %v301 = vsel %vm287, %v238, -inf
        %v302 = vmax.f32 %v300, %v301
        %v303 = vsel %vm287, %v242, -inf
        %v304 = vmax.f32 %v302, %v303
        %305 = vst [vmem:[%s206] sm:$0xff] %v250
        %306 = vst.msk [vmem:[%s206 + $0x8] sm:$0xff] %vm251, %v268
        %307 = vst [vmem:[%s206 + $0x10] sm:$0x1] %v286
        %308 = vst.msk [vmem:[%s206 + $0x18] sm:$0x1] %vm287, %v304
        %p309 = scmp.lt.s32.totalorder %s12, 1
        %s310 = scalar_select %p309, %s12, 1
        %s311 = smul.addr %s310, 4
        %s312 = smul.addr %s311, 8
        %s313 = scalar_lea.vmem %s1, %s312
        // Predicated region
        $region48: #{alexnet_features.11} parent=42 // pred_check
          %p314 = pneg %p56
        $region49: #{alexnet_features.11} parent=42 // pred_check_branch
          %316 = sbr.rel (%p314) target = $region51
        $region50: #{alexnet_features.11} parent=42 // pred_region
          _
        $region51: #{alexnet_features.11} parent=42 // pred_fallthru
          _
      $region43: #{alexnet_features.11} parent=5 // pred_fallthru
        _
      %p317 = scmp.le.s32.totalorder 2, %s7
      // Predicated region
      $region52: #{alexnet_features.11} parent=5 // pred_check
        %p318 = pneg %p317
      $region53: #{alexnet_features.11} parent=5 // pred_check_branch
        %320 = sbr.rel (%p318) target = $region55
      $region54: #{alexnet_features.11} parent=5 // pred_region
        %s321 = ssub.s32 %s7, 2
        // Predicated region
        $region56: #{alexnet_features.11} parent=54 // pred_check
          %p322 = pneg %p62
        $region57: #{alexnet_features.11} parent=54 // pred_check_branch
          %324 = sbr.rel (%p322) target = $region59
        $region58: #{alexnet_features.11} parent=54 // pred_region
          %p325 = scmp.lt.s32.totalorder %s13, 1
          %s326 = scalar_select %p325, %s13, 1
          %s327 = smul.addr %s326, 4
          %s328 = smul.addr %s327, 8
          %s329 = scalar_lea.vmem %s1, %s328
        $region59: #{alexnet_features.11} parent=54 // pred_fallthru
          _
      $region55: #{alexnet_features.11} parent=5 // pred_fallthru
        _
    $region6: #{alexnet_features.11} parent=1 // loop_footer
      %s11 = sadd.s32 1, %s7
    $region7: #{alexnet_features.11} parent=1 // loop_footer_branch
      %6 = sbr.rel target = $region3
    $region8: #{alexnet_features.11} parent=1 // loop_exit
      _

// kernel: alexnet_features.10
$region0: #{alexnet_features.10}
  #allocation0 [shape = 'u32[]', space=smem, size = 0x4, offset = 0x4, fixed_abs, tag = 'smem constant byte address 0x4 - core index']
  #allocation1 [shape = 'u32[144,128]{1,0:T(1,128)}', space=vmem, size = 0x12000, scoped, tag = 'internal scratch']
  #allocation2 [shape = 'f32[98,192]{1,0:T(8,128)}', space=vmem, size = 0x1a000, scoped, tag = 'scratch operand']
  %s0 = inlined_call_operand.vmem [shape: bf16[98,1664], index: 0, kind: input, shape index: {}]
  %s1 = inlined_call_operand.vmem [shape: bf16[1664,192], index: 1, kind: input, shape index: {}]
  %s2 = inlined_call_operand.vmem [shape: f32[1,192], index: 2, kind: input, shape index: {}]
  %s3 = inlined_call_operand.vmem [shape: f32[98,192], index: 3, kind: output, shape index: {}]
  %s4 = sld [smem:[#allocation0]]
  $region30: #{alexnet_features.10} parent=0
    _
  %s6 = ssub.s32 1, %s4
  %s7 = scalar_select 0, %s6, %s4
  // Predicated region
  $region2: #{alexnet_features.10} parent=0 // pred_check
    _
  $region3: #{alexnet_features.10} parent=0 // pred_check_branch
    %9 = sbr.rel (0) target = $region5
  $region4: #{alexnet_features.10} parent=0 // pred_region
    _
  $region5: #{alexnet_features.10} parent=0 // pred_fallthru
    _
  // Predicated region
  $region6: #{alexnet_features.10} parent=0 // pred_check
    _
  $region7: #{alexnet_features.10} parent=0 // pred_check_branch
    %11 = sbr.rel (0) target = $region9
  $region8: #{alexnet_features.10} parent=0 // pred_region
    _
  $region9: #{alexnet_features.10} parent=0 // pred_fallthru
    _
  // Predicated region
  $region10: #{alexnet_features.10} parent=0 // pred_check
    _
  $region11: #{alexnet_features.10} parent=0 // pred_check_branch
    %13 = sbr.rel (0) target = $region13
  $region12: #{alexnet_features.10} parent=0 // pred_region
    _
  $region13: #{alexnet_features.10} parent=0 // pred_fallthru
    _
  %p15 = scmp.eq.s32.totalorder 0, 0
  // Predicated region
  $region14: #{alexnet_features.10} parent=0 // pred_check
    %p16 = pneg %p15
  $region15: #{alexnet_features.10} parent=0 // pred_check_branch
    %18 = sbr.rel (%p16) target = $region17
  $region16: #{alexnet_features.10} parent=0 // pred_region
    %19 = vst [vmem:[#allocation2] sm:$0xff] 0.0
    %vm20 = vcmask 523264
    %21 = vst.msk [vmem:[#allocation2 + $0x8] sm:$0xff] %vm20, 0.0
    %22 = vst [vmem:[#allocation2 + $0x10] sm:$0xff] 0.0
    %23 = vst.msk [vmem:[#allocation2 + $0x18] sm:$0xff] %vm20, 0.0
    %24 = vst [vmem:[#allocation2 + $0x20] sm:$0xff] 0.0
    %25 = vst.msk [vmem:[#allocation2 + $0x28] sm:$0xff] %vm20, 0.0
    %26 = vst [vmem:[#allocation2 + $0x30] sm:$0xff] 0.0
    %27 = vst.msk [vmem:[#allocation2 + $0x38] sm:$0xff] %vm20, 0.0
    %28 = vst [vmem:[#allocation2 + $0x40] sm:$0xff] 0.0
    %29 = vst.msk [vmem:[#allocation2 + $0x48] sm:$0xff] %vm20, 0.0
    %30 = vst [vmem:[#allocation2 + $0x50] sm:$0xff] 0.0
    %31 = vst.msk [vmem:[#allocation2 + $0x58] sm:$0xff] %vm20, 0.0
    %32 = vst [vmem:[#allocation2 + $0x60] sm:$0xff] 0.0
    %33 = vst.msk [vmem:[#allocation2 + $0x68] sm:$0xff] %vm20, 0.0
    %34 = vst [vmem:[#allocation2 + $0x70] sm:$0xff] 0.0
    %35 = vst.msk [vmem:[#allocation2 + $0x78] sm:$0xff] %vm20, 0.0
    %36 = vst [vmem:[#allocation2 + $0x80] sm:$0xff] 0.0
    %37 = vst.msk [vmem:[#allocation2 + $0x88] sm:$0xff] %vm20, 0.0
    %38 = vst [vmem:[#allocation2 + $0x90] sm:$0xff] 0.0
    %39 = vst.msk [vmem:[#allocation2 + $0x98] sm:$0xff] %vm20, 0.0
    %40 = vst [vmem:[#allocation2 + $0xa0] sm:$0xff] 0.0
    %41 = vst.msk [vmem:[#allocation2 + $0xa8] sm:$0xff] %vm20, 0.0
    %42 = vst [vmem:[#allocation2 + $0xb0] sm:$0xff] 0.0
    %43 = vst.msk [vmem:[#allocation2 + $0xb8] sm:$0xff] %vm20, 0.0
    %44 = vst [vmem:[#allocation2 + $0xc0] sm:$0x3] 0.0
    %vm45 = vcmask 517120
    %46 = vst.msk [vmem:[#allocation2 + $0xc8] sm:$0x3] %vm45, 0.0
  $region17: #{alexnet_features.10} parent=0 // pred_fallthru
    _
  %v47 = vld [vmem:[#allocation2] sm:$0xff]
  %v48 = vld [vmem:[#allocation2 + $0x8] sm:$0xff]
  %v49 = vld [vmem:[#allocation2 + $0x10] sm:$0xff]
  %v50 = vld [vmem:[#allocation2 + $0x18] sm:$0xff]
  %v51 = vld [vmem:[#allocation2 + $0x20] sm:$0xff]
  %v52 = vld [vmem:[#allocation2 + $0x28] sm:$0xff]
  %v53 = vld [vmem:[#allocation2 + $0x30] sm:$0xff]
  %v54 = vld [vmem:[#allocation2 + $0x38] sm:$0xff]
  %v55 = vld [vmem:[#allocation2 + $0x40] sm:$0xff]
  %v56 = vld [vmem:[#allocation2 + $0x48] sm:$0xff]
  %v57 = vld [vmem:[#allocation2 + $0x50] sm:$0xff]
  %v58 = vld [vmem:[#allocation2 + $0x58] sm:$0xff]
  %v59 = vld [vmem:[#allocation2 + $0x60] sm:$0xff]
  %v60 = vld [vmem:[#allocation2 + $0x68] sm:$0xff]
  %v61 = vld [vmem:[#allocation2 + $0x70] sm:$0xff]
  %v62 = vld [vmem:[#allocation2 + $0x78] sm:$0xff]
  %v63 = vld [vmem:[#allocation2 + $0x80] sm:$0xff]
  %v64 = vld [vmem:[#allocation2 + $0x88] sm:$0xff]
  %v65 = vld [vmem:[#allocation2 + $0x90] sm:$0xff]
  %v66 = vld [vmem:[#allocation2 + $0x98] sm:$0xff]
  %v67 = vld [vmem:[#allocation2 + $0xa0] sm:$0xff]
  %v68 = vld [vmem:[#allocation2 + $0xa8] sm:$0xff]
  %v69 = vld [vmem:[#allocation2 + $0xb0] sm:$0xff]
  %v70 = vld [vmem:[#allocation2 + $0xb8] sm:$0xff]
  %v71 = vld [vmem:[#allocation2 + $0xc0] sm:$0x3]
  %v72 = vld [vmem:[#allocation2 + $0xc8] sm:$0x3]
  %v73 = vld [vmem:[%s0] sm:$0xff]
  %v74 = vld [vmem:[%s0 + $0x8] sm:$0xff]
  %v75 = vld [vmem:[%s0 + $0x10] sm:$0xff]
  %v76 = vld [vmem:[%s0 + $0x18] sm:$0xff]
  %v77 = vld [vmem:[%s0 + $0x20] sm:$0xff]
  %v78 = vld [vmem:[%s0 + $0x28] sm:$0xff]
  %v79 = vld [vmem:[%s0 + $0x30] sm:$0xf]
  %v80 = vld [vmem:[%s0 + $0x34] sm:$0xff]
  %v81 = vld [vmem:[%s0 + $0x3c] sm:$0xff]
  %v82 = vld [vmem:[%s0 + $0x44] sm:$0xff]
  %v83 = vld [vmem:[%s0 + $0x4c] sm:$0xff]
  %v84 = vld [vmem:[%s0 + $0x54] sm:$0xff]
  %v85 = vld [vmem:[%s0 + $0x5c] sm:$0xff]
  %v86 = vld [vmem:[%s0 + $0x64] sm:$0xf]
  %v87 = vld [vmem:[%s0 + $0x68] sm:$0xff]
  %v88 = vld [vmem:[%s0 + $0x70] sm:$0xff]
  %v89 = vld [vmem:[%s0 + $0x78] sm:$0xff]
  %v90 = vld [vmem:[%s0 + $0x80] sm:$0xff]
  %v91 = vld [vmem:[%s0 + $0x88] sm:$0xff]
  %v92 = vld [vmem:[%s0 + $0x90] sm:$0xff]
  %v93 = vld [vmem:[%s0 + $0x98] sm:$0xf]
  %v94 = vld [vmem:[%s0 + $0x9c] sm:$0xff]
  %v95 = vld [vmem:[%s0 + $0xa4] sm:$0xff]
  %v96 = vld [vmem:[%s0 + $0xac] sm:$0xff]
  %v97 = vld [vmem:[%s0 + $0xb4] sm:$0xff]
  %v98 = vld [vmem:[%s0 + $0xbc] sm:$0xff]
  %v99 = vld [vmem:[%s0 + $0xc4] sm:$0xff]
  %v100 = vld [vmem:[%s0 + $0xcc] sm:$0xf]
  %v101 = vld [vmem:[%s0 + $0xd0] sm:$0xff]
  %v102 = vld [vmem:[%s0 + $0xd8] sm:$0xff]
  %v103 = vld [vmem:[%s0 + $0xe0] sm:$0xff]
  %v104 = vld [vmem:[%s0 + $0xe8] sm:$0xff]
  %v105 = vld [vmem:[%s0 + $0xf0] sm:$0xff]
  %v106 = vld [vmem:[%s0 + $0xf8] sm:$0xff]
  %v107 = vld [vmem:[%s0 + $0x100] sm:$0xf]
  %v108 = vld [vmem:[%s0 + $0x104] sm:$0xff]
  %v109 = vld [vmem:[%s0 + $0x10c] sm:$0xff]
  %v110 = vld [vmem:[%s0 + $0x114] sm:$0xff]
  %v111 = vld [vmem:[%s0 + $0x11c] sm:$0xff]
  %v112 = vld [vmem:[%s0 + $0x124] sm:$0xff]
  %v113 = vld [vmem:[%s0 + $0x12c] sm:$0xff]
  %v114 = vld [vmem:[%s0 + $0x134] sm:$0xf]
  %v115 = vld [vmem:[%s0 + $0x138] sm:$0xff]
  %v116 = vld [vmem:[%s0 + $0x140] sm:$0xff]
  %v117 = vld [vmem:[%s0 + $0x148] sm:$0xff]
  %v118 = vld [vmem:[%s0 + $0x150] sm:$0xff]
  %v119 = vld [vmem:[%s0 + $0x158] sm:$0xff]
  %v120 = vld [vmem:[%s0 + $0x160] sm:$0xff]
  %v121 = vld [vmem:[%s0 + $0x168] sm:$0xf]
  %v122 = vld [vmem:[%s0 + $0x16c] sm:$0xff]
  %v123 = vld [vmem:[%s0 + $0x174] sm:$0xff]
  %v124 = vld [vmem:[%s0 + $0x17c] sm:$0xff]
  %v125 = vld [vmem:[%s0 + $0x184] sm:$0xff]
  %v126 = vld [vmem:[%s0 + $0x18c] sm:$0xff]
  %v127 = vld [vmem:[%s0 + $0x194] sm:$0xff]
  %v128 = vld [vmem:[%s0 + $0x19c] sm:$0xf]
  %v129 = vld [vmem:[%s0 + $0x1a0] sm:$0xff]
  %v130 = vld [vmem:[%s0 + $0x1a8] sm:$0xff]
  %v131 = vld [vmem:[%s0 + $0x1b0] sm:$0xff]
  %v132 = vld [vmem:[%s0 + $0x1b8] sm:$0xff]
  %v133 = vld [vmem:[%s0 + $0x1c0] sm:$0xff]
  %v134 = vld [vmem:[%s0 + $0x1c8] sm:$0xff]
  %v135 = vld [vmem:[%s0 + $0x1d0] sm:$0xf]
  %v136 = vld [vmem:[%s0 + $0x1d4] sm:$0xff]
  %v137 = vld [vmem:[%s0 + $0x1dc] sm:$0xff]
  %v138 = vld [vmem:[%s0 + $0x1e4] sm:$0xff]
  %v139 = vld [vmem:[%s0 + $0x1ec] sm:$0xff]
  %v140 = vld [vmem:[%s0 + $0x1f4] sm:$0xff]
  %v141 = vld [vmem:[%s0 + $0x1fc] sm:$0xff]
  %v142 = vld [vmem:[%s0 + $0x204] sm:$0xf]
  %v143 = vld [vmem:[%s0 + $0x208] sm:$0xff]
  %v144 = vld [vmem:[%s0 + $0x210] sm:$0xff]
  %v145 = vld [vmem:[%s0 + $0x218] sm:$0xff]
  %v146 = vld [vmem:[%s0 + $0x220] sm:$0xff]
  %v147 = vld [vmem:[%s0 + $0x228] sm:$0xff]
  %v148 = vld [vmem:[%s0 + $0x230] sm:$0xff]
  %v149 = vld [vmem:[%s0 + $0x238] sm:$0xf]
  %v150 = vld [vmem:[%s0 + $0x23c] sm:$0xff]
  %v151 = vld [vmem:[%s0 + $0x244] sm:$0xff]
  %v152 = vld [vmem:[%s0 + $0x24c] sm:$0xff]
  %v153 = vld [vmem:[%s0 + $0x254] sm:$0xff]
  %v154 = vld [vmem:[%s0 + $0x25c] sm:$0xff]
  %v155 = vld [vmem:[%s0 + $0x264] sm:$0xff]
  %v156 = vld [vmem:[%s0 + $0x26c] sm:$0xf]
  %v157 = vld [vmem:[%s0 + $0x270] sm:$0x11]
  %v158 = vld [vmem:[%s0 + $0x278] sm:$0x11]
  %v159 = vld [vmem:[%s0 + $0x280] sm:$0x11]
  %v160 = vld [vmem:[%s0 + $0x288] sm:$0x11]
  %v161 = vld [vmem:[%s0 + $0x290] sm:$0x11]
  %v162 = vld [vmem:[%s0 + $0x298] sm:$0x11]
  %v163 = vld [vmem:[%s0 + $0x2a0] sm:$0x1]
  %v164 = vld [vmem:[%s1] sm:$0xff]
  %v165 = vld [vmem:[%s1 + $0x8] sm:$0xff]
  %v166 = vld [vmem:[%s1 + $0x10] sm:$0xff]
  %v167 = vld [vmem:[%s1 + $0x18] sm:$0xff]
  %v168 = vld [vmem:[%s1 + $0x20] sm:$0xff]
  %v169 = vld [vmem:[%s1 + $0x28] sm:$0xff]
  %v170 = vld [vmem:[%s1 + $0x30] sm:$0xff]
  %v171 = vld [vmem:[%s1 + $0x38] sm:$0xff]
  %v172 = vld [vmem:[%s1 + $0x40] sm:$0xff]
  %v173 = vld [vmem:[%s1 + $0x48] sm:$0xff]
  %v174 = vld [vmem:[%s1 + $0x50] sm:$0xff]
  %v175 = vld [vmem:[%s1 + $0x58] sm:$0xff]
  %v176 = vld [vmem:[%s1 + $0x60] sm:$0xff]
  %v177 = vld [vmem:[%s1 + $0x68] sm:$0xff]
  %v178 = vld [vmem:[%s1 + $0x70] sm:$0xff]
  %v179 = vld [vmem:[%s1 + $0x78] sm:$0xff]
  %v180 = vld [vmem:[%s1 + $0x80] sm:$0xff]
  %v181 = vld [vmem:[%s1 + $0x88] sm:$0xff]
  %v182 = vld [vmem:[%s1 + $0x90] sm:$0xff]
  %v183 = vld [vmem:[%s1 + $0x98] sm:$0xff]
  %v184 = vld [vmem:[%s1 + $0xa0] sm:$0xff]
  %v185 = vld [vmem:[%s1 + $0xa8] sm:$0xff]
  %v186 = vld [vmem:[%s1 + $0xb0] sm:$0xff]
  %v187 = vld [vmem:[%s1 + $0xb8] sm:$0xff]
  %v188 = vld [vmem:[%s1 + $0xc0] sm:$0xff]
  %v189 = vld [vmem:[%s1 + $0xc8] sm:$0xff]
  %v190 = vld [vmem:[%s1 + $0xd0] sm:$0xff]
  %v191 = vld [vmem:[%s1 + $0xd8] sm:$0xff]
  %v192 = vld [vmem:[%s1 + $0xe0] sm:$0xff]
  %v193 = vld [vmem:[%s1 + $0xe8] sm:$0xff]
  %v194 = vld [vmem:[%s1 + $0xf0] sm:$0xff]
  %v195 = vld [vmem:[%s1 + $0xf8] sm:$0xff]
  %v196 = vld [vmem:[%s1 + $0x100] sm:$0xff]
  %v197 = vld [vmem:[%s1 + $0x108] sm:$0xff]
  %v198 = vld [vmem:[%s1 + $0x110] sm:$0xff]
  %v199 = vld [vmem:[%s1 + $0x118] sm:$0xff]
  %v200 = vld [vmem:[%s1 + $0x120] sm:$0xff]
  %v201 = vld [vmem:[%s1 + $0x128] sm:$0xff]
  %v202 = vld [vmem:[%s1 + $0x130] sm:$0xff]
  %v203 = vld [vmem:[%s1 + $0x138] sm:$0xff]
  %v204 = vld [vmem:[%s1 + $0x140] sm:$0xff]
  %v205 = vld [vmem:[%s1 + $0x148] sm:$0xff]
  %v206 = vld [vmem:[%s1 + $0x150] sm:$0xff]
  %v207 = vld [vmem:[%s1 + $0x158] sm:$0xff]
  %v208 = vld [vmem:[%s1 + $0x160] sm:$0xff]
  %v209 = vld [vmem:[%s1 + $0x168] sm:$0xff]
  %v210 = vld [vmem:[%s1 + $0x170] sm:$0xff]
  %v211 = vld [vmem:[%s1 + $0x178] sm:$0xff]
  %v212 = vld [vmem:[%s1 + $0x180] sm:$0xff]
  %v213 = vld [vmem:[%s1 + $0x188] sm:$0xff]
  %v214 = vld [vmem:[%s1 + $0x190] sm:$0xff]
  %v215 = vld [vmem:[%s1 + $0x198] sm:$0xff]
  %v216 = vld [vmem:[%s1 + $0x1a0] sm:$0xff]
  %v217 = vld [vmem:[%s1 + $0x1a8] sm:$0xff]
  %v218 = vld [vmem:[%s1 + $0x1b0] sm:$0xff]
  %v219 = vld [vmem:[%s1 + $0x1b8] sm:$0xff]
  %v220 = vld [vmem:[%s1 + $0x1c0] sm:$0xff]
  %v221 = vld [vmem:[%s1 + $0x1c8] sm:$0xff]
  %v222 = vld [vmem:[%s1 + $0x1d0] sm:$0xff]
  %v223 = vld [vmem:[%s1 + $0x1d8] sm:$0xff]
  %v224 = vld [vmem:[%s1 + $0x1e0] sm:$0xff]
  %v225 = vld [vmem:[%s1 + $0x1e8] sm:$0xff]
  %v226 = vld [vmem:[%s1 + $0x1f0] sm:$0xff]
  %v227 = vld [vmem:[%s1 + $0x1f8] sm:$0xff]
  %v228 = vld [vmem:[%s1 + $0x200] sm:$0xff]
  %v229 = vld [vmem:[%s1 + $0x208] sm:$0xff]
  %v230 = vld [vmem:[%s1 + $0x210] sm:$0xff]
  %v231 = vld [vmem:[%s1 + $0x218] sm:$0xff]
  %v232 = vld [vmem:[%s1 + $0x220] sm:$0xff]
  %v233 = vld [vmem:[%s1 + $0x228] sm:$0xff]
  %v234 = vld [vmem:[%s1 + $0x230] sm:$0xff]
  %v235 = vld [vmem:[%s1 + $0x238] sm:$0xff]
  %v236 = vld [vmem:[%s1 + $0x240] sm:$0xff]
  %v237 = vld [vmem:[%s1 + $0x248] sm:$0xff]
  %v238 = vld [vmem:[%s1 + $0x250] sm:$0xff]
  %v239 = vld [vmem:[%s1 + $0x258] sm:$0xff]
  %v240 = vld [vmem:[%s1 + $0x260] sm:$0xff]
  %v241 = vld [vmem:[%s1 + $0x268] sm:$0xff]
  %v242 = vld [vmem:[%s1 + $0x270] sm:$0xff]
  %v243 = vld [vmem:[%s1 + $0x278] sm:$0xff]
  %v244 = vld [vmem:[%s1 + $0x280] sm:$0xff]
  %v245 = vld [vmem:[%s1 + $0x288] sm:$0xff]
  %v246 = vld [vmem:[%s1 + $0x290] sm:$0xff]
  %v247 = vld [vmem:[%s1 + $0x298] sm:$0xff]
  %v248 = vld [vmem:[%s1 + $0x2a0] sm:$0xff]
  %v249 = vld [vmem:[%s1 + $0x2a8] sm:$0xff]
  %v250 = vld [vmem:[%s1 + $0x2b0] sm:$0xff]
  %v251 = vld [vmem:[%s1 + $0x2b8] sm:$0xff]
  %v252 = vld [vmem:[%s1 + $0x2c0] sm:$0xff]
  %v253 = vld [vmem:[%s1 + $0x2c8] sm:$0xff]
  %v254 = vld [vmem:[%s1 + $0x2d0] sm:$0xff]
  %v255 = vld [vmem:[%s1 + $0x2d8] sm:$0xff]
  %v256 = vld [vmem:[%s1 + $0x2e0] sm:$0xff]
  %v257 = vld [vmem:[%s1 + $0x2e8] sm:$0xff]
  %v258 = vld [vmem:[%s1 + $0x2f0] sm:$0xff]
  %v259 = vld [vmem:[%s1 + $0x2f8] sm:$0xff]
  %v260 = vld [vmem:[%s1 + $0x300] sm:$0xff]
  %v261 = vld [vmem:[%s1 + $0x308] sm:$0xff]
  %v262 = vld [vmem:[%s1 + $0x310] sm:$0xff]
  %v263 = vld [vmem:[%s1 + $0x318] sm:$0xff]
  %v264 = vld [vmem:[%s1 + $0x320] sm:$0xff]
  %v265 = vld [vmem:[%s1 + $0x328] sm:$0xff]
  %v266 = vld [vmem:[%s1 + $0x330] sm:$0xff]
  %v267 = vld [vmem:[%s1 + $0x338] sm:$0xff]
  %v268 = vld [vmem:[%s1 + $0x340] sm:$0xff]
  %v269 = vld [vmem:[%s1 + $0x348] sm:$0xff]
  %v270 = vld [vmem:[%s1 + $0x350] sm:$0xff]
  %v271 = vld [vmem:[%s1 + $0x358] sm:$0xff]
  %v272 = vld [vmem:[%s1 + $0x360] sm:$0xff]
  %v273 = vld [vmem:[%s1 + $0x368] sm:$0xff]
  %v274 = vld [vmem:[%s1 + $0x370] sm:$0xff]
  %v275 = vld [vmem:[%s1 + $0x378] sm:$0xff]
  %v276 = vld [vmem:[%s1 + $0x380] sm:$0xff]
  %v277 = vld [vmem:[%s1 + $0x388] sm:$0xff]
  %v278 = vld [vmem:[%s1 + $0x390] sm:$0xff]
  %v279 = vld [vmem:[%s1 + $0x398] sm:$0xff]
  %v280 = vld [vmem:[%s1 + $0x3a0] sm:$0xff]
  %v281 = vld [vmem:[%s1 + $0x3a8] sm:$0xff]
  %v282 = vld [vmem:[%s1 + $0x3b0] sm:$0xff]
  %v283 = vld [vmem:[%s1 + $0x3b8] sm:$0xff]
  %v284 = vld [vmem:[%s1 + $0x3c0] sm:$0xff]
  %v285 = vld [vmem:[%s1 + $0x3c8] sm:$0xff]
  %v286 = vld [vmem:[%s1 + $0x3d0] sm:$0xff]
  %v287 = vld [vmem:[%s1 + $0x3d8] sm:$0xff]
  %v288 = vld [vmem:[%s1 + $0x3e0] sm:$0xff]
  %v289 = vld [vmem:[%s1 + $0x3e8] sm:$0xff]
  %v290 = vld [vmem:[%s1 + $0x3f0] sm:$0xff]
  %v291 = vld [vmem:[%s1 + $0x3f8] sm:$0xff]
  %v292 = vld [vmem:[%s1 + $0x400] sm:$0xff]
  %v293 = vld [vmem:[%s1 + $0x408] sm:$0xff]
  %v294 = vld [vmem:[%s1 + $0x410] sm:$0xff]
  %v295 = vld [vmem:[%s1 + $0x418] sm:$0xff]
  %v296 = vld [vmem:[%s1 + $0x420] sm:$0xff]
  %v297 = vld [vmem:[%s1 + $0x428] sm:$0xff]
  %v298 = vld [vmem:[%s1 + $0x430] sm:$0xff]
  %v299 = vld [vmem:[%s1 + $0x438] sm:$0xff]
  %v300 = vld [vmem:[%s1 + $0x440] sm:$0xff]
  %v301 = vld [vmem:[%s1 + $0x448] sm:$0xff]
  %v302 = vld [vmem:[%s1 + $0x450] sm:$0xff]
  %v303 = vld [vmem:[%s1 + $0x458] sm:$0xff]
  %v304 = vld [vmem:[%s1 + $0x460] sm:$0xff]
  %v305 = vld [vmem:[%s1 + $0x468] sm:$0xff]
  %v306 = vld [vmem:[%s1 + $0x470] sm:$0xff]
  %v307 = vld [vmem:[%s1 + $0x478] sm:$0xff]
  %v308 = vld [vmem:[%s1 + $0x480] sm:$0xff]
  %v309 = vld [vmem:[%s1 + $0x488] sm:$0xff]
  %v310 = vld [vmem:[%s1 + $0x490] sm:$0xff]
  %v311 = vld [vmem:[%s1 + $0x498] sm:$0xff]
  %v312 = vld [vmem:[%s1 + $0x4a0] sm:$0xff]
  %v313 = vld [vmem:[%s1 + $0x4a8] sm:$0xff]
  %v314 = vld [vmem:[%s1 + $0x4b0] sm:$0xff]
  %v315 = vld [vmem:[%s1 + $0x4b8] sm:$0xff]
  %v316 = vld [vmem:[%s1 + $0x4c0] sm:$0xff]
  %v317 = vld [vmem:[%s1 + $0x4c8] sm:$0xff]
  %v318 = vld [vmem:[%s1 + $0x4d0] sm:$0xff]
  %v319 = vld [vmem:[%s1 + $0x4d8] sm:$0xff]
  %v320 = vld [vmem:[%s1 + $0x4e0] sm:$0xff]
  %v321 = vld [vmem:[%s1 + $0x4e8] sm:$0xff]
  %v322 = vld [vmem:[%s1 + $0x4f0] sm:$0xff]
  %v323 = vld [vmem:[%s1 + $0x4f8] sm:$0xff]
  %v324 = vld [vmem:[%s1 + $0x500] sm:$0xff]
  %v325 = vld [vmem:[%s1 + $0x508] sm:$0xff]
  %v326 = vld [vmem:[%s1 + $0x510] sm:$0xff]
  %v327 = vld [vmem:[%s1 + $0x518] sm:$0xff]
  %v328 = vld [vmem:[%s1 + $0x520] sm:$0xff]
  %v329 = vld [vmem:[%s1 + $0x528] sm:$0xff]
  %v330 = vld [vmem:[%s1 + $0x530] sm:$0xff]
  %v331 = vld [vmem:[%s1 + $0x538] sm:$0xff]
  %v332 = vld [vmem:[%s1 + $0x540] sm:$0xff]
  %v333 = vld [vmem:[%s1 + $0x548] sm:$0xff]
  %v334 = vld [vmem:[%s1 + $0x550] sm:$0xff]
  %v335 = vld [vmem:[%s1 + $0x558] sm:$0xff]
  %v336 = vld [vmem:[%s1 + $0x560] sm:$0xff]
  %v337 = vld [vmem:[%s1 + $0x568] sm:$0xff]
  %v338 = vld [vmem:[%s1 + $0x570] sm:$0xff]
  %v339 = vld [vmem:[%s1 + $0x578] sm:$0xff]
  %v340 = vld [vmem:[%s1 + $0x580] sm:$0xff]
  %v341 = vld [vmem:[%s1 + $0x588] sm:$0xff]
  %v342 = vld [vmem:[%s1 + $0x590] sm:$0xff]
  %v343 = vld [vmem:[%s1 + $0x598] sm:$0xff]
  %v344 = vld [vmem:[%s1 + $0x5a0] sm:$0xff]
  %v345 = vld [vmem:[%s1 + $0x5a8] sm:$0xff]
  %v346 = vld [vmem:[%s1 + $0x5b0] sm:$0xff]
  %v347 = vld [vmem:[%s1 + $0x5b8] sm:$0xff]
  %v348 = vld [vmem:[%s1 + $0x5c0] sm:$0xff]
  %v349 = vld [vmem:[%s1 + $0x5c8] sm:$0xff]
  %v350 = vld [vmem:[%s1 + $0x5d0] sm:$0xff]
  %v351 = vld [vmem:[%s1 + $0x5d8] sm:$0xff]
  %v352 = vld [vmem:[%s1 + $0x5e0] sm:$0xff]
  %v353 = vld [vmem:[%s1 + $0x5e8] sm:$0xff]
  %v354 = vld [vmem:[%s1 + $0x5f0] sm:$0xff]
  %v355 = vld [vmem:[%s1 + $0x5f8] sm:$0xff]
  %v356 = vld [vmem:[%s1 + $0x600] sm:$0xff]
  %v357 = vld [vmem:[%s1 + $0x608] sm:$0xff]
  %v358 = vld [vmem:[%s1 + $0x610] sm:$0xff]
  %v359 = vld [vmem:[%s1 + $0x618] sm:$0xff]
  %v360 = vld [vmem:[%s1 + $0x620] sm:$0xff]
  %v361 = vld [vmem:[%s1 + $0x628] sm:$0xff]
  %v362 = vld [vmem:[%s1 + $0x630] sm:$0xff]
  %v363 = vld [vmem:[%s1 + $0x638] sm:$0xff]
  %v364 = vld [vmem:[%s1 + $0x640] sm:$0xff]
  %v365 = vld [vmem:[%s1 + $0x648] sm:$0xff]
  %v366 = vld [vmem:[%s1 + $0x650] sm:$0xff]
  %v367 = vld [vmem:[%s1 + $0x658] sm:$0xff]
  %v368 = vld [vmem:[%s1 + $0x660] sm:$0xff]
  %v369 = vld [vmem:[%s1 + $0x668] sm:$0xff]
  %v370 = vld [vmem:[%s1 + $0x670] sm:$0xff]
  %v371 = vld [vmem:[%s1 + $0x678] sm:$0xff]
  %v463 = vunpack.c.l.b16 %v73
  %v464 = vunpack.c.h.b16 %v73
  %v465 = vunpack.c.l.b16 %v74
  %v466 = vunpack.c.h.b16 %v74
  %v467 = vunpack.c.l.b16 %v75
  %v468 = vunpack.c.h.b16 %v75
  %v469 = vunpack.c.l.b16 %v76
  %v470 = vunpack.c.h.b16 %v76
  %v471 = vunpack.c.l.b16 %v77
  %v472 = vunpack.c.h.b16 %v77
  %v473 = vunpack.c.l.b16 %v78
  %v474 = vunpack.c.h.b16 %v78
  %v475 = vunpack.c.l.b16 %v79
  %v476 = vunpack.c.l.b16 %v80
  %v477 = vunpack.c.h.b16 %v80
  %v478 = vunpack.c.l.b16 %v81
  %v479 = vunpack.c.h.b16 %v81
  %v480 = vunpack.c.l.b16 %v82
  %v481 = vunpack.c.h.b16 %v82
  %v482 = vunpack.c.l.b16 %v83
  %v483 = vunpack.c.h.b16 %v83
  %v484 = vunpack.c.l.b16 %v84
  %v485 = vunpack.c.h.b16 %v84
  %v486 = vunpack.c.l.b16 %v85
  %v487 = vunpack.c.h.b16 %v85
  %v488 = vunpack.c.l.b16 %v86
  %v489 = vunpack.c.l.b16 %v87
  %v490 = vunpack.c.h.b16 %v87
  %v491 = vunpack.c.l.b16 %v88
  %v492 = vunpack.c.h.b16 %v88
  %v493 = vunpack.c.l.b16 %v89
  %v494 = vunpack.c.h.b16 %v89
  %v495 = vunpack.c.l.b16 %v90
  %v496 = vunpack.c.h.b16 %v90
  %v497 = vunpack.c.l.b16 %v91
  %v498 = vunpack.c.h.b16 %v91
  %v499 = vunpack.c.l.b16 %v92
  %v500 = vunpack.c.h.b16 %v92
  %v501 = vunpack.c.l.b16 %v93
  %v502 = vunpack.c.l.b16 %v94
  %v503 = vunpack.c.h.b16 %v94
  %v504 = vunpack.c.l.b16 %v95
  %v505 = vunpack.c.h.b16 %v95
  %v506 = vunpack.c.l.b16 %v96
  %v507 = vunpack.c.h.b16 %v96
  %v508 = vunpack.c.l.b16 %v97
  %v509 = vunpack.c.h.b16 %v97
  %v510 = vunpack.c.l.b16 %v98
  %v511 = vunpack.c.h.b16 %v98
  %v512 = vunpack.c.l.b16 %v99
  %v513 = vunpack.c.h.b16 %v99
  %v514 = vunpack.c.l.b16 %v100
  %v515 = vunpack.c.l.b16 %v101
  %v516 = vunpack.c.h.b16 %v101
  %v517 = vunpack.c.l.b16 %v102
  %v518 = vunpack.c.h.b16 %v102
  %v519 = vunpack.c.l.b16 %v103
  %v520 = vunpack.c.h.b16 %v103
  %v521 = vunpack.c.l.b16 %v104
  %v522 = vunpack.c.h.b16 %v104
  %v523 = vunpack.c.l.b16 %v105
  %v524 = vunpack.c.h.b16 %v105
  %v525 = vunpack.c.l.b16 %v106
  %v526 = vunpack.c.h.b16 %v106
  %v527 = vunpack.c.l.b16 %v107
  %v528 = vunpack.c.l.b16 %v108
  %v529 = vunpack.c.h.b16 %v108
  %v530 = vunpack.c.l.b16 %v109
  %v531 = vunpack.c.h.b16 %v109
  %v532 = vunpack.c.l.b16 %v110
  %v533 = vunpack.c.h.b16 %v110
  %v534 = vunpack.c.l.b16 %v111
  %v535 = vunpack.c.h.b16 %v111
  %v536 = vunpack.c.l.b16 %v112
  %v537 = vunpack.c.h.b16 %v112
  %v538 = vunpack.c.l.b16 %v113
  %v539 = vunpack.c.h.b16 %v113
  %v540 = vunpack.c.l.b16 %v114
  %v541 = vunpack.c.l.b16 %v115
  %v542 = vunpack.c.h.b16 %v115
  %v543 = vunpack.c.l.b16 %v116
  %v544 = vunpack.c.h.b16 %v116
  %v545 = vunpack.c.l.b16 %v117
  %v546 = vunpack.c.h.b16 %v117
  %v547 = vunpack.c.l.b16 %v118
  %v548 = vunpack.c.h.b16 %v118
  %v549 = vunpack.c.l.b16 %v119
  %v550 = vunpack.c.h.b16 %v119
  %v551 = vunpack.c.l.b16 %v120
  %v552 = vunpack.c.h.b16 %v120
  %v553 = vunpack.c.l.b16 %v121
  %v554 = vunpack.c.l.b16 %v122
  %v555 = vunpack.c.h.b16 %v122
  %v556 = vunpack.c.l.b16 %v123
  %v557 = vunpack.c.h.b16 %v123
  %v558 = vunpack.c.l.b16 %v124
  %v559 = vunpack.c.h.b16 %v124
  %v560 = vunpack.c.l.b16 %v125
  %v561 = vunpack.c.h.b16 %v125
  %v562 = vunpack.c.l.b16 %v126
  %v563 = vunpack.c.h.b16 %v126
  %v564 = vunpack.c.l.b16 %v127
  %v565 = vunpack.c.h.b16 %v127
  %v566 = vunpack.c.l.b16 %v128
  %v567 = vunpack.c.l.b16 %v129
  %v568 = vunpack.c.h.b16 %v129
  %v569 = vunpack.c.l.b16 %v130
  %v570 = vunpack.c.h.b16 %v130
  %v571 = vunpack.c.l.b16 %v131
  %v572 = vunpack.c.h.b16 %v131
  %v573 = vunpack.c.l.b16 %v132
  %v574 = vunpack.c.h.b16 %v132
  %v575 = vunpack.c.l.b16 %v133
  %v576 = vunpack.c.h.b16 %v133
  %v577 = vunpack.c.l.b16 %v134
  %v578 = vunpack.c.h.b16 %v134
  %v579 = vunpack.c.l.b16 %v135
  %v580 = vunpack.c.l.b16 %v136
  %v581 = vunpack.c.h.b16 %v136
  %v582 = vunpack.c.l.b16 %v137
  %v583 = vunpack.c.h.b16 %v137
  %v584 = vunpack.c.l.b16 %v138
  %v585 = vunpack.c.h.b16 %v138
  %v586 = vunpack.c.l.b16 %v139
  %v587 = vunpack.c.h.b16 %v139
  %v588 = vunpack.c.l.b16 %v140
  %v589 = vunpack.c.h.b16 %v140
  %v590 = vunpack.c.l.b16 %v141
  %v591 = vunpack.c.h.b16 %v141
  %v592 = vunpack.c.l.b16 %v142
  %v593 = vunpack.c.l.b16 %v143
  %v594 = vunpack.c.h.b16 %v143
  %v595 = vunpack.c.l.b16 %v144
  %v596 = vunpack.c.h.b16 %v144
  %v597 = vunpack.c.l.b16 %v145
  %v598 = vunpack.c.h.b16 %v145
  %v599 = vunpack.c.l.b16 %v146
  %v600 = vunpack.c.h.b16 %v146
  %v601 = vunpack.c.l.b16 %v147
  %v602 = vunpack.c.h.b16 %v147
  %v603 = vunpack.c.l.b16 %v148
  %v604 = vunpack.c.h.b16 %v148
  %v605 = vunpack.c.l.b16 %v149
  %v606 = vunpack.c.l.b16 %v150
  %v607 = vunpack.c.h.b16 %v150
  %v608 = vunpack.c.l.b16 %v151
  %v609 = vunpack.c.h.b16 %v151
  %v610 = vunpack.c.l.b16 %v152
  %v611 = vunpack.c.h.b16 %v152
  %v612 = vunpack.c.l.b16 %v153
  %v613 = vunpack.c.h.b16 %v153
  %v614 = vunpack.c.l.b16 %v154
  %v615 = vunpack.c.h.b16 %v154
  %v616 = vunpack.c.l.b16 %v155
  %v617 = vunpack.c.h.b16 %v155
  %v618 = vunpack.c.l.b16 %v156
  %v619 = vunpack.c.l.b16 %v157
  %v620 = vunpack.c.h.b16 %v157
  %v621 = vunpack.c.l.b16 %v158
  %v622 = vunpack.c.h.b16 %v158
  %v623 = vunpack.c.l.b16 %v159
  %v624 = vunpack.c.h.b16 %v159
  %v625 = vunpack.c.l.b16 %v160
  %v626 = vunpack.c.h.b16 %v160
  %v627 = vunpack.c.l.b16 %v161
  %v628 = vunpack.c.h.b16 %v161
  %v629 = vunpack.c.l.b16 %v162
  %v630 = vunpack.c.h.b16 %v162
  %v631 = vunpack.c.l.b16 %v163
  %v632 = vpack.c.b16 %v476, %v463
  %v633 = vpack.c.b16 %v477, %v464
  %v634 = vpack.c.b16 %v478, %v465
  %v635 = vpack.c.b16 %v479, %v466
  %v636 = vpack.c.b16 %v480, %v467
  %v637 = vpack.c.b16 %v481, %v468
  %v638 = vpack.c.b16 %v482, %v469
  %v639 = vpack.c.b16 %v483, %v470
  %v640 = vpack.c.b16 %v484, %v471
  %v641 = vpack.c.b16 %v485, %v472
  %v642 = vpack.c.b16 %v486, %v473
  %v643 = vpack.c.b16 %v487, %v474
  %v644 = vpack.c.b16 %v488, %v475
  %v645 = vpack.c.b16 %v502, %v489
  %v646 = vpack.c.b16 %v503, %v490
  %v647 = vpack.c.b16 %v504, %v491
  %v648 = vpack.c.b16 %v505, %v492
  %v649 = vpack.c.b16 %v506, %v493
  %v650 = vpack.c.b16 %v507, %v494
  %v651 = vpack.c.b16 %v508, %v495
  %v652 = vpack.c.b16 %v509, %v496
  %v653 = vpack.c.b16 %v510, %v497
  %v654 = vpack.c.b16 %v511, %v498
  %v655 = vpack.c.b16 %v512, %v499
  %v656 = vpack.c.b16 %v513, %v500
  %v657 = vpack.c.b16 %v514, %v501
  %v658 = vpack.c.b16 %v528, %v515
  %v659 = vpack.c.b16 %v529, %v516
  %v660 = vpack.c.b16 %v530, %v517
  %v661 = vpack.c.b16 %v531, %v518
  %v662 = vpack.c.b16 %v532, %v519
  %v663 = vpack.c.b16 %v533, %v520
  %v664 = vpack.c.b16 %v534, %v521
  %v665 = vpack.c.b16 %v535, %v522
  %v666 = vpack.c.b16 %v536, %v523
  %v667 = vpack.c.b16 %v537, %v524
  %v668 = vpack.c.b16 %v538, %v525
  %v669 = vpack.c.b16 %v539, %v526
  %v670 = vpack.c.b16 %v540, %v527
  %v671 = vpack.c.b16 %v554, %v541
  %v672 = vpack.c.b16 %v555, %v542
  %v673 = vpack.c.b16 %v556, %v543
  %v674 = vpack.c.b16 %v557, %v544
  %v675 = vpack.c.b16 %v558, %v545
  %v676 = vpack.c.b16 %v559, %v546
  %v677 = vpack.c.b16 %v560, %v547
  %v678 = vpack.c.b16 %v561, %v548
  %v679 = vpack.c.b16 %v562, %v549
  %v680 = vpack.c.b16 %v563, %v550
  %v681 = vpack.c.b16 %v564, %v551
  %v682 = vpack.c.b16 %v565, %v552
  %v683 = vpack.c.b16 %v566, %v553
  %v684 = vpack.c.b16 %v580, %v567
  %v685 = vpack.c.b16 %v581, %v568
  %v686 = vpack.c.b16 %v582, %v569
  %v687 = vpack.c.b16 %v583, %v570
  %v688 = vpack.c.b16 %v584, %v571
  %v689 = vpack.c.b16 %v585, %v572
  %v690 = vpack.c.b16 %v586, %v573
  %v691 = vpack.c.b16 %v587, %v574
  %v692 = vpack.c.b16 %v588, %v575
  %v693 = vpack.c.b16 %v589, %v576
  %v694 = vpack.c.b16 %v590, %v577
  %v695 = vpack.c.b16 %v591, %v578
  %v696 = vpack.c.b16 %v592, %v579
  %v697 = vpack.c.b16 %v606, %v593
  %v698 = vpack.c.b16 %v607, %v594
  %v699 = vpack.c.b16 %v608, %v595
  %v700 = vpack.c.b16 %v609, %v596
  %v701 = vpack.c.b16 %v610, %v597
  %v702 = vpack.c.b16 %v611, %v598
  %v703 = vpack.c.b16 %v612, %v599
  %v704 = vpack.c.b16 %v613, %v600
  %v705 = vpack.c.b16 %v614, %v601
  %v706 = vpack.c.b16 %v615, %v602
  %v707 = vpack.c.b16 %v616, %v603
  %v708 = vpack.c.b16 %v617, %v604
  %v709 = vpack.c.b16 %v618, %v605
  %v710 = vpack.c.b16 %v619, %v619
  %v711 = vpack.c.b16 %v620, %v620
  %v712 = vpack.c.b16 %v621, %v621
  %v713 = vpack.c.b16 %v622, %v622
  %v714 = vpack.c.b16 %v623, %v623
  %v715 = vpack.c.b16 %v624, %v624
  %v716 = vpack.c.b16 %v625, %v625
  %v717 = vpack.c.b16 %v626, %v626
  %v718 = vpack.c.b16 %v627, %v627
  %v719 = vpack.c.b16 %v628, %v628
  %v720 = vpack.c.b16 %v629, %v629
  %v721 = vpack.c.b16 %v630, %v630
  %v722 = vpack.c.b16 %v631, %v631
  %v1022 = vunpack.c.l.b16 %v164
  %v1023 = vunpack.c.h.b16 %v164
  %v1024 = vunpack.c.l.b16 %v165
  %v1025 = vunpack.c.h.b16 %v165
  %v1026 = vunpack.c.l.b16 %v166
  %v1027 = vunpack.c.h.b16 %v166
  %v1028 = vunpack.c.l.b16 %v167
  %v1029 = vunpack.c.h.b16 %v167
  %v1030 = vunpack.c.l.b16 %v168
  %v1031 = vunpack.c.h.b16 %v168
  %v1032 = vunpack.c.l.b16 %v169
  %v1033 = vunpack.c.h.b16 %v169
  %v1034 = vunpack.c.l.b16 %v170
  %v1035 = vunpack.c.h.b16 %v170
  %v1036 = vunpack.c.l.b16 %v171
  %v1037 = vunpack.c.h.b16 %v171
  %v1038 = vunpack.c.l.b16 %v172
  %v1039 = vunpack.c.h.b16 %v172
  %v1040 = vunpack.c.l.b16 %v173
  %v1041 = vunpack.c.h.b16 %v173
  %v1042 = vunpack.c.l.b16 %v174
  %v1043 = vunpack.c.h.b16 %v174
  %v1044 = vunpack.c.l.b16 %v175
  %v1045 = vunpack.c.h.b16 %v175
  %v1046 = vunpack.c.l.b16 %v176
  %v1047 = vunpack.c.h.b16 %v176
  %v1048 = vunpack.c.l.b16 %v177
  %v1049 = vunpack.c.h.b16 %v177
  %v1050 = vunpack.c.l.b16 %v178
  %v1051 = vunpack.c.h.b16 %v178
  %v1052 = vunpack.c.l.b16 %v179
  %v1053 = vunpack.c.h.b16 %v179
  %v1054 = vunpack.c.l.b16 %v180
  %v1055 = vunpack.c.h.b16 %v180
  %v1056 = vunpack.c.l.b16 %v181
  %v1057 = vunpack.c.h.b16 %v181
  %v1058 = vunpack.c.l.b16 %v182
  %v1059 = vunpack.c.h.b16 %v182
  %v1060 = vunpack.c.l.b16 %v183
  %v1061 = vunpack.c.h.b16 %v183
  %v1062 = vunpack.c.l.b16 %v184
  %v1063 = vunpack.c.h.b16 %v184
  %v1064 = vunpack.c.l.b16 %v185
  %v1065 = vunpack.c.h.b16 %v185
  %v1066 = vunpack.c.l.b16 %v186
  %v1067 = vunpack.c.h.b16 %v186
  %v1068 = vunpack.c.l.b16 %v187
  %v1069 = vunpack.c.h.b16 %v187
  %v1070 = vunpack.c.l.b16 %v188
  %v1071 = vunpack.c.h.b16 %v188
  %v1072 = vunpack.c.l.b16 %v189
  %v1073 = vunpack.c.h.b16 %v189
  %v1074 = vunpack.c.l.b16 %v190
  %v1075 = vunpack.c.h.b16 %v190
  %v1076 = vunpack.c.l.b16 %v191
  %v1077 = vunpack.c.h.b16 %v191
  %v1078 = vunpack.c.l.b16 %v192
  %v1079 = vunpack.c.h.b16 %v192
  %v1080 = vunpack.c.l.b16 %v193
  %v1081 = vunpack.c.h.b16 %v193
  %v1082 = vunpack.c.l.b16 %v194
  %v1083 = vunpack.c.h.b16 %v194
  %v1084 = vunpack.c.l.b16 %v195
  %v1085 = vunpack.c.h.b16 %v195
  %v1086 = vunpack.c.l.b16 %v196
  %v1087 = vunpack.c.h.b16 %v196
  %v1088 = vunpack.c.l.b16 %v197
  %v1089 = vunpack.c.h.b16 %v197
  %v1090 = vunpack.c.l.b16 %v198
  %v1091 = vunpack.c.h.b16 %v198
  %v1092 = vunpack.c.l.b16 %v199
  %v1093 = vunpack.c.h.b16 %v199
  %v1094 = vunpack.c.l.b16 %v200
  %v1095 = vunpack.c.h.b16 %v200
  %v1096 = vunpack.c.l.b16 %v201
  %v1097 = vunpack.c.h.b16 %v201
  %v1098 = vunpack.c.l.b16 %v202
  %v1099 = vunpack.c.h.b16 %v202
  %v1100 = vunpack.c.l.b16 %v203
  %v1101 = vunpack.c.h.b16 %v203
  %v1102 = vunpack.c.l.b16 %v204
  %v1103 = vunpack.c.h.b16 %v204
  %v1104 = vunpack.c.l.b16 %v205
  %v1105 = vunpack.c.h.b16 %v205
  %v1106 = vunpack.c.l.b16 %v206
  %v1107 = vunpack.c.h.b16 %v206
  %v1108 = vunpack.c.l.b16 %v207
  %v1109 = vunpack.c.h.b16 %v207
  %v1110 = vunpack.c.l.b16 %v208
  %v1111 = vunpack.c.h.b16 %v208
  %v1112 = vunpack.c.l.b16 %v209
  %v1113 = vunpack.c.h.b16 %v209
  %v1114 = vunpack.c.l.b16 %v210
  %v1115 = vunpack.c.h.b16 %v210
  %v1116 = vunpack.c.l.b16 %v211
  %v1117 = vunpack.c.h.b16 %v211
  %v1118 = vunpack.c.l.b16 %v212
  %v1119 = vunpack.c.h.b16 %v212
  %v1120 = vunpack.c.l.b16 %v213
  %v1121 = vunpack.c.h.b16 %v213
  %v1122 = vunpack.c.l.b16 %v214
  %v1123 = vunpack.c.h.b16 %v214
  %v1124 = vunpack.c.l.b16 %v215
  %v1125 = vunpack.c.h.b16 %v215
  %v1126 = vunpack.c.l.b16 %v216
  %v1127 = vunpack.c.h.b16 %v216
  %v1128 = vunpack.c.l.b16 %v217
  %v1129 = vunpack.c.h.b16 %v217
  %v1130 = vunpack.c.l.b16 %v218
  %v1131 = vunpack.c.h.b16 %v218
  %v1132 = vunpack.c.l.b16 %v219
  %v1133 = vunpack.c.h.b16 %v219
  %v1134 = vunpack.c.l.b16 %v220
  %v1135 = vunpack.c.h.b16 %v220
  %v1136 = vunpack.c.l.b16 %v221
  %v1137 = vunpack.c.h.b16 %v221
  %v1138 = vunpack.c.l.b16 %v222
  %v1139 = vunpack.c.h.b16 %v222
  %v1140 = vunpack.c.l.b16 %v223
  %v1141 = vunpack.c.h.b16 %v223
  %v1142 = vunpack.c.l.b16 %v224
  %v1143 = vunpack.c.h.b16 %v224
  %v1144 = vunpack.c.l.b16 %v225
  %v1145 = vunpack.c.h.b16 %v225
  %v1146 = vunpack.c.l.b16 %v226
  %v1147 = vunpack.c.h.b16 %v226
  %v1148 = vunpack.c.l.b16 %v227
  %v1149 = vunpack.c.h.b16 %v227
  %v1150 = vunpack.c.l.b16 %v228
  %v1151 = vunpack.c.h.b16 %v228
  %v1152 = vunpack.c.l.b16 %v229
  %v1153 = vunpack.c.h.b16 %v229
  %v1154 = vunpack.c.l.b16 %v230
  %v1155 = vunpack.c.h.b16 %v230
  %v1156 = vunpack.c.l.b16 %v231
  %v1157 = vunpack.c.h.b16 %v231
  %v1158 = vunpack.c.l.b16 %v232
  %v1159 = vunpack.c.h.b16 %v232
  %v1160 = vunpack.c.l.b16 %v233
  %v1161 = vunpack.c.h.b16 %v233
  %v1162 = vunpack.c.l.b16 %v234
  %v1163 = vunpack.c.h.b16 %v234
  %v1164 = vunpack.c.l.b16 %v235
  %v1165 = vunpack.c.h.b16 %v235
  %v1166 = vunpack.c.l.b16 %v236
  %v1167 = vunpack.c.h.b16 %v236
  %v1168 = vunpack.c.l.b16 %v237
  %v1169 = vunpack.c.h.b16 %v237
  %v1170 = vunpack.c.l.b16 %v238
  %v1171 = vunpack.c.h.b16 %v238
  %v1172 = vunpack.c.l.b16 %v239
  %v1173 = vunpack.c.h.b16 %v239
  %v1174 = vunpack.c.l.b16 %v240
  %v1175 = vunpack.c.h.b16 %v240
  %v1176 = vunpack.c.l.b16 %v241
  %v1177 = vunpack.c.h.b16 %v241
  %v1178 = vunpack.c.l.b16 %v242
  %v1179 = vunpack.c.h.b16 %v242
  %v1180 = vunpack.c.l.b16 %v243
  %v1181 = vunpack.c.h.b16 %v243
  %v1182 = vunpack.c.l.b16 %v244
  %v1183 = vunpack.c.h.b16 %v244
  %v1184 = vunpack.c.l.b16 %v245
  %v1185 = vunpack.c.h.b16 %v245
  %v1186 = vunpack.c.l.b16 %v246
  %v1187 = vunpack.c.h.b16 %v246
  %v1188 = vunpack.c.l.b16 %v247
  %v1189 = vunpack.c.h.b16 %v247
  %v1190 = vunpack.c.l.b16 %v248
  %v1191 = vunpack.c.h.b16 %v248
  %v1192 = vunpack.c.l.b16 %v249
  %v1193 = vunpack.c.h.b16 %v249
  %v1194 = vunpack.c.l.b16 %v250
  %v1195 = vunpack.c.h.b16 %v250
  %v1196 = vunpack.c.l.b16 %v251
  %v1197 = vunpack.c.h.b16 %v251
  %v1198 = vunpack.c.l.b16 %v252
  %v1199 = vunpack.c.h.b16 %v252
  %v1200 = vunpack.c.l.b16 %v253
  %v1201 = vunpack.c.h.b16 %v253
  %v1202 = vunpack.c.l.b16 %v254
  %v1203 = vunpack.c.h.b16 %v254
  %v1204 = vunpack.c.l.b16 %v255
  %v1205 = vunpack.c.h.b16 %v255
  %v1206 = vunpack.c.l.b16 %v256
  %v1207 = vunpack.c.h.b16 %v256
  %v1208 = vunpack.c.l.b16 %v257
  %v1209 = vunpack.c.h.b16 %v257
  %v1210 = vunpack.c.l.b16 %v258
  %v1211 = vunpack.c.h.b16 %v258
  %v1212 = vunpack.c.l.b16 %v259
  %v1213 = vunpack.c.h.b16 %v259
  %v1214 = vunpack.c.l.b16 %v260
  %v1215 = vunpack.c.h.b16 %v260
  %v1216 = vunpack.c.l.b16 %v261
  %v1217 = vunpack.c.h.b16 %v261
  %v1218 = vunpack.c.l.b16 %v262
  %v1219 = vunpack.c.h.b16 %v262
  %v1220 = vunpack.c.l.b16 %v263
  %v1221 = vunpack.c.h.b16 %v263
  %v1222 = vunpack.c.l.b16 %v264
  %v1223 = vunpack.c.h.b16 %v264
  %v1224 = vunpack.c.l.b16 %v265
  %v1225 = vunpack.c.h.b16 %v265
  %v1226 = vunpack.c.l.b16 %v266
  %v1227 = vunpack.c.h.b16 %v266
  %v1228 = vunpack.c.l.b16 %v267
  %v1229 = vunpack.c.h.b16 %v267
  %v1230 = vunpack.c.l.b16 %v268
  %v1231 = vunpack.c.h.b16 %v268
  %v1232 = vunpack.c.l.b16 %v269
  %v1233 = vunpack.c.h.b16 %v269
  %v1234 = vunpack.c.l.b16 %v270
  %v1235 = vunpack.c.h.b16 %v270
  %v1236 = vunpack.c.l.b16 %v271
  %v1237 = vunpack.c.h.b16 %v271
  %v1238 = vunpack.c.l.b16 %v272
  %v1239 = vunpack.c.h.b16 %v272
  %v1240 = vunpack.c.l.b16 %v273
  %v1241 = vunpack.c.h.b16 %v273
  %v1242 = vunpack.c.l.b16 %v274
  %v1243 = vunpack.c.h.b16 %v274
  %v1244 = vunpack.c.l.b16 %v275
  %v1245 = vunpack.c.h.b16 %v275
  %v1246 = vunpack.c.l.b16 %v276
  %v1247 = vunpack.c.h.b16 %v276
  %v1248 = vunpack.c.l.b16 %v277
  %v1249 = vunpack.c.h.b16 %v277
  %v1250 = vunpack.c.l.b16 %v278
  %v1251 = vunpack.c.h.b16 %v278
  %v1252 = vunpack.c.l.b16 %v279
  %v1253 = vunpack.c.h.b16 %v279
  %v1254 = vunpack.c.l.b16 %v280
  %v1255 = vunpack.c.h.b16 %v280
  %v1256 = vunpack.c.l.b16 %v281
  %v1257 = vunpack.c.h.b16 %v281
  %v1258 = vunpack.c.l.b16 %v282
  %v1259 = vunpack.c.h.b16 %v282
  %v1260 = vunpack.c.l.b16 %v283
  %v1261 = vunpack.c.h.b16 %v283
  %v1262 = vunpack.c.l.b16 %v284
  %v1263 = vunpack.c.h.b16 %v284
  %v1264 = vunpack.c.l.b16 %v285
  %v1265 = vunpack.c.h.b16 %v285
  %v1266 = vunpack.c.l.b16 %v286
  %v1267 = vunpack.c.h.b16 %v286
  %v1268 = vunpack.c.l.b16 %v287
  %v1269 = vunpack.c.h.b16 %v287
  %v1270 = vunpack.c.l.b16 %v288
  %v1271 = vunpack.c.h.b16 %v288
  %v1272 = vunpack.c.l.b16 %v289
  %v1273 = vunpack.c.h.b16 %v289
  %v1274 = vunpack.c.l.b16 %v290
  %v1275 = vunpack.c.h.b16 %v290
  %v1276 = vunpack.c.l.b16 %v291
  %v1277 = vunpack.c.h.b16 %v291
  %v1278 = vunpack.c.l.b16 %v292
  %v1279 = vunpack.c.h.b16 %v292
  %v1280 = vunpack.c.l.b16 %v293
  %v1281 = vunpack.c.h.b16 %v293
  %v1282 = vunpack.c.l.b16 %v294
  %v1283 = vunpack.c.h.b16 %v294
  %v1284 = vunpack.c.l.b16 %v295
  %v1285 = vunpack.c.h.b16 %v295
  %v1286 = vunpack.c.l.b16 %v296
  %v1287 = vunpack.c.h.b16 %v296
  %v1288 = vunpack.c.l.b16 %v297
  %v1289 = vunpack.c.h.b16 %v297
  %v1290 = vunpack.c.l.b16 %v298
  %v1291 = vunpack.c.h.b16 %v298
  %v1292 = vunpack.c.l.b16 %v299
  %v1293 = vunpack.c.h.b16 %v299
  %v1294 = vunpack.c.l.b16 %v300
  %v1295 = vunpack.c.h.b16 %v300
  %v1296 = vunpack.c.l.b16 %v301
  %v1297 = vunpack.c.h.b16 %v301
  %v1298 = vunpack.c.l.b16 %v302
  %v1299 = vunpack.c.h.b16 %v302
  %v1300 = vunpack.c.l.b16 %v303
  %v1301 = vunpack.c.h.b16 %v303
  %v1302 = vunpack.c.l.b16 %v304
  %v1303 = vunpack.c.h.b16 %v304
  %v1304 = vunpack.c.l.b16 %v305
  %v1305 = vunpack.c.h.b16 %v305
  %v1306 = vunpack.c.l.b16 %v306
  %v1307 = vunpack.c.h.b16 %v306
  %v1308 = vunpack.c.l.b16 %v307
  %v1309 = vunpack.c.h.b16 %v307
  %v1310 = vunpack.c.l.b16 %v308
  %v1311 = vunpack.c.h.b16 %v308
  %v1312 = vunpack.c.l.b16 %v309
  %v1313 = vunpack.c.h.b16 %v309
  %v1314 = vunpack.c.l.b16 %v310
  %v1315 = vunpack.c.h.b16 %v310
  %v1316 = vunpack.c.l.b16 %v311
  %v1317 = vunpack.c.h.b16 %v311
  %v1318 = vunpack.c.l.b16 %v312
  %v1319 = vunpack.c.h.b16 %v312
  %v1320 = vunpack.c.l.b16 %v313
  %v1321 = vunpack.c.h.b16 %v313
  %v1322 = vunpack.c.l.b16 %v314
  %v1323 = vunpack.c.h.b16 %v314
  %v1324 = vunpack.c.l.b16 %v315
  %v1325 = vunpack.c.h.b16 %v315
  %v1326 = vunpack.c.l.b16 %v316
  %v1327 = vunpack.c.h.b16 %v316
  %v1328 = vunpack.c.l.b16 %v317
  %v1329 = vunpack.c.h.b16 %v317
  %v1330 = vunpack.c.l.b16 %v318
  %v1331 = vunpack.c.h.b16 %v318
  %v1332 = vunpack.c.l.b16 %v319
  %v1333 = vunpack.c.h.b16 %v319
  %v1334 = vunpack.c.l.b16 %v320
  %v1335 = vunpack.c.h.b16 %v320
  %v1336 = vunpack.c.l.b16 %v321
  %v1337 = vunpack.c.h.b16 %v321
  %v1338 = vunpack.c.l.b16 %v322
  %v1339 = vunpack.c.h.b16 %v322
  %v1340 = vunpack.c.l.b16 %v323
  %v1341 = vunpack.c.h.b16 %v323
  %v1342 = vunpack.c.l.b16 %v324
  %v1343 = vunpack.c.h.b16 %v324
  %v1344 = vunpack.c.l.b16 %v325
  %v1345 = vunpack.c.h.b16 %v325
  %v1346 = vunpack.c.l.b16 %v326
  %v1347 = vunpack.c.h.b16 %v326
  %v1348 = vunpack.c.l.b16 %v327
  %v1349 = vunpack.c.h.b16 %v327
  %v1350 = vunpack.c.l.b16 %v328
  %v1351 = vunpack.c.h.b16 %v328
  %v1352 = vunpack.c.l.b16 %v329
  %v1353 = vunpack.c.h.b16 %v329
  %v1354 = vunpack.c.l.b16 %v330
  %v1355 = vunpack.c.h.b16 %v330
  %v1356 = vunpack.c.l.b16 %v331
  %v1357 = vunpack.c.h.b16 %v331
  %v1358 = vunpack.c.l.b16 %v332
  %v1359 = vunpack.c.h.b16 %v332
  %v1360 = vunpack.c.l.b16 %v333
  %v1361 = vunpack.c.h.b16 %v333
  %v1362 = vunpack.c.l.b16 %v334
  %v1363 = vunpack.c.h.b16 %v334
  %v1364 = vunpack.c.l.b16 %v335
  %v1365 = vunpack.c.h.b16 %v335
  %v1366 = vunpack.c.l.b16 %v336
  %v1367 = vunpack.c.h.b16 %v336
  %v1368 = vunpack.c.l.b16 %v337
  %v1369 = vunpack.c.h.b16 %v337
  %v1370 = vunpack.c.l.b16 %v338
  %v1371 = vunpack.c.h.b16 %v338
  %v1372 = vunpack.c.l.b16 %v339
  %v1373 = vunpack.c.h.b16 %v339
  %v1374 = vunpack.c.l.b16 %v340
  %v1375 = vunpack.c.h.b16 %v340
  %v1376 = vunpack.c.l.b16 %v341
  %v1377 = vunpack.c.h.b16 %v341
  %v1378 = vunpack.c.l.b16 %v342
  %v1379 = vunpack.c.h.b16 %v342
  %v1380 = vunpack.c.l.b16 %v343
  %v1381 = vunpack.c.h.b16 %v343
  %v1382 = vunpack.c.l.b16 %v344
  %v1383 = vunpack.c.h.b16 %v344
  %v1384 = vunpack.c.l.b16 %v345
  %v1385 = vunpack.c.h.b16 %v345
  %v1386 = vunpack.c.l.b16 %v346
  %v1387 = vunpack.c.h.b16 %v346
  %v1388 = vunpack.c.l.b16 %v347
  %v1389 = vunpack.c.h.b16 %v347
  %v1390 = vunpack.c.l.b16 %v348
  %v1391 = vunpack.c.h.b16 %v348
  %v1392 = vunpack.c.l.b16 %v349
  %v1393 = vunpack.c.h.b16 %v349
  %v1394 = vunpack.c.l.b16 %v350
  %v1395 = vunpack.c.h.b16 %v350
  %v1396 = vunpack.c.l.b16 %v351
  %v1397 = vunpack.c.h.b16 %v351
  %v1398 = vunpack.c.l.b16 %v352
  %v1399 = vunpack.c.h.b16 %v352
  %v1400 = vunpack.c.l.b16 %v353
  %v1401 = vunpack.c.h.b16 %v353
  %v1402 = vunpack.c.l.b16 %v354
  %v1403 = vunpack.c.h.b16 %v354
  %v1404 = vunpack.c.l.b16 %v355
  %v1405 = vunpack.c.h.b16 %v355
  %v1406 = vunpack.c.l.b16 %v356
  %v1407 = vunpack.c.h.b16 %v356
  %v1408 = vunpack.c.l.b16 %v357
  %v1409 = vunpack.c.h.b16 %v357
  %v1410 = vunpack.c.l.b16 %v358
  %v1411 = vunpack.c.h.b16 %v358
  %v1412 = vunpack.c.l.b16 %v359
  %v1413 = vunpack.c.h.b16 %v359
  %v1414 = vunpack.c.l.b16 %v360
  %v1415 = vunpack.c.h.b16 %v360
  %v1416 = vunpack.c.l.b16 %v361
  %v1417 = vunpack.c.h.b16 %v361
  %v1418 = vunpack.c.l.b16 %v362
  %v1419 = vunpack.c.h.b16 %v362
  %v1420 = vunpack.c.l.b16 %v363
  %v1421 = vunpack.c.h.b16 %v363
  %v1422 = vunpack.c.l.b16 %v364
  %v1423 = vunpack.c.h.b16 %v364
  %v1424 = vunpack.c.l.b16 %v365
  %v1425 = vunpack.c.h.b16 %v365
  %v1426 = vunpack.c.l.b16 %v366
  %v1427 = vunpack.c.h.b16 %v366
  %v1428 = vunpack.c.l.b16 %v367
  %v1429 = vunpack.c.h.b16 %v367
  %v1430 = vunpack.c.l.b16 %v368
  %v1431 = vunpack.c.h.b16 %v368
  %v1432 = vunpack.c.l.b16 %v369
  %v1433 = vunpack.c.h.b16 %v369
  %v1434 = vunpack.c.l.b16 %v370
  %v1435 = vunpack.c.h.b16 %v370
  %v1436 = vunpack.c.l.b16 %v371
  %v1437 = vunpack.c.h.b16 %v371
  %v1438 = vpack.c.b16 %v1024, %v1022
  %v1439 = vpack.c.b16 %v1025, %v1023
  %v1440 = vpack.c.b16 %v1028, %v1026
  %v1441 = vpack.c.b16 %v1029, %v1027
  %v1442 = vpack.c.b16 %v1032, %v1030
  %v1443 = vpack.c.b16 %v1033, %v1031
  %v1444 = vpack.c.b16 %v1036, %v1034
  %v1445 = vpack.c.b16 %v1037, %v1035
  %v1446 = vpack.c.b16 %v1040, %v1038
  %v1447 = vpack.c.b16 %v1041, %v1039
  %v1448 = vpack.c.b16 %v1044, %v1042
  %v1449 = vpack.c.b16 %v1045, %v1043
  %v1450 = vpack.c.b16 %v1048, %v1046
  %v1451 = vpack.c.b16 %v1049, %v1047
  %v1452 = vpack.c.b16 %v1052, %v1050
  %v1453 = vpack.c.b16 %v1053, %v1051
  %v1454 = vpack.c.b16 %v1056, %v1054
  %v1455 = vpack.c.b16 %v1057, %v1055
  %v1456 = vpack.c.b16 %v1060, %v1058
  %v1457 = vpack.c.b16 %v1061, %v1059
  %v1458 = vpack.c.b16 %v1064, %v1062
  %v1459 = vpack.c.b16 %v1065, %v1063
  %v1460 = vpack.c.b16 %v1068, %v1066
  %v1461 = vpack.c.b16 %v1069, %v1067
  %v1462 = vpack.c.b16 %v1072, %v1070
  %v1463 = vpack.c.b16 %v1073, %v1071
  %v1464 = vpack.c.b16 %v1076, %v1074
  %v1465 = vpack.c.b16 %v1077, %v1075
  %v1466 = vpack.c.b16 %v1080, %v1078
  %v1467 = vpack.c.b16 %v1081, %v1079
  %v1468 = vpack.c.b16 %v1084, %v1082
  %v1469 = vpack.c.b16 %v1085, %v1083
  %v1470 = vpack.c.b16 %v1088, %v1086
  %v1471 = vpack.c.b16 %v1089, %v1087
  %v1472 = vpack.c.b16 %v1092, %v1090
  %v1473 = vpack.c.b16 %v1093, %v1091
  %v1474 = vpack.c.b16 %v1096, %v1094
  %v1475 = vpack.c.b16 %v1097, %v1095
  %v1476 = vpack.c.b16 %v1100, %v1098
  %v1477 = vpack.c.b16 %v1101, %v1099
  %v1478 = vpack.c.b16 %v1104, %v1102
  %v1479 = vpack.c.b16 %v1105, %v1103
  %v1480 = vpack.c.b16 %v1108, %v1106
  %v1481 = vpack.c.b16 %v1109, %v1107
  %v1482 = vpack.c.b16 %v1112, %v1110
  %v1483 = vpack.c.b16 %v1113, %v1111
  %v1484 = vpack.c.b16 %v1116, %v1114
  %v1485 = vpack.c.b16 %v1117, %v1115
  %v1486 = vpack.c.b16 %v1120, %v1118
  %v1487 = vpack.c.b16 %v1121, %v1119
  %v1488 = vpack.c.b16 %v1124, %v1122
  %v1489 = vpack.c.b16 %v1125, %v1123
  %v1490 = vpack.c.b16 %v1128, %v1126
  %v1491 = vpack.c.b16 %v1129, %v1127
  %v1492 = vpack.c.b16 %v1132, %v1130
  %v1493 = vpack.c.b16 %v1133, %v1131
  %v1494 = vpack.c.b16 %v1136, %v1134
  %v1495 = vpack.c.b16 %v1137, %v1135
  %v1496 = vpack.c.b16 %v1140, %v1138
  %v1497 = vpack.c.b16 %v1141, %v1139
  %v1498 = vpack.c.b16 %v1144, %v1142
  %v1499 = vpack.c.b16 %v1145, %v1143
  %v1500 = vpack.c.b16 %v1148, %v1146
  %v1501 = vpack.c.b16 %v1149, %v1147
  %v1502 = vpack.c.b16 %v1152, %v1150
  %v1503 = vpack.c.b16 %v1153, %v1151
  %v1504 = vpack.c.b16 %v1156, %v1154
  %v1505 = vpack.c.b16 %v1157, %v1155
  %v1506 = vpack.c.b16 %v1160, %v1158
  %v1507 = vpack.c.b16 %v1161, %v1159
  %v1508 = vpack.c.b16 %v1164, %v1162
  %v1509 = vpack.c.b16 %v1165, %v1163
  %v1510 = vpack.c.b16 %v1168, %v1166
  %v1511 = vpack.c.b16 %v1169, %v1167
  %v1512 = vpack.c.b16 %v1172, %v1170
  %v1513 = vpack.c.b16 %v1173, %v1171
  %v1514 = vpack.c.b16 %v1176, %v1174
  %v1515 = vpack.c.b16 %v1177, %v1175
  %v1516 = vpack.c.b16 %v1180, %v1178
  %v1517 = vpack.c.b16 %v1181, %v1179
  %v1518 = vpack.c.b16 %v1184, %v1182
  %v1519 = vpack.c.b16 %v1185, %v1183
  %v1520 = vpack.c.b16 %v1188, %v1186
  %v1521 = vpack.c.b16 %v1189, %v1187
  %v1522 = vpack.c.b16 %v1192, %v1190
  %v1523 = vpack.c.b16 %v1193, %v1191
  %v1524 = vpack.c.b16 %v1196, %v1194
  %v1525 = vpack.c.b16 %v1197, %v1195
  %v1526 = vpack.c.b16 %v1200, %v1198
  %v1527 = vpack.c.b16 %v1201, %v1199
  %v1528 = vpack.c.b16 %v1204, %v1202
  %v1529 = vpack.c.b16 %v1205, %v1203
  %v1530 = vpack.c.b16 %v1208, %v1206
  %v1531 = vpack.c.b16 %v1209, %v1207
  %v1532 = vpack.c.b16 %v1212, %v1210
  %v1533 = vpack.c.b16 %v1213, %v1211
  %v1534 = vpack.c.b16 %v1216, %v1214
  %v1535 = vpack.c.b16 %v1217, %v1215
  %v1536 = vpack.c.b16 %v1220, %v1218
  %v1537 = vpack.c.b16 %v1221, %v1219
  %v1538 = vpack.c.b16 %v1224, %v1222
  %v1539 = vpack.c.b16 %v1225, %v1223
  %v1540 = vpack.c.b16 %v1228, %v1226
  %v1541 = vpack.c.b16 %v1229, %v1227
  %v1542 = vpack.c.b16 %v1232, %v1230
  %v1543 = vpack.c.b16 %v1233, %v1231
  %v1544 = vpack.c.b16 %v1236, %v1234
  %v1545 = vpack.c.b16 %v1237, %v1235
  %v1546 = vpack.c.b16 %v1240, %v1238
  %v1547 = vpack.c.b16 %v1241, %v1239
  %v1548 = vpack.c.b16 %v1244, %v1242
  %v1549 = vpack.c.b16 %v1245, %v1243
  %v1550 = vpack.c.b16 %v1248, %v1246
  %v1551 = vpack.c.b16 %v1249, %v1247
  %v1552 = vpack.c.b16 %v1252, %v1250
  %v1553 = vpack.c.b16 %v1253, %v1251
  %v1554 = vpack.c.b16 %v1256, %v1254
  %v1555 = vpack.c.b16 %v1257, %v1255
  %v1556 = vpack.c.b16 %v1260, %v1258
  %v1557 = vpack.c.b16 %v1261, %v1259
  %v1558 = vpack.c.b16 %v1264, %v1262
  %v1559 = vpack.c.b16 %v1265, %v1263
  %v1560 = vpack.c.b16 %v1268, %v1266
  %v1561 = vpack.c.b16 %v1269, %v1267
  %v1562 = vpack.c.b16 %v1272, %v1270
  %v1563 = vpack.c.b16 %v1273, %v1271
  %v1564 = vpack.c.b16 %v1276, %v1274
  %v1565 = vpack.c.b16 %v1277, %v1275
  %v1566 = vpack.c.b16 %v1280, %v1278
  %v1567 = vpack.c.b16 %v1281, %v1279
  %v1568 = vpack.c.b16 %v1284, %v1282
  %v1569 = vpack.c.b16 %v1285, %v1283
  %v1570 = vpack.c.b16 %v1288, %v1286
  %v1571 = vpack.c.b16 %v1289, %v1287
  %v1572 = vpack.c.b16 %v1292, %v1290
  %v1573 = vpack.c.b16 %v1293, %v1291
  %v1574 = vpack.c.b16 %v1296, %v1294
  %v1575 = vpack.c.b16 %v1297, %v1295
  %v1576 = vpack.c.b16 %v1300, %v1298
  %v1577 = vpack.c.b16 %v1301, %v1299
  %v1578 = vpack.c.b16 %v1304, %v1302
  %v1579 = vpack.c.b16 %v1305, %v1303
  %v1580 = vpack.c.b16 %v1308, %v1306
  %v1581 = vpack.c.b16 %v1309, %v1307
  %v1582 = vpack.c.b16 %v1312, %v1310
  %v1583 = vpack.c.b16 %v1313, %v1311
  %v1584 = vpack.c.b16 %v1316, %v1314
  %v1585 = vpack.c.b16 %v1317, %v1315
  %v1586 = vpack.c.b16 %v1320, %v1318
  %v1587 = vpack.c.b16 %v1321, %v1319
  %v1588 = vpack.c.b16 %v1324, %v1322
  %v1589 = vpack.c.b16 %v1325, %v1323
  %v1590 = vpack.c.b16 %v1328, %v1326
  %v1591 = vpack.c.b16 %v1329, %v1327
  %v1592 = vpack.c.b16 %v1332, %v1330
  %v1593 = vpack.c.b16 %v1333, %v1331
  %v1594 = vpack.c.b16 %v1336, %v1334
  %v1595 = vpack.c.b16 %v1337, %v1335
  %v1596 = vpack.c.b16 %v1340, %v1338
  %v1597 = vpack.c.b16 %v1341, %v1339
  %v1598 = vpack.c.b16 %v1344, %v1342
  %v1599 = vpack.c.b16 %v1345, %v1343
  %v1600 = vpack.c.b16 %v1348, %v1346
  %v1601 = vpack.c.b16 %v1349, %v1347
  %v1602 = vpack.c.b16 %v1352, %v1350
  %v1603 = vpack.c.b16 %v1353, %v1351
  %v1604 = vpack.c.b16 %v1356, %v1354
  %v1605 = vpack.c.b16 %v1357, %v1355
  %v1606 = vpack.c.b16 %v1360, %v1358
  %v1607 = vpack.c.b16 %v1361, %v1359
  %v1608 = vpack.c.b16 %v1364, %v1362
  %v1609 = vpack.c.b16 %v1365, %v1363
  %v1610 = vpack.c.b16 %v1368, %v1366
  %v1611 = vpack.c.b16 %v1369, %v1367
  %v1612 = vpack.c.b16 %v1372, %v1370
  %v1613 = vpack.c.b16 %v1373, %v1371
  %v1614 = vpack.c.b16 %v1376, %v1374
  %v1615 = vpack.c.b16 %v1377, %v1375
  %v1616 = vpack.c.b16 %v1380, %v1378
  %v1617 = vpack.c.b16 %v1381, %v1379
  %v1618 = vpack.c.b16 %v1384, %v1382
  %v1619 = vpack.c.b16 %v1385, %v1383
  %v1620 = vpack.c.b16 %v1388, %v1386
  %v1621 = vpack.c.b16 %v1389, %v1387
  %v1622 = vpack.c.b16 %v1392, %v1390
  %v1623 = vpack.c.b16 %v1393, %v1391
  %v1624 = vpack.c.b16 %v1396, %v1394
  %v1625 = vpack.c.b16 %v1397, %v1395
  %v1626 = vpack.c.b16 %v1400, %v1398
  %v1627 = vpack.c.b16 %v1401, %v1399
  %v1628 = vpack.c.b16 %v1404, %v1402
  %v1629 = vpack.c.b16 %v1405, %v1403
  %v1630 = vpack.c.b16 %v1408, %v1406
  %v1631 = vpack.c.b16 %v1409, %v1407
  %v1632 = vpack.c.b16 %v1412, %v1410
  %v1633 = vpack.c.b16 %v1413, %v1411
  %v1634 = vpack.c.b16 %v1416, %v1414
  %v1635 = vpack.c.b16 %v1417, %v1415
  %v1636 = vpack.c.b16 %v1420, %v1418
  %v1637 = vpack.c.b16 %v1421, %v1419
  %v1638 = vpack.c.b16 %v1424, %v1422
  %v1639 = vpack.c.b16 %v1425, %v1423
  %v1640 = vpack.c.b16 %v1428, %v1426
  %v1641 = vpack.c.b16 %v1429, %v1427
  %v1642 = vpack.c.b16 %v1432, %v1430
  %v1643 = vpack.c.b16 %v1433, %v1431
  %v1644 = vpack.c.b16 %v1436, %v1434
  %v1645 = vpack.c.b16 %v1437, %v1435
  %1854 = vmatprep.subr.bf16.mxu0 %v1439
  %1855 = vmatpush1.bf16.msra.mxu0 %v1438
  %1856 = vmatprep.subr.bf16.mxu0 %v1441
  %1857 = vmatpush1.bf16.msra.mxu0 %v1440
  %1858 = vmatprep.subr.bf16.mxu0 %v1443
  %1859 = vmatpush1.bf16.msra.mxu0 %v1442
  %1860 = vmatprep.subr.bf16.mxu0 %v1445
  %1861 = vmatpush1.bf16.msra.mxu0 %v1444
  %1862 = vmatprep.subr.bf16.mxu0 %v1447
  %1863 = vmatpush1.bf16.msra.mxu0 %v1446
  %1864 = vmatprep.subr.bf16.mxu0 %v1449
  %1865 = vmatpush1.bf16.msra.mxu0 %v1448
  %1866 = vmatprep.subr.bf16.mxu0 %v1451
  %1867 = vmatpush1.bf16.msra.mxu0 %v1450
  %1868 = vmatprep.subr.bf16.mxu0 %v1453
  %1869 = vmatpush1.bf16.msra.mxu0 %v1452
  %1870 = vmatprep.subr.bf16.mxu0 %v1455
  %1871 = vmatpush1.bf16.msra.mxu0 %v1454
  %1872 = vmatprep.subr.bf16.mxu0 %v1457
  %1873 = vmatpush1.bf16.msra.mxu0 %v1456
  %1874 = vmatprep.subr.bf16.mxu0 %v1459
  %1875 = vmatpush1.bf16.msra.mxu0 %v1458
  %1876 = vmatprep.subr.bf16.mxu0 %v1461
  %1877 = vmatpush1.bf16.msra.mxu0 %v1460
  %1878 = vmatprep.subr.bf16.mxu0 %v1463
  %1879 = vmatpush1.bf16.msra.mxu0 %v1462
  %1880 = vmatprep.subr.bf16.mxu0 %v1465
  %1881 = vmatpush1.bf16.msra.mxu0 %v1464
  %1882 = vmatprep.subr.bf16.mxu0 %v1467
  %1883 = vmatpush1.bf16.msra.mxu0 %v1466
  %1884 = vmatprep.subr.bf16.mxu0 %v1469
  %1885 = vmatpush1.bf16.msra.mxu0 %v1468
  %1886 = vmatprep.mubr.bf16.mxu0 %v633
  %1887 = vmatmul.mubr.bf16.gmra.mrb[0].mxu0 %v632
  %v1888 = vpop.f32.mrb[0].mxu0
  %v1889 = vadd.f32 0.0, %v1888
  %v1890 = vpop.f32.mrb[0].mxu0
  %v1891 = vadd.f32 0.0, %v1890
  %v1892 = vpop.f32.mrb[0].mxu0
  %v1893 = vadd.f32 0.0, %v1892
  %v1894 = vpop.f32.mrb[0].mxu0
  %v1895 = vadd.f32 0.0, %v1894
  %1896 = vmatprep.mubr.bf16.mxu0 %v646
  %1897 = vmatmul.mubr.bf16.gmra.mrb[0].mxu0 %v645
  %v1898 = vpop.f32.mrb[0].mxu0
  %v1899 = vadd.f32 0.0, %v1898
  %v1900 = vpop.f32.mrb[0].mxu0
  %v1901 = vadd.f32 0.0, %v1900
  %v1902 = vpop.f32.mrb[0].mxu0
  %v1903 = vadd.f32 0.0, %v1902
  %v1904 = vpop.f32.mrb[0].mxu0
  %v1905 = vadd.f32 0.0, %v1904
  %1906 = vmatprep.mubr.bf16.mxu0 %v659
  %1907 = vmatmul.mubr.bf16.gmra.mrb[0].mxu0 %v658
  %v1908 = vpop.f32.mrb[0].mxu0
  %v1909 = vadd.f32 0.0, %v1908
  %v1910 = vpop.f32.mrb[0].mxu0
  %v1911 = vadd.f32 0.0, %v1910
  %v1912 = vpop.f32.mrb[0].mxu0
  %v1913 = vadd.f32 0.0, %v1912
  %v1914 = vpop.f32.mrb[0].mxu0
  %v1915 = vadd.f32 0.0, %v1914
  %1916 = vmatprep.mubr.bf16.mxu0 %v672
  %1917 = vmatmul.mubr.bf16.gmra.mrb[0].mxu0 %v671
  %v1918 = vpop.f32.mrb[0].mxu0
  %v1919 = vadd.f32 0.0, %v1918
  %v1920 = vpop.f32.mrb[0].mxu0
  %v1921 = vadd.f32 0.0, %v1920
  %v1922 = vpop.f32.mrb[0].mxu0
  %v1923 = vadd.f32 0.0, %v1922
  %v1924 = vpop.f32.mrb[0].mxu0
  %v1925 = vadd.f32 0.0, %v1924
  %1926 = vmatprep.mubr.bf16.mxu0 %v685
  %1927 = vmatmul.mubr.bf16.gmra.mrb[0].mxu0 %v684
  %v1928 = vpop.f32.mrb[0].mxu0
  %v1929 = vadd.f32 0.0, %v1928
  %v1930 = vpop.f32.mrb[0].mxu0
  %v1931 = vadd.f32 0.0, %v1930
  %v1932 = vpop.f32.mrb[0].mxu0
  %v1933 = vadd.f32 0.0, %v1932
  %v1934 = vpop.f32.mrb[0].mxu0
  %v1935 = vadd.f32 0.0, %v1934
  %1936 = vmatprep.mubr.bf16.mxu0 %v698
  %1937 = vmatmul.mubr.bf16.gmra.mrb[0].mxu0 %v697
  %v1938 = vpop.f32.mrb[0].mxu0
  %v1939 = vadd.f32 0.0, %v1938
  %v1940 = vpop.f32.mrb[0].mxu0
  %v1941 = vadd.f32 0.0, %v1940
  %v1942 = vpop.f32.mrb[0].mxu0
  %v1943 = vadd.f32 0.0, %v1942
  %v1944 = vpop.f32.mrb[0].mxu0
  %v1945 = vadd.f32 0.0, %v1944
  %1946 = vmatprep.mubr.bf16.mxu0 %v711
  %1947 = vmatmul.mubr.bf16.gmra.mrb[0].mxu0 %v710
  %v1948 = vpop.f32.mrb[0].mxu0
  %v1949 = vadd.f32 0.0, %v1948
  %v1950 = vpop.f32.mrb[0].mxu0
  %v1951 = vadd.f32 0.0, %v1950
  %v1952 = vpop.f32.mrb[0].mxu0
  %v1953 = vpop.f32.mrb[0].mxu0
  %1954 = vdwg.mxu0
  %1955 = vmatprep.subr.bf16.mxu0 %v1471
  %1956 = vmatpush1.bf16.msra.mxu0 %v1470
  %1957 = vmatprep.subr.bf16.mxu0 %v1473
  %1958 = vmatpush1.bf16.msra.mxu0 %v1472
  %1959 = vmatprep.subr.bf16.mxu0 %v1475
  %1960 = vmatpush1.bf16.msra.mxu0 %v1474
  %1961 = vmatprep.subr.bf16.mxu0 %v1477
  %1962 = vmatpush1.bf16.msra.mxu0 %v1476
  %1963 = vmatprep.subr.bf16.mxu0 %v1479
  %1964 = vmatpush1.bf16.msra.mxu0 %v1478
  %1965 = vmatprep.subr.bf16.mxu0 %v1481
  %1966 = vmatpush1.bf16.msra.mxu0 %v1480
  %1967 = vmatprep.subr.bf16.mxu0 %v1483
  %1968 = vmatpush1.bf16.msra.mxu0 %v1482
  %1969 = vmatprep.subr.bf16.mxu0 %v1485
  %1970 = vmatpush1.bf16.msra.mxu0 %v1484
  %1971 = vmatprep.subr.bf16.mxu0 %v1487
  %1972 = vmatpush1.bf16.msra.mxu0 %v1486
  %1973 = vmatprep.subr.bf16.mxu0 %v1489
  %1974 = vmatpush1.bf16.msra.mxu0 %v1488
  %1975 = vmatprep.subr.bf16.mxu0 %v1491
  %1976 = vmatpush1.bf16.msra.mxu0 %v1490
  %1977 = vmatprep.subr.bf16.mxu0 %v1493
  %1978 = vmatpush1.bf16.msra.mxu0 %v1492
  %1979 = vmatprep.subr.bf16.mxu0 %v1495
  %1980 = vmatpush1.bf16.msra.mxu0 %v1494
  %1981 = vmatprep.subr.bf16.mxu0 %v1497
  %1982 = vmatpush1.bf16.msra.mxu0 %v1496
  %1983 = vmatprep.subr.bf16.mxu0 %v1499
  %1984 = vmatpush1.bf16.msra.mxu0 %v1498
  %1985 = vmatprep.subr.bf16.mxu0 %v1501
  %1986 = vmatpush1.bf16.msra.mxu0 %v1500
  %1987 = vmatprep.mubr.bf16.mxu0 %v635
  %1988 = vmatmul.mubr.bf16.gmra.mrb[0].mxu0 %v634
  %v1989 = vpop.f32.mrb[0].mxu0
  %v1990 = vadd.f32 %v1889, %v1989
  %v1991 = vpop.f32.mrb[0].mxu0
  %v1992 = vadd.f32 %v1891, %v1991
  %v1993 = vpop.f32.mrb[0].mxu0
  %v1994 = vadd.f32 %v1893, %v1993
  %v1995 = vpop.f32.mrb[0].mxu0
  %v1996 = vadd.f32 %v1895, %v1995
  %1997 = vmatprep.mubr.bf16.mxu0 %v648
  %1998 = vmatmul.mubr.bf16.gmra.mrb[0].mxu0 %v647
  %v1999 = vpop.f32.mrb[0].mxu0
  %v2000 = vadd.f32 %v1899, %v1999
  %v2001 = vpop.f32.mrb[0].mxu0
  %v2002 = vadd.f32 %v1901, %v2001
  %v2003 = vpop.f32.mrb[0].mxu0
  %v2004 = vadd.f32 %v1903, %v2003
  %v2005 = vpop.f32.mrb[0].mxu0
  %v2006 = vadd.f32 %v1905, %v2005
  %2007 = vmatprep.mubr.bf16.mxu0 %v661
  %2008 = vmatmul.mubr.bf16.gmra.mrb[0].mxu0 %v660
  %v2009 = vpop.f32.mrb[0].mxu0
  %v2010 = vadd.f32 %v1909, %v2009
  %v2011 = vpop.f32.mrb[0].mxu0
  %v2012 = vadd.f32 %v1911, %v2011
  %v2013 = vpop.f32.mrb[0].mxu0
  %v2014 = vadd.f32 %v1913, %v2013
  %v2015 = vpop.f32.mrb[0].mxu0
  %v2016 = vadd.f32 %v1915, %v2015
  %2017 = vmatprep.mubr.bf16.mxu0 %v674
  %2018 = vmatmul.mubr.bf16.gmra.mrb[0].mxu0 %v673
  %v2019 = vpop.f32.mrb[0].mxu0
  %v2020 = vadd.f32 %v1919, %v2019
  %v2021 = vpop.f32.mrb[0].mxu0
  %v2022 = vadd.f32 %v1921, %v2021
  %v2023 = vpop.f32.mrb[0].mxu0
  %v2024 = vadd.f32 %v1923, %v2023
  %v2025 = vpop.f32.mrb[0].mxu0
  %v2026 = vadd.f32 %v1925, %v2025
  %2027 = vmatprep.mubr.bf16.mxu0 %v687
  %2028 = vmatmul.mubr.bf16.gmra.mrb[0].mxu0 %v686
  %v2029 = vpop.f32.mrb[0].mxu0
  %v2030 = vadd.f32 %v1929, %v2029
  %v2031 = vpop.f32.mrb[0].mxu0
  %v2032 = vadd.f32 %v1931, %v2031
  %v2033 = vpop.f32.mrb[0].mxu0
  %v2034 = vadd.f32 %v1933, %v2033
  %v2035 = vpop.f32.mrb[0].mxu0
  %v2036 = vadd.f32 %v1935, %v2035
  %2037 = vmatprep.mubr.bf16.mxu0 %v700
  %2038 = vmatmul.mubr.bf16.gmra.mrb[0].mxu0 %v699
  %v2039 = vpop.f32.mrb[0].mxu0
  %v2040 = vadd.f32 %v1939, %v2039
  %v2041 = vpop.f32.mrb[0].mxu0
  %v2042 = vadd.f32 %v1941, %v2041
  %v2043 = vpop.f32.mrb[0].mxu0
  %v2044 = vadd.f32 %v1943, %v2043
  %v2045 = vpop.f32.mrb[0].mxu0
  %v2046 = vadd.f32 %v1945, %v2045
  %2047 = vmatprep.mubr.bf16.mxu0 %v713
  %2048 = vmatmul.mubr.bf16.gmra.mrb[0].mxu0 %v712
  %v2049 = vpop.f32.mrb[0].mxu0
  %v2050 = vadd.f32 %v1949, %v2049
  %v2051 = vpop.f32.mrb[0].mxu0
  %v2052 = vadd.f32 %v1951, %v2051
  %v2053 = vpop.f32.mrb[0].mxu0
  %v2054 = vpop.f32.mrb[0].mxu0
  %2055 = vdwg.mxu0
  %2056 = vmatprep.subr.bf16.mxu0 %v1503
  %2057 = vmatpush1.bf16.msra.mxu0 %v1502
  %2058 = vmatprep.subr.bf16.mxu0 %v1505
  %2059 = vmatpush1.bf16.msra.mxu0 %v1504
  %2060 = vmatprep.subr.bf16.mxu0 %v1507
  %2061 = vmatpush1.bf16.msra.mxu0 %v1506
  %2062 = vmatprep.subr.bf16.mxu0 %v1509
  %2063 = vmatpush1.bf16.msra.mxu0 %v1508
  %2064 = vmatprep.subr.bf16.mxu0 %v1511
  %2065 = vmatpush1.bf16.msra.mxu0 %v1510
  %2066 = vmatprep.subr.bf16.mxu0 %v1513
  %2067 = vmatpush1.bf16.msra.mxu0 %v1512
  %2068 = vmatprep.subr.bf16.mxu0 %v1515
  %2069 = vmatpush1.bf16.msra.mxu0 %v1514
  %2070 = vmatprep.subr.bf16.mxu0 %v1517
  %2071 = vmatpush1.bf16.msra.mxu0 %v1516
  %2072 = vmatprep.subr.bf16.mxu0 %v1519
  %2073 = vmatpush1.bf16.msra.mxu0 %v1518
  %2074 = vmatprep.subr.bf16.mxu0 %v1521
  %2075 = vmatpush1.bf16.msra.mxu0 %v1520
  %2076 = vmatprep.subr.bf16.mxu0 %v1523
  %2077 = vmatpush1.bf16.msra.mxu0 %v1522
  %2078 = vmatprep.subr.bf16.mxu0 %v1525
  %2079 = vmatpush1.bf16.msra.mxu0 %v1524
  %2080 = vmatprep.subr.bf16.mxu0 %v1527
  %2081 = vmatpush1.bf16.msra.mxu0 %v1526
  %2082 = vmatprep.subr.bf16.mxu0 %v1529
  %2083 = vmatpush1.bf16.msra.mxu0 %v1528
  %2084 = vmatprep.subr.bf16.mxu0 %v1531
  %2085 = vmatpush1.bf16.msra.mxu0 %v1530
  %2086 = vmatprep.subr.bf16.mxu0 %v1533
  %2087 = vmatpush1.bf16.msra.mxu0 %v1532
  %2088 = vmatprep.mubr.bf16.mxu0 %v637
  %2089 = vmatmul.mubr.bf16.gmra.mrb[0].mxu0 %v636
  %v2090 = vpop.f32.mrb[0].mxu0
  %v2091 = vadd.f32 %v1990, %v2090
  %v2092 = vpop.f32.mrb[0].mxu0
  %v2093 = vadd.f32 %v1992, %v2092
  %v2094 = vpop.f32.mrb[0].mxu0
  %v2095 = vadd.f32 %v1994, %v2094
  %v2096 = vpop.f32.mrb[0].mxu0
  %v2097 = vadd.f32 %v1996, %v2096
  %2098 = vmatprep.mubr.bf16.mxu0 %v650
  %2099 = vmatmul.mubr.bf16.gmra.mrb[0].mxu0 %v649
  %v2100 = vpop.f32.mrb[0].mxu0
  %v2101 = vadd.f32 %v2000, %v2100
  %v2102 = vpop.f32.mrb[0].mxu0
  %v2103 = vadd.f32 %v2002, %v2102
  %v2104 = vpop.f32.mrb[0].mxu0
  %v2105 = vadd.f32 %v2004, %v2104
  %v2106 = vpop.f32.mrb[0].mxu0
  %v2107 = vadd.f32 %v2006, %v2106
  %2108 = vmatprep.mubr.bf16.mxu0 %v663
  %2109 = vmatmul.mubr.bf16.gmra.mrb[0].mxu0 %v662
  %v2110 = vpop.f32.mrb[0].mxu0
  %v2111 = vadd.f32 %v2010, %v2110
  %v2112 = vpop.f32.mrb[0].mxu0
  %v2113 = vadd.f32 %v2012, %v2112
  %v2114 = vpop.f32.mrb[0].mxu0
  %v2115 = vadd.f32 %v2014, %v2114
  %v2116 = vpop.f32.mrb[0].mxu0
  %v2117 = vadd.f32 %v2016, %v2116
  %2118 = vmatprep.mubr.bf16.mxu0 %v676
  %2119 = vmatmul.mubr.bf16.gmra.mrb[0].mxu0 %v675
  %v2120 = vpop.f32.mrb[0].mxu0
  %v2121 = vadd.f32 %v2020, %v2120
  %v2122 = vpop.f32.mrb[0].mxu0
  %v2123 = vadd.f32 %v2022, %v2122
  %v2124 = vpop.f32.mrb[0].mxu0
  %v2125 = vadd.f32 %v2024, %v2124
  %v2126 = vpop.f32.mrb[0].mxu0
  %v2127 = vadd.f32 %v2026, %v2126
  %2128 = vmatprep.mubr.bf16.mxu0 %v689
  %2129 = vmatmul.mubr.bf16.gmra.mrb[0].mxu0 %v688
  %v2130 = vpop.f32.mrb[0].mxu0
  %v2131 = vadd.f32 %v2030, %v2130
  %v2132 = vpop.f32.mrb[0].mxu0
  %v2133 = vadd.f32 %v2032, %v2132
  %v2134 = vpop.f32.mrb[0].mxu0
  %v2135 = vadd.f32 %v2034, %v2134
  %v2136 = vpop.f32.mrb[0].mxu0
  %v2137 = vadd.f32 %v2036, %v2136
  %2138 = vmatprep.mubr.bf16.mxu0 %v702
  %2139 = vmatmul.mubr.bf16.gmra.mrb[0].mxu0 %v701
  %v2140 = vpop.f32.mrb[0].mxu0
  %v2141 = vadd.f32 %v2040, %v2140
  %v2142 = vpop.f32.mrb[0].mxu0
  %v2143 = vadd.f32 %v2042, %v2142
  %v2144 = vpop.f32.mrb[0].mxu0
  %v2145 = vadd.f32 %v2044, %v2144
  %v2146 = vpop.f32.mrb[0].mxu0
  %v2147 = vadd.f32 %v2046, %v2146
  %2148 = vmatprep.mubr.bf16.mxu0 %v715
  %2149 = vmatmul.mubr.bf16.gmra.mrb[0].mxu0 %v714
  %v2150 = vpop.f32.mrb[0].mxu0
  %v2151 = vadd.f32 %v2050, %v2150
  %v2152 = vpop.f32.mrb[0].mxu0
  %v2153 = vadd.f32 %v2052, %v2152
  %v2154 = vpop.f32.mrb[0].mxu0
  %v2155 = vpop.f32.mrb[0].mxu0
  %2156 = vdwg.mxu0
  %2157 = vmatprep.subr.bf16.mxu0 %v1535
  %2158 = vmatpush1.bf16.msra.mxu0 %v1534
  %2159 = vmatprep.subr.bf16.mxu0 %v1537
  %2160 = vmatpush1.bf16.msra.mxu0 %v1536
  %2161 = vmatprep.subr.bf16.mxu0 %v1539
  %2162 = vmatpush1.bf16.msra.mxu0 %v1538
  %2163 = vmatprep.subr.bf16.mxu0 %v1541
  %2164 = vmatpush1.bf16.msra.mxu0 %v1540
  %2165 = vmatprep.subr.bf16.mxu0 %v1543
  %2166 = vmatpush1.bf16.msra.mxu0 %v1542
  %2167 = vmatprep.subr.bf16.mxu0 %v1545
  %2168 = vmatpush1.bf16.msra.mxu0 %v1544
  %2169 = vmatprep.subr.bf16.mxu0 %v1547
  %2170 = vmatpush1.bf16.msra.mxu0 %v1546
  %2171 = vmatprep.subr.bf16.mxu0 %v1549
  %2172 = vmatpush1.bf16.msra.mxu0 %v1548
  %2173 = vmatprep.subr.bf16.mxu0 %v1551
  %2174 = vmatpush1.bf16.msra.mxu0 %v1550
  %2175 = vmatprep.subr.bf16.mxu0 %v1553
  %2176 = vmatpush1.bf16.msra.mxu0 %v1552
  %2177 = vmatprep.subr.bf16.mxu0 %v1555
  %2178 = vmatpush1.bf16.msra.mxu0 %v1554
  %2179 = vmatprep.subr.bf16.mxu0 %v1557
  %2180 = vmatpush1.bf16.msra.mxu0 %v1556
  %2181 = vmatprep.subr.bf16.mxu0 %v1559
  %2182 = vmatpush1.bf16.msra.mxu0 %v1558
  %2183 = vmatprep.subr.bf16.mxu0 %v1561
  %2184 = vmatpush1.bf16.msra.mxu0 %v1560
  %2185 = vmatprep.subr.bf16.mxu0 %v1563
  %2186 = vmatpush1.bf16.msra.mxu0 %v1562
  %2187 = vmatprep.subr.bf16.mxu0 %v1565
  %2188 = vmatpush1.bf16.msra.mxu0 %v1564
  %2189 = vmatprep.mubr.bf16.mxu0 %v639
  %2190 = vmatmul.mubr.bf16.gmra.mrb[0].mxu0 %v638
  %v2191 = vpop.f32.mrb[0].mxu0
  %v2192 = vadd.f32 %v2091, %v2191
  %v2193 = vpop.f32.mrb[0].mxu0
  %v2194 = vadd.f32 %v2093, %v2193
  %v2195 = vpop.f32.mrb[0].mxu0
  %v2196 = vadd.f32 %v2095, %v2195
  %v2197 = vpop.f32.mrb[0].mxu0
  %v2198 = vadd.f32 %v2097, %v2197
  %2199 = vmatprep.mubr.bf16.mxu0 %v652
  %2200 = vmatmul.mubr.bf16.gmra.mrb[0].mxu0 %v651
  %v2201 = vpop.f32.mrb[0].mxu0
  %v2202 = vadd.f32 %v2101, %v2201
  %v2203 = vpop.f32.mrb[0].mxu0
  %v2204 = vadd.f32 %v2103, %v2203
  %v2205 = vpop.f32.mrb[0].mxu0
  %v2206 = vadd.f32 %v2105, %v2205
  %v2207 = vpop.f32.mrb[0].mxu0
  %v2208 = vadd.f32 %v2107, %v2207
  %2209 = vmatprep.mubr.bf16.mxu0 %v665
  %2210 = vmatmul.mubr.bf16.gmra.mrb[0].mxu0 %v664
  %v2211 = vpop.f32.mrb[0].mxu0
  %v2212 = vadd.f32 %v2111, %v2211
  %v2213 = vpop.f32.mrb[0].mxu0
  %v2214 = vadd.f32 %v2113, %v2213
  %v2215 = vpop.f32.mrb[0].mxu0
  %v2216 = vadd.f32 %v2115, %v2215
  %v2217 = vpop.f32.mrb[0].mxu0
  %v2218 = vadd.f32 %v2117, %v2217
  %2219 = vmatprep.mubr.bf16.mxu0 %v678
  %2220 = vmatmul.mubr.bf16.gmra.mrb[0].mxu0 %v677
  %v2221 = vpop.f32.mrb[0].mxu0
  %v2222 = vadd.f32 %v2121, %v2221
  %v2223 = vpop.f32.mrb[0].mxu0
  %v2224 = vadd.f32 %v2123, %v2223
  %v2225 = vpop.f32.mrb[0].mxu0
  %v2226 = vadd.f32 %v2125, %v2225
  %v2227 = vpop.f32.mrb[0].mxu0
  %v2228 = vadd.f32 %v2127, %v2227
  %2229 = vmatprep.mubr.bf16.mxu0 %v691
  %2230 = vmatmul.mubr.bf16.gmra.mrb[0].mxu0 %v690
  %v2231 = vpop.f32.mrb[0].mxu0
  %v2232 = vadd.f32 %v2131, %v2231
  %v2233 = vpop.f32.mrb[0].mxu0
  %v2234 = vadd.f32 %v2133, %v2233
  %v2235 = vpop.f32.mrb[0].mxu0
  %v2236 = vadd.f32 %v2135, %v2235
  %v2237 = vpop.f32.mrb[0].mxu0
  %v2238 = vadd.f32 %v2137, %v2237
  %2239 = vmatprep.mubr.bf16.mxu0 %v704
  %2240 = vmatmul.mubr.bf16.gmra.mrb[0].mxu0 %v703
  %v2241 = vpop.f32.mrb[0].mxu0
  %v2242 = vadd.f32 %v2141, %v2241
  %v2243 = vpop.f32.mrb[0].mxu0
  %v2244 = vadd.f32 %v2143, %v2243
  %v2245 = vpop.f32.mrb[0].mxu0
  %v2246 = vadd.f32 %v2145, %v2245
  %v2247 = vpop.f32.mrb[0].mxu0
  %v2248 = vadd.f32 %v2147, %v2247
  %2249 = vmatprep.mubr.bf16.mxu0 %v717
  %2250 = vmatmul.mubr.bf16.gmra.mrb[0].mxu0 %v716
  %v2251 = vpop.f32.mrb[0].mxu0
  %v2252 = vadd.f32 %v2151, %v2251
  %v2253 = vpop.f32.mrb[0].mxu0
  %v2254 = vadd.f32 %v2153, %v2253
  %v2255 = vpop.f32.mrb[0].mxu0
  %v2256 = vpop.f32.mrb[0].mxu0
  %2257 = vdwg.mxu0
  %2258 = vmatprep.subr.bf16.mxu0 %v1567
  %2259 = vmatpush1.bf16.msra.mxu0 %v1566
  %2260 = vmatprep.subr.bf16.mxu0 %v1569
  %2261 = vmatpush1.bf16.msra.mxu0 %v1568
  %2262 = vmatprep.subr.bf16.mxu0 %v1571
  %2263 = vmatpush1.bf16.msra.mxu0 %v1570
  %2264 = vmatprep.subr.bf16.mxu0 %v1573
  %2265 = vmatpush1.bf16.msra.mxu0 %v1572
  %2266 = vmatprep.subr.bf16.mxu0 %v1575
  %2267 = vmatpush1.bf16.msra.mxu0 %v1574
  %2268 = vmatprep.subr.bf16.mxu0 %v1577
  %2269 = vmatpush1.bf16.msra.mxu0 %v1576
  %2270 = vmatprep.subr.bf16.mxu0 %v1579
  %2271 = vmatpush1.bf16.msra.mxu0 %v1578
  %2272 = vmatprep.subr.bf16.mxu0 %v1581
  %2273 = vmatpush1.bf16.msra.mxu0 %v1580
  %2274 = vmatprep.subr.bf16.mxu0 %v1583
  %2275 = vmatpush1.bf16.msra.mxu0 %v1582
  %2276 = vmatprep.subr.bf16.mxu0 %v1585
  %2277 = vmatpush1.bf16.msra.mxu0 %v1584
  %2278 = vmatprep.subr.bf16.mxu0 %v1587
  %2279 = vmatpush1.bf16.msra.mxu0 %v1586
  %2280 = vmatprep.subr.bf16.mxu0 %v1589
  %2281 = vmatpush1.bf16.msra.mxu0 %v1588
  %2282 = vmatprep.subr.bf16.mxu0 %v1591
  %2283 = vmatpush1.bf16.msra.mxu0 %v1590
  %2284 = vmatprep.subr.bf16.mxu0 %v1593
  %2285 = vmatpush1.bf16.msra.mxu0 %v1592
  %2286 = vmatprep.subr.bf16.mxu0 %v1595
  %2287 = vmatpush1.bf16.msra.mxu0 %v1594
  %2288 = vmatprep.subr.bf16.mxu0 %v1597
  %2289 = vmatpush1.bf16.msra.mxu0 %v1596
  %2290 = vmatprep.mubr.bf16.mxu0 %v641
  %2291 = vmatmul.mubr.bf16.gmra.mrb[0].mxu0 %v640
  %v2292 = vpop.f32.mrb[0].mxu0
  %v2293 = vadd.f32 %v2192, %v2292
  %v2294 = vpop.f32.mrb[0].mxu0
  %v2295 = vadd.f32 %v2194, %v2294
  %v2296 = vpop.f32.mrb[0].mxu0
  %v2297 = vadd.f32 %v2196, %v2296
  %v2298 = vpop.f32.mrb[0].mxu0
  %v2299 = vadd.f32 %v2198, %v2298
  %2300 = vmatprep.mubr.bf16.mxu0 %v654
  %2301 = vmatmul.mubr.bf16.gmra.mrb[0].mxu0 %v653
  %v2302 = vpop.f32.mrb[0].mxu0
  %v2303 = vadd.f32 %v2202, %v2302
  %v2304 = vpop.f32.mrb[0].mxu0
  %v2305 = vadd.f32 %v2204, %v2304
  %v2306 = vpop.f32.mrb[0].mxu0
  %v2307 = vadd.f32 %v2206, %v2306
  %v2308 = vpop.f32.mrb[0].mxu0
  %v2309 = vadd.f32 %v2208, %v2308
  %2310 = vmatprep.mubr.bf16.mxu0 %v667
  %2311 = vmatmul.mubr.bf16.gmra.mrb[0].mxu0 %v666
  %v2312 = vpop.f32.mrb[0].mxu0
  %v2313 = vadd.f32 %v2212, %v2312
  %v2314 = vpop.f32.mrb[0].mxu0
  %v2315 = vadd.f32 %v2214, %v2314
  %v2316 = vpop.f32.mrb[0].mxu0
  %v2317 = vadd.f32 %v2216, %v2316
  %v2318 = vpop.f32.mrb[0].mxu0
  %v2319 = vadd.f32 %v2218, %v2318
  %2320 = vmatprep.mubr.bf16.mxu0 %v680
  %2321 = vmatmul.mubr.bf16.gmra.mrb[0].mxu0 %v679
  %v2322 = vpop.f32.mrb[0].mxu0
  %v2323 = vadd.f32 %v2222, %v2322
  %v2324 = vpop.f32.mrb[0].mxu0
  %v2325 = vadd.f32 %v2224, %v2324
  %v2326 = vpop.f32.mrb[0].mxu0
  %v2327 = vadd.f32 %v2226, %v2326
  %v2328 = vpop.f32.mrb[0].mxu0
  %v2329 = vadd.f32 %v2228, %v2328
  %2330 = vmatprep.mubr.bf16.mxu0 %v693
  %2331 = vmatmul.mubr.bf16.gmra.mrb[0].mxu0 %v692
  %v2332 = vpop.f32.mrb[0].mxu0
  %v2333 = vadd.f32 %v2232, %v2332
  %v2334 = vpop.f32.mrb[0].mxu0
  %v2335 = vadd.f32 %v2234, %v2334
  %v2336 = vpop.f32.mrb[0].mxu0
  %v2337 = vadd.f32 %v2236, %v2336
  %v2338 = vpop.f32.mrb[0].mxu0
  %v2339 = vadd.f32 %v2238, %v2338
  %2340 = vmatprep.mubr.bf16.mxu0 %v706
  %2341 = vmatmul.mubr.bf16.gmra.mrb[0].mxu0 %v705
  %v2342 = vpop.f32.mrb[0].mxu0
  %v2343 = vadd.f32 %v2242, %v2342
  %v2344 = vpop.f32.mrb[0].mxu0
  %v2345 = vadd.f32 %v2244, %v2344
  %v2346 = vpop.f32.mrb[0].mxu0
  %v2347 = vadd.f32 %v2246, %v2346
  %v2348 = vpop.f32.mrb[0].mxu0
  %v2349 = vadd.f32 %v2248, %v2348
  %2350 = vmatprep.mubr.bf16.mxu0 %v719
  %2351 = vmatmul.mubr.bf16.gmra.mrb[0].mxu0 %v718
  %v2352 = vpop.f32.mrb[0].mxu0
  %v2353 = vadd.f32 %v2252, %v2352
  %v2354 = vpop.f32.mrb[0].mxu0
  %v2355 = vadd.f32 %v2254, %v2354
  %v2356 = vpop.f32.mrb[0].mxu0
  %v2357 = vpop.f32.mrb[0].mxu0
  %2358 = vdwg.mxu0
  %2359 = vmatprep.subr.bf16.mxu0 %v1599
  %2360 = vmatpush1.bf16.msra.mxu0 %v1598
  %2361 = vmatprep.subr.bf16.mxu0 %v1601
  %2362 = vmatpush1.bf16.msra.mxu0 %v1600
  %2363 = vmatprep.subr.bf16.mxu0 %v1603
  %2364 = vmatpush1.bf16.msra.mxu0 %v1602
  %2365 = vmatprep.subr.bf16.mxu0 %v1605
  %2366 = vmatpush1.bf16.msra.mxu0 %v1604
  %2367 = vmatprep.subr.bf16.mxu0 %v1607
  %2368 = vmatpush1.bf16.msra.mxu0 %v1606
  %2369 = vmatprep.subr.bf16.mxu0 %v1609
  %2370 = vmatpush1.bf16.msra.mxu0 %v1608
  %2371 = vmatprep.subr.bf16.mxu0 %v1611
  %2372 = vmatpush1.bf16.msra.mxu0 %v1610
  %2373 = vmatprep.subr.bf16.mxu0 %v1613
  %2374 = vmatpush1.bf16.msra.mxu0 %v1612
  %2375 = vmatprep.subr.bf16.mxu0 %v1615
  %2376 = vmatpush1.bf16.msra.mxu0 %v1614
  %2377 = vmatprep.subr.bf16.mxu0 %v1617
  %2378 = vmatpush1.bf16.msra.mxu0 %v1616
  %2379 = vmatprep.subr.bf16.mxu0 %v1619
  %2380 = vmatpush1.bf16.msra.mxu0 %v1618
  %2381 = vmatprep.subr.bf16.mxu0 %v1621
  %2382 = vmatpush1.bf16.msra.mxu0 %v1620
  %2383 = vmatprep.subr.bf16.mxu0 %v1623
  %2384 = vmatpush1.bf16.msra.mxu0 %v1622
  %2385 = vmatprep.subr.bf16.mxu0 %v1625
  %2386 = vmatpush1.bf16.msra.mxu0 %v1624
  %2387 = vmatprep.subr.bf16.mxu0 %v1627
  %2388 = vmatpush1.bf16.msra.mxu0 %v1626
  %2389 = vmatprep.subr.bf16.mxu0 %v1629
  %2390 = vmatpush1.bf16.msra.mxu0 %v1628
  %2391 = vmatprep.mubr.bf16.mxu0 %v643
  %2392 = vmatmul.mubr.bf16.gmra.mrb[0].mxu0 %v642
  %v2393 = vpop.f32.mrb[0].mxu0
  %v2394 = vadd.f32 %v2293, %v2393
  %v2395 = vpop.f32.mrb[0].mxu0
  %v2396 = vadd.f32 %v2295, %v2395
  %v2397 = vpop.f32.mrb[0].mxu0
  %v2398 = vadd.f32 %v2297, %v2397
  %v2399 = vpop.f32.mrb[0].mxu0
  %v2400 = vadd.f32 %v2299, %v2399
  %2401 = vmatprep.mubr.bf16.mxu0 %v656
  %2402 = vmatmul.mubr.bf16.gmra.mrb[0].mxu0 %v655
  %v2403 = vpop.f32.mrb[0].mxu0
  %v2404 = vadd.f32 %v2303, %v2403
  %v2405 = vpop.f32.mrb[0].mxu0
  %v2406 = vadd.f32 %v2305, %v2405
  %v2407 = vpop.f32.mrb[0].mxu0
  %v2408 = vadd.f32 %v2307, %v2407
  %v2409 = vpop.f32.mrb[0].mxu0
  %v2410 = vadd.f32 %v2309, %v2409
  %2411 = vmatprep.mubr.bf16.mxu0 %v669
  %2412 = vmatmul.mubr.bf16.gmra.mrb[0].mxu0 %v668
  %v2413 = vpop.f32.mrb[0].mxu0
  %v2414 = vadd.f32 %v2313, %v2413
  %v2415 = vpop.f32.mrb[0].mxu0
  %v2416 = vadd.f32 %v2315, %v2415
  %v2417 = vpop.f32.mrb[0].mxu0
  %v2418 = vadd.f32 %v2317, %v2417
  %v2419 = vpop.f32.mrb[0].mxu0
  %v2420 = vadd.f32 %v2319, %v2419
  %2421 = vmatprep.mubr.bf16.mxu0 %v682
  %2422 = vmatmul.mubr.bf16.gmra.mrb[0].mxu0 %v681
  %v2423 = vpop.f32.mrb[0].mxu0
  %v2424 = vadd.f32 %v2323, %v2423
  %v2425 = vpop.f32.mrb[0].mxu0
  %v2426 = vadd.f32 %v2325, %v2425
  %v2427 = vpop.f32.mrb[0].mxu0
  %v2428 = vadd.f32 %v2327, %v2427
  %v2429 = vpop.f32.mrb[0].mxu0
  %v2430 = vadd.f32 %v2329, %v2429
  %2431 = vmatprep.mubr.bf16.mxu0 %v695
  %2432 = vmatmul.mubr.bf16.gmra.mrb[0].mxu0 %v694
  %v2433 = vpop.f32.mrb[0].mxu0
  %v2434 = vadd.f32 %v2333, %v2433
  %v2435 = vpop.f32.mrb[0].mxu0
  %v2436 = vadd.f32 %v2335, %v2435
  %v2437 = vpop.f32.mrb[0].mxu0
  %v2438 = vadd.f32 %v2337, %v2437
  %v2439 = vpop.f32.mrb[0].mxu0
  %v2440 = vadd.f32 %v2339, %v2439
  %2441 = vmatprep.mubr.bf16.mxu0 %v708
  %2442 = vmatmul.mubr.bf16.gmra.mrb[0].mxu0 %v707
  %v2443 = vpop.f32.mrb[0].mxu0
  %v2444 = vadd.f32 %v2343, %v2443
  %v2445 = vpop.f32.mrb[0].mxu0
  %v2446 = vadd.f32 %v2345, %v2445
  %v2447 = vpop.f32.mrb[0].mxu0
  %v2448 = vadd.f32 %v2347, %v2447
  %v2449 = vpop.f32.mrb[0].mxu0
  %v2450 = vadd.f32 %v2349, %v2449
  %2451 = vmatprep.mubr.bf16.mxu0 %v721
  %2452 = vmatmul.mubr.bf16.gmra.mrb[0].mxu0 %v720
  %v2453 = vpop.f32.mrb[0].mxu0
  %v2454 = vadd.f32 %v2353, %v2453
  %v2455 = vpop.f32.mrb[0].mxu0
  %v2456 = vadd.f32 %v2355, %v2455
  %v2457 = vpop.f32.mrb[0].mxu0
  %v2458 = vpop.f32.mrb[0].mxu0
  %2459 = vdwg.mxu0
  %2460 = vmatprep.subr.bf16.mxu0 %v1631
  %2461 = vmatpush1.bf16.msra.mxu0 %v1630
  %2462 = vmatprep.subr.bf16.mxu0 %v1633
  %2463 = vmatpush1.bf16.msra.mxu0 %v1632
  %2464 = vmatprep.subr.bf16.mxu0 %v1635
  %2465 = vmatpush1.bf16.msra.mxu0 %v1634
  %2466 = vmatprep.subr.bf16.mxu0 %v1637
  %2467 = vmatpush1.bf16.msra.mxu0 %v1636
  %2468 = vmatprep.subr.bf16.mxu0 %v1639
  %2469 = vmatpush1.bf16.msra.mxu0 %v1638
  %2470 = vmatprep.subr.bf16.mxu0 %v1641
  %2471 = vmatpush1.bf16.msra.mxu0 %v1640
  %2472 = vmatprep.subr.bf16.mxu0 %v1643
  %2473 = vmatpush1.bf16.msra.mxu0 %v1642
  %2474 = vmatprep.subr.bf16.mxu0 %v1645
  %2475 = vmatpush1.bf16.msra.mxu0 %v1644
  %2476 = vmatprep.subr.bf16.mxu0 0
  %2477 = vmatpush1.bf16.msra.mxu0 0
  %2478 = vmatprep.subr.bf16.mxu0 0
  %2479 = vmatpush1.bf16.msra.mxu0 0
  %2480 = vmatprep.subr.bf16.mxu0 0
  %2481 = vmatpush1.bf16.msra.mxu0 0
  %2482 = vmatprep.subr.bf16.mxu0 0
  %2483 = vmatpush1.bf16.msra.mxu0 0
  %2484 = vmatprep.subr.bf16.mxu0 0
  %2485 = vmatpush1.bf16.msra.mxu0 0
  %2486 = vmatprep.subr.bf16.mxu0 0
  %2487 = vmatpush1.bf16.msra.mxu0 0
  %2488 = vmatprep.subr.bf16.mxu0 0
  %2489 = vmatpush1.bf16.msra.mxu0 0
  %2490 = vmatprep.subr.bf16.mxu0 0
  %2491 = vmatpush1.bf16.msra.mxu0 0
  %2492 = vmatprep.mubr.bf16.mxu0 0
  %2493 = vmatmul.mubr.bf16.gmra.mrb[0].mxu0 %v644
  %v2494 = vpop.f32.mrb[0].mxu0
  %v2495 = vadd.f32 %v2394, %v2494
  %v2496 = vpop.f32.mrb[0].mxu0
  %v2497 = vadd.f32 %v2396, %v2496
  %v2498 = vpop.f32.mrb[0].mxu0
  %v2499 = vadd.f32 %v2398, %v2498
  %v2500 = vpop.f32.mrb[0].mxu0
  %v2501 = vadd.f32 %v2400, %v2500
  %2502 = vmatprep.mubr.bf16.mxu0 0
  %2503 = vmatmul.mubr.bf16.gmra.mrb[0].mxu0 %v657
  %v2504 = vpop.f32.mrb[0].mxu0
  %v2505 = vadd.f32 %v2404, %v2504
  %v2506 = vpop.f32.mrb[0].mxu0
  %v2507 = vadd.f32 %v2406, %v2506
  %v2508 = vpop.f32.mrb[0].mxu0
  %v2509 = vadd.f32 %v2408, %v2508
  %v2510 = vpop.f32.mrb[0].mxu0
  %v2511 = vadd.f32 %v2410, %v2510
  %2512 = vmatprep.mubr.bf16.mxu0 0
  %2513 = vmatmul.mubr.bf16.gmra.mrb[0].mxu0 %v670
  %v2514 = vpop.f32.mrb[0].mxu0
  %v2515 = vadd.f32 %v2414, %v2514
  %v2516 = vpop.f32.mrb[0].mxu0
  %v2517 = vadd.f32 %v2416, %v2516
  %v2518 = vpop.f32.mrb[0].mxu0
  %v2519 = vadd.f32 %v2418, %v2518
  %v2520 = vpop.f32.mrb[0].mxu0
  %v2521 = vadd.f32 %v2420, %v2520
  %2522 = vmatprep.mubr.bf16.mxu0 0
  %2523 = vmatmul.mubr.bf16.gmra.mrb[0].mxu0 %v683
  %v2524 = vpop.f32.mrb[0].mxu0
  %v2525 = vadd.f32 %v2424, %v2524
  %v2526 = vpop.f32.mrb[0].mxu0
  %v2527 = vadd.f32 %v2426, %v2526
  %v2528 = vpop.f32.mrb[0].mxu0
  %v2529 = vadd.f32 %v2428, %v2528
  %v2530 = vpop.f32.mrb[0].mxu0
  %v2531 = vadd.f32 %v2430, %v2530
  %2532 = vmatprep.mubr.bf16.mxu0 0
  %2533 = vmatmul.mubr.bf16.gmra.mrb[0].mxu0 %v696
  %v2534 = vpop.f32.mrb[0].mxu0
  %v2535 = vadd.f32 %v2434, %v2534
  %v2536 = vpop.f32.mrb[0].mxu0
  %v2537 = vadd.f32 %v2436, %v2536
  %v2538 = vpop.f32.mrb[0].mxu0
  %v2539 = vadd.f32 %v2438, %v2538
  %v2540 = vpop.f32.mrb[0].mxu0
  %v2541 = vadd.f32 %v2440, %v2540
  %2542 = vmatprep.mubr.bf16.mxu0 0
  %2543 = vmatmul.mubr.bf16.gmra.mrb[0].mxu0 %v709
  %v2544 = vpop.f32.mrb[0].mxu0
  %v2545 = vadd.f32 %v2444, %v2544
  %v2546 = vpop.f32.mrb[0].mxu0
  %v2547 = vadd.f32 %v2446, %v2546
  %v2548 = vpop.f32.mrb[0].mxu0
  %v2549 = vadd.f32 %v2448, %v2548
  %v2550 = vpop.f32.mrb[0].mxu0
  %v2551 = vadd.f32 %v2450, %v2550
  %2552 = vmatprep.mubr.bf16.mxu0 0
  %2553 = vmatmul.mubr.bf16.gmra.mrb[0].mxu0 %v722
  %v2554 = vpop.f32.mrb[0].mxu0
  %v2555 = vadd.f32 %v2454, %v2554
  %v2556 = vpop.f32.mrb[0].mxu0
  %v2557 = vadd.f32 %v2456, %v2556
  %v2558 = vpop.f32.mrb[0].mxu0
  %v2559 = vpop.f32.mrb[0].mxu0
  %2560 = vdwg.mxu0
  %v2561 = vadd.f32 %v47, %v2495
  %v2562 = vadd.f32 %v48, %v2497
  %v2563 = vadd.f32 %v49, %v2499
  %v2564 = vadd.f32 %v50, %v2501
  %v2565 = vadd.f32 %v51, %v2505
  %v2566 = vadd.f32 %v52, %v2507
  %v2567 = vadd.f32 %v53, %v2509
  %v2568 = vadd.f32 %v54, %v2511
  %v2569 = vadd.f32 %v55, %v2515
  %v2570 = vadd.f32 %v56, %v2517
  %v2571 = vadd.f32 %v57, %v2519
  %v2572 = vadd.f32 %v58, %v2521
  %v2573 = vadd.f32 %v59, %v2525
  %v2574 = vadd.f32 %v60, %v2527
  %v2575 = vadd.f32 %v61, %v2529
  %v2576 = vadd.f32 %v62, %v2531
  %v2577 = vadd.f32 %v63, %v2535
  %v2578 = vadd.f32 %v64, %v2537
  %v2579 = vadd.f32 %v65, %v2539
  %v2580 = vadd.f32 %v66, %v2541
  %v2581 = vadd.f32 %v67, %v2545
  %v2582 = vadd.f32 %v68, %v2547
  %v2583 = vadd.f32 %v69, %v2549
  %v2584 = vadd.f32 %v70, %v2551
  %v2585 = vadd.f32 %v71, %v2555
  %v2586 = vadd.f32 %v72, %v2557
  %2587 = vst [vmem:[#allocation2] sm:$0xff] %v2561
  %vm2588 = vcmask 523264
  %2589 = vst.msk [vmem:[#allocation2 + $0x8] sm:$0xff] %vm2588, %v2562
  %2590 = vst [vmem:[#allocation2 + $0x10] sm:$0xff] %v2563
  %2591 = vst.msk [vmem:[#allocation2 + $0x18] sm:$0xff] %vm2588, %v2564
  %2592 = vst [vmem:[#allocation2 + $0x20] sm:$0xff] %v2565
  %2593 = vst.msk [vmem:[#allocation2 + $0x28] sm:$0xff] %vm2588, %v2566
  %2594 = vst [vmem:[#allocation2 + $0x30] sm:$0xff] %v2567
  %2595 = vst.msk [vmem:[#allocation2 + $0x38] sm:$0xff] %vm2588, %v2568
  %2596 = vst [vmem:[#allocation2 + $0x40] sm:$0xff] %v2569
  %2597 = vst.msk [vmem:[#allocation2 + $0x48] sm:$0xff] %vm2588, %v2570
  %2598 = vst [vmem:[#allocation2 + $0x50] sm:$0xff] %v2571
  %2599 = vst.msk [vmem:[#allocation2 + $0x58] sm:$0xff] %vm2588, %v2572
  %2600 = vst [vmem:[#allocation2 + $0x60] sm:$0xff] %v2573
  %2601 = vst.msk [vmem:[#allocation2 + $0x68] sm:$0xff] %vm2588, %v2574
  %2602 = vst [vmem:[#allocation2 + $0x70] sm:$0xff] %v2575
  %2603 = vst.msk [vmem:[#allocation2 + $0x78] sm:$0xff] %vm2588, %v2576
  %2604 = vst [vmem:[#allocation2 + $0x80] sm:$0xff] %v2577
  %2605 = vst.msk [vmem:[#allocation2 + $0x88] sm:$0xff] %vm2588, %v2578
  %2606 = vst [vmem:[#allocation2 + $0x90] sm:$0xff] %v2579
  %2607 = vst.msk [vmem:[#allocation2 + $0x98] sm:$0xff] %vm2588, %v2580
  %2608 = vst [vmem:[#allocation2 + $0xa0] sm:$0xff] %v2581
  %2609 = vst.msk [vmem:[#allocation2 + $0xa8] sm:$0xff] %vm2588, %v2582
  %2610 = vst [vmem:[#allocation2 + $0xb0] sm:$0xff] %v2583
  %2611 = vst.msk [vmem:[#allocation2 + $0xb8] sm:$0xff] %vm2588, %v2584
  %2612 = vst [vmem:[#allocation2 + $0xc0] sm:$0x3] %v2585
  %vm2613 = vcmask 517120
  %2614 = vst.msk [vmem:[#allocation2 + $0xc8] sm:$0x3] %vm2613, %v2586
  // Predicated region
  $region18: #{alexnet_features.10} parent=0 // pred_check
    %p2615 = pneg %p15
  $region19: #{alexnet_features.10} parent=0 // pred_check_branch
    %2617 = sbr.rel (%p2615) target = $region21
  $region20: #{alexnet_features.10} parent=0 // pred_region
    %v2618 = vld [vmem:[#allocation2] sm:$0xff]
    %v2619 = vld [vmem:[#allocation2 + $0x8] sm:$0xff]
    %v2620 = vld [vmem:[#allocation2 + $0x10] sm:$0xff]
    %v2621 = vld [vmem:[#allocation2 + $0x18] sm:$0xff]
    %v2622 = vld [vmem:[#allocation2 + $0x20] sm:$0xff]
    %v2623 = vld [vmem:[#allocation2 + $0x28] sm:$0xff]
    %v2624 = vld [vmem:[#allocation2 + $0x30] sm:$0xff]
    %v2625 = vld [vmem:[#allocation2 + $0x38] sm:$0xff]
    %v2626 = vld [vmem:[#allocation2 + $0x40] sm:$0xff]
    %v2627 = vld [vmem:[#allocation2 + $0x48] sm:$0xff]
    %v2628 = vld [vmem:[#allocation2 + $0x50] sm:$0xff]
    %v2629 = vld [vmem:[#allocation2 + $0x58] sm:$0xff]
    %v2630 = vld [vmem:[#allocation2 + $0x60] sm:$0xff]
    %v2631 = vld [vmem:[#allocation2 + $0x68] sm:$0xff]
    %v2632 = vld [vmem:[#allocation2 + $0x70] sm:$0xff]
    %v2633 = vld [vmem:[#allocation2 + $0x78] sm:$0xff]
    %v2634 = vld [vmem:[#allocation2 + $0x80] sm:$0xff]
    %v2635 = vld [vmem:[#allocation2 + $0x88] sm:$0xff]
    %v2636 = vld [vmem:[#allocation2 + $0x90] sm:$0xff]
    %v2637 = vld [vmem:[#allocation2 + $0x98] sm:$0xff]
    %v2638 = vld [vmem:[#allocation2 + $0xa0] sm:$0xff]
    %v2639 = vld [vmem:[#allocation2 + $0xa8] sm:$0xff]
    %v2640 = vld [vmem:[#allocation2 + $0xb0] sm:$0xff]
    %v2641 = vld [vmem:[#allocation2 + $0xb8] sm:$0xff]
    %v2642 = vld [vmem:[#allocation2 + $0xc0] sm:$0x3]
    %v2643 = vld [vmem:[#allocation2 + $0xc8] sm:$0x3]
    %v2644 = vld [vmem:[%s2] sm:$0x3]
    %v2646 = vlaneseq
    %v2647 = vshrl.u32 %v2646, 7
    %v2648 = vsub.s32 0, %v2647
    %v2649 = vrot.slane %v2644, %v2648
    %v2650 = vlaneseq
    %v2651 = vshrl.u32 %v2650, 7
    %v2652 = vsub.s32 1, %v2651
    %v2653 = vrot.slane %v2644, %v2652
    %v2656 = vadd.f32 %v2618, %v2649
    %v2657 = vadd.f32 %v2619, %v2653
    %v2658 = vadd.f32 %v2620, %v2649
    %v2659 = vadd.f32 %v2621, %v2653
    %v2660 = vadd.f32 %v2622, %v2649
    %v2661 = vadd.f32 %v2623, %v2653
    %v2662 = vadd.f32 %v2624, %v2649
    %v2663 = vadd.f32 %v2625, %v2653
    %v2664 = vadd.f32 %v2626, %v2649
    %v2665 = vadd.f32 %v2627, %v2653
    %v2666 = vadd.f32 %v2628, %v2649
    %v2667 = vadd.f32 %v2629, %v2653
    %v2668 = vadd.f32 %v2630, %v2649
    %v2669 = vadd.f32 %v2631, %v2653
    %v2670 = vadd.f32 %v2632, %v2649
    %v2671 = vadd.f32 %v2633, %v2653
    %v2672 = vadd.f32 %v2634, %v2649
    %v2673 = vadd.f32 %v2635, %v2653
    %v2674 = vadd.f32 %v2636, %v2649
    %v2675 = vadd.f32 %v2637, %v2653
    %v2676 = vadd.f32 %v2638, %v2649
    %v2677 = vadd.f32 %v2639, %v2653
    %v2678 = vadd.f32 %v2640, %v2649
    %v2679 = vadd.f32 %v2641, %v2653
    %v2680 = vadd.f32 %v2642, %v2649
    %v2681 = vadd.f32 %v2643, %v2653
    %v2682 = vmax.f32 %v2656, 0.0
    %v2683 = vmax.f32 %v2657, 0.0
    %v2684 = vmax.f32 %v2658, 0.0
    %v2685 = vmax.f32 %v2659, 0.0
    %v2686 = vmax.f32 %v2660, 0.0
    %v2687 = vmax.f32 %v2661, 0.0
    %v2688 = vmax.f32 %v2662, 0.0
    %v2689 = vmax.f32 %v2663, 0.0
    %v2690 = vmax.f32 %v2664, 0.0
    %v2691 = vmax.f32 %v2665, 0.0
    %v2692 = vmax.f32 %v2666, 0.0
    %v2693 = vmax.f32 %v2667, 0.0
    %v2694 = vmax.f32 %v2668, 0.0
    %v2695 = vmax.f32 %v2669, 0.0
    %v2696 = vmax.f32 %v2670, 0.0
    %v2697 = vmax.f32 %v2671, 0.0
    %v2698 = vmax.f32 %v2672, 0.0
    %v2699 = vmax.f32 %v2673, 0.0
    %v2700 = vmax.f32 %v2674, 0.0
    %v2701 = vmax.f32 %v2675, 0.0
    %v2702 = vmax.f32 %v2676, 0.0
    %v2703 = vmax.f32 %v2677, 0.0
    %v2704 = vmax.f32 %v2678, 0.0
    %v2705 = vmax.f32 %v2679, 0.0
    %v2706 = vmax.f32 %v2680, 0.0
    %v2707 = vmax.f32 %v2681, 0.0
    %2708 = vst [vmem:[%s3] sm:$0xff] %v2682
    %2709 = vst.msk [vmem:[%s3 + $0x8] sm:$0xff] %vm2588, %v2683
    %2710 = vst [vmem:[%s3 + $0x10] sm:$0xff] %v2684
    %2711 = vst.msk [vmem:[%s3 + $0x18] sm:$0xff] %vm2588, %v2685
    %2712 = vst [vmem:[%s3 + $0x20] sm:$0xff] %v2686
    %2713 = vst.msk [vmem:[%s3 + $0x28] sm:$0xff] %vm2588, %v2687
    %2714 = vst [vmem:[%s3 + $0x30] sm:$0xff] %v2688
    %2715 = vst.msk [vmem:[%s3 + $0x38] sm:$0xff] %vm2588, %v2689
    %2716 = vst [vmem:[%s3 + $0x40] sm:$0xff] %v2690
    %2717 = vst.msk [vmem:[%s3 + $0x48] sm:$0xff] %vm2588, %v2691
    %2718 = vst [vmem:[%s3 + $0x50] sm:$0xff] %v2692
    %2719 = vst.msk [vmem:[%s3 + $0x58] sm:$0xff] %vm2588, %v2693
    %2720 = vst [vmem:[%s3 + $0x60] sm:$0xff] %v2694
    %2721 = vst.msk [vmem:[%s3 + $0x68] sm:$0xff] %vm2588, %v2695
    %2722 = vst [vmem:[%s3 + $0x70] sm:$0xff] %v2696
    %2723 = vst.msk [vmem:[%s3 + $0x78] sm:$0xff] %vm2588, %v2697
    %2724 = vst [vmem:[%s3 + $0x80] sm:$0xff] %v2698
    %2725 = vst.msk [vmem:[%s3 + $0x88] sm:$0xff] %vm2588, %v2699
    %2726 = vst [vmem:[%s3 + $0x90] sm:$0xff] %v2700
    %2727 = vst.msk [vmem:[%s3 + $0x98] sm:$0xff] %vm2588, %v2701
    %2728 = vst [vmem:[%s3 + $0xa0] sm:$0xff] %v2702
    %2729 = vst.msk [vmem:[%s3 + $0xa8] sm:$0xff] %vm2588, %v2703
    %2730 = vst [vmem:[%s3 + $0xb0] sm:$0xff] %v2704
    %2731 = vst.msk [vmem:[%s3 + $0xb8] sm:$0xff] %vm2588, %v2705
    %2732 = vst [vmem:[%s3 + $0xc0] sm:$0x3] %v2706
    %2733 = vst.msk [vmem:[%s3 + $0xc8] sm:$0x3] %vm2613, %v2707
  $region21: #{alexnet_features.10} parent=0 // pred_fallthru
    _
  // Predicated region
  $region22: #{alexnet_features.10} parent=0 // pred_check
    _
  $region23: #{alexnet_features.10} parent=0 // pred_check_branch
    %2735 = sbr.rel (0) target = $region25
  $region24: #{alexnet_features.10} parent=0 // pred_region
    _
  $region25: #{alexnet_features.10} parent=0 // pred_fallthru
    _
  // Predicated region
  $region26: #{alexnet_features.10} parent=0 // pred_check
    _
  $region27: #{alexnet_features.10} parent=0 // pred_check_branch
    %2737 = sbr.rel (0) target = $region29
  $region28: #{alexnet_features.10} parent=0 // pred_region
    _
  $region29: #{alexnet_features.10} parent=0 // pred_fallthru
    _

// kernel: alexnet_features.12
$region0: #{alexnet_features.12}
  #allocation0 [shape = 'u32[]', space=smem, size = 0x4, offset = 0x4, fixed_abs, tag = 'smem constant byte address 0x4 - core index']
  #allocation1 [shape = 'u32[144,128]{1,0:T(1,128)}', space=vmem, size = 0x12000, scoped, tag = 'internal scratch']
  #allocation2 [shape = 'f32[18,384]{1,0:T(8,128)}', space=vmem, size = 0x9000, scoped, tag = 'scratch operand']
  %s0 = inlined_call_operand.vmem [shape: bf16[18,1792], index: 0, kind: input, shape index: {}]
  %s1 = inlined_call_operand.vmem [shape: bf16[1792,384], index: 1, kind: input, shape index: {}]
  %s2 = inlined_call_operand.vmem [shape: f32[1,384], index: 2, kind: input, shape index: {}]
  %s3 = inlined_call_operand.vmem [shape: f32[18,384], index: 3, kind: output, shape index: {}]
  %s4 = sld [smem:[#allocation0]]
  $region30: #{alexnet_features.12} parent=0
    _
  %s6 = ssub.s32 1, %s4
  %s7 = scalar_select 0, %s6, %s4
  // Predicated region
  $region2: #{alexnet_features.12} parent=0 // pred_check
    _
  $region3: #{alexnet_features.12} parent=0 // pred_check_branch
    %9 = sbr.rel (0) target = $region5
  $region4: #{alexnet_features.12} parent=0 // pred_region
    _
  $region5: #{alexnet_features.12} parent=0 // pred_fallthru
    _
  // Predicated region
  $region6: #{alexnet_features.12} parent=0 // pred_check
    _
  $region7: #{alexnet_features.12} parent=0 // pred_check_branch
    %11 = sbr.rel (0) target = $region9
  $region8: #{alexnet_features.12} parent=0 // pred_region
    _
  $region9: #{alexnet_features.12} parent=0 // pred_fallthru
    _
  // Predicated region
  $region10: #{alexnet_features.12} parent=0 // pred_check
    _
  $region11: #{alexnet_features.12} parent=0 // pred_check_branch
    %13 = sbr.rel (0) target = $region13
  $region12: #{alexnet_features.12} parent=0 // pred_region
    _
  $region13: #{alexnet_features.12} parent=0 // pred_fallthru
    _
  %p15 = scmp.eq.s32.totalorder 0, 0
  // Predicated region
  $region14: #{alexnet_features.12} parent=0 // pred_check
    %p16 = pneg %p15
  $region15: #{alexnet_features.12} parent=0 // pred_check_branch
    %18 = sbr.rel (%p16) target = $region17
  $region16: #{alexnet_features.12} parent=0 // pred_region
    %19 = vst [vmem:[#allocation2] sm:$0xff] 0.0
    %20 = vst [vmem:[#allocation2 + $0x8] sm:$0xff] 0.0
    %21 = vst [vmem:[#allocation2 + $0x10] sm:$0xff] 0.0
    %22 = vst [vmem:[#allocation2 + $0x18] sm:$0xff] 0.0
    %23 = vst [vmem:[#allocation2 + $0x20] sm:$0xff] 0.0
    %24 = vst [vmem:[#allocation2 + $0x28] sm:$0xff] 0.0
    %25 = vst [vmem:[#allocation2 + $0x30] sm:$0x3] 0.0
    %26 = vst [vmem:[#allocation2 + $0x38] sm:$0x3] 0.0
    %27 = vst [vmem:[#allocation2 + $0x40] sm:$0x3] 0.0
  $region17: #{alexnet_features.12} parent=0 // pred_fallthru
    _
  %v28 = vld [vmem:[#allocation2] sm:$0xff]
  %v29 = vld [vmem:[#allocation2 + $0x8] sm:$0xff]
  %v30 = vld [vmem:[#allocation2 + $0x10] sm:$0xff]
  %v31 = vld [vmem:[#allocation2 + $0x18] sm:$0xff]
  %v32 = vld [vmem:[#allocation2 + $0x20] sm:$0xff]
  %v33 = vld [vmem:[#allocation2 + $0x28] sm:$0xff]
  %v34 = vld [vmem:[#allocation2 + $0x30] sm:$0x3]
  %v35 = vld [vmem:[#allocation2 + $0x38] sm:$0x3]
  %v36 = vld [vmem:[#allocation2 + $0x40] sm:$0x3]
  %v37 = vld [vmem:[%s0] sm:$0xff]
  %v38 = vld [vmem:[%s0 + $0x8] sm:$0xff]
  %v39 = vld [vmem:[%s0 + $0x10] sm:$0xff]
  %v40 = vld [vmem:[%s0 + $0x18] sm:$0xff]
  %v41 = vld [vmem:[%s0 + $0x20] sm:$0xff]
  %v42 = vld [vmem:[%s0 + $0x28] sm:$0xff]
  %v43 = vld [vmem:[%s0 + $0x30] sm:$0xff]
  %v44 = vld [vmem:[%s0 + $0x38] sm:$0xff]
  %v45 = vld [vmem:[%s0 + $0x40] sm:$0xff]
  %v46 = vld [vmem:[%s0 + $0x48] sm:$0xff]
  %v47 = vld [vmem:[%s0 + $0x50] sm:$0xff]
  %v48 = vld [vmem:[%s0 + $0x58] sm:$0xff]
  %v49 = vld [vmem:[%s0 + $0x60] sm:$0xff]
  %v50 = vld [vmem:[%s0 + $0x68] sm:$0xff]
  %v51 = vld [vmem:[%s0 + $0x70] sm:$0x11]
  %v52 = vld [vmem:[%s0 + $0x78] sm:$0x11]
  %v53 = vld [vmem:[%s0 + $0x80] sm:$0x11]
  %v54 = vld [vmem:[%s0 + $0x88] sm:$0x11]
  %v55 = vld [vmem:[%s0 + $0x90] sm:$0x11]
  %v56 = vld [vmem:[%s0 + $0x98] sm:$0x11]
  %v57 = vld [vmem:[%s0 + $0xa0] sm:$0x11]
  %v58 = vld [vmem:[%s1] sm:$0xff]
  %v59 = vld [vmem:[%s1 + $0x8] sm:$0xf]
  %v60 = vld [vmem:[%s1 + $0xc] sm:$0xff]
  %v61 = vld [vmem:[%s1 + $0x14] sm:$0xf]
  %v62 = vld [vmem:[%s1 + $0x18] sm:$0xff]
  %v63 = vld [vmem:[%s1 + $0x20] sm:$0xf]
  %v64 = vld [vmem:[%s1 + $0x24] sm:$0xff]
  %v65 = vld [vmem:[%s1 + $0x2c] sm:$0xf]
  %v66 = vld [vmem:[%s1 + $0x30] sm:$0xff]
  %v67 = vld [vmem:[%s1 + $0x38] sm:$0xf]
  %v68 = vld [vmem:[%s1 + $0x3c] sm:$0xff]
  %v69 = vld [vmem:[%s1 + $0x44] sm:$0xf]
  %v70 = vld [vmem:[%s1 + $0x48] sm:$0xff]
  %v71 = vld [vmem:[%s1 + $0x50] sm:$0xf]
  %v72 = vld [vmem:[%s1 + $0x54] sm:$0xff]
  %v73 = vld [vmem:[%s1 + $0x5c] sm:$0xf]
  %v74 = vld [vmem:[%s1 + $0x60] sm:$0xff]
  %v75 = vld [vmem:[%s1 + $0x68] sm:$0xf]
  %v76 = vld [vmem:[%s1 + $0x6c] sm:$0xff]
  %v77 = vld [vmem:[%s1 + $0x74] sm:$0xf]
  %v78 = vld [vmem:[%s1 + $0x78] sm:$0xff]
  %v79 = vld [vmem:[%s1 + $0x80] sm:$0xf]
  %v80 = vld [vmem:[%s1 + $0x84] sm:$0xff]
  %v81 = vld [vmem:[%s1 + $0x8c] sm:$0xf]
  %v82 = vld [vmem:[%s1 + $0x90] sm:$0xff]
  %v83 = vld [vmem:[%s1 + $0x98] sm:$0xf]
  %v84 = vld [vmem:[%s1 + $0x9c] sm:$0xff]
  %v85 = vld [vmem:[%s1 + $0xa4] sm:$0xf]
  %v86 = vld [vmem:[%s1 + $0xa8] sm:$0xff]
  %v87 = vld [vmem:[%s1 + $0xb0] sm:$0xf]
  %v88 = vld [vmem:[%s1 + $0xb4] sm:$0xff]
  %v89 = vld [vmem:[%s1 + $0xbc] sm:$0xf]
  %v90 = vld [vmem:[%s1 + $0xc0] sm:$0xff]
  %v91 = vld [vmem:[%s1 + $0xc8] sm:$0xf]
  %v92 = vld [vmem:[%s1 + $0xcc] sm:$0xff]
  %v93 = vld [vmem:[%s1 + $0xd4] sm:$0xf]
  %v94 = vld [vmem:[%s1 + $0xd8] sm:$0xff]
  %v95 = vld [vmem:[%s1 + $0xe0] sm:$0xf]
  %v96 = vld [vmem:[%s1 + $0xe4] sm:$0xff]
  %v97 = vld [vmem:[%s1 + $0xec] sm:$0xf]
  %v98 = vld [vmem:[%s1 + $0xf0] sm:$0xff]
  %v99 = vld [vmem:[%s1 + $0xf8] sm:$0xf]
  %v100 = vld [vmem:[%s1 + $0xfc] sm:$0xff]
  %v101 = vld [vmem:[%s1 + $0x104] sm:$0xf]
  %v102 = vld [vmem:[%s1 + $0x108] sm:$0xff]
  %v103 = vld [vmem:[%s1 + $0x110] sm:$0xf]
  %v104 = vld [vmem:[%s1 + $0x114] sm:$0xff]
  %v105 = vld [vmem:[%s1 + $0x11c] sm:$0xf]
  %v106 = vld [vmem:[%s1 + $0x120] sm:$0xff]
  %v107 = vld [vmem:[%s1 + $0x128] sm:$0xf]
  %v108 = vld [vmem:[%s1 + $0x12c] sm:$0xff]
  %v109 = vld [vmem:[%s1 + $0x134] sm:$0xf]
  %v110 = vld [vmem:[%s1 + $0x138] sm:$0xff]
  %v111 = vld [vmem:[%s1 + $0x140] sm:$0xf]
  %v112 = vld [vmem:[%s1 + $0x144] sm:$0xff]
  %v113 = vld [vmem:[%s1 + $0x14c] sm:$0xf]
  %v114 = vld [vmem:[%s1 + $0x150] sm:$0xff]
  %v115 = vld [vmem:[%s1 + $0x158] sm:$0xf]
  %v116 = vld [vmem:[%s1 + $0x15c] sm:$0xff]
  %v117 = vld [vmem:[%s1 + $0x164] sm:$0xf]
  %v118 = vld [vmem:[%s1 + $0x168] sm:$0xff]
  %v119 = vld [vmem:[%s1 + $0x170] sm:$0xf]
  %v120 = vld [vmem:[%s1 + $0x174] sm:$0xff]
  %v121 = vld [vmem:[%s1 + $0x17c] sm:$0xf]
  %v122 = vld [vmem:[%s1 + $0x180] sm:$0xff]
  %v123 = vld [vmem:[%s1 + $0x188] sm:$0xf]
  %v124 = vld [vmem:[%s1 + $0x18c] sm:$0xff]
  %v125 = vld [vmem:[%s1 + $0x194] sm:$0xf]
  %v126 = vld [vmem:[%s1 + $0x198] sm:$0xff]
  %v127 = vld [vmem:[%s1 + $0x1a0] sm:$0xf]
  %v128 = vld [vmem:[%s1 + $0x1a4] sm:$0xff]
  %v129 = vld [vmem:[%s1 + $0x1ac] sm:$0xf]
  %v130 = vld [vmem:[%s1 + $0x1b0] sm:$0xff]
  %v131 = vld [vmem:[%s1 + $0x1b8] sm:$0xf]
  %v132 = vld [vmem:[%s1 + $0x1bc] sm:$0xff]
  %v133 = vld [vmem:[%s1 + $0x1c4] sm:$0xf]
  %v134 = vld [vmem:[%s1 + $0x1c8] sm:$0xff]
  %v135 = vld [vmem:[%s1 + $0x1d0] sm:$0xf]
  %v136 = vld [vmem:[%s1 + $0x1d4] sm:$0xff]
  %v137 = vld [vmem:[%s1 + $0x1dc] sm:$0xf]
  %v138 = vld [vmem:[%s1 + $0x1e0] sm:$0xff]
  %v139 = vld [vmem:[%s1 + $0x1e8] sm:$0xf]
  %v140 = vld [vmem:[%s1 + $0x1ec] sm:$0xff]
  %v141 = vld [vmem:[%s1 + $0x1f4] sm:$0xf]
  %v142 = vld [vmem:[%s1 + $0x1f8] sm:$0xff]
  %v143 = vld [vmem:[%s1 + $0x200] sm:$0xf]
  %v144 = vld [vmem:[%s1 + $0x204] sm:$0xff]
  %v145 = vld [vmem:[%s1 + $0x20c] sm:$0xf]
  %v146 = vld [vmem:[%s1 + $0x210] sm:$0xff]
  %v147 = vld [vmem:[%s1 + $0x218] sm:$0xf]
  %v148 = vld [vmem:[%s1 + $0x21c] sm:$0xff]
  %v149 = vld [vmem:[%s1 + $0x224] sm:$0xf]
  %v150 = vld [vmem:[%s1 + $0x228] sm:$0xff]
  %v151 = vld [vmem:[%s1 + $0x230] sm:$0xf]
  %v152 = vld [vmem:[%s1 + $0x234] sm:$0xff]
  %v153 = vld [vmem:[%s1 + $0x23c] sm:$0xf]
  %v154 = vld [vmem:[%s1 + $0x240] sm:$0xff]
  %v155 = vld [vmem:[%s1 + $0x248] sm:$0xf]
  %v156 = vld [vmem:[%s1 + $0x24c] sm:$0xff]
  %v157 = vld [vmem:[%s1 + $0x254] sm:$0xf]
  %v158 = vld [vmem:[%s1 + $0x258] sm:$0xff]
  %v159 = vld [vmem:[%s1 + $0x260] sm:$0xf]
  %v160 = vld [vmem:[%s1 + $0x264] sm:$0xff]
  %v161 = vld [vmem:[%s1 + $0x26c] sm:$0xf]
  %v162 = vld [vmem:[%s1 + $0x270] sm:$0xff]
  %v163 = vld [vmem:[%s1 + $0x278] sm:$0xf]
  %v164 = vld [vmem:[%s1 + $0x27c] sm:$0xff]
  %v165 = vld [vmem:[%s1 + $0x284] sm:$0xf]
  %v166 = vld [vmem:[%s1 + $0x288] sm:$0xff]
  %v167 = vld [vmem:[%s1 + $0x290] sm:$0xf]
  %v168 = vld [vmem:[%s1 + $0x294] sm:$0xff]
  %v169 = vld [vmem:[%s1 + $0x29c] sm:$0xf]
  %v170 = vld [vmem:[%s1 + $0x2a0] sm:$0xff]
  %v171 = vld [vmem:[%s1 + $0x2a8] sm:$0xf]
  %v172 = vld [vmem:[%s1 + $0x2ac] sm:$0xff]
  %v173 = vld [vmem:[%s1 + $0x2b4] sm:$0xf]
  %v174 = vld [vmem:[%s1 + $0x2b8] sm:$0xff]
  %v175 = vld [vmem:[%s1 + $0x2c0] sm:$0xf]
  %v176 = vld [vmem:[%s1 + $0x2c4] sm:$0xff]
  %v177 = vld [vmem:[%s1 + $0x2cc] sm:$0xf]
  %v178 = vld [vmem:[%s1 + $0x2d0] sm:$0xff]
  %v179 = vld [vmem:[%s1 + $0x2d8] sm:$0xf]
  %v180 = vld [vmem:[%s1 + $0x2dc] sm:$0xff]
  %v181 = vld [vmem:[%s1 + $0x2e4] sm:$0xf]
  %v182 = vld [vmem:[%s1 + $0x2e8] sm:$0xff]
  %v183 = vld [vmem:[%s1 + $0x2f0] sm:$0xf]
  %v184 = vld [vmem:[%s1 + $0x2f4] sm:$0xff]
  %v185 = vld [vmem:[%s1 + $0x2fc] sm:$0xf]
  %v186 = vld [vmem:[%s1 + $0x300] sm:$0xff]
  %v187 = vld [vmem:[%s1 + $0x308] sm:$0xf]
  %v188 = vld [vmem:[%s1 + $0x30c] sm:$0xff]
  %v189 = vld [vmem:[%s1 + $0x314] sm:$0xf]
  %v190 = vld [vmem:[%s1 + $0x318] sm:$0xff]
  %v191 = vld [vmem:[%s1 + $0x320] sm:$0xf]
  %v192 = vld [vmem:[%s1 + $0x324] sm:$0xff]
  %v193 = vld [vmem:[%s1 + $0x32c] sm:$0xf]
  %v194 = vld [vmem:[%s1 + $0x330] sm:$0xff]
  %v195 = vld [vmem:[%s1 + $0x338] sm:$0xf]
  %v196 = vld [vmem:[%s1 + $0x33c] sm:$0xff]
  %v197 = vld [vmem:[%s1 + $0x344] sm:$0xf]
  %v198 = vld [vmem:[%s1 + $0x348] sm:$0xff]
  %v199 = vld [vmem:[%s1 + $0x350] sm:$0xf]
  %v200 = vld [vmem:[%s1 + $0x354] sm:$0xff]
  %v201 = vld [vmem:[%s1 + $0x35c] sm:$0xf]
  %v202 = vld [vmem:[%s1 + $0x360] sm:$0xff]
  %v203 = vld [vmem:[%s1 + $0x368] sm:$0xf]
  %v204 = vld [vmem:[%s1 + $0x36c] sm:$0xff]
  %v205 = vld [vmem:[%s1 + $0x374] sm:$0xf]
  %v206 = vld [vmem:[%s1 + $0x378] sm:$0xff]
  %v207 = vld [vmem:[%s1 + $0x380] sm:$0xf]
  %v208 = vld [vmem:[%s1 + $0x384] sm:$0xff]
  %v209 = vld [vmem:[%s1 + $0x38c] sm:$0xf]
  %v210 = vld [vmem:[%s1 + $0x390] sm:$0xff]
  %v211 = vld [vmem:[%s1 + $0x398] sm:$0xf]
  %v212 = vld [vmem:[%s1 + $0x39c] sm:$0xff]
  %v213 = vld [vmem:[%s1 + $0x3a4] sm:$0xf]
  %v214 = vld [vmem:[%s1 + $0x3a8] sm:$0xff]
  %v215 = vld [vmem:[%s1 + $0x3b0] sm:$0xf]
  %v216 = vld [vmem:[%s1 + $0x3b4] sm:$0xff]
  %v217 = vld [vmem:[%s1 + $0x3bc] sm:$0xf]
  %v218 = vld [vmem:[%s1 + $0x3c0] sm:$0xff]
  %v219 = vld [vmem:[%s1 + $0x3c8] sm:$0xf]
  %v220 = vld [vmem:[%s1 + $0x3cc] sm:$0xff]
  %v221 = vld [vmem:[%s1 + $0x3d4] sm:$0xf]
  %v222 = vld [vmem:[%s1 + $0x3d8] sm:$0xff]
  %v223 = vld [vmem:[%s1 + $0x3e0] sm:$0xf]
  %v224 = vld [vmem:[%s1 + $0x3e4] sm:$0xff]
  %v225 = vld [vmem:[%s1 + $0x3ec] sm:$0xf]
  %v226 = vld [vmem:[%s1 + $0x3f0] sm:$0xff]
  %v227 = vld [vmem:[%s1 + $0x3f8] sm:$0xf]
  %v228 = vld [vmem:[%s1 + $0x3fc] sm:$0xff]
  %v229 = vld [vmem:[%s1 + $0x404] sm:$0xf]
  %v230 = vld [vmem:[%s1 + $0x408] sm:$0xff]
  %v231 = vld [vmem:[%s1 + $0x410] sm:$0xf]
  %v232 = vld [vmem:[%s1 + $0x414] sm:$0xff]
  %v233 = vld [vmem:[%s1 + $0x41c] sm:$0xf]
  %v234 = vld [vmem:[%s1 + $0x420] sm:$0xff]
  %v235 = vld [vmem:[%s1 + $0x428] sm:$0xf]
  %v236 = vld [vmem:[%s1 + $0x42c] sm:$0xff]
  %v237 = vld [vmem:[%s1 + $0x434] sm:$0xf]
  %v238 = vld [vmem:[%s1 + $0x438] sm:$0xff]
  %v239 = vld [vmem:[%s1 + $0x440] sm:$0xf]
  %v240 = vld [vmem:[%s1 + $0x444] sm:$0xff]
  %v241 = vld [vmem:[%s1 + $0x44c] sm:$0xf]
  %v242 = vld [vmem:[%s1 + $0x450] sm:$0xff]
  %v243 = vld [vmem:[%s1 + $0x458] sm:$0xf]
  %v244 = vld [vmem:[%s1 + $0x45c] sm:$0xff]
  %v245 = vld [vmem:[%s1 + $0x464] sm:$0xf]
  %v246 = vld [vmem:[%s1 + $0x468] sm:$0xff]
  %v247 = vld [vmem:[%s1 + $0x470] sm:$0xf]
  %v248 = vld [vmem:[%s1 + $0x474] sm:$0xff]
  %v249 = vld [vmem:[%s1 + $0x47c] sm:$0xf]
  %v250 = vld [vmem:[%s1 + $0x480] sm:$0xff]
  %v251 = vld [vmem:[%s1 + $0x488] sm:$0xf]
  %v252 = vld [vmem:[%s1 + $0x48c] sm:$0xff]
  %v253 = vld [vmem:[%s1 + $0x494] sm:$0xf]
  %v254 = vld [vmem:[%s1 + $0x498] sm:$0xff]
  %v255 = vld [vmem:[%s1 + $0x4a0] sm:$0xf]
  %v256 = vld [vmem:[%s1 + $0x4a4] sm:$0xff]
  %v257 = vld [vmem:[%s1 + $0x4ac] sm:$0xf]
  %v258 = vld [vmem:[%s1 + $0x4b0] sm:$0xff]
  %v259 = vld [vmem:[%s1 + $0x4b8] sm:$0xf]
  %v260 = vld [vmem:[%s1 + $0x4bc] sm:$0xff]
  %v261 = vld [vmem:[%s1 + $0x4c4] sm:$0xf]
  %v262 = vld [vmem:[%s1 + $0x4c8] sm:$0xff]
  %v263 = vld [vmem:[%s1 + $0x4d0] sm:$0xf]
  %v264 = vld [vmem:[%s1 + $0x4d4] sm:$0xff]
  %v265 = vld [vmem:[%s1 + $0x4dc] sm:$0xf]
  %v266 = vld [vmem:[%s1 + $0x4e0] sm:$0xff]
  %v267 = vld [vmem:[%s1 + $0x4e8] sm:$0xf]
  %v268 = vld [vmem:[%s1 + $0x4ec] sm:$0xff]
  %v269 = vld [vmem:[%s1 + $0x4f4] sm:$0xf]
  %v270 = vld [vmem:[%s1 + $0x4f8] sm:$0xff]
  %v271 = vld [vmem:[%s1 + $0x500] sm:$0xf]
  %v272 = vld [vmem:[%s1 + $0x504] sm:$0xff]
  %v273 = vld [vmem:[%s1 + $0x50c] sm:$0xf]
  %v274 = vld [vmem:[%s1 + $0x510] sm:$0xff]
  %v275 = vld [vmem:[%s1 + $0x518] sm:$0xf]
  %v276 = vld [vmem:[%s1 + $0x51c] sm:$0xff]
  %v277 = vld [vmem:[%s1 + $0x524] sm:$0xf]
  %v278 = vld [vmem:[%s1 + $0x528] sm:$0xff]
  %v279 = vld [vmem:[%s1 + $0x530] sm:$0xf]
  %v280 = vld [vmem:[%s1 + $0x534] sm:$0xff]
  %v281 = vld [vmem:[%s1 + $0x53c] sm:$0xf]
  %v282 = vld [vmem:[%s1 + $0x540] sm:$0xff]
  %v283 = vld [vmem:[%s1 + $0x548] sm:$0xf]
  %v284 = vld [vmem:[%s1 + $0x54c] sm:$0xff]
  %v285 = vld [vmem:[%s1 + $0x554] sm:$0xf]
  %v286 = vld [vmem:[%s1 + $0x558] sm:$0xff]
  %v287 = vld [vmem:[%s1 + $0x560] sm:$0xf]
  %v288 = vld [vmem:[%s1 + $0x564] sm:$0xff]
  %v289 = vld [vmem:[%s1 + $0x56c] sm:$0xf]
  %v290 = vld [vmem:[%s1 + $0x570] sm:$0xff]
  %v291 = vld [vmem:[%s1 + $0x578] sm:$0xf]
  %v292 = vld [vmem:[%s1 + $0x57c] sm:$0xff]
  %v293 = vld [vmem:[%s1 + $0x584] sm:$0xf]
  %v294 = vld [vmem:[%s1 + $0x588] sm:$0xff]
  %v295 = vld [vmem:[%s1 + $0x590] sm:$0xf]
  %v296 = vld [vmem:[%s1 + $0x594] sm:$0xff]
  %v297 = vld [vmem:[%s1 + $0x59c] sm:$0xf]
  %v298 = vld [vmem:[%s1 + $0x5a0] sm:$0xff]
  %v299 = vld [vmem:[%s1 + $0x5a8] sm:$0xf]
  %v300 = vld [vmem:[%s1 + $0x5ac] sm:$0xff]
  %v301 = vld [vmem:[%s1 + $0x5b4] sm:$0xf]
  %v302 = vld [vmem:[%s1 + $0x5b8] sm:$0xff]
  %v303 = vld [vmem:[%s1 + $0x5c0] sm:$0xf]
  %v304 = vld [vmem:[%s1 + $0x5c4] sm:$0xff]
  %v305 = vld [vmem:[%s1 + $0x5cc] sm:$0xf]
  %v306 = vld [vmem:[%s1 + $0x5d0] sm:$0xff]
  %v307 = vld [vmem:[%s1 + $0x5d8] sm:$0xf]
  %v308 = vld [vmem:[%s1 + $0x5dc] sm:$0xff]
  %v309 = vld [vmem:[%s1 + $0x5e4] sm:$0xf]
  %v310 = vld [vmem:[%s1 + $0x5e8] sm:$0xff]
  %v311 = vld [vmem:[%s1 + $0x5f0] sm:$0xf]
  %v312 = vld [vmem:[%s1 + $0x5f4] sm:$0xff]
  %v313 = vld [vmem:[%s1 + $0x5fc] sm:$0xf]
  %v314 = vld [vmem:[%s1 + $0x600] sm:$0xff]
  %v315 = vld [vmem:[%s1 + $0x608] sm:$0xf]
  %v316 = vld [vmem:[%s1 + $0x60c] sm:$0xff]
  %v317 = vld [vmem:[%s1 + $0x614] sm:$0xf]
  %v318 = vld [vmem:[%s1 + $0x618] sm:$0xff]
  %v319 = vld [vmem:[%s1 + $0x620] sm:$0xf]
  %v320 = vld [vmem:[%s1 + $0x624] sm:$0xff]
  %v321 = vld [vmem:[%s1 + $0x62c] sm:$0xf]
  %v322 = vld [vmem:[%s1 + $0x630] sm:$0xff]
  %v323 = vld [vmem:[%s1 + $0x638] sm:$0xf]
  %v324 = vld [vmem:[%s1 + $0x63c] sm:$0xff]
  %v325 = vld [vmem:[%s1 + $0x644] sm:$0xf]
  %v326 = vld [vmem:[%s1 + $0x648] sm:$0xff]
  %v327 = vld [vmem:[%s1 + $0x650] sm:$0xf]
  %v328 = vld [vmem:[%s1 + $0x654] sm:$0xff]
  %v329 = vld [vmem:[%s1 + $0x65c] sm:$0xf]
  %v330 = vld [vmem:[%s1 + $0x660] sm:$0xff]
  %v331 = vld [vmem:[%s1 + $0x668] sm:$0xf]
  %v332 = vld [vmem:[%s1 + $0x66c] sm:$0xff]
  %v333 = vld [vmem:[%s1 + $0x674] sm:$0xf]
  %v334 = vld [vmem:[%s1 + $0x678] sm:$0xff]
  %v335 = vld [vmem:[%s1 + $0x680] sm:$0xf]
  %v336 = vld [vmem:[%s1 + $0x684] sm:$0xff]
  %v337 = vld [vmem:[%s1 + $0x68c] sm:$0xf]
  %v338 = vld [vmem:[%s1 + $0x690] sm:$0xff]
  %v339 = vld [vmem:[%s1 + $0x698] sm:$0xf]
  %v340 = vld [vmem:[%s1 + $0x69c] sm:$0xff]
  %v341 = vld [vmem:[%s1 + $0x6a4] sm:$0xf]
  %v342 = vld [vmem:[%s1 + $0x6a8] sm:$0xff]
  %v343 = vld [vmem:[%s1 + $0x6b0] sm:$0xf]
  %v344 = vld [vmem:[%s1 + $0x6b4] sm:$0xff]
  %v345 = vld [vmem:[%s1 + $0x6bc] sm:$0xf]
  %v346 = vld [vmem:[%s1 + $0x6c0] sm:$0xff]
  %v347 = vld [vmem:[%s1 + $0x6c8] sm:$0xf]
  %v348 = vld [vmem:[%s1 + $0x6cc] sm:$0xff]
  %v349 = vld [vmem:[%s1 + $0x6d4] sm:$0xf]
  %v350 = vld [vmem:[%s1 + $0x6d8] sm:$0xff]
  %v351 = vld [vmem:[%s1 + $0x6e0] sm:$0xf]
  %v352 = vld [vmem:[%s1 + $0x6e4] sm:$0xff]
  %v353 = vld [vmem:[%s1 + $0x6ec] sm:$0xf]
  %v354 = vld [vmem:[%s1 + $0x6f0] sm:$0xff]
  %v355 = vld [vmem:[%s1 + $0x6f8] sm:$0xf]
  %v356 = vld [vmem:[%s1 + $0x6fc] sm:$0xff]
  %v357 = vld [vmem:[%s1 + $0x704] sm:$0xf]
  %v358 = vld [vmem:[%s1 + $0x708] sm:$0xff]
  %v359 = vld [vmem:[%s1 + $0x710] sm:$0xf]
  %v360 = vld [vmem:[%s1 + $0x714] sm:$0xff]
  %v361 = vld [vmem:[%s1 + $0x71c] sm:$0xf]
  %v362 = vld [vmem:[%s1 + $0x720] sm:$0xff]
  %v363 = vld [vmem:[%s1 + $0x728] sm:$0xf]
  %v364 = vld [vmem:[%s1 + $0x72c] sm:$0xff]
  %v365 = vld [vmem:[%s1 + $0x734] sm:$0xf]
  %v366 = vld [vmem:[%s1 + $0x738] sm:$0xff]
  %v367 = vld [vmem:[%s1 + $0x740] sm:$0xf]
  %v368 = vld [vmem:[%s1 + $0x744] sm:$0xff]
  %v369 = vld [vmem:[%s1 + $0x74c] sm:$0xf]
  %v370 = vld [vmem:[%s1 + $0x750] sm:$0xff]
  %v371 = vld [vmem:[%s1 + $0x758] sm:$0xf]
  %v372 = vld [vmem:[%s1 + $0x75c] sm:$0xff]
  %v373 = vld [vmem:[%s1 + $0x764] sm:$0xf]
  %v374 = vld [vmem:[%s1 + $0x768] sm:$0xff]
  %v375 = vld [vmem:[%s1 + $0x770] sm:$0xf]
  %v376 = vld [vmem:[%s1 + $0x774] sm:$0xff]
  %v377 = vld [vmem:[%s1 + $0x77c] sm:$0xf]
  %v378 = vld [vmem:[%s1 + $0x780] sm:$0xff]
  %v379 = vld [vmem:[%s1 + $0x788] sm:$0xf]
  %v380 = vld [vmem:[%s1 + $0x78c] sm:$0xff]
  %v381 = vld [vmem:[%s1 + $0x794] sm:$0xf]
  %v382 = vld [vmem:[%s1 + $0x798] sm:$0xff]
  %v383 = vld [vmem:[%s1 + $0x7a0] sm:$0xf]
  %v384 = vld [vmem:[%s1 + $0x7a4] sm:$0xff]
  %v385 = vld [vmem:[%s1 + $0x7ac] sm:$0xf]
  %v386 = vld [vmem:[%s1 + $0x7b0] sm:$0xff]
  %v387 = vld [vmem:[%s1 + $0x7b8] sm:$0xf]
  %v388 = vld [vmem:[%s1 + $0x7bc] sm:$0xff]
  %v389 = vld [vmem:[%s1 + $0x7c4] sm:$0xf]
  %v390 = vld [vmem:[%s1 + $0x7c8] sm:$0xff]
  %v391 = vld [vmem:[%s1 + $0x7d0] sm:$0xf]
  %v392 = vld [vmem:[%s1 + $0x7d4] sm:$0xff]
  %v393 = vld [vmem:[%s1 + $0x7dc] sm:$0xf]
  %v394 = vld [vmem:[%s1 + $0x7e0] sm:$0xff]
  %v395 = vld [vmem:[%s1 + $0x7e8] sm:$0xf]
  %v396 = vld [vmem:[%s1 + $0x7ec] sm:$0xff]
  %v397 = vld [vmem:[%s1 + $0x7f4] sm:$0xf]
  %v398 = vld [vmem:[%s1 + $0x7f8] sm:$0xff]
  %v399 = vld [vmem:[%s1 + $0x800] sm:$0xf]
  %v400 = vld [vmem:[%s1 + $0x804] sm:$0xff]
  %v401 = vld [vmem:[%s1 + $0x80c] sm:$0xf]
  %v402 = vld [vmem:[%s1 + $0x810] sm:$0xff]
  %v403 = vld [vmem:[%s1 + $0x818] sm:$0xf]
  %v404 = vld [vmem:[%s1 + $0x81c] sm:$0xff]
  %v405 = vld [vmem:[%s1 + $0x824] sm:$0xf]
  %v406 = vld [vmem:[%s1 + $0x828] sm:$0xff]
  %v407 = vld [vmem:[%s1 + $0x830] sm:$0xf]
  %v408 = vld [vmem:[%s1 + $0x834] sm:$0xff]
  %v409 = vld [vmem:[%s1 + $0x83c] sm:$0xf]
  %v410 = vld [vmem:[%s1 + $0x840] sm:$0xff]
  %v411 = vld [vmem:[%s1 + $0x848] sm:$0xf]
  %v412 = vld [vmem:[%s1 + $0x84c] sm:$0xff]
  %v413 = vld [vmem:[%s1 + $0x854] sm:$0xf]
  %v414 = vld [vmem:[%s1 + $0x858] sm:$0xff]
  %v415 = vld [vmem:[%s1 + $0x860] sm:$0xf]
  %v416 = vld [vmem:[%s1 + $0x864] sm:$0xff]
  %v417 = vld [vmem:[%s1 + $0x86c] sm:$0xf]
  %v418 = vld [vmem:[%s1 + $0x870] sm:$0xff]
  %v419 = vld [vmem:[%s1 + $0x878] sm:$0xf]
  %v420 = vld [vmem:[%s1 + $0x87c] sm:$0xff]
  %v421 = vld [vmem:[%s1 + $0x884] sm:$0xf]
  %v422 = vld [vmem:[%s1 + $0x888] sm:$0xff]
  %v423 = vld [vmem:[%s1 + $0x890] sm:$0xf]
  %v424 = vld [vmem:[%s1 + $0x894] sm:$0xff]
  %v425 = vld [vmem:[%s1 + $0x89c] sm:$0xf]
  %v426 = vld [vmem:[%s1 + $0x8a0] sm:$0xff]
  %v427 = vld [vmem:[%s1 + $0x8a8] sm:$0xf]
  %v428 = vld [vmem:[%s1 + $0x8ac] sm:$0xff]
  %v429 = vld [vmem:[%s1 + $0x8b4] sm:$0xf]
  %v430 = vld [vmem:[%s1 + $0x8b8] sm:$0xff]
  %v431 = vld [vmem:[%s1 + $0x8c0] sm:$0xf]
  %v432 = vld [vmem:[%s1 + $0x8c4] sm:$0xff]
  %v433 = vld [vmem:[%s1 + $0x8cc] sm:$0xf]
  %v434 = vld [vmem:[%s1 + $0x8d0] sm:$0xff]
  %v435 = vld [vmem:[%s1 + $0x8d8] sm:$0xf]
  %v436 = vld [vmem:[%s1 + $0x8dc] sm:$0xff]
  %v437 = vld [vmem:[%s1 + $0x8e4] sm:$0xf]
  %v438 = vld [vmem:[%s1 + $0x8e8] sm:$0xff]
  %v439 = vld [vmem:[%s1 + $0x8f0] sm:$0xf]
  %v440 = vld [vmem:[%s1 + $0x8f4] sm:$0xff]
  %v441 = vld [vmem:[%s1 + $0x8fc] sm:$0xf]
  %v442 = vld [vmem:[%s1 + $0x900] sm:$0xff]
  %v443 = vld [vmem:[%s1 + $0x908] sm:$0xf]
  %v444 = vld [vmem:[%s1 + $0x90c] sm:$0xff]
  %v445 = vld [vmem:[%s1 + $0x914] sm:$0xf]
  %v446 = vld [vmem:[%s1 + $0x918] sm:$0xff]
  %v447 = vld [vmem:[%s1 + $0x920] sm:$0xf]
  %v448 = vld [vmem:[%s1 + $0x924] sm:$0xff]
  %v449 = vld [vmem:[%s1 + $0x92c] sm:$0xf]
  %v450 = vld [vmem:[%s1 + $0x930] sm:$0xff]
  %v451 = vld [vmem:[%s1 + $0x938] sm:$0xf]
  %v452 = vld [vmem:[%s1 + $0x93c] sm:$0xff]
  %v453 = vld [vmem:[%s1 + $0x944] sm:$0xf]
  %v454 = vld [vmem:[%s1 + $0x948] sm:$0xff]
  %v455 = vld [vmem:[%s1 + $0x950] sm:$0xf]
  %v456 = vld [vmem:[%s1 + $0x954] sm:$0xff]
  %v457 = vld [vmem:[%s1 + $0x95c] sm:$0xf]
  %v458 = vld [vmem:[%s1 + $0x960] sm:$0xff]
  %v459 = vld [vmem:[%s1 + $0x968] sm:$0xf]
  %v460 = vld [vmem:[%s1 + $0x96c] sm:$0xff]
  %v461 = vld [vmem:[%s1 + $0x974] sm:$0xf]
  %v462 = vld [vmem:[%s1 + $0x978] sm:$0xff]
  %v463 = vld [vmem:[%s1 + $0x980] sm:$0xf]
  %v464 = vld [vmem:[%s1 + $0x984] sm:$0xff]
  %v465 = vld [vmem:[%s1 + $0x98c] sm:$0xf]
  %v466 = vld [vmem:[%s1 + $0x990] sm:$0xff]
  %v467 = vld [vmem:[%s1 + $0x998] sm:$0xf]
  %v468 = vld [vmem:[%s1 + $0x99c] sm:$0xff]
  %v469 = vld [vmem:[%s1 + $0x9a4] sm:$0xf]
  %v470 = vld [vmem:[%s1 + $0x9a8] sm:$0xff]
  %v471 = vld [vmem:[%s1 + $0x9b0] sm:$0xf]
  %v472 = vld [vmem:[%s1 + $0x9b4] sm:$0xff]
  %v473 = vld [vmem:[%s1 + $0x9bc] sm:$0xf]
  %v474 = vld [vmem:[%s1 + $0x9c0] sm:$0xff]
  %v475 = vld [vmem:[%s1 + $0x9c8] sm:$0xf]
  %v476 = vld [vmem:[%s1 + $0x9cc] sm:$0xff]
  %v477 = vld [vmem:[%s1 + $0x9d4] sm:$0xf]
  %v478 = vld [vmem:[%s1 + $0x9d8] sm:$0xff]
  %v479 = vld [vmem:[%s1 + $0x9e0] sm:$0xf]
  %v480 = vld [vmem:[%s1 + $0x9e4] sm:$0xff]
  %v481 = vld [vmem:[%s1 + $0x9ec] sm:$0xf]
  %v482 = vld [vmem:[%s1 + $0x9f0] sm:$0xff]
  %v483 = vld [vmem:[%s1 + $0x9f8] sm:$0xf]
  %v484 = vld [vmem:[%s1 + $0x9fc] sm:$0xff]
  %v485 = vld [vmem:[%s1 + $0xa04] sm:$0xf]
  %v486 = vld [vmem:[%s1 + $0xa08] sm:$0xff]
  %v487 = vld [vmem:[%s1 + $0xa10] sm:$0xf]
  %v488 = vld [vmem:[%s1 + $0xa14] sm:$0xff]
  %v489 = vld [vmem:[%s1 + $0xa1c] sm:$0xf]
  %v490 = vld [vmem:[%s1 + $0xa20] sm:$0xff]
  %v491 = vld [vmem:[%s1 + $0xa28] sm:$0xf]
  %v492 = vld [vmem:[%s1 + $0xa2c] sm:$0xff]
  %v493 = vld [vmem:[%s1 + $0xa34] sm:$0xf]
  %v494 = vld [vmem:[%s1 + $0xa38] sm:$0xff]
  %v495 = vld [vmem:[%s1 + $0xa40] sm:$0xf]
  %v496 = vld [vmem:[%s1 + $0xa44] sm:$0xff]
  %v497 = vld [vmem:[%s1 + $0xa4c] sm:$0xf]
  %v498 = vld [vmem:[%s1 + $0xa50] sm:$0xff]
  %v499 = vld [vmem:[%s1 + $0xa58] sm:$0xf]
  %v500 = vld [vmem:[%s1 + $0xa5c] sm:$0xff]
  %v501 = vld [vmem:[%s1 + $0xa64] sm:$0xf]
  %v502 = vld [vmem:[%s1 + $0xa68] sm:$0xff]
  %v503 = vld [vmem:[%s1 + $0xa70] sm:$0xf]
  %v504 = vld [vmem:[%s1 + $0xa74] sm:$0xff]
  %v505 = vld [vmem:[%s1 + $0xa7c] sm:$0xf]
  %v527 = vunpack.c.l.b16 %v37
  %v528 = vunpack.c.h.b16 %v37
  %v529 = vunpack.c.l.b16 %v38
  %v530 = vunpack.c.h.b16 %v38
  %v531 = vunpack.c.l.b16 %v39
  %v532 = vunpack.c.h.b16 %v39
  %v533 = vunpack.c.l.b16 %v40
  %v534 = vunpack.c.h.b16 %v40
  %v535 = vunpack.c.l.b16 %v41
  %v536 = vunpack.c.h.b16 %v41
  %v537 = vunpack.c.l.b16 %v42
  %v538 = vunpack.c.h.b16 %v42
  %v539 = vunpack.c.l.b16 %v43
  %v540 = vunpack.c.h.b16 %v43
  %v541 = vunpack.c.l.b16 %v44
  %v542 = vunpack.c.h.b16 %v44
  %v543 = vunpack.c.l.b16 %v45
  %v544 = vunpack.c.h.b16 %v45
  %v545 = vunpack.c.l.b16 %v46
  %v546 = vunpack.c.h.b16 %v46
  %v547 = vunpack.c.l.b16 %v47
  %v548 = vunpack.c.h.b16 %v47
  %v549 = vunpack.c.l.b16 %v48
  %v550 = vunpack.c.h.b16 %v48
  %v551 = vunpack.c.l.b16 %v49
  %v552 = vunpack.c.h.b16 %v49
  %v553 = vunpack.c.l.b16 %v50
  %v554 = vunpack.c.h.b16 %v50
  %v555 = vunpack.c.l.b16 %v51
  %v556 = vunpack.c.h.b16 %v51
  %v557 = vunpack.c.l.b16 %v52
  %v558 = vunpack.c.h.b16 %v52
  %v559 = vunpack.c.l.b16 %v53
  %v560 = vunpack.c.h.b16 %v53
  %v561 = vunpack.c.l.b16 %v54
  %v562 = vunpack.c.h.b16 %v54
  %v563 = vunpack.c.l.b16 %v55
  %v564 = vunpack.c.h.b16 %v55
  %v565 = vunpack.c.l.b16 %v56
  %v566 = vunpack.c.h.b16 %v56
  %v567 = vunpack.c.l.b16 %v57
  %v568 = vunpack.c.h.b16 %v57
  %v569 = vpack.c.b16 %v541, %v527
  %v570 = vpack.c.b16 %v542, %v528
  %v571 = vpack.c.b16 %v543, %v529
  %v572 = vpack.c.b16 %v544, %v530
  %v573 = vpack.c.b16 %v545, %v531
  %v574 = vpack.c.b16 %v546, %v532
  %v575 = vpack.c.b16 %v547, %v533
  %v576 = vpack.c.b16 %v548, %v534
  %v577 = vpack.c.b16 %v549, %v535
  %v578 = vpack.c.b16 %v550, %v536
  %v579 = vpack.c.b16 %v551, %v537
  %v580 = vpack.c.b16 %v552, %v538
  %v581 = vpack.c.b16 %v553, %v539
  %v582 = vpack.c.b16 %v554, %v540
  %v583 = vpack.c.b16 %v555, %v555
  %v584 = vpack.c.b16 %v556, %v556
  %v585 = vpack.c.b16 %v557, %v557
  %v586 = vpack.c.b16 %v558, %v558
  %v587 = vpack.c.b16 %v559, %v559
  %v588 = vpack.c.b16 %v560, %v560
  %v589 = vpack.c.b16 %v561, %v561
  %v590 = vpack.c.b16 %v562, %v562
  %v591 = vpack.c.b16 %v563, %v563
  %v592 = vpack.c.b16 %v564, %v564
  %v593 = vpack.c.b16 %v565, %v565
  %v594 = vpack.c.b16 %v566, %v566
  %v595 = vpack.c.b16 %v567, %v567
  %v596 = vpack.c.b16 %v568, %v568
  %v1073 = vunpack.c.l.b16 %v58
  %v1074 = vunpack.c.h.b16 %v58
  %v1075 = vunpack.c.l.b16 %v59
  %v1076 = vunpack.c.l.b16 %v60
  %v1077 = vunpack.c.h.b16 %v60
  %v1078 = vunpack.c.l.b16 %v61
  %v1079 = vunpack.c.l.b16 %v62
  %v1080 = vunpack.c.h.b16 %v62
  %v1081 = vunpack.c.l.b16 %v63
  %v1082 = vunpack.c.l.b16 %v64
  %v1083 = vunpack.c.h.b16 %v64
  %v1084 = vunpack.c.l.b16 %v65
  %v1085 = vunpack.c.l.b16 %v66
  %v1086 = vunpack.c.h.b16 %v66
  %v1087 = vunpack.c.l.b16 %v67
  %v1088 = vunpack.c.l.b16 %v68
  %v1089 = vunpack.c.h.b16 %v68
  %v1090 = vunpack.c.l.b16 %v69
  %v1091 = vunpack.c.l.b16 %v70
  %v1092 = vunpack.c.h.b16 %v70
  %v1093 = vunpack.c.l.b16 %v71
  %v1094 = vunpack.c.l.b16 %v72
  %v1095 = vunpack.c.h.b16 %v72
  %v1096 = vunpack.c.l.b16 %v73
  %v1097 = vunpack.c.l.b16 %v74
  %v1098 = vunpack.c.h.b16 %v74
  %v1099 = vunpack.c.l.b16 %v75
  %v1100 = vunpack.c.l.b16 %v76
  %v1101 = vunpack.c.h.b16 %v76
  %v1102 = vunpack.c.l.b16 %v77
  %v1103 = vunpack.c.l.b16 %v78
  %v1104 = vunpack.c.h.b16 %v78
  %v1105 = vunpack.c.l.b16 %v79
  %v1106 = vunpack.c.l.b16 %v80
  %v1107 = vunpack.c.h.b16 %v80
  %v1108 = vunpack.c.l.b16 %v81
  %v1109 = vunpack.c.l.b16 %v82
  %v1110 = vunpack.c.h.b16 %v82
  %v1111 = vunpack.c.l.b16 %v83
  %v1112 = vunpack.c.l.b16 %v84
  %v1113 = vunpack.c.h.b16 %v84
  %v1114 = vunpack.c.l.b16 %v85
  %v1115 = vunpack.c.l.b16 %v86
  %v1116 = vunpack.c.h.b16 %v86
  %v1117 = vunpack.c.l.b16 %v87
  %v1118 = vunpack.c.l.b16 %v88
  %v1119 = vunpack.c.h.b16 %v88
  %v1120 = vunpack.c.l.b16 %v89
  %v1121 = vunpack.c.l.b16 %v90
  %v1122 = vunpack.c.h.b16 %v90
  %v1123 = vunpack.c.l.b16 %v91
  %v1124 = vunpack.c.l.b16 %v92
  %v1125 = vunpack.c.h.b16 %v92
  %v1126 = vunpack.c.l.b16 %v93
  %v1127 = vunpack.c.l.b16 %v94
  %v1128 = vunpack.c.h.b16 %v94
  %v1129 = vunpack.c.l.b16 %v95
  %v1130 = vunpack.c.l.b16 %v96
  %v1131 = vunpack.c.h.b16 %v96
  %v1132 = vunpack.c.l.b16 %v97
  %v1133 = vunpack.c.l.b16 %v98
  %v1134 = vunpack.c.h.b16 %v98
  %v1135 = vunpack.c.l.b16 %v99
  %v1136 = vunpack.c.l.b16 %v100
  %v1137 = vunpack.c.h.b16 %v100
  %v1138 = vunpack.c.l.b16 %v101
  %v1139 = vunpack.c.l.b16 %v102
  %v1140 = vunpack.c.h.b16 %v102
  %v1141 = vunpack.c.l.b16 %v103
  %v1142 = vunpack.c.l.b16 %v104
  %v1143 = vunpack.c.h.b16 %v104
  %v1144 = vunpack.c.l.b16 %v105
  %v1145 = vunpack.c.l.b16 %v106
  %v1146 = vunpack.c.h.b16 %v106
  %v1147 = vunpack.c.l.b16 %v107
  %v1148 = vunpack.c.l.b16 %v108
  %v1149 = vunpack.c.h.b16 %v108
  %v1150 = vunpack.c.l.b16 %v109
  %v1151 = vunpack.c.l.b16 %v110
  %v1152 = vunpack.c.h.b16 %v110
  %v1153 = vunpack.c.l.b16 %v111
  %v1154 = vunpack.c.l.b16 %v112
  %v1155 = vunpack.c.h.b16 %v112
  %v1156 = vunpack.c.l.b16 %v113
  %v1157 = vunpack.c.l.b16 %v114
  %v1158 = vunpack.c.h.b16 %v114
  %v1159 = vunpack.c.l.b16 %v115
  %v1160 = vunpack.c.l.b16 %v116
  %v1161 = vunpack.c.h.b16 %v116
  %v1162 = vunpack.c.l.b16 %v117
  %v1163 = vunpack.c.l.b16 %v118
  %v1164 = vunpack.c.h.b16 %v118
  %v1165 = vunpack.c.l.b16 %v119
  %v1166 = vunpack.c.l.b16 %v120
  %v1167 = vunpack.c.h.b16 %v120
  %v1168 = vunpack.c.l.b16 %v121
  %v1169 = vunpack.c.l.b16 %v122
  %v1170 = vunpack.c.h.b16 %v122
  %v1171 = vunpack.c.l.b16 %v123
  %v1172 = vunpack.c.l.b16 %v124
  %v1173 = vunpack.c.h.b16 %v124
  %v1174 = vunpack.c.l.b16 %v125
  %v1175 = vunpack.c.l.b16 %v126
  %v1176 = vunpack.c.h.b16 %v126
  %v1177 = vunpack.c.l.b16 %v127
  %v1178 = vunpack.c.l.b16 %v128
  %v1179 = vunpack.c.h.b16 %v128
  %v1180 = vunpack.c.l.b16 %v129
  %v1181 = vunpack.c.l.b16 %v130
  %v1182 = vunpack.c.h.b16 %v130
  %v1183 = vunpack.c.l.b16 %v131
  %v1184 = vunpack.c.l.b16 %v132
  %v1185 = vunpack.c.h.b16 %v132
  %v1186 = vunpack.c.l.b16 %v133
  %v1187 = vunpack.c.l.b16 %v134
  %v1188 = vunpack.c.h.b16 %v134
  %v1189 = vunpack.c.l.b16 %v135
  %v1190 = vunpack.c.l.b16 %v136
  %v1191 = vunpack.c.h.b16 %v136
  %v1192 = vunpack.c.l.b16 %v137
  %v1193 = vunpack.c.l.b16 %v138
  %v1194 = vunpack.c.h.b16 %v138
  %v1195 = vunpack.c.l.b16 %v139
  %v1196 = vunpack.c.l.b16 %v140
  %v1197 = vunpack.c.h.b16 %v140
  %v1198 = vunpack.c.l.b16 %v141
  %v1199 = vunpack.c.l.b16 %v142
  %v1200 = vunpack.c.h.b16 %v142
  %v1201 = vunpack.c.l.b16 %v143
  %v1202 = vunpack.c.l.b16 %v144
  %v1203 = vunpack.c.h.b16 %v144
  %v1204 = vunpack.c.l.b16 %v145
  %v1205 = vunpack.c.l.b16 %v146
  %v1206 = vunpack.c.h.b16 %v146
  %v1207 = vunpack.c.l.b16 %v147
  %v1208 = vunpack.c.l.b16 %v148
  %v1209 = vunpack.c.h.b16 %v148
  %v1210 = vunpack.c.l.b16 %v149
  %v1211 = vunpack.c.l.b16 %v150
  %v1212 = vunpack.c.h.b16 %v150
  %v1213 = vunpack.c.l.b16 %v151
  %v1214 = vunpack.c.l.b16 %v152
  %v1215 = vunpack.c.h.b16 %v152
  %v1216 = vunpack.c.l.b16 %v153
  %v1217 = vunpack.c.l.b16 %v154
  %v1218 = vunpack.c.h.b16 %v154
  %v1219 = vunpack.c.l.b16 %v155
  %v1220 = vunpack.c.l.b16 %v156
  %v1221 = vunpack.c.h.b16 %v156
  %v1222 = vunpack.c.l.b16 %v157
  %v1223 = vunpack.c.l.b16 %v158
  %v1224 = vunpack.c.h.b16 %v158
  %v1225 = vunpack.c.l.b16 %v159
  %v1226 = vunpack.c.l.b16 %v160
  %v1227 = vunpack.c.h.b16 %v160
  %v1228 = vunpack.c.l.b16 %v161
  %v1229 = vunpack.c.l.b16 %v162
  %v1230 = vunpack.c.h.b16 %v162
  %v1231 = vunpack.c.l.b16 %v163
  %v1232 = vunpack.c.l.b16 %v164
  %v1233 = vunpack.c.h.b16 %v164
  %v1234 = vunpack.c.l.b16 %v165
  %v1235 = vunpack.c.l.b16 %v166
  %v1236 = vunpack.c.h.b16 %v166
  %v1237 = vunpack.c.l.b16 %v167
  %v1238 = vunpack.c.l.b16 %v168
  %v1239 = vunpack.c.h.b16 %v168
  %v1240 = vunpack.c.l.b16 %v169
  %v1241 = vunpack.c.l.b16 %v170
  %v1242 = vunpack.c.h.b16 %v170
  %v1243 = vunpack.c.l.b16 %v171
  %v1244 = vunpack.c.l.b16 %v172
  %v1245 = vunpack.c.h.b16 %v172
  %v1246 = vunpack.c.l.b16 %v173
  %v1247 = vunpack.c.l.b16 %v174
  %v1248 = vunpack.c.h.b16 %v174
  %v1249 = vunpack.c.l.b16 %v175
  %v1250 = vunpack.c.l.b16 %v176
  %v1251 = vunpack.c.h.b16 %v176
  %v1252 = vunpack.c.l.b16 %v177
  %v1253 = vunpack.c.l.b16 %v178
  %v1254 = vunpack.c.h.b16 %v178
  %v1255 = vunpack.c.l.b16 %v179
  %v1256 = vunpack.c.l.b16 %v180
  %v1257 = vunpack.c.h.b16 %v180
  %v1258 = vunpack.c.l.b16 %v181
  %v1259 = vunpack.c.l.b16 %v182
  %v1260 = vunpack.c.h.b16 %v182
  %v1261 = vunpack.c.l.b16 %v183
  %v1262 = vunpack.c.l.b16 %v184
  %v1263 = vunpack.c.h.b16 %v184
  %v1264 = vunpack.c.l.b16 %v185
  %v1265 = vunpack.c.l.b16 %v186
  %v1266 = vunpack.c.h.b16 %v186
  %v1267 = vunpack.c.l.b16 %v187
  %v1268 = vunpack.c.l.b16 %v188
  %v1269 = vunpack.c.h.b16 %v188
  %v1270 = vunpack.c.l.b16 %v189
  %v1271 = vunpack.c.l.b16 %v190
  %v1272 = vunpack.c.h.b16 %v190
  %v1273 = vunpack.c.l.b16 %v191
  %v1274 = vunpack.c.l.b16 %v192
  %v1275 = vunpack.c.h.b16 %v192
  %v1276 = vunpack.c.l.b16 %v193
  %v1277 = vunpack.c.l.b16 %v194
  %v1278 = vunpack.c.h.b16 %v194
  %v1279 = vunpack.c.l.b16 %v195
  %v1280 = vunpack.c.l.b16 %v196
  %v1281 = vunpack.c.h.b16 %v196
  %v1282 = vunpack.c.l.b16 %v197
  %v1283 = vunpack.c.l.b16 %v198
  %v1284 = vunpack.c.h.b16 %v198
  %v1285 = vunpack.c.l.b16 %v199
  %v1286 = vunpack.c.l.b16 %v200
  %v1287 = vunpack.c.h.b16 %v200
  %v1288 = vunpack.c.l.b16 %v201
  %v1289 = vunpack.c.l.b16 %v202
  %v1290 = vunpack.c.h.b16 %v202
  %v1291 = vunpack.c.l.b16 %v203
  %v1292 = vunpack.c.l.b16 %v204
  %v1293 = vunpack.c.h.b16 %v204
  %v1294 = vunpack.c.l.b16 %v205
  %v1295 = vunpack.c.l.b16 %v206
  %v1296 = vunpack.c.h.b16 %v206
  %v1297 = vunpack.c.l.b16 %v207
  %v1298 = vunpack.c.l.b16 %v208
  %v1299 = vunpack.c.h.b16 %v208
  %v1300 = vunpack.c.l.b16 %v209
  %v1301 = vunpack.c.l.b16 %v210
  %v1302 = vunpack.c.h.b16 %v210
  %v1303 = vunpack.c.l.b16 %v211
  %v1304 = vunpack.c.l.b16 %v212
  %v1305 = vunpack.c.h.b16 %v212
  %v1306 = vunpack.c.l.b16 %v213
  %v1307 = vunpack.c.l.b16 %v214
  %v1308 = vunpack.c.h.b16 %v214
  %v1309 = vunpack.c.l.b16 %v215
  %v1310 = vunpack.c.l.b16 %v216
  %v1311 = vunpack.c.h.b16 %v216
  %v1312 = vunpack.c.l.b16 %v217
  %v1313 = vunpack.c.l.b16 %v218
  %v1314 = vunpack.c.h.b16 %v218
  %v1315 = vunpack.c.l.b16 %v219
  %v1316 = vunpack.c.l.b16 %v220
  %v1317 = vunpack.c.h.b16 %v220
  %v1318 = vunpack.c.l.b16 %v221
  %v1319 = vunpack.c.l.b16 %v222
  %v1320 = vunpack.c.h.b16 %v222
  %v1321 = vunpack.c.l.b16 %v223
  %v1322 = vunpack.c.l.b16 %v224
  %v1323 = vunpack.c.h.b16 %v224
  %v1324 = vunpack.c.l.b16 %v225
  %v1325 = vunpack.c.l.b16 %v226
  %v1326 = vunpack.c.h.b16 %v226
  %v1327 = vunpack.c.l.b16 %v227
  %v1328 = vunpack.c.l.b16 %v228
  %v1329 = vunpack.c.h.b16 %v228
  %v1330 = vunpack.c.l.b16 %v229
  %v1331 = vunpack.c.l.b16 %v230
  %v1332 = vunpack.c.h.b16 %v230
  %v1333 = vunpack.c.l.b16 %v231
  %v1334 = vunpack.c.l.b16 %v232
  %v1335 = vunpack.c.h.b16 %v232
  %v1336 = vunpack.c.l.b16 %v233
  %v1337 = vunpack.c.l.b16 %v234
  %v1338 = vunpack.c.h.b16 %v234
  %v1339 = vunpack.c.l.b16 %v235
  %v1340 = vunpack.c.l.b16 %v236
  %v1341 = vunpack.c.h.b16 %v236
  %v1342 = vunpack.c.l.b16 %v237
  %v1343 = vunpack.c.l.b16 %v238
  %v1344 = vunpack.c.h.b16 %v238
  %v1345 = vunpack.c.l.b16 %v239
  %v1346 = vunpack.c.l.b16 %v240
  %v1347 = vunpack.c.h.b16 %v240
  %v1348 = vunpack.c.l.b16 %v241
  %v1349 = vunpack.c.l.b16 %v242
  %v1350 = vunpack.c.h.b16 %v242
  %v1351 = vunpack.c.l.b16 %v243
  %v1352 = vunpack.c.l.b16 %v244
  %v1353 = vunpack.c.h.b16 %v244
  %v1354 = vunpack.c.l.b16 %v245
  %v1355 = vunpack.c.l.b16 %v246
  %v1356 = vunpack.c.h.b16 %v246
  %v1357 = vunpack.c.l.b16 %v247
  %v1358 = vunpack.c.l.b16 %v248
  %v1359 = vunpack.c.h.b16 %v248
  %v1360 = vunpack.c.l.b16 %v249
  %v1361 = vunpack.c.l.b16 %v250
  %v1362 = vunpack.c.h.b16 %v250
  %v1363 = vunpack.c.l.b16 %v251
  %v1364 = vunpack.c.l.b16 %v252
  %v1365 = vunpack.c.h.b16 %v252
  %v1366 = vunpack.c.l.b16 %v253
  %v1367 = vunpack.c.l.b16 %v254
  %v1368 = vunpack.c.h.b16 %v254
  %v1369 = vunpack.c.l.b16 %v255
  %v1370 = vunpack.c.l.b16 %v256
  %v1371 = vunpack.c.h.b16 %v256
  %v1372 = vunpack.c.l.b16 %v257
  %v1373 = vunpack.c.l.b16 %v258
  %v1374 = vunpack.c.h.b16 %v258
  %v1375 = vunpack.c.l.b16 %v259
  %v1376 = vunpack.c.l.b16 %v260
  %v1377 = vunpack.c.h.b16 %v260
  %v1378 = vunpack.c.l.b16 %v261
  %v1379 = vunpack.c.l.b16 %v262
  %v1380 = vunpack.c.h.b16 %v262
  %v1381 = vunpack.c.l.b16 %v263
  %v1382 = vunpack.c.l.b16 %v264
  %v1383 = vunpack.c.h.b16 %v264
  %v1384 = vunpack.c.l.b16 %v265
  %v1385 = vunpack.c.l.b16 %v266
  %v1386 = vunpack.c.h.b16 %v266
  %v1387 = vunpack.c.l.b16 %v267
  %v1388 = vunpack.c.l.b16 %v268
  %v1389 = vunpack.c.h.b16 %v268
  %v1390 = vunpack.c.l.b16 %v269
  %v1391 = vunpack.c.l.b16 %v270
  %v1392 = vunpack.c.h.b16 %v270
  %v1393 = vunpack.c.l.b16 %v271
  %v1394 = vunpack.c.l.b16 %v272
  %v1395 = vunpack.c.h.b16 %v272
  %v1396 = vunpack.c.l.b16 %v273
  %v1397 = vunpack.c.l.b16 %v274
  %v1398 = vunpack.c.h.b16 %v274
  %v1399 = vunpack.c.l.b16 %v275
  %v1400 = vunpack.c.l.b16 %v276
  %v1401 = vunpack.c.h.b16 %v276
  %v1402 = vunpack.c.l.b16 %v277
  %v1403 = vunpack.c.l.b16 %v278
  %v1404 = vunpack.c.h.b16 %v278
  %v1405 = vunpack.c.l.b16 %v279
  %v1406 = vunpack.c.l.b16 %v280
  %v1407 = vunpack.c.h.b16 %v280
  %v1408 = vunpack.c.l.b16 %v281
  %v1409 = vunpack.c.l.b16 %v282
  %v1410 = vunpack.c.h.b16 %v282
  %v1411 = vunpack.c.l.b16 %v283
  %v1412 = vunpack.c.l.b16 %v284
  %v1413 = vunpack.c.h.b16 %v284
  %v1414 = vunpack.c.l.b16 %v285
  %v1415 = vunpack.c.l.b16 %v286
  %v1416 = vunpack.c.h.b16 %v286
  %v1417 = vunpack.c.l.b16 %v287
  %v1418 = vunpack.c.l.b16 %v288
  %v1419 = vunpack.c.h.b16 %v288
  %v1420 = vunpack.c.l.b16 %v289
  %v1421 = vunpack.c.l.b16 %v290
  %v1422 = vunpack.c.h.b16 %v290
  %v1423 = vunpack.c.l.b16 %v291
  %v1424 = vunpack.c.l.b16 %v292
  %v1425 = vunpack.c.h.b16 %v292
  %v1426 = vunpack.c.l.b16 %v293
  %v1427 = vunpack.c.l.b16 %v294
  %v1428 = vunpack.c.h.b16 %v294
  %v1429 = vunpack.c.l.b16 %v295
  %v1430 = vunpack.c.l.b16 %v296
  %v1431 = vunpack.c.h.b16 %v296
  %v1432 = vunpack.c.l.b16 %v297
  %v1433 = vunpack.c.l.b16 %v298
  %v1434 = vunpack.c.h.b16 %v298
  %v1435 = vunpack.c.l.b16 %v299
  %v1436 = vunpack.c.l.b16 %v300
  %v1437 = vunpack.c.h.b16 %v300
  %v1438 = vunpack.c.l.b16 %v301
  %v1439 = vunpack.c.l.b16 %v302
  %v1440 = vunpack.c.h.b16 %v302
  %v1441 = vunpack.c.l.b16 %v303
  %v1442 = vunpack.c.l.b16 %v304
  %v1443 = vunpack.c.h.b16 %v304
  %v1444 = vunpack.c.l.b16 %v305
  %v1445 = vunpack.c.l.b16 %v306
  %v1446 = vunpack.c.h.b16 %v306
  %v1447 = vunpack.c.l.b16 %v307
  %v1448 = vunpack.c.l.b16 %v308
  %v1449 = vunpack.c.h.b16 %v308
  %v1450 = vunpack.c.l.b16 %v309
  %v1451 = vunpack.c.l.b16 %v310
  %v1452 = vunpack.c.h.b16 %v310
  %v1453 = vunpack.c.l.b16 %v311
  %v1454 = vunpack.c.l.b16 %v312
  %v1455 = vunpack.c.h.b16 %v312
  %v1456 = vunpack.c.l.b16 %v313
  %v1457 = vunpack.c.l.b16 %v314
  %v1458 = vunpack.c.h.b16 %v314
  %v1459 = vunpack.c.l.b16 %v315
  %v1460 = vunpack.c.l.b16 %v316
  %v1461 = vunpack.c.h.b16 %v316
  %v1462 = vunpack.c.l.b16 %v317
  %v1463 = vunpack.c.l.b16 %v318
  %v1464 = vunpack.c.h.b16 %v318
  %v1465 = vunpack.c.l.b16 %v319
  %v1466 = vunpack.c.l.b16 %v320
  %v1467 = vunpack.c.h.b16 %v320
  %v1468 = vunpack.c.l.b16 %v321
  %v1469 = vunpack.c.l.b16 %v322
  %v1470 = vunpack.c.h.b16 %v322
  %v1471 = vunpack.c.l.b16 %v323
  %v1472 = vunpack.c.l.b16 %v324
  %v1473 = vunpack.c.h.b16 %v324
  %v1474 = vunpack.c.l.b16 %v325
  %v1475 = vunpack.c.l.b16 %v326
  %v1476 = vunpack.c.h.b16 %v326
  %v1477 = vunpack.c.l.b16 %v327
  %v1478 = vunpack.c.l.b16 %v328
  %v1479 = vunpack.c.h.b16 %v328
  %v1480 = vunpack.c.l.b16 %v329
  %v1481 = vunpack.c.l.b16 %v330
  %v1482 = vunpack.c.h.b16 %v330
  %v1483 = vunpack.c.l.b16 %v331
  %v1484 = vunpack.c.l.b16 %v332
  %v1485 = vunpack.c.h.b16 %v332
  %v1486 = vunpack.c.l.b16 %v333
  %v1487 = vunpack.c.l.b16 %v334
  %v1488 = vunpack.c.h.b16 %v334
  %v1489 = vunpack.c.l.b16 %v335
  %v1490 = vunpack.c.l.b16 %v336
  %v1491 = vunpack.c.h.b16 %v336
  %v1492 = vunpack.c.l.b16 %v337
  %v1493 = vunpack.c.l.b16 %v338
  %v1494 = vunpack.c.h.b16 %v338
  %v1495 = vunpack.c.l.b16 %v339
  %v1496 = vunpack.c.l.b16 %v340
  %v1497 = vunpack.c.h.b16 %v340
  %v1498 = vunpack.c.l.b16 %v341
  %v1499 = vunpack.c.l.b16 %v342
  %v1500 = vunpack.c.h.b16 %v342
  %v1501 = vunpack.c.l.b16 %v343
  %v1502 = vunpack.c.l.b16 %v344
  %v1503 = vunpack.c.h.b16 %v344
  %v1504 = vunpack.c.l.b16 %v345
  %v1505 = vunpack.c.l.b16 %v346
  %v1506 = vunpack.c.h.b16 %v346
  %v1507 = vunpack.c.l.b16 %v347
  %v1508 = vunpack.c.l.b16 %v348
  %v1509 = vunpack.c.h.b16 %v348
  %v1510 = vunpack.c.l.b16 %v349
  %v1511 = vunpack.c.l.b16 %v350
  %v1512 = vunpack.c.h.b16 %v350
  %v1513 = vunpack.c.l.b16 %v351
  %v1514 = vunpack.c.l.b16 %v352
  %v1515 = vunpack.c.h.b16 %v352
  %v1516 = vunpack.c.l.b16 %v353
  %v1517 = vunpack.c.l.b16 %v354
  %v1518 = vunpack.c.h.b16 %v354
  %v1519 = vunpack.c.l.b16 %v355
  %v1520 = vunpack.c.l.b16 %v356
  %v1521 = vunpack.c.h.b16 %v356
  %v1522 = vunpack.c.l.b16 %v357
  %v1523 = vunpack.c.l.b16 %v358
  %v1524 = vunpack.c.h.b16 %v358
  %v1525 = vunpack.c.l.b16 %v359
  %v1526 = vunpack.c.l.b16 %v360
  %v1527 = vunpack.c.h.b16 %v360
  %v1528 = vunpack.c.l.b16 %v361
  %v1529 = vunpack.c.l.b16 %v362
  %v1530 = vunpack.c.h.b16 %v362
  %v1531 = vunpack.c.l.b16 %v363
  %v1532 = vunpack.c.l.b16 %v364
  %v1533 = vunpack.c.h.b16 %v364
  %v1534 = vunpack.c.l.b16 %v365
  %v1535 = vunpack.c.l.b16 %v366
  %v1536 = vunpack.c.h.b16 %v366
  %v1537 = vunpack.c.l.b16 %v367
  %v1538 = vunpack.c.l.b16 %v368
  %v1539 = vunpack.c.h.b16 %v368
  %v1540 = vunpack.c.l.b16 %v369
  %v1541 = vunpack.c.l.b16 %v370
  %v1542 = vunpack.c.h.b16 %v370
  %v1543 = vunpack.c.l.b16 %v371
  %v1544 = vunpack.c.l.b16 %v372
  %v1545 = vunpack.c.h.b16 %v372
  %v1546 = vunpack.c.l.b16 %v373
  %v1547 = vunpack.c.l.b16 %v374
  %v1548 = vunpack.c.h.b16 %v374
  %v1549 = vunpack.c.l.b16 %v375
  %v1550 = vunpack.c.l.b16 %v376
  %v1551 = vunpack.c.h.b16 %v376
  %v1552 = vunpack.c.l.b16 %v377
  %v1553 = vunpack.c.l.b16 %v378
  %v1554 = vunpack.c.h.b16 %v378
  %v1555 = vunpack.c.l.b16 %v379
  %v1556 = vunpack.c.l.b16 %v380
  %v1557 = vunpack.c.h.b16 %v380
  %v1558 = vunpack.c.l.b16 %v381
  %v1559 = vunpack.c.l.b16 %v382
  %v1560 = vunpack.c.h.b16 %v382
  %v1561 = vunpack.c.l.b16 %v383
  %v1562 = vunpack.c.l.b16 %v384
  %v1563 = vunpack.c.h.b16 %v384
  %v1564 = vunpack.c.l.b16 %v385
  %v1565 = vunpack.c.l.b16 %v386
  %v1566 = vunpack.c.h.b16 %v386
  %v1567 = vunpack.c.l.b16 %v387
  %v1568 = vunpack.c.l.b16 %v388
  %v1569 = vunpack.c.h.b16 %v388
  %v1570 = vunpack.c.l.b16 %v389
  %v1571 = vunpack.c.l.b16 %v390
  %v1572 = vunpack.c.h.b16 %v390
  %v1573 = vunpack.c.l.b16 %v391
  %v1574 = vunpack.c.l.b16 %v392
  %v1575 = vunpack.c.h.b16 %v392
  %v1576 = vunpack.c.l.b16 %v393
  %v1577 = vunpack.c.l.b16 %v394
  %v1578 = vunpack.c.h.b16 %v394
  %v1579 = vunpack.c.l.b16 %v395
  %v1580 = vunpack.c.l.b16 %v396
  %v1581 = vunpack.c.h.b16 %v396
  %v1582 = vunpack.c.l.b16 %v397
  %v1583 = vunpack.c.l.b16 %v398
  %v1584 = vunpack.c.h.b16 %v398
  %v1585 = vunpack.c.l.b16 %v399
  %v1586 = vunpack.c.l.b16 %v400
  %v1587 = vunpack.c.h.b16 %v400
  %v1588 = vunpack.c.l.b16 %v401
  %v1589 = vunpack.c.l.b16 %v402
  %v1590 = vunpack.c.h.b16 %v402
  %v1591 = vunpack.c.l.b16 %v403
  %v1592 = vunpack.c.l.b16 %v404
  %v1593 = vunpack.c.h.b16 %v404
  %v1594 = vunpack.c.l.b16 %v405
  %v1595 = vunpack.c.l.b16 %v406
  %v1596 = vunpack.c.h.b16 %v406
  %v1597 = vunpack.c.l.b16 %v407
  %v1598 = vunpack.c.l.b16 %v408
  %v1599 = vunpack.c.h.b16 %v408
  %v1600 = vunpack.c.l.b16 %v409
  %v1601 = vunpack.c.l.b16 %v410
  %v1602 = vunpack.c.h.b16 %v410
  %v1603 = vunpack.c.l.b16 %v411
  %v1604 = vunpack.c.l.b16 %v412
  %v1605 = vunpack.c.h.b16 %v412
  %v1606 = vunpack.c.l.b16 %v413
  %v1607 = vunpack.c.l.b16 %v414
  %v1608 = vunpack.c.h.b16 %v414
  %v1609 = vunpack.c.l.b16 %v415
  %v1610 = vunpack.c.l.b16 %v416
  %v1611 = vunpack.c.h.b16 %v416
  %v1612 = vunpack.c.l.b16 %v417
  %v1613 = vunpack.c.l.b16 %v418
  %v1614 = vunpack.c.h.b16 %v418
  %v1615 = vunpack.c.l.b16 %v419
  %v1616 = vunpack.c.l.b16 %v420
  %v1617 = vunpack.c.h.b16 %v420
  %v1618 = vunpack.c.l.b16 %v421
  %v1619 = vunpack.c.l.b16 %v422
  %v1620 = vunpack.c.h.b16 %v422
  %v1621 = vunpack.c.l.b16 %v423
  %v1622 = vunpack.c.l.b16 %v424
  %v1623 = vunpack.c.h.b16 %v424
  %v1624 = vunpack.c.l.b16 %v425
  %v1625 = vunpack.c.l.b16 %v426
  %v1626 = vunpack.c.h.b16 %v426
  %v1627 = vunpack.c.l.b16 %v427
  %v1628 = vunpack.c.l.b16 %v428
  %v1629 = vunpack.c.h.b16 %v428
  %v1630 = vunpack.c.l.b16 %v429
  %v1631 = vunpack.c.l.b16 %v430
  %v1632 = vunpack.c.h.b16 %v430
  %v1633 = vunpack.c.l.b16 %v431
  %v1634 = vunpack.c.l.b16 %v432
  %v1635 = vunpack.c.h.b16 %v432
  %v1636 = vunpack.c.l.b16 %v433
  %v1637 = vunpack.c.l.b16 %v434
  %v1638 = vunpack.c.h.b16 %v434
  %v1639 = vunpack.c.l.b16 %v435
  %v1640 = vunpack.c.l.b16 %v436
  %v1641 = vunpack.c.h.b16 %v436
  %v1642 = vunpack.c.l.b16 %v437
  %v1643 = vunpack.c.l.b16 %v438
  %v1644 = vunpack.c.h.b16 %v438
  %v1645 = vunpack.c.l.b16 %v439
  %v1646 = vunpack.c.l.b16 %v440
  %v1647 = vunpack.c.h.b16 %v440
  %v1648 = vunpack.c.l.b16 %v441
  %v1649 = vunpack.c.l.b16 %v442
  %v1650 = vunpack.c.h.b16 %v442
  %v1651 = vunpack.c.l.b16 %v443
  %v1652 = vunpack.c.l.b16 %v444
  %v1653 = vunpack.c.h.b16 %v444
  %v1654 = vunpack.c.l.b16 %v445
  %v1655 = vunpack.c.l.b16 %v446
  %v1656 = vunpack.c.h.b16 %v446
  %v1657 = vunpack.c.l.b16 %v447
  %v1658 = vunpack.c.l.b16 %v448
  %v1659 = vunpack.c.h.b16 %v448
  %v1660 = vunpack.c.l.b16 %v449
  %v1661 = vunpack.c.l.b16 %v450
  %v1662 = vunpack.c.h.b16 %v450
  %v1663 = vunpack.c.l.b16 %v451
  %v1664 = vunpack.c.l.b16 %v452
  %v1665 = vunpack.c.h.b16 %v452
  %v1666 = vunpack.c.l.b16 %v453
  %v1667 = vunpack.c.l.b16 %v454
  %v1668 = vunpack.c.h.b16 %v454
  %v1669 = vunpack.c.l.b16 %v455
  %v1670 = vunpack.c.l.b16 %v456
  %v1671 = vunpack.c.h.b16 %v456
  %v1672 = vunpack.c.l.b16 %v457
  %v1673 = vunpack.c.l.b16 %v458
  %v1674 = vunpack.c.h.b16 %v458
  %v1675 = vunpack.c.l.b16 %v459
  %v1676 = vunpack.c.l.b16 %v460
  %v1677 = vunpack.c.h.b16 %v460
  %v1678 = vunpack.c.l.b16 %v461
  %v1679 = vunpack.c.l.b16 %v462
  %v1680 = vunpack.c.h.b16 %v462
  %v1681 = vunpack.c.l.b16 %v463
  %v1682 = vunpack.c.l.b16 %v464
  %v1683 = vunpack.c.h.b16 %v464
  %v1684 = vunpack.c.l.b16 %v465
  %v1685 = vunpack.c.l.b16 %v466
  %v1686 = vunpack.c.h.b16 %v466
  %v1687 = vunpack.c.l.b16 %v467
  %v1688 = vunpack.c.l.b16 %v468
  %v1689 = vunpack.c.h.b16 %v468
  %v1690 = vunpack.c.l.b16 %v469
  %v1691 = vunpack.c.l.b16 %v470
  %v1692 = vunpack.c.h.b16 %v470
  %v1693 = vunpack.c.l.b16 %v471
  %v1694 = vunpack.c.l.b16 %v472
  %v1695 = vunpack.c.h.b16 %v472
  %v1696 = vunpack.c.l.b16 %v473
  %v1697 = vunpack.c.l.b16 %v474
  %v1698 = vunpack.c.h.b16 %v474
  %v1699 = vunpack.c.l.b16 %v475
  %v1700 = vunpack.c.l.b16 %v476
  %v1701 = vunpack.c.h.b16 %v476
  %v1702 = vunpack.c.l.b16 %v477
  %v1703 = vunpack.c.l.b16 %v478
  %v1704 = vunpack.c.h.b16 %v478
  %v1705 = vunpack.c.l.b16 %v479
  %v1706 = vunpack.c.l.b16 %v480
  %v1707 = vunpack.c.h.b16 %v480
  %v1708 = vunpack.c.l.b16 %v481
  %v1709 = vunpack.c.l.b16 %v482
  %v1710 = vunpack.c.h.b16 %v482
  %v1711 = vunpack.c.l.b16 %v483
  %v1712 = vunpack.c.l.b16 %v484
  %v1713 = vunpack.c.h.b16 %v484
  %v1714 = vunpack.c.l.b16 %v485
  %v1715 = vunpack.c.l.b16 %v486
  %v1716 = vunpack.c.h.b16 %v486
  %v1717 = vunpack.c.l.b16 %v487
  %v1718 = vunpack.c.l.b16 %v488
  %v1719 = vunpack.c.h.b16 %v488
  %v1720 = vunpack.c.l.b16 %v489
  %v1721 = vunpack.c.l.b16 %v490
  %v1722 = vunpack.c.h.b16 %v490
  %v1723 = vunpack.c.l.b16 %v491
  %v1724 = vunpack.c.l.b16 %v492
  %v1725 = vunpack.c.h.b16 %v492
  %v1726 = vunpack.c.l.b16 %v493
  %v1727 = vunpack.c.l.b16 %v494
  %v1728 = vunpack.c.h.b16 %v494
  %v1729 = vunpack.c.l.b16 %v495
  %v1730 = vunpack.c.l.b16 %v496
  %v1731 = vunpack.c.h.b16 %v496
  %v1732 = vunpack.c.l.b16 %v497
  %v1733 = vunpack.c.l.b16 %v498
  %v1734 = vunpack.c.h.b16 %v498
  %v1735 = vunpack.c.l.b16 %v499
  %v1736 = vunpack.c.l.b16 %v500
  %v1737 = vunpack.c.h.b16 %v500
  %v1738 = vunpack.c.l.b16 %v501
  %v1739 = vunpack.c.l.b16 %v502
  %v1740 = vunpack.c.h.b16 %v502
  %v1741 = vunpack.c.l.b16 %v503
  %v1742 = vunpack.c.l.b16 %v504
  %v1743 = vunpack.c.h.b16 %v504
  %v1744 = vunpack.c.l.b16 %v505
  %v1745 = vpack.c.b16 %v1076, %v1073
  %v1746 = vpack.c.b16 %v1077, %v1074
  %v1747 = vpack.c.b16 %v1078, %v1075
  %v1748 = vpack.c.b16 %v1082, %v1079
  %v1749 = vpack.c.b16 %v1083, %v1080
  %v1750 = vpack.c.b16 %v1084, %v1081
  %v1751 = vpack.c.b16 %v1088, %v1085
  %v1752 = vpack.c.b16 %v1089, %v1086
  %v1753 = vpack.c.b16 %v1090, %v1087
  %v1754 = vpack.c.b16 %v1094, %v1091
  %v1755 = vpack.c.b16 %v1095, %v1092
  %v1756 = vpack.c.b16 %v1096, %v1093
  %v1757 = vpack.c.b16 %v1100, %v1097
  %v1758 = vpack.c.b16 %v1101, %v1098
  %v1759 = vpack.c.b16 %v1102, %v1099
  %v1760 = vpack.c.b16 %v1106, %v1103
  %v1761 = vpack.c.b16 %v1107, %v1104
  %v1762 = vpack.c.b16 %v1108, %v1105
  %v1763 = vpack.c.b16 %v1112, %v1109
  %v1764 = vpack.c.b16 %v1113, %v1110
  %v1765 = vpack.c.b16 %v1114, %v1111
  %v1766 = vpack.c.b16 %v1118, %v1115
  %v1767 = vpack.c.b16 %v1119, %v1116
  %v1768 = vpack.c.b16 %v1120, %v1117
  %v1769 = vpack.c.b16 %v1124, %v1121
  %v1770 = vpack.c.b16 %v1125, %v1122
  %v1771 = vpack.c.b16 %v1126, %v1123
  %v1772 = vpack.c.b16 %v1130, %v1127
  %v1773 = vpack.c.b16 %v1131, %v1128
  %v1774 = vpack.c.b16 %v1132, %v1129
  %v1775 = vpack.c.b16 %v1136, %v1133
  %v1776 = vpack.c.b16 %v1137, %v1134
  %v1777 = vpack.c.b16 %v1138, %v1135
  %v1778 = vpack.c.b16 %v1142, %v1139
  %v1779 = vpack.c.b16 %v1143, %v1140
  %v1780 = vpack.c.b16 %v1144, %v1141
  %v1781 = vpack.c.b16 %v1148, %v1145
  %v1782 = vpack.c.b16 %v1149, %v1146
  %v1783 = vpack.c.b16 %v1150, %v1147
  %v1784 = vpack.c.b16 %v1154, %v1151
  %v1785 = vpack.c.b16 %v1155, %v1152
  %v1786 = vpack.c.b16 %v1156, %v1153
  %v1787 = vpack.c.b16 %v1160, %v1157
  %v1788 = vpack.c.b16 %v1161, %v1158
  %v1789 = vpack.c.b16 %v1162, %v1159
  %v1790 = vpack.c.b16 %v1166, %v1163
  %v1791 = vpack.c.b16 %v1167, %v1164
  %v1792 = vpack.c.b16 %v1168, %v1165
  %v1793 = vpack.c.b16 %v1172, %v1169
  %v1794 = vpack.c.b16 %v1173, %v1170
  %v1795 = vpack.c.b16 %v1174, %v1171
  %v1796 = vpack.c.b16 %v1178, %v1175
  %v1797 = vpack.c.b16 %v1179, %v1176
  %v1798 = vpack.c.b16 %v1180, %v1177
  %v1799 = vpack.c.b16 %v1184, %v1181
  %v1800 = vpack.c.b16 %v1185, %v1182
  %v1801 = vpack.c.b16 %v1186, %v1183
  %v1802 = vpack.c.b16 %v1190, %v1187
  %v1803 = vpack.c.b16 %v1191, %v1188
  %v1804 = vpack.c.b16 %v1192, %v1189
  %v1805 = vpack.c.b16 %v1196, %v1193
  %v1806 = vpack.c.b16 %v1197, %v1194
  %v1807 = vpack.c.b16 %v1198, %v1195
  %v1808 = vpack.c.b16 %v1202, %v1199
  %v1809 = vpack.c.b16 %v1203, %v1200
  %v1810 = vpack.c.b16 %v1204, %v1201
  %v1811 = vpack.c.b16 %v1208, %v1205
  %v1812 = vpack.c.b16 %v1209, %v1206
  %v1813 = vpack.c.b16 %v1210, %v1207
  %v1814 = vpack.c.b16 %v1214, %v1211
  %v1815 = vpack.c.b16 %v1215, %v1212
  %v1816 = vpack.c.b16 %v1216, %v1213
  %v1817 = vpack.c.b16 %v1220, %v1217
  %v1818 = vpack.c.b16 %v1221, %v1218
  %v1819 = vpack.c.b16 %v1222, %v1219
  %v1820 = vpack.c.b16 %v1226, %v1223
  %v1821 = vpack.c.b16 %v1227, %v1224
  %v1822 = vpack.c.b16 %v1228, %v1225
  %v1823 = vpack.c.b16 %v1232, %v1229
  %v1824 = vpack.c.b16 %v1233, %v1230
  %v1825 = vpack.c.b16 %v1234, %v1231
  %v1826 = vpack.c.b16 %v1238, %v1235
  %v1827 = vpack.c.b16 %v1239, %v1236
  %v1828 = vpack.c.b16 %v1240, %v1237
  %v1829 = vpack.c.b16 %v1244, %v1241
  %v1830 = vpack.c.b16 %v1245, %v1242
  %v1831 = vpack.c.b16 %v1246, %v1243
  %v1832 = vpack.c.b16 %v1250, %v1247
  %v1833 = vpack.c.b16 %v1251, %v1248
  %v1834 = vpack.c.b16 %v1252, %v1249
  %v1835 = vpack.c.b16 %v1256, %v1253
  %v1836 = vpack.c.b16 %v1257, %v1254
  %v1837 = vpack.c.b16 %v1258, %v1255
  %v1838 = vpack.c.b16 %v1262, %v1259
  %v1839 = vpack.c.b16 %v1263, %v1260
  %v1840 = vpack.c.b16 %v1264, %v1261
  %v1841 = vpack.c.b16 %v1268, %v1265
  %v1842 = vpack.c.b16 %v1269, %v1266
  %v1843 = vpack.c.b16 %v1270, %v1267
  %v1844 = vpack.c.b16 %v1274, %v1271
  %v1845 = vpack.c.b16 %v1275, %v1272
  %v1846 = vpack.c.b16 %v1276, %v1273
  %v1847 = vpack.c.b16 %v1280, %v1277
  %v1848 = vpack.c.b16 %v1281, %v1278
  %v1849 = vpack.c.b16 %v1282, %v1279
  %v1850 = vpack.c.b16 %v1286, %v1283
  %v1851 = vpack.c.b16 %v1287, %v1284
  %v1852 = vpack.c.b16 %v1288, %v1285
  %v1853 = vpack.c.b16 %v1292, %v1289
  %v1854 = vpack.c.b16 %v1293, %v1290
  %v1855 = vpack.c.b16 %v1294, %v1291
  %v1856 = vpack.c.b16 %v1298, %v1295
  %v1857 = vpack.c.b16 %v1299, %v1296
  %v1858 = vpack.c.b16 %v1300, %v1297
  %v1859 = vpack.c.b16 %v1304, %v1301
  %v1860 = vpack.c.b16 %v1305, %v1302
  %v1861 = vpack.c.b16 %v1306, %v1303
  %v1862 = vpack.c.b16 %v1310, %v1307
  %v1863 = vpack.c.b16 %v1311, %v1308
  %v1864 = vpack.c.b16 %v1312, %v1309
  %v1865 = vpack.c.b16 %v1316, %v1313
  %v1866 = vpack.c.b16 %v1317, %v1314
  %v1867 = vpack.c.b16 %v1318, %v1315
  %v1868 = vpack.c.b16 %v1322, %v1319
  %v1869 = vpack.c.b16 %v1323, %v1320
  %v1870 = vpack.c.b16 %v1324, %v1321
  %v1871 = vpack.c.b16 %v1328, %v1325
  %v1872 = vpack.c.b16 %v1329, %v1326
  %v1873 = vpack.c.b16 %v1330, %v1327
  %v1874 = vpack.c.b16 %v1334, %v1331
  %v1875 = vpack.c.b16 %v1335, %v1332
  %v1876 = vpack.c.b16 %v1336, %v1333
  %v1877 = vpack.c.b16 %v1340, %v1337
  %v1878 = vpack.c.b16 %v1341, %v1338
  %v1879 = vpack.c.b16 %v1342, %v1339
  %v1880 = vpack.c.b16 %v1346, %v1343
  %v1881 = vpack.c.b16 %v1347, %v1344
  %v1882 = vpack.c.b16 %v1348, %v1345
  %v1883 = vpack.c.b16 %v1352, %v1349
  %v1884 = vpack.c.b16 %v1353, %v1350
  %v1885 = vpack.c.b16 %v1354, %v1351
  %v1886 = vpack.c.b16 %v1358, %v1355
  %v1887 = vpack.c.b16 %v1359, %v1356
  %v1888 = vpack.c.b16 %v1360, %v1357
  %v1889 = vpack.c.b16 %v1364, %v1361
  %v1890 = vpack.c.b16 %v1365, %v1362
  %v1891 = vpack.c.b16 %v1366, %v1363
  %v1892 = vpack.c.b16 %v1370, %v1367
  %v1893 = vpack.c.b16 %v1371, %v1368
  %v1894 = vpack.c.b16 %v1372, %v1369
  %v1895 = vpack.c.b16 %v1376, %v1373
  %v1896 = vpack.c.b16 %v1377, %v1374
  %v1897 = vpack.c.b16 %v1378, %v1375
  %v1898 = vpack.c.b16 %v1382, %v1379
  %v1899 = vpack.c.b16 %v1383, %v1380
  %v1900 = vpack.c.b16 %v1384, %v1381
  %v1901 = vpack.c.b16 %v1388, %v1385
  %v1902 = vpack.c.b16 %v1389, %v1386
  %v1903 = vpack.c.b16 %v1390, %v1387
  %v1904 = vpack.c.b16 %v1394, %v1391
  %v1905 = vpack.c.b16 %v1395, %v1392
  %v1906 = vpack.c.b16 %v1396, %v1393
  %v1907 = vpack.c.b16 %v1400, %v1397
  %v1908 = vpack.c.b16 %v1401, %v1398
  %v1909 = vpack.c.b16 %v1402, %v1399
  %v1910 = vpack.c.b16 %v1406, %v1403
  %v1911 = vpack.c.b16 %v1407, %v1404
  %v1912 = vpack.c.b16 %v1408, %v1405
  %v1913 = vpack.c.b16 %v1412, %v1409
  %v1914 = vpack.c.b16 %v1413, %v1410
  %v1915 = vpack.c.b16 %v1414, %v1411
  %v1916 = vpack.c.b16 %v1418, %v1415
  %v1917 = vpack.c.b16 %v1419, %v1416
  %v1918 = vpack.c.b16 %v1420, %v1417
  %v1919 = vpack.c.b16 %v1424, %v1421
  %v1920 = vpack.c.b16 %v1425, %v1422
  %v1921 = vpack.c.b16 %v1426, %v1423
  %v1922 = vpack.c.b16 %v1430, %v1427
  %v1923 = vpack.c.b16 %v1431, %v1428
  %v1924 = vpack.c.b16 %v1432, %v1429
  %v1925 = vpack.c.b16 %v1436, %v1433
  %v1926 = vpack.c.b16 %v1437, %v1434
  %v1927 = vpack.c.b16 %v1438, %v1435
  %v1928 = vpack.c.b16 %v1442, %v1439
  %v1929 = vpack.c.b16 %v1443, %v1440
  %v1930 = vpack.c.b16 %v1444, %v1441
  %v1931 = vpack.c.b16 %v1448, %v1445
  %v1932 = vpack.c.b16 %v1449, %v1446
  %v1933 = vpack.c.b16 %v1450, %v1447
  %v1934 = vpack.c.b16 %v1454, %v1451
  %v1935 = vpack.c.b16 %v1455, %v1452
  %v1936 = vpack.c.b16 %v1456, %v1453
  %v1937 = vpack.c.b16 %v1460, %v1457
  %v1938 = vpack.c.b16 %v1461, %v1458
  %v1939 = vpack.c.b16 %v1462, %v1459
  %v1940 = vpack.c.b16 %v1466, %v1463
  %v1941 = vpack.c.b16 %v1467, %v1464
  %v1942 = vpack.c.b16 %v1468, %v1465
  %v1943 = vpack.c.b16 %v1472, %v1469
  %v1944 = vpack.c.b16 %v1473, %v1470
  %v1945 = vpack.c.b16 %v1474, %v1471
  %v1946 = vpack.c.b16 %v1478, %v1475
  %v1947 = vpack.c.b16 %v1479, %v1476
  %v1948 = vpack.c.b16 %v1480, %v1477
  %v1949 = vpack.c.b16 %v1484, %v1481
  %v1950 = vpack.c.b16 %v1485, %v1482
  %v1951 = vpack.c.b16 %v1486, %v1483
  %v1952 = vpack.c.b16 %v1490, %v1487
  %v1953 = vpack.c.b16 %v1491, %v1488
  %v1954 = vpack.c.b16 %v1492, %v1489
  %v1955 = vpack.c.b16 %v1496, %v1493
  %v1956 = vpack.c.b16 %v1497, %v1494
  %v1957 = vpack.c.b16 %v1498, %v1495
  %v1958 = vpack.c.b16 %v1502, %v1499
  %v1959 = vpack.c.b16 %v1503, %v1500
  %v1960 = vpack.c.b16 %v1504, %v1501
  %v1961 = vpack.c.b16 %v1508, %v1505
  %v1962 = vpack.c.b16 %v1509, %v1506
  %v1963 = vpack.c.b16 %v1510, %v1507
  %v1964 = vpack.c.b16 %v1514, %v1511
  %v1965 = vpack.c.b16 %v1515, %v1512
  %v1966 = vpack.c.b16 %v1516, %v1513
  %v1967 = vpack.c.b16 %v1520, %v1517
  %v1968 = vpack.c.b16 %v1521, %v1518
  %v1969 = vpack.c.b16 %v1522, %v1519
  %v1970 = vpack.c.b16 %v1526, %v1523
  %v1971 = vpack.c.b16 %v1527, %v1524
  %v1972 = vpack.c.b16 %v1528, %v1525
  %v1973 = vpack.c.b16 %v1532, %v1529
  %v1974 = vpack.c.b16 %v1533, %v1530
  %v1975 = vpack.c.b16 %v1534, %v1531
  %v1976 = vpack.c.b16 %v1538, %v1535
  %v1977 = vpack.c.b16 %v1539, %v1536
  %v1978 = vpack.c.b16 %v1540, %v1537
  %v1979 = vpack.c.b16 %v1544, %v1541
  %v1980 = vpack.c.b16 %v1545, %v1542
  %v1981 = vpack.c.b16 %v1546, %v1543
  %v1982 = vpack.c.b16 %v1550, %v1547
  %v1983 = vpack.c.b16 %v1551, %v1548
  %v1984 = vpack.c.b16 %v1552, %v1549
  %v1985 = vpack.c.b16 %v1556, %v1553
  %v1986 = vpack.c.b16 %v1557, %v1554
  %v1987 = vpack.c.b16 %v1558, %v1555
  %v1988 = vpack.c.b16 %v1562, %v1559
  %v1989 = vpack.c.b16 %v1563, %v1560
  %v1990 = vpack.c.b16 %v1564, %v1561
  %v1991 = vpack.c.b16 %v1568, %v1565
  %v1992 = vpack.c.b16 %v1569, %v1566
  %v1993 = vpack.c.b16 %v1570, %v1567
  %v1994 = vpack.c.b16 %v1574, %v1571
  %v1995 = vpack.c.b16 %v1575, %v1572
  %v1996 = vpack.c.b16 %v1576, %v1573
  %v1997 = vpack.c.b16 %v1580, %v1577
  %v1998 = vpack.c.b16 %v1581, %v1578
  %v1999 = vpack.c.b16 %v1582, %v1579
  %v2000 = vpack.c.b16 %v1586, %v1583
  %v2001 = vpack.c.b16 %v1587, %v1584
  %v2002 = vpack.c.b16 %v1588, %v1585
  %v2003 = vpack.c.b16 %v1592, %v1589
  %v2004 = vpack.c.b16 %v1593, %v1590
  %v2005 = vpack.c.b16 %v1594, %v1591
  %v2006 = vpack.c.b16 %v1598, %v1595
  %v2007 = vpack.c.b16 %v1599, %v1596
  %v2008 = vpack.c.b16 %v1600, %v1597
  %v2009 = vpack.c.b16 %v1604, %v1601
  %v2010 = vpack.c.b16 %v1605, %v1602
  %v2011 = vpack.c.b16 %v1606, %v1603
  %v2012 = vpack.c.b16 %v1610, %v1607
  %v2013 = vpack.c.b16 %v1611, %v1608
  %v2014 = vpack.c.b16 %v1612, %v1609
  %v2015 = vpack.c.b16 %v1616, %v1613
  %v2016 = vpack.c.b16 %v1617, %v1614
  %v2017 = vpack.c.b16 %v1618, %v1615
  %v2018 = vpack.c.b16 %v1622, %v1619
  %v2019 = vpack.c.b16 %v1623, %v1620
  %v2020 = vpack.c.b16 %v1624, %v1621
  %v2021 = vpack.c.b16 %v1628, %v1625
  %v2022 = vpack.c.b16 %v1629, %v1626
  %v2023 = vpack.c.b16 %v1630, %v1627
  %v2024 = vpack.c.b16 %v1634, %v1631
  %v2025 = vpack.c.b16 %v1635, %v1632
  %v2026 = vpack.c.b16 %v1636, %v1633
  %v2027 = vpack.c.b16 %v1640, %v1637
  %v2028 = vpack.c.b16 %v1641, %v1638
  %v2029 = vpack.c.b16 %v1642, %v1639
  %v2030 = vpack.c.b16 %v1646, %v1643
  %v2031 = vpack.c.b16 %v1647, %v1644
  %v2032 = vpack.c.b16 %v1648, %v1645
  %v2033 = vpack.c.b16 %v1652, %v1649
  %v2034 = vpack.c.b16 %v1653, %v1650
  %v2035 = vpack.c.b16 %v1654, %v1651
  %v2036 = vpack.c.b16 %v1658, %v1655
  %v2037 = vpack.c.b16 %v1659, %v1656
  %v2038 = vpack.c.b16 %v1660, %v1657
  %v2039 = vpack.c.b16 %v1664, %v1661
  %v2040 = vpack.c.b16 %v1665, %v1662
  %v2041 = vpack.c.b16 %v1666, %v1663
  %v2042 = vpack.c.b16 %v1670, %v1667
  %v2043 = vpack.c.b16 %v1671, %v1668
  %v2044 = vpack.c.b16 %v1672, %v1669
  %v2045 = vpack.c.b16 %v1676, %v1673
  %v2046 = vpack.c.b16 %v1677, %v1674
  %v2047 = vpack.c.b16 %v1678, %v1675
  %v2048 = vpack.c.b16 %v1682, %v1679
  %v2049 = vpack.c.b16 %v1683, %v1680
  %v2050 = vpack.c.b16 %v1684, %v1681
  %v2051 = vpack.c.b16 %v1688, %v1685
  %v2052 = vpack.c.b16 %v1689, %v1686
  %v2053 = vpack.c.b16 %v1690, %v1687
  %v2054 = vpack.c.b16 %v1694, %v1691
  %v2055 = vpack.c.b16 %v1695, %v1692
  %v2056 = vpack.c.b16 %v1696, %v1693
  %v2057 = vpack.c.b16 %v1700, %v1697
  %v2058 = vpack.c.b16 %v1701, %v1698
  %v2059 = vpack.c.b16 %v1702, %v1699
  %v2060 = vpack.c.b16 %v1706, %v1703
  %v2061 = vpack.c.b16 %v1707, %v1704
  %v2062 = vpack.c.b16 %v1708, %v1705
  %v2063 = vpack.c.b16 %v1712, %v1709
  %v2064 = vpack.c.b16 %v1713, %v1710
  %v2065 = vpack.c.b16 %v1714, %v1711
  %v2066 = vpack.c.b16 %v1718, %v1715
  %v2067 = vpack.c.b16 %v1719, %v1716
  %v2068 = vpack.c.b16 %v1720, %v1717
  %v2069 = vpack.c.b16 %v1724, %v1721
  %v2070 = vpack.c.b16 %v1725, %v1722
  %v2071 = vpack.c.b16 %v1726, %v1723
  %v2072 = vpack.c.b16 %v1730, %v1727
  %v2073 = vpack.c.b16 %v1731, %v1728
  %v2074 = vpack.c.b16 %v1732, %v1729
  %v2075 = vpack.c.b16 %v1736, %v1733
  %v2076 = vpack.c.b16 %v1737, %v1734
  %v2077 = vpack.c.b16 %v1738, %v1735
  %v2078 = vpack.c.b16 %v1742, %v1739
  %v2079 = vpack.c.b16 %v1743, %v1740
  %v2080 = vpack.c.b16 %v1744, %v1741
  %2417 = vmatprep.subr.bf16.mxu0 %v1746
  %2418 = vmatpush1.bf16.msra.mxu0 %v1745
  %2419 = vmatprep.subr.bf16.mxu0 %v1749
  %2420 = vmatpush1.bf16.msra.mxu0 %v1748
  %2421 = vmatprep.subr.bf16.mxu0 %v1752
  %2422 = vmatpush1.bf16.msra.mxu0 %v1751
  %2423 = vmatprep.subr.bf16.mxu0 %v1755
  %2424 = vmatpush1.bf16.msra.mxu0 %v1754
  %2425 = vmatprep.subr.bf16.mxu0 %v1758
  %2426 = vmatpush1.bf16.msra.mxu0 %v1757
  %2427 = vmatprep.subr.bf16.mxu0 %v1761
  %2428 = vmatpush1.bf16.msra.mxu0 %v1760
  %2429 = vmatprep.subr.bf16.mxu0 %v1764
  %2430 = vmatpush1.bf16.msra.mxu0 %v1763
  %2431 = vmatprep.subr.bf16.mxu0 %v1767
  %2432 = vmatpush1.bf16.msra.mxu0 %v1766
  %2433 = vmatprep.subr.bf16.mxu0 %v1770
  %2434 = vmatpush1.bf16.msra.mxu0 %v1769
  %2435 = vmatprep.subr.bf16.mxu0 %v1773
  %2436 = vmatpush1.bf16.msra.mxu0 %v1772
  %2437 = vmatprep.subr.bf16.mxu0 %v1776
  %2438 = vmatpush1.bf16.msra.mxu0 %v1775
  %2439 = vmatprep.subr.bf16.mxu0 %v1779
  %2440 = vmatpush1.bf16.msra.mxu0 %v1778
  %2441 = vmatprep.subr.bf16.mxu0 %v1782
  %2442 = vmatpush1.bf16.msra.mxu0 %v1781
  %2443 = vmatprep.subr.bf16.mxu0 %v1785
  %2444 = vmatpush1.bf16.msra.mxu0 %v1784
  %2445 = vmatprep.subr.bf16.mxu0 %v1788
  %2446 = vmatpush1.bf16.msra.mxu0 %v1787
  %2447 = vmatprep.subr.bf16.mxu0 %v1791
  %2448 = vmatpush1.bf16.msra.mxu0 %v1790
  %2449 = vmatprep.mubr.bf16.mxu0 %v570
  %2450 = vmatmul.mubr.bf16.gmra.mrb[0].mxu0 %v569
  %v2451 = vpop.f32.mrb[0].mxu0
  %v2452 = vadd.f32 0.0, %v2451
  %v2453 = vpop.f32.mrb[0].mxu0
  %v2454 = vadd.f32 0.0, %v2453
  %v2455 = vpop.f32.mrb[0].mxu0
  %v2456 = vadd.f32 0.0, %v2455
  %v2457 = vpop.f32.mrb[0].mxu0
  %v2458 = vadd.f32 0.0, %v2457
  %2459 = vmatprep.mubr.bf16.mxu0 %v584
  %2460 = vmatmul.mubr.bf16.gmra.mrb[0].mxu0 %v583
  %v2461 = vpop.f32.mrb[0].mxu0
  %v2462 = vadd.f32 0.0, %v2461
  %v2463 = vpop.f32.mrb[0].mxu0
  %v2464 = vadd.f32 0.0, %v2463
  %v2465 = vpop.f32.mrb[0].mxu0
  %v2466 = vpop.f32.mrb[0].mxu0
  %2467 = vdwg.mxu0
  %2468 = vmatprep.subr.bf16.mxu0 %v1794
  %2469 = vmatpush1.bf16.msra.mxu0 %v1793
  %2470 = vmatprep.subr.bf16.mxu0 %v1797
  %2471 = vmatpush1.bf16.msra.mxu0 %v1796
  %2472 = vmatprep.subr.bf16.mxu0 %v1800
  %2473 = vmatpush1.bf16.msra.mxu0 %v1799
  %2474 = vmatprep.subr.bf16.mxu0 %v1803
  %2475 = vmatpush1.bf16.msra.mxu0 %v1802
  %2476 = vmatprep.subr.bf16.mxu0 %v1806
  %2477 = vmatpush1.bf16.msra.mxu0 %v1805
  %2478 = vmatprep.subr.bf16.mxu0 %v1809
  %2479 = vmatpush1.bf16.msra.mxu0 %v1808
  %2480 = vmatprep.subr.bf16.mxu0 %v1812
  %2481 = vmatpush1.bf16.msra.mxu0 %v1811
  %2482 = vmatprep.subr.bf16.mxu0 %v1815
  %2483 = vmatpush1.bf16.msra.mxu0 %v1814
  %2484 = vmatprep.subr.bf16.mxu0 %v1818
  %2485 = vmatpush1.bf16.msra.mxu0 %v1817
  %2486 = vmatprep.subr.bf16.mxu0 %v1821
  %2487 = vmatpush1.bf16.msra.mxu0 %v1820
  %2488 = vmatprep.subr.bf16.mxu0 %v1824
  %2489 = vmatpush1.bf16.msra.mxu0 %v1823
  %2490 = vmatprep.subr.bf16.mxu0 %v1827
  %2491 = vmatpush1.bf16.msra.mxu0 %v1826
  %2492 = vmatprep.subr.bf16.mxu0 %v1830
  %2493 = vmatpush1.bf16.msra.mxu0 %v1829
  %2494 = vmatprep.subr.bf16.mxu0 %v1833
  %2495 = vmatpush1.bf16.msra.mxu0 %v1832
  %2496 = vmatprep.subr.bf16.mxu0 %v1836
  %2497 = vmatpush1.bf16.msra.mxu0 %v1835
  %2498 = vmatprep.subr.bf16.mxu0 %v1839
  %2499 = vmatpush1.bf16.msra.mxu0 %v1838
  %2500 = vmatprep.mubr.bf16.mxu0 %v572
  %2501 = vmatmul.mubr.bf16.gmra.mrb[0].mxu0 %v571
  %v2502 = vpop.f32.mrb[0].mxu0
  %v2503 = vadd.f32 %v2452, %v2502
  %v2504 = vpop.f32.mrb[0].mxu0
  %v2505 = vadd.f32 %v2454, %v2504
  %v2506 = vpop.f32.mrb[0].mxu0
  %v2507 = vadd.f32 %v2456, %v2506
  %v2508 = vpop.f32.mrb[0].mxu0
  %v2509 = vadd.f32 %v2458, %v2508
  %2510 = vmatprep.mubr.bf16.mxu0 %v586
  %2511 = vmatmul.mubr.bf16.gmra.mrb[0].mxu0 %v585
  %v2512 = vpop.f32.mrb[0].mxu0
  %v2513 = vadd.f32 %v2462, %v2512
  %v2514 = vpop.f32.mrb[0].mxu0
  %v2515 = vadd.f32 %v2464, %v2514
  %v2516 = vpop.f32.mrb[0].mxu0
  %v2517 = vpop.f32.mrb[0].mxu0
  %2518 = vdwg.mxu0
  %2519 = vmatprep.subr.bf16.mxu0 %v1842
  %2520 = vmatpush1.bf16.msra.mxu0 %v1841
  %2521 = vmatprep.subr.bf16.mxu0 %v1845
  %2522 = vmatpush1.bf16.msra.mxu0 %v1844
  %2523 = vmatprep.subr.bf16.mxu0 %v1848
  %2524 = vmatpush1.bf16.msra.mxu0 %v1847
  %2525 = vmatprep.subr.bf16.mxu0 %v1851
  %2526 = vmatpush1.bf16.msra.mxu0 %v1850
  %2527 = vmatprep.subr.bf16.mxu0 %v1854
  %2528 = vmatpush1.bf16.msra.mxu0 %v1853
  %2529 = vmatprep.subr.bf16.mxu0 %v1857
  %2530 = vmatpush1.bf16.msra.mxu0 %v1856
  %2531 = vmatprep.subr.bf16.mxu0 %v1860
  %2532 = vmatpush1.bf16.msra.mxu0 %v1859
  %2533 = vmatprep.subr.bf16.mxu0 %v1863
  %2534 = vmatpush1.bf16.msra.mxu0 %v1862
  %2535 = vmatprep.subr.bf16.mxu0 %v1866
  %2536 = vmatpush1.bf16.msra.mxu0 %v1865
  %2537 = vmatprep.subr.bf16.mxu0 %v1869
  %2538 = vmatpush1.bf16.msra.mxu0 %v1868
  %2539 = vmatprep.subr.bf16.mxu0 %v1872
  %2540 = vmatpush1.bf16.msra.mxu0 %v1871
  %2541 = vmatprep.subr.bf16.mxu0 %v1875
  %2542 = vmatpush1.bf16.msra.mxu0 %v1874
  %2543 = vmatprep.subr.bf16.mxu0 %v1878
  %2544 = vmatpush1.bf16.msra.mxu0 %v1877
  %2545 = vmatprep.subr.bf16.mxu0 %v1881
  %2546 = vmatpush1.bf16.msra.mxu0 %v1880
  %2547 = vmatprep.subr.bf16.mxu0 %v1884
  %2548 = vmatpush1.bf16.msra.mxu0 %v1883
  %2549 = vmatprep.subr.bf16.mxu0 %v1887
  %2550 = vmatpush1.bf16.msra.mxu0 %v1886
  %2551 = vmatprep.mubr.bf16.mxu0 %v574
  %2552 = vmatmul.mubr.bf16.gmra.mrb[0].mxu0 %v573
  %v2553 = vpop.f32.mrb[0].mxu0
  %v2554 = vadd.f32 %v2503, %v2553
  %v2555 = vpop.f32.mrb[0].mxu0
  %v2556 = vadd.f32 %v2505, %v2555
  %v2557 = vpop.f32.mrb[0].mxu0
  %v2558 = vadd.f32 %v2507, %v2557
  %v2559 = vpop.f32.mrb[0].mxu0
  %v2560 = vadd.f32 %v2509, %v2559
  %2561 = vmatprep.mubr.bf16.mxu0 %v588
  %2562 = vmatmul.mubr.bf16.gmra.mrb[0].mxu0 %v587
  %v2563 = vpop.f32.mrb[0].mxu0
  %v2564 = vadd.f32 %v2513, %v2563
  %v2565 = vpop.f32.mrb[0].mxu0
  %v2566 = vadd.f32 %v2515, %v2565
  %v2567 = vpop.f32.mrb[0].mxu0
  %v2568 = vpop.f32.mrb[0].mxu0
  %2569 = vdwg.mxu0
  %2570 = vmatprep.subr.bf16.mxu0 %v1890
  %2571 = vmatpush1.bf16.msra.mxu0 %v1889
  %2572 = vmatprep.subr.bf16.mxu0 %v1893
  %2573 = vmatpush1.bf16.msra.mxu0 %v1892
  %2574 = vmatprep.subr.bf16.mxu0 %v1896
  %2575 = vmatpush1.bf16.msra.mxu0 %v1895
  %2576 = vmatprep.subr.bf16.mxu0 %v1899
  %2577 = vmatpush1.bf16.msra.mxu0 %v1898
  %2578 = vmatprep.subr.bf16.mxu0 %v1902
  %2579 = vmatpush1.bf16.msra.mxu0 %v1901
  %2580 = vmatprep.subr.bf16.mxu0 %v1905
  %2581 = vmatpush1.bf16.msra.mxu0 %v1904
  %2582 = vmatprep.subr.bf16.mxu0 %v1908
  %2583 = vmatpush1.bf16.msra.mxu0 %v1907
  %2584 = vmatprep.subr.bf16.mxu0 %v1911
  %2585 = vmatpush1.bf16.msra.mxu0 %v1910
  %2586 = vmatprep.subr.bf16.mxu0 %v1914
  %2587 = vmatpush1.bf16.msra.mxu0 %v1913
  %2588 = vmatprep.subr.bf16.mxu0 %v1917
  %2589 = vmatpush1.bf16.msra.mxu0 %v1916
  %2590 = vmatprep.subr.bf16.mxu0 %v1920
  %2591 = vmatpush1.bf16.msra.mxu0 %v1919
  %2592 = vmatprep.subr.bf16.mxu0 %v1923
  %2593 = vmatpush1.bf16.msra.mxu0 %v1922
  %2594 = vmatprep.subr.bf16.mxu0 %v1926
  %2595 = vmatpush1.bf16.msra.mxu0 %v1925
  %2596 = vmatprep.subr.bf16.mxu0 %v1929
  %2597 = vmatpush1.bf16.msra.mxu0 %v1928
  %2598 = vmatprep.subr.bf16.mxu0 %v1932
  %2599 = vmatpush1.bf16.msra.mxu0 %v1931
  %2600 = vmatprep.subr.bf16.mxu0 %v1935
  %2601 = vmatpush1.bf16.msra.mxu0 %v1934
  %2602 = vmatprep.mubr.bf16.mxu0 %v576
  %2603 = vmatmul.mubr.bf16.gmra.mrb[0].mxu0 %v575
  %v2604 = vpop.f32.mrb[0].mxu0
  %v2605 = vadd.f32 %v2554, %v2604
  %v2606 = vpop.f32.mrb[0].mxu0
  %v2607 = vadd.f32 %v2556, %v2606
  %v2608 = vpop.f32.mrb[0].mxu0
  %v2609 = vadd.f32 %v2558, %v2608
  %v2610 = vpop.f32.mrb[0].mxu0
  %v2611 = vadd.f32 %v2560, %v2610
  %2612 = vmatprep.mubr.bf16.mxu0 %v590
  %2613 = vmatmul.mubr.bf16.gmra.mrb[0].mxu0 %v589
  %v2614 = vpop.f32.mrb[0].mxu0
  %v2615 = vadd.f32 %v2564, %v2614
  %v2616 = vpop.f32.mrb[0].mxu0
  %v2617 = vadd.f32 %v2566, %v2616
  %v2618 = vpop.f32.mrb[0].mxu0
  %v2619 = vpop.f32.mrb[0].mxu0
  %2620 = vdwg.mxu0
  %2621 = vmatprep.subr.bf16.mxu0 %v1938
  %2622 = vmatpush1.bf16.msra.mxu0 %v1937
  %2623 = vmatprep.subr.bf16.mxu0 %v1941
  %2624 = vmatpush1.bf16.msra.mxu0 %v1940
  %2625 = vmatprep.subr.bf16.mxu0 %v1944
  %2626 = vmatpush1.bf16.msra.mxu0 %v1943
  %2627 = vmatprep.subr.bf16.mxu0 %v1947
  %2628 = vmatpush1.bf16.msra.mxu0 %v1946
  %2629 = vmatprep.subr.bf16.mxu0 %v1950
  %2630 = vmatpush1.bf16.msra.mxu0 %v1949
  %2631 = vmatprep.subr.bf16.mxu0 %v1953
  %2632 = vmatpush1.bf16.msra.mxu0 %v1952
  %2633 = vmatprep.subr.bf16.mxu0 %v1956
  %2634 = vmatpush1.bf16.msra.mxu0 %v1955
  %2635 = vmatprep.subr.bf16.mxu0 %v1959
  %2636 = vmatpush1.bf16.msra.mxu0 %v1958
  %2637 = vmatprep.subr.bf16.mxu0 %v1962
  %2638 = vmatpush1.bf16.msra.mxu0 %v1961
  %2639 = vmatprep.subr.bf16.mxu0 %v1965
  %2640 = vmatpush1.bf16.msra.mxu0 %v1964
  %2641 = vmatprep.subr.bf16.mxu0 %v1968
  %2642 = vmatpush1.bf16.msra.mxu0 %v1967
  %2643 = vmatprep.subr.bf16.mxu0 %v1971
  %2644 = vmatpush1.bf16.msra.mxu0 %v1970
  %2645 = vmatprep.subr.bf16.mxu0 %v1974
  %2646 = vmatpush1.bf16.msra.mxu0 %v1973
  %2647 = vmatprep.subr.bf16.mxu0 %v1977
  %2648 = vmatpush1.bf16.msra.mxu0 %v1976
  %2649 = vmatprep.subr.bf16.mxu0 %v1980
  %2650 = vmatpush1.bf16.msra.mxu0 %v1979
  %2651 = vmatprep.subr.bf16.mxu0 %v1983
  %2652 = vmatpush1.bf16.msra.mxu0 %v1982
  %2653 = vmatprep.mubr.bf16.mxu0 %v578
  %2654 = vmatmul.mubr.bf16.gmra.mrb[0].mxu0 %v577
  %v2655 = vpop.f32.mrb[0].mxu0
  %v2656 = vadd.f32 %v2605, %v2655
  %v2657 = vpop.f32.mrb[0].mxu0
  %v2658 = vadd.f32 %v2607, %v2657
  %v2659 = vpop.f32.mrb[0].mxu0
  %v2660 = vadd.f32 %v2609, %v2659
  %v2661 = vpop.f32.mrb[0].mxu0
  %v2662 = vadd.f32 %v2611, %v2661
  %2663 = vmatprep.mubr.bf16.mxu0 %v592
  %2664 = vmatmul.mubr.bf16.gmra.mrb[0].mxu0 %v591
  %v2665 = vpop.f32.mrb[0].mxu0
  %v2666 = vadd.f32 %v2615, %v2665
  %v2667 = vpop.f32.mrb[0].mxu0
  %v2668 = vadd.f32 %v2617, %v2667
  %v2669 = vpop.f32.mrb[0].mxu0
  %v2670 = vpop.f32.mrb[0].mxu0
  %2671 = vdwg.mxu0
  %2672 = vmatprep.subr.bf16.mxu0 %v1986
  %2673 = vmatpush1.bf16.msra.mxu0 %v1985
  %2674 = vmatprep.subr.bf16.mxu0 %v1989
  %2675 = vmatpush1.bf16.msra.mxu0 %v1988
  %2676 = vmatprep.subr.bf16.mxu0 %v1992
  %2677 = vmatpush1.bf16.msra.mxu0 %v1991
  %2678 = vmatprep.subr.bf16.mxu0 %v1995
  %2679 = vmatpush1.bf16.msra.mxu0 %v1994
  %2680 = vmatprep.subr.bf16.mxu0 %v1998
  %2681 = vmatpush1.bf16.msra.mxu0 %v1997
  %2682 = vmatprep.subr.bf16.mxu0 %v2001
  %2683 = vmatpush1.bf16.msra.mxu0 %v2000
  %2684 = vmatprep.subr.bf16.mxu0 %v2004
  %2685 = vmatpush1.bf16.msra.mxu0 %v2003
  %2686 = vmatprep.subr.bf16.mxu0 %v2007
  %2687 = vmatpush1.bf16.msra.mxu0 %v2006
  %2688 = vmatprep.subr.bf16.mxu0 %v2010
  %2689 = vmatpush1.bf16.msra.mxu0 %v2009
  %2690 = vmatprep.subr.bf16.mxu0 %v2013
  %2691 = vmatpush1.bf16.msra.mxu0 %v2012
  %2692 = vmatprep.subr.bf16.mxu0 %v2016
  %2693 = vmatpush1.bf16.msra.mxu0 %v2015
  %2694 = vmatprep.subr.bf16.mxu0 %v2019
  %2695 = vmatpush1.bf16.msra.mxu0 %v2018
  %2696 = vmatprep.subr.bf16.mxu0 %v2022
  %2697 = vmatpush1.bf16.msra.mxu0 %v2021
  %2698 = vmatprep.subr.bf16.mxu0 %v2025
  %2699 = vmatpush1.bf16.msra.mxu0 %v2024
  %2700 = vmatprep.subr.bf16.mxu0 %v2028
  %2701 = vmatpush1.bf16.msra.mxu0 %v2027
  %2702 = vmatprep.subr.bf16.mxu0 %v2031
  %2703 = vmatpush1.bf16.msra.mxu0 %v2030
  %2704 = vmatprep.mubr.bf16.mxu0 %v580
  %2705 = vmatmul.mubr.bf16.gmra.mrb[0].mxu0 %v579
  %v2706 = vpop.f32.mrb[0].mxu0
  %v2707 = vadd.f32 %v2656, %v2706
  %v2708 = vpop.f32.mrb[0].mxu0
  %v2709 = vadd.f32 %v2658, %v2708
  %v2710 = vpop.f32.mrb[0].mxu0
  %v2711 = vadd.f32 %v2660, %v2710
  %v2712 = vpop.f32.mrb[0].mxu0
  %v2713 = vadd.f32 %v2662, %v2712
  %2714 = vmatprep.mubr.bf16.mxu0 %v594
  %2715 = vmatmul.mubr.bf16.gmra.mrb[0].mxu0 %v593
  %v2716 = vpop.f32.mrb[0].mxu0
  %v2717 = vadd.f32 %v2666, %v2716
  %v2718 = vpop.f32.mrb[0].mxu0
  %v2719 = vadd.f32 %v2668, %v2718
  %v2720 = vpop.f32.mrb[0].mxu0
  %v2721 = vpop.f32.mrb[0].mxu0
  %2722 = vdwg.mxu0
  %2723 = vmatprep.subr.bf16.mxu0 %v2034
  %2724 = vmatpush1.bf16.msra.mxu0 %v2033
  %2725 = vmatprep.subr.bf16.mxu0 %v2037
  %2726 = vmatpush1.bf16.msra.mxu0 %v2036
  %2727 = vmatprep.subr.bf16.mxu0 %v2040
  %2728 = vmatpush1.bf16.msra.mxu0 %v2039
  %2729 = vmatprep.subr.bf16.mxu0 %v2043
  %2730 = vmatpush1.bf16.msra.mxu0 %v2042
  %2731 = vmatprep.subr.bf16.mxu0 %v2046
  %2732 = vmatpush1.bf16.msra.mxu0 %v2045
  %2733 = vmatprep.subr.bf16.mxu0 %v2049
  %2734 = vmatpush1.bf16.msra.mxu0 %v2048
  %2735 = vmatprep.subr.bf16.mxu0 %v2052
  %2736 = vmatpush1.bf16.msra.mxu0 %v2051
  %2737 = vmatprep.subr.bf16.mxu0 %v2055
  %2738 = vmatpush1.bf16.msra.mxu0 %v2054
  %2739 = vmatprep.subr.bf16.mxu0 %v2058
  %2740 = vmatpush1.bf16.msra.mxu0 %v2057
  %2741 = vmatprep.subr.bf16.mxu0 %v2061
  %2742 = vmatpush1.bf16.msra.mxu0 %v2060
  %2743 = vmatprep.subr.bf16.mxu0 %v2064
  %2744 = vmatpush1.bf16.msra.mxu0 %v2063
  %2745 = vmatprep.subr.bf16.mxu0 %v2067
  %2746 = vmatpush1.bf16.msra.mxu0 %v2066
  %2747 = vmatprep.subr.bf16.mxu0 %v2070
  %2748 = vmatpush1.bf16.msra.mxu0 %v2069
  %2749 = vmatprep.subr.bf16.mxu0 %v2073
  %2750 = vmatpush1.bf16.msra.mxu0 %v2072
  %2751 = vmatprep.subr.bf16.mxu0 %v2076
  %2752 = vmatpush1.bf16.msra.mxu0 %v2075
  %2753 = vmatprep.subr.bf16.mxu0 %v2079
  %2754 = vmatpush1.bf16.msra.mxu0 %v2078
  %2755 = vmatprep.mubr.bf16.mxu0 %v582
  %2756 = vmatmul.mubr.bf16.gmra.mrb[0].mxu0 %v581
  %v2757 = vpop.f32.mrb[0].mxu0
  %v2758 = vadd.f32 %v2707, %v2757
  %v2759 = vpop.f32.mrb[0].mxu0
  %v2760 = vadd.f32 %v2709, %v2759
  %v2761 = vpop.f32.mrb[0].mxu0
  %v2762 = vadd.f32 %v2711, %v2761
  %v2763 = vpop.f32.mrb[0].mxu0
  %v2764 = vadd.f32 %v2713, %v2763
  %2765 = vmatprep.mubr.bf16.mxu0 %v596
  %2766 = vmatmul.mubr.bf16.gmra.mrb[0].mxu0 %v595
  %v2767 = vpop.f32.mrb[0].mxu0
  %v2768 = vadd.f32 %v2717, %v2767
  %v2769 = vpop.f32.mrb[0].mxu0
  %v2770 = vadd.f32 %v2719, %v2769
  %v2771 = vpop.f32.mrb[0].mxu0
  %v2772 = vpop.f32.mrb[0].mxu0
  %2773 = vdwg.mxu0
  %2774 = vmatprep.subr.bf16.mxu0 0
  %2775 = vmatpush1.bf16.msra.mxu0 %v1747
  %2776 = vmatprep.subr.bf16.mxu0 0
  %2777 = vmatpush1.bf16.msra.mxu0 %v1750
  %2778 = vmatprep.subr.bf16.mxu0 0
  %2779 = vmatpush1.bf16.msra.mxu0 %v1753
  %2780 = vmatprep.subr.bf16.mxu0 0
  %2781 = vmatpush1.bf16.msra.mxu0 %v1756
  %2782 = vmatprep.subr.bf16.mxu0 0
  %2783 = vmatpush1.bf16.msra.mxu0 %v1759
  %2784 = vmatprep.subr.bf16.mxu0 0
  %2785 = vmatpush1.bf16.msra.mxu0 %v1762
  %2786 = vmatprep.subr.bf16.mxu0 0
  %2787 = vmatpush1.bf16.msra.mxu0 %v1765
  %2788 = vmatprep.subr.bf16.mxu0 0
  %2789 = vmatpush1.bf16.msra.mxu0 %v1768
  %2790 = vmatprep.subr.bf16.mxu0 0
  %2791 = vmatpush1.bf16.msra.mxu0 %v1771
  %2792 = vmatprep.subr.bf16.mxu0 0
  %2793 = vmatpush1.bf16.msra.mxu0 %v1774
  %2794 = vmatprep.subr.bf16.mxu0 0
  %2795 = vmatpush1.bf16.msra.mxu0 %v1777
  %2796 = vmatprep.subr.bf16.mxu0 0
  %2797 = vmatpush1.bf16.msra.mxu0 %v1780
  %2798 = vmatprep.subr.bf16.mxu0 0
  %2799 = vmatpush1.bf16.msra.mxu0 %v1783
  %2800 = vmatprep.subr.bf16.mxu0 0
  %2801 = vmatpush1.bf16.msra.mxu0 %v1786
  %2802 = vmatprep.subr.bf16.mxu0 0
  %2803 = vmatpush1.bf16.msra.mxu0 %v1789
  %2804 = vmatprep.subr.bf16.mxu0 0
  %2805 = vmatpush1.bf16.msra.mxu0 %v1792
  %2806 = vmatprep.mubr.bf16.mxu0 %v570
  %2807 = vmatmul.mubr.bf16.gmra.mrb[0].mxu0 %v569
  %v2808 = vpop.f32.mrb[0].mxu0
  %v2809 = vadd.f32 0.0, %v2808
  %v2810 = vpop.f32.mrb[0].mxu0
  %v2811 = vpop.f32.mrb[0].mxu0
  %v2812 = vadd.f32 0.0, %v2811
  %v2813 = vpop.f32.mrb[0].mxu0
  %2814 = vmatprep.mubr.bf16.mxu0 %v584
  %2815 = vmatmul.mubr.bf16.gmra.mrb[0].mxu0 %v583
  %v2816 = vpop.f32.mrb[0].mxu0
  %v2817 = vadd.f32 0.0, %v2816
  %v2818 = vpop.f32.mrb[0].mxu0
  %v2819 = vpop.f32.mrb[0].mxu0
  %v2820 = vpop.f32.mrb[0].mxu0
  %2821 = vdwg.mxu0
  %2822 = vmatprep.subr.bf16.mxu0 0
  %2823 = vmatpush1.bf16.msra.mxu0 %v1795
  %2824 = vmatprep.subr.bf16.mxu0 0
  %2825 = vmatpush1.bf16.msra.mxu0 %v1798
  %2826 = vmatprep.subr.bf16.mxu0 0
  %2827 = vmatpush1.bf16.msra.mxu0 %v1801
  %2828 = vmatprep.subr.bf16.mxu0 0
  %2829 = vmatpush1.bf16.msra.mxu0 %v1804
  %2830 = vmatprep.subr.bf16.mxu0 0
  %2831 = vmatpush1.bf16.msra.mxu0 %v1807
  %2832 = vmatprep.subr.bf16.mxu0 0
  %2833 = vmatpush1.bf16.msra.mxu0 %v1810
  %2834 = vmatprep.subr.bf16.mxu0 0
  %2835 = vmatpush1.bf16.msra.mxu0 %v1813
  %2836 = vmatprep.subr.bf16.mxu0 0
  %2837 = vmatpush1.bf16.msra.mxu0 %v1816
  %2838 = vmatprep.subr.bf16.mxu0 0
  %2839 = vmatpush1.bf16.msra.mxu0 %v1819
  %2840 = vmatprep.subr.bf16.mxu0 0
  %2841 = vmatpush1.bf16.msra.mxu0 %v1822
  %2842 = vmatprep.subr.bf16.mxu0 0
  %2843 = vmatpush1.bf16.msra.mxu0 %v1825
  %2844 = vmatprep.subr.bf16.mxu0 0
  %2845 = vmatpush1.bf16.msra.mxu0 %v1828
  %2846 = vmatprep.subr.bf16.mxu0 0
  %2847 = vmatpush1.bf16.msra.mxu0 %v1831
  %2848 = vmatprep.subr.bf16.mxu0 0
  %2849 = vmatpush1.bf16.msra.mxu0 %v1834
  %2850 = vmatprep.subr.bf16.mxu0 0
  %2851 = vmatpush1.bf16.msra.mxu0 %v1837
  %2852 = vmatprep.subr.bf16.mxu0 0
  %2853 = vmatpush1.bf16.msra.mxu0 %v1840
  %2854 = vmatprep.mubr.bf16.mxu0 %v572
  %2855 = vmatmul.mubr.bf16.gmra.mrb[0].mxu0 %v571
  %v2856 = vpop.f32.mrb[0].mxu0
  %v2857 = vadd.f32 %v2809, %v2856
  %v2858 = vpop.f32.mrb[0].mxu0
  %v2859 = vpop.f32.mrb[0].mxu0
  %v2860 = vadd.f32 %v2812, %v2859
  %v2861 = vpop.f32.mrb[0].mxu0
  %2862 = vmatprep.mubr.bf16.mxu0 %v586
  %2863 = vmatmul.mubr.bf16.gmra.mrb[0].mxu0 %v585
  %v2864 = vpop.f32.mrb[0].mxu0
  %v2865 = vadd.f32 %v2817, %v2864
  %v2866 = vpop.f32.mrb[0].mxu0
  %v2867 = vpop.f32.mrb[0].mxu0
  %v2868 = vpop.f32.mrb[0].mxu0
  %2869 = vdwg.mxu0
  %2870 = vmatprep.subr.bf16.mxu0 0
  %2871 = vmatpush1.bf16.msra.mxu0 %v1843
  %2872 = vmatprep.subr.bf16.mxu0 0
  %2873 = vmatpush1.bf16.msra.mxu0 %v1846
  %2874 = vmatprep.subr.bf16.mxu0 0
  %2875 = vmatpush1.bf16.msra.mxu0 %v1849
  %2876 = vmatprep.subr.bf16.mxu0 0
  %2877 = vmatpush1.bf16.msra.mxu0 %v1852
  %2878 = vmatprep.subr.bf16.mxu0 0
  %2879 = vmatpush1.bf16.msra.mxu0 %v1855
  %2880 = vmatprep.subr.bf16.mxu0 0
  %2881 = vmatpush1.bf16.msra.mxu0 %v1858
  %2882 = vmatprep.subr.bf16.mxu0 0
  %2883 = vmatpush1.bf16.msra.mxu0 %v1861
  %2884 = vmatprep.subr.bf16.mxu0 0
  %2885 = vmatpush1.bf16.msra.mxu0 %v1864
  %2886 = vmatprep.subr.bf16.mxu0 0
  %2887 = vmatpush1.bf16.msra.mxu0 %v1867
  %2888 = vmatprep.subr.bf16.mxu0 0
  %2889 = vmatpush1.bf16.msra.mxu0 %v1870
  %2890 = vmatprep.subr.bf16.mxu0 0
  %2891 = vmatpush1.bf16.msra.mxu0 %v1873
  %2892 = vmatprep.subr.bf16.mxu0 0
  %2893 = vmatpush1.bf16.msra.mxu0 %v1876
  %2894 = vmatprep.subr.bf16.mxu0 0
  %2895 = vmatpush1.bf16.msra.mxu0 %v1879
  %2896 = vmatprep.subr.bf16.mxu0 0
  %2897 = vmatpush1.bf16.msra.mxu0 %v1882
  %2898 = vmatprep.subr.bf16.mxu0 0
  %2899 = vmatpush1.bf16.msra.mxu0 %v1885
  %2900 = vmatprep.subr.bf16.mxu0 0
  %2901 = vmatpush1.bf16.msra.mxu0 %v1888
  %2902 = vmatprep.mubr.bf16.mxu0 %v574
  %2903 = vmatmul.mubr.bf16.gmra.mrb[0].mxu0 %v573
  %v2904 = vpop.f32.mrb[0].mxu0
  %v2905 = vadd.f32 %v2857, %v2904
  %v2906 = vpop.f32.mrb[0].mxu0
  %v2907 = vpop.f32.mrb[0].mxu0
  %v2908 = vadd.f32 %v2860, %v2907
  %v2909 = vpop.f32.mrb[0].mxu0
  %2910 = vmatprep.mubr.bf16.mxu0 %v588
  %2911 = vmatmul.mubr.bf16.gmra.mrb[0].mxu0 %v587
  %v2912 = vpop.f32.mrb[0].mxu0
  %v2913 = vadd.f32 %v2865, %v2912
  %v2914 = vpop.f32.mrb[0].mxu0
  %v2915 = vpop.f32.mrb[0].mxu0
  %v2916 = vpop.f32.mrb[0].mxu0
  %2917 = vdwg.mxu0
  %2918 = vmatprep.subr.bf16.mxu0 0
  %2919 = vmatpush1.bf16.msra.mxu0 %v1891
  %2920 = vmatprep.subr.bf16.mxu0 0
  %2921 = vmatpush1.bf16.msra.mxu0 %v1894
  %2922 = vmatprep.subr.bf16.mxu0 0
  %2923 = vmatpush1.bf16.msra.mxu0 %v1897
  %2924 = vmatprep.subr.bf16.mxu0 0
  %2925 = vmatpush1.bf16.msra.mxu0 %v1900
  %2926 = vmatprep.subr.bf16.mxu0 0
  %2927 = vmatpush1.bf16.msra.mxu0 %v1903
  %2928 = vmatprep.subr.bf16.mxu0 0
  %2929 = vmatpush1.bf16.msra.mxu0 %v1906
  %2930 = vmatprep.subr.bf16.mxu0 0
  %2931 = vmatpush1.bf16.msra.mxu0 %v1909
  %2932 = vmatprep.subr.bf16.mxu0 0
  %2933 = vmatpush1.bf16.msra.mxu0 %v1912
  %2934 = vmatprep.subr.bf16.mxu0 0
  %2935 = vmatpush1.bf16.msra.mxu0 %v1915
  %2936 = vmatprep.subr.bf16.mxu0 0
  %2937 = vmatpush1.bf16.msra.mxu0 %v1918
  %2938 = vmatprep.subr.bf16.mxu0 0
  %2939 = vmatpush1.bf16.msra.mxu0 %v1921
  %2940 = vmatprep.subr.bf16.mxu0 0
  %2941 = vmatpush1.bf16.msra.mxu0 %v1924
  %2942 = vmatprep.subr.bf16.mxu0 0
  %2943 = vmatpush1.bf16.msra.mxu0 %v1927
  %2944 = vmatprep.subr.bf16.mxu0 0
  %2945 = vmatpush1.bf16.msra.mxu0 %v1930
  %2946 = vmatprep.subr.bf16.mxu0 0
  %2947 = vmatpush1.bf16.msra.mxu0 %v1933
  %2948 = vmatprep.subr.bf16.mxu0 0
  %2949 = vmatpush1.bf16.msra.mxu0 %v1936
  %2950 = vmatprep.mubr.bf16.mxu0 %v576
  %2951 = vmatmul.mubr.bf16.gmra.mrb[0].mxu0 %v575
  %v2952 = vpop.f32.mrb[0].mxu0
  %v2953 = vadd.f32 %v2905, %v2952
  %v2954 = vpop.f32.mrb[0].mxu0
  %v2955 = vpop.f32.mrb[0].mxu0
  %v2956 = vadd.f32 %v2908, %v2955
  %v2957 = vpop.f32.mrb[0].mxu0
  %2958 = vmatprep.mubr.bf16.mxu0 %v590
  %2959 = vmatmul.mubr.bf16.gmra.mrb[0].mxu0 %v589
  %v2960 = vpop.f32.mrb[0].mxu0
  %v2961 = vadd.f32 %v2913, %v2960
  %v2962 = vpop.f32.mrb[0].mxu0
  %v2963 = vpop.f32.mrb[0].mxu0
  %v2964 = vpop.f32.mrb[0].mxu0
  %2965 = vdwg.mxu0
  %2966 = vmatprep.subr.bf16.mxu0 0
  %2967 = vmatpush1.bf16.msra.mxu0 %v1939
  %2968 = vmatprep.subr.bf16.mxu0 0
  %2969 = vmatpush1.bf16.msra.mxu0 %v1942
  %2970 = vmatprep.subr.bf16.mxu0 0
  %2971 = vmatpush1.bf16.msra.mxu0 %v1945
  %2972 = vmatprep.subr.bf16.mxu0 0
  %2973 = vmatpush1.bf16.msra.mxu0 %v1948
  %2974 = vmatprep.subr.bf16.mxu0 0
  %2975 = vmatpush1.bf16.msra.mxu0 %v1951
  %2976 = vmatprep.subr.bf16.mxu0 0
  %2977 = vmatpush1.bf16.msra.mxu0 %v1954
  %2978 = vmatprep.subr.bf16.mxu0 0
  %2979 = vmatpush1.bf16.msra.mxu0 %v1957
  %2980 = vmatprep.subr.bf16.mxu0 0
  %2981 = vmatpush1.bf16.msra.mxu0 %v1960
  %2982 = vmatprep.subr.bf16.mxu0 0
  %2983 = vmatpush1.bf16.msra.mxu0 %v1963
  %2984 = vmatprep.subr.bf16.mxu0 0
  %2985 = vmatpush1.bf16.msra.mxu0 %v1966
  %2986 = vmatprep.subr.bf16.mxu0 0
  %2987 = vmatpush1.bf16.msra.mxu0 %v1969
  %2988 = vmatprep.subr.bf16.mxu0 0
  %2989 = vmatpush1.bf16.msra.mxu0 %v1972
  %2990 = vmatprep.subr.bf16.mxu0 0
  %2991 = vmatpush1.bf16.msra.mxu0 %v1975
  %2992 = vmatprep.subr.bf16.mxu0 0
  %2993 = vmatpush1.bf16.msra.mxu0 %v1978
  %2994 = vmatprep.subr.bf16.mxu0 0
  %2995 = vmatpush1.bf16.msra.mxu0 %v1981
  %2996 = vmatprep.subr.bf16.mxu0 0
  %2997 = vmatpush1.bf16.msra.mxu0 %v1984
  %2998 = vmatprep.mubr.bf16.mxu0 %v578
  %2999 = vmatmul.mubr.bf16.gmra.mrb[0].mxu0 %v577
  %v3000 = vpop.f32.mrb[0].mxu0
  %v3001 = vadd.f32 %v2953, %v3000
  %v3002 = vpop.f32.mrb[0].mxu0
  %v3003 = vpop.f32.mrb[0].mxu0
  %v3004 = vadd.f32 %v2956, %v3003
  %v3005 = vpop.f32.mrb[0].mxu0
  %3006 = vmatprep.mubr.bf16.mxu0 %v592
  %3007 = vmatmul.mubr.bf16.gmra.mrb[0].mxu0 %v591
  %v3008 = vpop.f32.mrb[0].mxu0
  %v3009 = vadd.f32 %v2961, %v3008
  %v3010 = vpop.f32.mrb[0].mxu0
  %v3011 = vpop.f32.mrb[0].mxu0
  %v3012 = vpop.f32.mrb[0].mxu0
  %3013 = vdwg.mxu0
  %3014 = vmatprep.subr.bf16.mxu0 0
  %3015 = vmatpush1.bf16.msra.mxu0 %v1987
  %3016 = vmatprep.subr.bf16.mxu0 0
  %3017 = vmatpush1.bf16.msra.mxu0 %v1990
  %3018 = vmatprep.subr.bf16.mxu0 0
  %3019 = vmatpush1.bf16.msra.mxu0 %v1993
  %3020 = vmatprep.subr.bf16.mxu0 0
  %3021 = vmatpush1.bf16.msra.mxu0 %v1996
  %3022 = vmatprep.subr.bf16.mxu0 0
  %3023 = vmatpush1.bf16.msra.mxu0 %v1999
  %3024 = vmatprep.subr.bf16.mxu0 0
  %3025 = vmatpush1.bf16.msra.mxu0 %v2002
  %3026 = vmatprep.subr.bf16.mxu0 0
  %3027 = vmatpush1.bf16.msra.mxu0 %v2005
  %3028 = vmatprep.subr.bf16.mxu0 0
  %3029 = vmatpush1.bf16.msra.mxu0 %v2008
  %3030 = vmatprep.subr.bf16.mxu0 0
  %3031 = vmatpush1.bf16.msra.mxu0 %v2011
  %3032 = vmatprep.subr.bf16.mxu0 0
  %3033 = vmatpush1.bf16.msra.mxu0 %v2014
  %3034 = vmatprep.subr.bf16.mxu0 0
  %3035 = vmatpush1.bf16.msra.mxu0 %v2017
  %3036 = vmatprep.subr.bf16.mxu0 0
  %3037 = vmatpush1.bf16.msra.mxu0 %v2020
  %3038 = vmatprep.subr.bf16.mxu0 0
  %3039 = vmatpush1.bf16.msra.mxu0 %v2023
  %3040 = vmatprep.subr.bf16.mxu0 0
  %3041 = vmatpush1.bf16.msra.mxu0 %v2026
  %3042 = vmatprep.subr.bf16.mxu0 0
  %3043 = vmatpush1.bf16.msra.mxu0 %v2029
  %3044 = vmatprep.subr.bf16.mxu0 0
  %3045 = vmatpush1.bf16.msra.mxu0 %v2032
  %3046 = vmatprep.mubr.bf16.mxu0 %v580
  %3047 = vmatmul.mubr.bf16.gmra.mrb[0].mxu0 %v579
  %v3048 = vpop.f32.mrb[0].mxu0
  %v3049 = vadd.f32 %v3001, %v3048
  %v3050 = vpop.f32.mrb[0].mxu0
  %v3051 = vpop.f32.mrb[0].mxu0
  %v3052 = vadd.f32 %v3004, %v3051
  %v3053 = vpop.f32.mrb[0].mxu0
  %3054 = vmatprep.mubr.bf16.mxu0 %v594
  %3055 = vmatmul.mubr.bf16.gmra.mrb[0].mxu0 %v593
  %v3056 = vpop.f32.mrb[0].mxu0
  %v3057 = vadd.f32 %v3009, %v3056
  %v3058 = vpop.f32.mrb[0].mxu0
  %v3059 = vpop.f32.mrb[0].mxu0
  %v3060 = vpop.f32.mrb[0].mxu0
  %3061 = vdwg.mxu0
  %3062 = vmatprep.subr.bf16.mxu0 0
  %3063 = vmatpush1.bf16.msra.mxu0 %v2035
  %3064 = vmatprep.subr.bf16.mxu0 0
  %3065 = vmatpush1.bf16.msra.mxu0 %v2038
  %3066 = vmatprep.subr.bf16.mxu0 0
  %3067 = vmatpush1.bf16.msra.mxu0 %v2041
  %3068 = vmatprep.subr.bf16.mxu0 0
  %3069 = vmatpush1.bf16.msra.mxu0 %v2044
  %3070 = vmatprep.subr.bf16.mxu0 0
  %3071 = vmatpush1.bf16.msra.mxu0 %v2047
  %3072 = vmatprep.subr.bf16.mxu0 0
  %3073 = vmatpush1.bf16.msra.mxu0 %v2050
  %3074 = vmatprep.subr.bf16.mxu0 0
  %3075 = vmatpush1.bf16.msra.mxu0 %v2053
  %3076 = vmatprep.subr.bf16.mxu0 0
  %3077 = vmatpush1.bf16.msra.mxu0 %v2056
  %3078 = vmatprep.subr.bf16.mxu0 0
  %3079 = vmatpush1.bf16.msra.mxu0 %v2059
  %3080 = vmatprep.subr.bf16.mxu0 0
  %3081 = vmatpush1.bf16.msra.mxu0 %v2062
  %3082 = vmatprep.subr.bf16.mxu0 0
  %3083 = vmatpush1.bf16.msra.mxu0 %v2065
  %3084 = vmatprep.subr.bf16.mxu0 0
  %3085 = vmatpush1.bf16.msra.mxu0 %v2068
  %3086 = vmatprep.subr.bf16.mxu0 0
  %3087 = vmatpush1.bf16.msra.mxu0 %v2071
  %3088 = vmatprep.subr.bf16.mxu0 0
  %3089 = vmatpush1.bf16.msra.mxu0 %v2074
  %3090 = vmatprep.subr.bf16.mxu0 0
  %3091 = vmatpush1.bf16.msra.mxu0 %v2077
  %3092 = vmatprep.subr.bf16.mxu0 0
  %3093 = vmatpush1.bf16.msra.mxu0 %v2080
  %3094 = vmatprep.mubr.bf16.mxu0 %v582
  %3095 = vmatmul.mubr.bf16.gmra.mrb[0].mxu0 %v581
  %v3096 = vpop.f32.mrb[0].mxu0
  %v3097 = vadd.f32 %v3049, %v3096
  %v3098 = vpop.f32.mrb[0].mxu0
  %v3099 = vpop.f32.mrb[0].mxu0
  %v3100 = vadd.f32 %v3052, %v3099
  %v3101 = vpop.f32.mrb[0].mxu0
  %3102 = vmatprep.mubr.bf16.mxu0 %v596
  %3103 = vmatmul.mubr.bf16.gmra.mrb[0].mxu0 %v595
  %v3104 = vpop.f32.mrb[0].mxu0
  %v3105 = vadd.f32 %v3057, %v3104
  %v3106 = vpop.f32.mrb[0].mxu0
  %v3107 = vpop.f32.mrb[0].mxu0
  %v3108 = vpop.f32.mrb[0].mxu0
  %3109 = vdwg.mxu0
  %v3110 = vadd.f32 %v28, %v2758
  %v3111 = vadd.f32 %v29, %v2760
  %v3112 = vadd.f32 %v30, %v3097
  %v3113 = vadd.f32 %v31, %v2762
  %v3114 = vadd.f32 %v32, %v2764
  %v3115 = vadd.f32 %v33, %v3100
  %v3116 = vadd.f32 %v34, %v2768
  %v3117 = vadd.f32 %v35, %v2770
  %v3118 = vadd.f32 %v36, %v3105
  %3119 = vst [vmem:[#allocation2] sm:$0xff] %v3110
  %3120 = vst [vmem:[#allocation2 + $0x8] sm:$0xff] %v3111
  %3121 = vst [vmem:[#allocation2 + $0x10] sm:$0xff] %v3112
  %3122 = vst [vmem:[#allocation2 + $0x18] sm:$0xff] %v3113
  %3123 = vst [vmem:[#allocation2 + $0x20] sm:$0xff] %v3114
  %3124 = vst [vmem:[#allocation2 + $0x28] sm:$0xff] %v3115
  %3125 = vst [vmem:[#allocation2 + $0x30] sm:$0x3] %v3116
  %3126 = vst [vmem:[#allocation2 + $0x38] sm:$0x3] %v3117
  %3127 = vst [vmem:[#allocation2 + $0x40] sm:$0x3] %v3118
  // Predicated region
  $region18: #{alexnet_features.12} parent=0 // pred_check
    %p3128 = pneg %p15
  $region19: #{alexnet_features.12} parent=0 // pred_check_branch
    %3130 = sbr.rel (%p3128) target = $region21
  $region20: #{alexnet_features.12} parent=0 // pred_region
    %v3131 = vld [vmem:[#allocation2] sm:$0xff]
    %v3132 = vld [vmem:[#allocation2 + $0x8] sm:$0xff]
    %v3133 = vld [vmem:[#allocation2 + $0x10] sm:$0xff]
    %v3134 = vld [vmem:[#allocation2 + $0x18] sm:$0xff]
    %v3135 = vld [vmem:[#allocation2 + $0x20] sm:$0xff]
    %v3136 = vld [vmem:[#allocation2 + $0x28] sm:$0xff]
    %v3137 = vld [vmem:[#allocation2 + $0x30] sm:$0x3]
    %v3138 = vld [vmem:[#allocation2 + $0x38] sm:$0x3]
    %v3139 = vld [vmem:[#allocation2 + $0x40] sm:$0x3]
    %v3140 = vld [vmem:[%s2] sm:$0x7]
    %v3142 = vlaneseq
    %v3143 = vshrl.u32 %v3142, 7
    %v3144 = vsub.s32 0, %v3143
    %v3145 = vrot.slane %v3140, %v3144
    %v3146 = vlaneseq
    %v3147 = vshrl.u32 %v3146, 7
    %v3148 = vsub.s32 1, %v3147
    %v3149 = vrot.slane %v3140, %v3148
    %v3150 = vlaneseq
    %v3151 = vshrl.u32 %v3150, 7
    %v3152 = vsub.s32 2, %v3151
    %v3153 = vrot.slane %v3140, %v3152
    %v3157 = vadd.f32 %v3131, %v3145
    %v3158 = vadd.f32 %v3132, %v3149
    %v3159 = vadd.f32 %v3133, %v3153
    %v3160 = vadd.f32 %v3134, %v3145
    %v3161 = vadd.f32 %v3135, %v3149
    %v3162 = vadd.f32 %v3136, %v3153
    %v3163 = vadd.f32 %v3137, %v3145
    %v3164 = vadd.f32 %v3138, %v3149
    %v3165 = vadd.f32 %v3139, %v3153
    %v3166 = vmax.f32 %v3157, 0.0
    %v3167 = vmax.f32 %v3158, 0.0
    %v3168 = vmax.f32 %v3159, 0.0
    %v3169 = vmax.f32 %v3160, 0.0
    %v3170 = vmax.f32 %v3161, 0.0
    %v3171 = vmax.f32 %v3162, 0.0
    %v3172 = vmax.f32 %v3163, 0.0
    %v3173 = vmax.f32 %v3164, 0.0
    %v3174 = vmax.f32 %v3165, 0.0
    %3175 = vst [vmem:[%s3] sm:$0xff] %v3166
    %3176 = vst [vmem:[%s3 + $0x8] sm:$0xff] %v3167
    %3177 = vst [vmem:[%s3 + $0x10] sm:$0xff] %v3168
    %3178 = vst [vmem:[%s3 + $0x18] sm:$0xff] %v3169
    %3179 = vst [vmem:[%s3 + $0x20] sm:$0xff] %v3170
    %3180 = vst [vmem:[%s3 + $0x28] sm:$0xff] %v3171
    %3181 = vst [vmem:[%s3 + $0x30] sm:$0x3] %v3172
    %3182 = vst [vmem:[%s3 + $0x38] sm:$0x3] %v3173
    %3183 = vst [vmem:[%s3 + $0x40] sm:$0x3] %v3174
  $region21: #{alexnet_features.12} parent=0 // pred_fallthru
    _
  // Predicated region
  $region22: #{alexnet_features.12} parent=0 // pred_check
    _
  $region23: #{alexnet_features.12} parent=0 // pred_check_branch
    %3185 = sbr.rel (0) target = $region25
  $region24: #{alexnet_features.12} parent=0 // pred_region
    _
  $region25: #{alexnet_features.12} parent=0 // pred_fallthru
    _
  // Predicated region
  $region26: #{alexnet_features.12} parent=0 // pred_check
    _
  $region27: #{alexnet_features.12} parent=0 // pred_check_branch
    %3187 = sbr.rel (0) target = $region29
  $region28: #{alexnet_features.12} parent=0 // pred_region
    _
  $region29: #{alexnet_features.12} parent=0 // pred_fallthru
    _

// kernel: alexnet_features.13
$region0: #{alexnet_features.13}
  #allocation0 [shape = 'u32[]', space=smem, size = 0x4, offset = 0x4, fixed_abs, tag = 'smem constant byte address 0x4 - core index']
  #allocation1 [shape = 'u32[144,128]{1,0:T(1,128)}', space=vmem, size = 0x12000, scoped, tag = 'internal scratch']
  #allocation2 [shape = 'f32[18,256]{1,0:T(8,128)}', space=vmem, size = 0x6000, scoped, tag = 'scratch operand']
  %s0 = inlined_call_operand.vmem [shape: bf16[18,3584], index: 0, kind: input, shape index: {}]
  %s1 = inlined_call_operand.vmem [shape: bf16[3584,256], index: 1, kind: input, shape index: {}]
  %s2 = inlined_call_operand.vmem [shape: f32[1,256], index: 2, kind: input, shape index: {}]
  %s3 = inlined_call_operand.vmem [shape: f32[18,256], index: 3, kind: output, shape index: {}]
  %s4 = sld [smem:[#allocation0]]
  $region76: #{alexnet_features.13} parent=0
    _
  %s6 = ssub.s32 1, %s4
  %s7 = scalar_select 0, %s6, %s4
  $region1: #{alexnet_features.13} parent=0
    #allocation3 [shape = 'u8[172032]{0}', space=vmem, size = 0x2a000, scoped, tag = 'input window, operand 0']
    loop: start=0, step=1, limit=4
    $region2: #{alexnet_features.13} parent=1 // loop_pre_header
      _
    $region3: #{alexnet_features.13} parent=1 // loop_header
      %s9 = sphi 0, %s13
      %p10 = scmp.ge.s32.totalorder %s9, 4
      %s16 = sphi 0, %s28
      %s17 = sphi 0, %s24
      %s18 = sphi 0, %s16
      %s19 = sphi 0, %s17
      %s20 = sphi 0, %s18
      %s21 = sphi 0, %s19
      %s33 = sphi 0, %s35
      %s36 = sphi 0, %s33
      %s37 = sphi 0, %s36
      %s53 = sphi 0, %s37
      %s59 = sphi 0, %s61
      %s62 = sphi 0, %s59
      %s63 = sphi 0, %s62
      %s79 = sphi 0, %s63
      %s83 = sphi 0, %s83
      %s85 = sphi 0, %s83
      %s86 = sphi 0, %s85
      %s100 = sphi 0, %s86
      %s106 = sphi 0, %s108
      %s109 = sphi 0, %s106
      %s110 = sphi 0, %s109
      %s126 = sphi 0, %s110
    $region4: #{alexnet_features.13} parent=1 // loop_header_branch
      %12 = sbr.rel (%p10) target = $region8
    $region5: #{alexnet_features.13} parent=1 // loop_body
      %s14 = ssub.s32 %s9, 1
      %s15 = ssub.s32 %s9, 2
      %s22 = sadd.s32 1, %s17
      %p23 = scmp.ge.s32.totalorder %s22, 2
      %s24 = scalar_select %p23, 0, %s22
      %s25 = sadd.s32 1, %s16
      %s26 = scalar_select %p23, %s25, %s16
      %p27 = scmp.ge.s32.totalorder %s26, 1
      %s28 = scalar_select %p27, 0, %s26
      %s29 = ssub.s32 %s16, %s28
      %s30 = ssub.s32 %s17, %s24
      %s31 = sor.u32 %s29, %s30
      %p32 = scmp.eq.s32.totalorder %s31, 0
      %s34 = sadd.s32 %s33, 1
      %s35 = scalar_select %p32, %s33, %s34
      %p38 = pneg %p32
      %p39 = scmp.eq.s32.totalorder %s9, 1
      %p40 = por %p38, %p39
      %p41 = scmp.ne.s32.totalorder %s33, %s36
      %p42 = scmp.eq.s32.totalorder %s9, 0
      %p43 = por %p41, %p42
      %p44 = scmp.ne.s32.totalorder %s33, %s36
      %p45 = scmp.eq.s32.totalorder %s14, 1
      %p46 = por %p44, %p45
      %p47 = scmp.ne.s32.totalorder %s36, %s37
      %p48 = scmp.eq.s32.totalorder %s14, 0
      %p49 = por %p47, %p48
      %p50 = scmp.ne.s32.totalorder %s36, %s37
      %p51 = scmp.eq.s32.totalorder %s15, 1
      %p52 = por %p50, %p51
      %p54 = scmp.ne.s32.totalorder %s37, %s53
      %p55 = scmp.eq.s32.totalorder %s15, 0
      %p56 = por %p54, %p55
      %s57 = ssub.s32 %s17, %s24
      %p58 = scmp.eq.s32.totalorder %s57, 0
      %s60 = sadd.s32 %s59, 1
      %s61 = scalar_select %p58, %s59, %s60
      %p64 = pneg %p58
      %p65 = scmp.eq.s32.totalorder %s9, 1
      %p66 = por %p64, %p65
      %p67 = scmp.ne.s32.totalorder %s59, %s62
      %p68 = scmp.eq.s32.totalorder %s9, 0
      %p69 = por %p67, %p68
      %p70 = scmp.ne.s32.totalorder %s59, %s62
      %p71 = scmp.eq.s32.totalorder %s14, 1
      %p72 = por %p70, %p71
      %p73 = scmp.ne.s32.totalorder %s62, %s63
      %p74 = scmp.eq.s32.totalorder %s14, 0
      %p75 = por %p73, %p74
      %p76 = scmp.ne.s32.totalorder %s62, %s63
      %p77 = scmp.eq.s32.totalorder %s15, 1
      %p78 = por %p76, %p77
      %p80 = scmp.ne.s32.totalorder %s63, %s79
      %p81 = scmp.eq.s32.totalorder %s15, 0
      %p82 = por %p80, %p81
      %s84 = sadd.s32 %s83, 1
      %p87 = scmp.eq.s32.totalorder %s9, 1
      %p88 = scmp.ne.s32.totalorder %s83, %s85
      %p89 = scmp.eq.s32.totalorder %s9, 0
      %p90 = por %p88, %p89
      %p91 = scmp.ne.s32.totalorder %s83, %s85
      %p92 = scmp.eq.s32.totalorder %s14, 1
      %p93 = por %p91, %p92
      %p94 = scmp.ne.s32.totalorder %s85, %s86
      %p95 = scmp.eq.s32.totalorder %s14, 0
      %p96 = por %p94, %p95
      %p97 = scmp.ne.s32.totalorder %s85, %s86
      %p98 = scmp.eq.s32.totalorder %s15, 1
      %p99 = por %p97, %p98
      %p101 = scmp.ne.s32.totalorder %s86, %s100
      %p102 = scmp.eq.s32.totalorder %s15, 0
      %p103 = por %p101, %p102
      %s104 = ssub.s32 %s16, %s28
      %p105 = scmp.eq.s32.totalorder %s104, 0
      %s107 = sadd.s32 %s106, 1
      %s108 = scalar_select %p105, %s106, %s107
      %p111 = pneg %p105
      %p112 = scmp.eq.s32.totalorder %s9, 1
      %p113 = por %p111, %p112
      %p114 = scmp.ne.s32.totalorder %s106, %s109
      %p115 = scmp.eq.s32.totalorder %s9, 0
      %p116 = por %p114, %p115
      %p117 = scmp.ne.s32.totalorder %s106, %s109
      %p118 = scmp.eq.s32.totalorder %s14, 1
      %p119 = por %p117, %p118
      %p120 = scmp.ne.s32.totalorder %s109, %s110
      %p121 = scmp.eq.s32.totalorder %s14, 0
      %p122 = por %p120, %p121
      %p123 = scmp.ne.s32.totalorder %s109, %s110
      %p124 = scmp.eq.s32.totalorder %s15, 1
      %p125 = por %p123, %p124
      %p127 = scmp.ne.s32.totalorder %s110, %s126
      %p128 = scmp.eq.s32.totalorder %s15, 0
      %p129 = por %p127, %p128
      %p130 = scmp.le.s32.totalorder 1, %s9
      %p131 = scmp.lt.s32.totalorder %s9, 3
      %p132 = pnand %p130, %p131
      %p133 = pneg %p132
      // Predicated region
      $region9: #{alexnet_features.13} parent=5 // pred_check
        _
      $region10: #{alexnet_features.13} parent=5 // pred_check_branch
        %135 = sbr.rel (%p132) target = $region12
      $region11: #{alexnet_features.13} parent=5 // pred_region
        %s136 = ssub.s32 %s9, 1
        // Predicated region
        $region13: #{alexnet_features.13} parent=11 // pred_check
          %p137 = pneg %p96
        $region14: #{alexnet_features.13} parent=11 // pred_check_branch
          %139 = sbr.rel (%p137) target = $region16
        $region15: #{alexnet_features.13} parent=11 // pred_region
          _
        $region16: #{alexnet_features.13} parent=11 // pred_fallthru
          _
      $region12: #{alexnet_features.13} parent=5 // pred_fallthru
        _
      %p140 = scmp.lt.s32.totalorder %s9, 2
      // Predicated region
      $region17: #{alexnet_features.13} parent=5 // pred_check
        %p141 = pneg %p140
      $region18: #{alexnet_features.13} parent=5 // pred_check_branch
        %143 = sbr.rel (%p141) target = $region20
      $region19: #{alexnet_features.13} parent=5 // pred_region
        // Predicated region
        $region21: #{alexnet_features.13} parent=19 // pred_check
          %p144 = pneg %p43
        $region22: #{alexnet_features.13} parent=19 // pred_check_branch
          %146 = sbr.rel (%p144) target = $region24
        $region23: #{alexnet_features.13} parent=19 // pred_region
          %s147 = sand.u32 %s33, 1
          %s148 = sand.u32 %s33, 1
          %s149 = smul.addr %s148, 168
          %s150 = scalar_lea.vmem [#allocation3], %s149
          %s151 = smul.u32 3, %s16
          %s152 = smul.u32 14, %s17
          %s153 = smul.addr %s151, 28
          %s154 = sadd.s32 %s152, %s153
          %s155 = smul.addr %s154, 4
          %s156 = scalar_lea.vmem %s0, %s155
          // Predicated region
          $region25: #{alexnet_features.13} parent=23 // pred_check
            _
          $region26: #{alexnet_features.13} parent=23 // pred_check_branch
            %158 = sbr.rel (0) target = $region28
          $region27: #{alexnet_features.13} parent=23 // pred_region
            // Predicated region
            $region29: #{alexnet_features.13} parent=27 // pred_check
              _
            $region30: #{alexnet_features.13} parent=27 // pred_check_branch
              %160 = sbr.rel (0) target = $region32
            $region31: #{alexnet_features.13} parent=27 // pred_region
              loop: start=0, step=1, limit=1
              $region33: #{alexnet_features.13} parent=31 // loop_pre_header
                _
              $region34: #{alexnet_features.13} parent=31 // loop_header
                %s162 = sphi 0, %s166
                %p163 = scmp.ge.s32.totalorder %s162, 1
                %s167 = sphi %s156, %s156
                %s168 = sphi %s150, %s150
              $region35: #{alexnet_features.13} parent=31 // loop_header_branch
                %165 = sbr.rel (%p163) target = $region39
              $region36: #{alexnet_features.13} parent=31 // loop_body
                %v169 = vld [vmem:[%s167] sm:$0xff]
                %170 = vst [vmem:[%s168] sm:$0xff] %v169
                %v171 = vld [vmem:[%s167 + $0x8] sm:$0xff]
                %172 = vst [vmem:[%s168 + $0x8] sm:$0xff] %v171
                %v173 = vld [vmem:[%s167 + $0x10] sm:$0xff]
                %174 = vst [vmem:[%s168 + $0x10] sm:$0xff] %v173
                %v175 = vld [vmem:[%s167 + $0x18] sm:$0xff]
                %176 = vst [vmem:[%s168 + $0x18] sm:$0xff] %v175
                %v177 = vld [vmem:[%s167 + $0x20] sm:$0xff]
                %178 = vst [vmem:[%s168 + $0x20] sm:$0xff] %v177
                %v179 = vld [vmem:[%s167 + $0x28] sm:$0xff]
                %180 = vst [vmem:[%s168 + $0x28] sm:$0xff] %v179
                %v181 = vld [vmem:[%s167 + $0x30] sm:$0xff]
                %182 = vst [vmem:[%s168 + $0x30] sm:$0xff] %v181
                %v183 = vld [vmem:[%s167 + $0x70] sm:$0xff]
                %184 = vst [vmem:[%s168 + $0x38] sm:$0xff] %v183
                %v185 = vld [vmem:[%s167 + $0x78] sm:$0xff]
                %186 = vst [vmem:[%s168 + $0x40] sm:$0xff] %v185
                %v187 = vld [vmem:[%s167 + $0x80] sm:$0xff]
                %188 = vst [vmem:[%s168 + $0x48] sm:$0xff] %v187
                %v189 = vld [vmem:[%s167 + $0x88] sm:$0xff]
                %190 = vst [vmem:[%s168 + $0x50] sm:$0xff] %v189
                %v191 = vld [vmem:[%s167 + $0x90] sm:$0xff]
                %192 = vst [vmem:[%s168 + $0x58] sm:$0xff] %v191
                %v193 = vld [vmem:[%s167 + $0x98] sm:$0xff]
                %194 = vst [vmem:[%s168 + $0x60] sm:$0xff] %v193
                %v195 = vld [vmem:[%s167 + $0xa0] sm:$0xff]
                %196 = vst [vmem:[%s168 + $0x68] sm:$0xff] %v195
                %v197 = vld [vmem:[%s167 + $0xe0] sm:$0xff]
                %198 = vst [vmem:[%s168 + $0x70] sm:$0xff] %v197
                %v199 = vld [vmem:[%s167 + $0xe8] sm:$0xff]
                %200 = vst [vmem:[%s168 + $0x78] sm:$0xff] %v199
                %v201 = vld [vmem:[%s167 + $0xf0] sm:$0xff]
                %202 = vst [vmem:[%s168 + $0x80] sm:$0xff] %v201
                %v203 = vld [vmem:[%s167 + $0xf8] sm:$0xff]
                %204 = vst [vmem:[%s168 + $0x88] sm:$0xff] %v203
                %v205 = vld [vmem:[%s167 + $0x100] sm:$0xff]
                %206 = vst [vmem:[%s168 + $0x90] sm:$0xff] %v205
                %v207 = vld [vmem:[%s167 + $0x108] sm:$0xff]
                %208 = vst [vmem:[%s168 + $0x98] sm:$0xff] %v207
                %v209 = vld [vmem:[%s167 + $0x110] sm:$0xff]
                %210 = vst [vmem:[%s168 + $0xa0] sm:$0xff] %v209
              $region37: #{alexnet_features.13} parent=31 // loop_footer
                %s166 = sadd.s32 1, %s162
              $region38: #{alexnet_features.13} parent=31 // loop_footer_branch
                %161 = sbr.rel target = $region34
              $region39: #{alexnet_features.13} parent=31 // loop_exit
                _
            $region32: #{alexnet_features.13} parent=27 // pred_fallthru
              _
            // Predicated region
            $region40: #{alexnet_features.13} parent=27 // pred_check
              _
            $region41: #{alexnet_features.13} parent=27 // pred_check_branch
              %212 = sbr.rel target = $region43
            $region42: #{alexnet_features.13} parent=27 // pred_region
              _
            $region43: #{alexnet_features.13} parent=27 // pred_fallthru
              _
          $region28: #{alexnet_features.13} parent=23 // pred_fallthru
            _
          %213 = vnop
        $region24: #{alexnet_features.13} parent=19 // pred_fallthru
          _
        // Predicated region
        $region44: #{alexnet_features.13} parent=19 // pred_check
          %p214 = pneg %p69
        $region45: #{alexnet_features.13} parent=19 // pred_check_branch
          %216 = sbr.rel (%p214) target = $region47
        $region46: #{alexnet_features.13} parent=19 // pred_region
          %s217 = smul.u32 224, %s17
          %p218 = scmp.lt.s32.totalorder %s217, 447
          %s219 = scalar_select %p218, %s217, 447
          %s220 = smul.addr %s219, 2
          %s221 = smul.addr %s220, 4
          %s222 = scalar_lea.vmem %s1, %s221
          %s223 = smul.u32 224, %s17
        $region47: #{alexnet_features.13} parent=19 // pred_fallthru
          _
      $region20: #{alexnet_features.13} parent=5 // pred_fallthru
        _
      %p224 = scmp.le.s32.totalorder 1, %s9
      %p225 = scmp.lt.s32.totalorder %s9, 3
      %p226 = pnand %p224, %p225
      %p227 = pneg %p226
      // Predicated region
      $region48: #{alexnet_features.13} parent=5 // pred_check
        _
      $region49: #{alexnet_features.13} parent=5 // pred_check_branch
        %229 = sbr.rel (%p226) target = $region51
      $region50: #{alexnet_features.13} parent=5 // pred_region
        %s230 = ssub.s32 %s9, 1
        %s231 = sand.u32 %s36, 1
        %s232 = sand.u32 %s36, 1
        %s233 = smul.addr %s232, 168
        %s234 = scalar_lea.vmem [#allocation3], %s233
        // Predicated region
        $region52: #{alexnet_features.13} parent=50 // pred_check
          %p235 = pneg %p49
        $region53: #{alexnet_features.13} parent=50 // pred_check_branch
          %237 = sbr.rel (%p235) target = $region55
        $region54: #{alexnet_features.13} parent=50 // pred_region
          _
        $region55: #{alexnet_features.13} parent=50 // pred_fallthru
          _
        %s238 = sand.u32 %s36, 1
        %s239 = sand.u32 %s36, 1
        %s240 = smul.addr %s239, 168
        %s241 = scalar_lea.vmem [#allocation3], %s240
        %p242 = pneg %p49
        %p243 = pneg %p46
        %s244 = smul.u32 224, %s19
        %p245 = scmp.lt.s32.totalorder %s244, 447
        %s246 = scalar_select %p245, %s244, 447
        %s247 = smul.addr %s246, 2
        %s248 = smul.addr %s247, 4
        %s249 = scalar_lea.vmem %s1, %s248
        %p250 = pneg %p75
        %p251 = pneg %p72
        %p252 = pneg %p96
        %p253 = pneg %p93
        %p254 = pneg %p122
        %p255 = pneg %p119
        %s256 = smul.u32 3, %s18
        %p257 = scmp.lt.s32.totalorder %s256, 2
        %s258 = scalar_select %p257, %s256, 2
        %s259 = smul.addr %s258, 2
        %s260 = smul.addr %s259, 8
        %s261 = scalar_lea.vmem %s3, %s260
        %s262 = smul.u32 3, %s18
        %s263 = smul.u32 14, %s19
        %s264 = smul.u32 224, %s19
        %p265 = scmp.lt.s32.totalorder %s264, 447
        %s266 = scalar_select %p265, %s264, 447
        %s267 = smul.addr %s266, 2
        %s268 = smul.addr %s267, 4
        %s269 = scalar_lea.vmem %s1, %s268
        %s270 = smul.u32 224, %s19
        %s271 = smul.u32 3, %s18
        %p272 = scmp.lt.s32.totalorder %s271, 2
        %s273 = scalar_select %p272, %s271, 2
        %s274 = smul.addr %s273, 2
        %s275 = smul.addr %s274, 8
        %s276 = scalar_lea.vmem %s3, %s275
        %s277 = smul.u32 3, %s18
        %p278 = scmp.eq.s32.totalorder %s19, 0
        // Predicated region
        $region56: #{alexnet_features.13} parent=50 // pred_check
          %p279 = pneg %p278
        $region57: #{alexnet_features.13} parent=50 // pred_check_branch
          %281 = sbr.rel (%p279) target = $region59
        $region58: #{alexnet_features.13} parent=50 // pred_region
          %282 = vst [vmem:[#allocation2] sm:$0xff] 0.0
          %283 = vst [vmem:[#allocation2 + $0x8] sm:$0xff] 0.0
          %284 = vst [vmem:[#allocation2 + $0x10] sm:$0xff] 0.0
          %285 = vst [vmem:[#allocation2 + $0x18] sm:$0xff] 0.0
          %286 = vst [vmem:[#allocation2 + $0x20] sm:$0x3] 0.0
          %287 = vst [vmem:[#allocation2 + $0x28] sm:$0x3] 0.0
        $region59: #{alexnet_features.13} parent=50 // pred_fallthru
          _
        %v288 = vld [vmem:[#allocation2] sm:$0xff]
        %v289 = vld [vmem:[#allocation2 + $0x8] sm:$0xff]
        %v290 = vld [vmem:[#allocation2 + $0x10] sm:$0xff]
        %v291 = vld [vmem:[#allocation2 + $0x18] sm:$0xff]
        %v292 = vld [vmem:[#allocation2 + $0x20] sm:$0x3]
        %v293 = vld [vmem:[#allocation2 + $0x28] sm:$0x3]
        %v294 = vld [vmem:[%s234] sm:$0xff]
        %v295 = vld [vmem:[%s234 + $0x8] sm:$0xff]
        %v296 = vld [vmem:[%s234 + $0x10] sm:$0xff]
        %v297 = vld [vmem:[%s234 + $0x18] sm:$0xff]
        %v298 = vld [vmem:[%s234 + $0x20] sm:$0xff]
        %v299 = vld [vmem:[%s234 + $0x28] sm:$0xff]
        %v300 = vld [vmem:[%s234 + $0x30] sm:$0xff]
        %v301 = vld [vmem:[%s234 + $0x38] sm:$0xff]
        %v302 = vld [vmem:[%s234 + $0x40] sm:$0xff]
        %v303 = vld [vmem:[%s234 + $0x48] sm:$0xff]
        %v304 = vld [vmem:[%s234 + $0x50] sm:$0xff]
        %v305 = vld [vmem:[%s234 + $0x58] sm:$0xff]
        %v306 = vld [vmem:[%s234 + $0x60] sm:$0xff]
        %v307 = vld [vmem:[%s234 + $0x68] sm:$0xff]
        %v308 = vld [vmem:[%s234 + $0x70] sm:$0x11]
        %v309 = vld [vmem:[%s234 + $0x78] sm:$0x11]
        %v310 = vld [vmem:[%s234 + $0x80] sm:$0x11]
        %v311 = vld [vmem:[%s234 + $0x88] sm:$0x11]
        %v312 = vld [vmem:[%s234 + $0x90] sm:$0x11]
        %v313 = vld [vmem:[%s234 + $0x98] sm:$0x11]
        %v314 = vld [vmem:[%s234 + $0xa0] sm:$0x11]
        %v315 = vld [vmem:[%s269] sm:$0xff]
        %v316 = vld [vmem:[%s269 + $0x8] sm:$0xff]
        %v317 = vld [vmem:[%s269 + $0x10] sm:$0xff]
        %v318 = vld [vmem:[%s269 + $0x18] sm:$0xff]
        %v319 = vld [vmem:[%s269 + $0x20] sm:$0xff]
        %v320 = vld [vmem:[%s269 + $0x28] sm:$0xff]
        %v321 = vld [vmem:[%s269 + $0x30] sm:$0xff]
        %v322 = vld [vmem:[%s269 + $0x38] sm:$0xff]
        %v323 = vld [vmem:[%s269 + $0x40] sm:$0xff]
        %v324 = vld [vmem:[%s269 + $0x48] sm:$0xff]
        %v325 = vld [vmem:[%s269 + $0x50] sm:$0xff]
        %v326 = vld [vmem:[%s269 + $0x58] sm:$0xff]
        %v327 = vld [vmem:[%s269 + $0x60] sm:$0xff]
        %v328 = vld [vmem:[%s269 + $0x68] sm:$0xff]
        %v329 = vld [vmem:[%s269 + $0x70] sm:$0xff]
        %v330 = vld [vmem:[%s269 + $0x78] sm:$0xff]
        %v331 = vld [vmem:[%s269 + $0x80] sm:$0xff]
        %v332 = vld [vmem:[%s269 + $0x88] sm:$0xff]
        %v333 = vld [vmem:[%s269 + $0x90] sm:$0xff]
        %v334 = vld [vmem:[%s269 + $0x98] sm:$0xff]
        %v335 = vld [vmem:[%s269 + $0xa0] sm:$0xff]
        %v336 = vld [vmem:[%s269 + $0xa8] sm:$0xff]
        %v337 = vld [vmem:[%s269 + $0xb0] sm:$0xff]
        %v338 = vld [vmem:[%s269 + $0xb8] sm:$0xff]
        %v339 = vld [vmem:[%s269 + $0xc0] sm:$0xff]
        %v340 = vld [vmem:[%s269 + $0xc8] sm:$0xff]
        %v341 = vld [vmem:[%s269 + $0xd0] sm:$0xff]
        %v342 = vld [vmem:[%s269 + $0xd8] sm:$0xff]
        %v343 = vld [vmem:[%s269 + $0xe0] sm:$0xff]
        %v344 = vld [vmem:[%s269 + $0xe8] sm:$0xff]
        %v345 = vld [vmem:[%s269 + $0xf0] sm:$0xff]
        %v346 = vld [vmem:[%s269 + $0xf8] sm:$0xff]
        %v347 = vld [vmem:[%s269 + $0x100] sm:$0xff]
        %v348 = vld [vmem:[%s269 + $0x108] sm:$0xff]
        %v349 = vld [vmem:[%s269 + $0x110] sm:$0xff]
        %v350 = vld [vmem:[%s269 + $0x118] sm:$0xff]
        %v351 = vld [vmem:[%s269 + $0x120] sm:$0xff]
        %v352 = vld [vmem:[%s269 + $0x128] sm:$0xff]
        %v353 = vld [vmem:[%s269 + $0x130] sm:$0xff]
        %v354 = vld [vmem:[%s269 + $0x138] sm:$0xff]
        %v355 = vld [vmem:[%s269 + $0x140] sm:$0xff]
        %v356 = vld [vmem:[%s269 + $0x148] sm:$0xff]
        %v357 = vld [vmem:[%s269 + $0x150] sm:$0xff]
        %v358 = vld [vmem:[%s269 + $0x158] sm:$0xff]
        %v359 = vld [vmem:[%s269 + $0x160] sm:$0xff]
        %v360 = vld [vmem:[%s269 + $0x168] sm:$0xff]
        %v361 = vld [vmem:[%s269 + $0x170] sm:$0xff]
        %v362 = vld [vmem:[%s269 + $0x178] sm:$0xff]
        %v363 = vld [vmem:[%s269 + $0x180] sm:$0xff]
        %v364 = vld [vmem:[%s269 + $0x188] sm:$0xff]
        %v365 = vld [vmem:[%s269 + $0x190] sm:$0xff]
        %v366 = vld [vmem:[%s269 + $0x198] sm:$0xff]
        %v367 = vld [vmem:[%s269 + $0x1a0] sm:$0xff]
        %v368 = vld [vmem:[%s269 + $0x1a8] sm:$0xff]
        %v369 = vld [vmem:[%s269 + $0x1b0] sm:$0xff]
        %v370 = vld [vmem:[%s269 + $0x1b8] sm:$0xff]
        %v371 = vld [vmem:[%s269 + $0x1c0] sm:$0xff]
        %v372 = vld [vmem:[%s269 + $0x1c8] sm:$0xff]
        %v373 = vld [vmem:[%s269 + $0x1d0] sm:$0xff]
        %v374 = vld [vmem:[%s269 + $0x1d8] sm:$0xff]
        %v375 = vld [vmem:[%s269 + $0x1e0] sm:$0xff]
        %v376 = vld [vmem:[%s269 + $0x1e8] sm:$0xff]
        %v377 = vld [vmem:[%s269 + $0x1f0] sm:$0xff]
        %v378 = vld [vmem:[%s269 + $0x1f8] sm:$0xff]
        %v379 = vld [vmem:[%s269 + $0x200] sm:$0xff]
        %v380 = vld [vmem:[%s269 + $0x208] sm:$0xff]
        %v381 = vld [vmem:[%s269 + $0x210] sm:$0xff]
        %v382 = vld [vmem:[%s269 + $0x218] sm:$0xff]
        %v383 = vld [vmem:[%s269 + $0x220] sm:$0xff]
        %v384 = vld [vmem:[%s269 + $0x228] sm:$0xff]
        %v385 = vld [vmem:[%s269 + $0x230] sm:$0xff]
        %v386 = vld [vmem:[%s269 + $0x238] sm:$0xff]
        %v387 = vld [vmem:[%s269 + $0x240] sm:$0xff]
        %v388 = vld [vmem:[%s269 + $0x248] sm:$0xff]
        %v389 = vld [vmem:[%s269 + $0x250] sm:$0xff]
        %v390 = vld [vmem:[%s269 + $0x258] sm:$0xff]
        %v391 = vld [vmem:[%s269 + $0x260] sm:$0xff]
        %v392 = vld [vmem:[%s269 + $0x268] sm:$0xff]
        %v393 = vld [vmem:[%s269 + $0x270] sm:$0xff]
        %v394 = vld [vmem:[%s269 + $0x278] sm:$0xff]
        %v395 = vld [vmem:[%s269 + $0x280] sm:$0xff]
        %v396 = vld [vmem:[%s269 + $0x288] sm:$0xff]
        %v397 = vld [vmem:[%s269 + $0x290] sm:$0xff]
        %v398 = vld [vmem:[%s269 + $0x298] sm:$0xff]
        %v399 = vld [vmem:[%s269 + $0x2a0] sm:$0xff]
        %v400 = vld [vmem:[%s269 + $0x2a8] sm:$0xff]
        %v401 = vld [vmem:[%s269 + $0x2b0] sm:$0xff]
        %v402 = vld [vmem:[%s269 + $0x2b8] sm:$0xff]
        %v403 = vld [vmem:[%s269 + $0x2c0] sm:$0xff]
        %v404 = vld [vmem:[%s269 + $0x2c8] sm:$0xff]
        %v405 = vld [vmem:[%s269 + $0x2d0] sm:$0xff]
        %v406 = vld [vmem:[%s269 + $0x2d8] sm:$0xff]
        %v407 = vld [vmem:[%s269 + $0x2e0] sm:$0xff]
        %v408 = vld [vmem:[%s269 + $0x2e8] sm:$0xff]
        %v409 = vld [vmem:[%s269 + $0x2f0] sm:$0xff]
        %v410 = vld [vmem:[%s269 + $0x2f8] sm:$0xff]
        %v411 = vld [vmem:[%s269 + $0x300] sm:$0xff]
        %v412 = vld [vmem:[%s269 + $0x308] sm:$0xff]
        %v413 = vld [vmem:[%s269 + $0x310] sm:$0xff]
        %v414 = vld [vmem:[%s269 + $0x318] sm:$0xff]
        %v415 = vld [vmem:[%s269 + $0x320] sm:$0xff]
        %v416 = vld [vmem:[%s269 + $0x328] sm:$0xff]
        %v417 = vld [vmem:[%s269 + $0x330] sm:$0xff]
        %v418 = vld [vmem:[%s269 + $0x338] sm:$0xff]
        %v419 = vld [vmem:[%s269 + $0x340] sm:$0xff]
        %v420 = vld [vmem:[%s269 + $0x348] sm:$0xff]
        %v421 = vld [vmem:[%s269 + $0x350] sm:$0xff]
        %v422 = vld [vmem:[%s269 + $0x358] sm:$0xff]
        %v423 = vld [vmem:[%s269 + $0x360] sm:$0xff]
        %v424 = vld [vmem:[%s269 + $0x368] sm:$0xff]
        %v425 = vld [vmem:[%s269 + $0x370] sm:$0xff]
        %v426 = vld [vmem:[%s269 + $0x378] sm:$0xff]
        %v427 = vld [vmem:[%s269 + $0x380] sm:$0xff]
        %v428 = vld [vmem:[%s269 + $0x388] sm:$0xff]
        %v429 = vld [vmem:[%s269 + $0x390] sm:$0xff]
        %v430 = vld [vmem:[%s269 + $0x398] sm:$0xff]
        %v431 = vld [vmem:[%s269 + $0x3a0] sm:$0xff]
        %v432 = vld [vmem:[%s269 + $0x3a8] sm:$0xff]
        %v433 = vld [vmem:[%s269 + $0x3b0] sm:$0xff]
        %v434 = vld [vmem:[%s269 + $0x3b8] sm:$0xff]
        %v435 = vld [vmem:[%s269 + $0x3c0] sm:$0xff]
        %v436 = vld [vmem:[%s269 + $0x3c8] sm:$0xff]
        %v437 = vld [vmem:[%s269 + $0x3d0] sm:$0xff]
        %v438 = vld [vmem:[%s269 + $0x3d8] sm:$0xff]
        %v439 = vld [vmem:[%s269 + $0x3e0] sm:$0xff]
        %v440 = vld [vmem:[%s269 + $0x3e8] sm:$0xff]
        %v441 = vld [vmem:[%s269 + $0x3f0] sm:$0xff]
        %v442 = vld [vmem:[%s269 + $0x3f8] sm:$0xff]
        %v443 = vld [vmem:[%s269 + $0x400] sm:$0xff]
        %v444 = vld [vmem:[%s269 + $0x408] sm:$0xff]
        %v445 = vld [vmem:[%s269 + $0x410] sm:$0xff]
        %v446 = vld [vmem:[%s269 + $0x418] sm:$0xff]
        %v447 = vld [vmem:[%s269 + $0x420] sm:$0xff]
        %v448 = vld [vmem:[%s269 + $0x428] sm:$0xff]
        %v449 = vld [vmem:[%s269 + $0x430] sm:$0xff]
        %v450 = vld [vmem:[%s269 + $0x438] sm:$0xff]
        %v451 = vld [vmem:[%s269 + $0x440] sm:$0xff]
        %v452 = vld [vmem:[%s269 + $0x448] sm:$0xff]
        %v453 = vld [vmem:[%s269 + $0x450] sm:$0xff]
        %v454 = vld [vmem:[%s269 + $0x458] sm:$0xff]
        %v455 = vld [vmem:[%s269 + $0x460] sm:$0xff]
        %v456 = vld [vmem:[%s269 + $0x468] sm:$0xff]
        %v457 = vld [vmem:[%s269 + $0x470] sm:$0xff]
        %v458 = vld [vmem:[%s269 + $0x478] sm:$0xff]
        %v459 = vld [vmem:[%s269 + $0x480] sm:$0xff]
        %v460 = vld [vmem:[%s269 + $0x488] sm:$0xff]
        %v461 = vld [vmem:[%s269 + $0x490] sm:$0xff]
        %v462 = vld [vmem:[%s269 + $0x498] sm:$0xff]
        %v463 = vld [vmem:[%s269 + $0x4a0] sm:$0xff]
        %v464 = vld [vmem:[%s269 + $0x4a8] sm:$0xff]
        %v465 = vld [vmem:[%s269 + $0x4b0] sm:$0xff]
        %v466 = vld [vmem:[%s269 + $0x4b8] sm:$0xff]
        %v467 = vld [vmem:[%s269 + $0x4c0] sm:$0xff]
        %v468 = vld [vmem:[%s269 + $0x4c8] sm:$0xff]
        %v469 = vld [vmem:[%s269 + $0x4d0] sm:$0xff]
        %v470 = vld [vmem:[%s269 + $0x4d8] sm:$0xff]
        %v471 = vld [vmem:[%s269 + $0x4e0] sm:$0xff]
        %v472 = vld [vmem:[%s269 + $0x4e8] sm:$0xff]
        %v473 = vld [vmem:[%s269 + $0x4f0] sm:$0xff]
        %v474 = vld [vmem:[%s269 + $0x4f8] sm:$0xff]
        %v475 = vld [vmem:[%s269 + $0x500] sm:$0xff]
        %v476 = vld [vmem:[%s269 + $0x508] sm:$0xff]
        %v477 = vld [vmem:[%s269 + $0x510] sm:$0xff]
        %v478 = vld [vmem:[%s269 + $0x518] sm:$0xff]
        %v479 = vld [vmem:[%s269 + $0x520] sm:$0xff]
        %v480 = vld [vmem:[%s269 + $0x528] sm:$0xff]
        %v481 = vld [vmem:[%s269 + $0x530] sm:$0xff]
        %v482 = vld [vmem:[%s269 + $0x538] sm:$0xff]
        %v483 = vld [vmem:[%s269 + $0x540] sm:$0xff]
        %v484 = vld [vmem:[%s269 + $0x548] sm:$0xff]
        %v485 = vld [vmem:[%s269 + $0x550] sm:$0xff]
        %v486 = vld [vmem:[%s269 + $0x558] sm:$0xff]
        %v487 = vld [vmem:[%s269 + $0x560] sm:$0xff]
        %v488 = vld [vmem:[%s269 + $0x568] sm:$0xff]
        %v489 = vld [vmem:[%s269 + $0x570] sm:$0xff]
        %v490 = vld [vmem:[%s269 + $0x578] sm:$0xff]
        %v491 = vld [vmem:[%s269 + $0x580] sm:$0xff]
        %v492 = vld [vmem:[%s269 + $0x588] sm:$0xff]
        %v493 = vld [vmem:[%s269 + $0x590] sm:$0xff]
        %v494 = vld [vmem:[%s269 + $0x598] sm:$0xff]
        %v495 = vld [vmem:[%s269 + $0x5a0] sm:$0xff]
        %v496 = vld [vmem:[%s269 + $0x5a8] sm:$0xff]
        %v497 = vld [vmem:[%s269 + $0x5b0] sm:$0xff]
        %v498 = vld [vmem:[%s269 + $0x5b8] sm:$0xff]
        %v499 = vld [vmem:[%s269 + $0x5c0] sm:$0xff]
        %v500 = vld [vmem:[%s269 + $0x5c8] sm:$0xff]
        %v501 = vld [vmem:[%s269 + $0x5d0] sm:$0xff]
        %v502 = vld [vmem:[%s269 + $0x5d8] sm:$0xff]
        %v503 = vld [vmem:[%s269 + $0x5e0] sm:$0xff]
        %v504 = vld [vmem:[%s269 + $0x5e8] sm:$0xff]
        %v505 = vld [vmem:[%s269 + $0x5f0] sm:$0xff]
        %v506 = vld [vmem:[%s269 + $0x5f8] sm:$0xff]
        %v507 = vld [vmem:[%s269 + $0x600] sm:$0xff]
        %v508 = vld [vmem:[%s269 + $0x608] sm:$0xff]
        %v509 = vld [vmem:[%s269 + $0x610] sm:$0xff]
        %v510 = vld [vmem:[%s269 + $0x618] sm:$0xff]
        %v511 = vld [vmem:[%s269 + $0x620] sm:$0xff]
        %v512 = vld [vmem:[%s269 + $0x628] sm:$0xff]
        %v513 = vld [vmem:[%s269 + $0x630] sm:$0xff]
        %v514 = vld [vmem:[%s269 + $0x638] sm:$0xff]
        %v515 = vld [vmem:[%s269 + $0x640] sm:$0xff]
        %v516 = vld [vmem:[%s269 + $0x648] sm:$0xff]
        %v517 = vld [vmem:[%s269 + $0x650] sm:$0xff]
        %v518 = vld [vmem:[%s269 + $0x658] sm:$0xff]
        %v519 = vld [vmem:[%s269 + $0x660] sm:$0xff]
        %v520 = vld [vmem:[%s269 + $0x668] sm:$0xff]
        %v521 = vld [vmem:[%s269 + $0x670] sm:$0xff]
        %v522 = vld [vmem:[%s269 + $0x678] sm:$0xff]
        %v523 = vld [vmem:[%s269 + $0x680] sm:$0xff]
        %v524 = vld [vmem:[%s269 + $0x688] sm:$0xff]
        %v525 = vld [vmem:[%s269 + $0x690] sm:$0xff]
        %v526 = vld [vmem:[%s269 + $0x698] sm:$0xff]
        %v527 = vld [vmem:[%s269 + $0x6a0] sm:$0xff]
        %v528 = vld [vmem:[%s269 + $0x6a8] sm:$0xff]
        %v529 = vld [vmem:[%s269 + $0x6b0] sm:$0xff]
        %v530 = vld [vmem:[%s269 + $0x6b8] sm:$0xff]
        %v531 = vld [vmem:[%s269 + $0x6c0] sm:$0xff]
        %v532 = vld [vmem:[%s269 + $0x6c8] sm:$0xff]
        %v533 = vld [vmem:[%s269 + $0x6d0] sm:$0xff]
        %v534 = vld [vmem:[%s269 + $0x6d8] sm:$0xff]
        %v535 = vld [vmem:[%s269 + $0x6e0] sm:$0xff]
        %v536 = vld [vmem:[%s269 + $0x6e8] sm:$0xff]
        %v537 = vld [vmem:[%s269 + $0x6f0] sm:$0xff]
        %v538 = vld [vmem:[%s269 + $0x6f8] sm:$0xff]
        %v560 = vunpack.c.l.b16 %v294
        %v561 = vunpack.c.h.b16 %v294
        %v562 = vunpack.c.l.b16 %v295
        %v563 = vunpack.c.h.b16 %v295
        %v564 = vunpack.c.l.b16 %v296
        %v565 = vunpack.c.h.b16 %v296
        %v566 = vunpack.c.l.b16 %v297
        %v567 = vunpack.c.h.b16 %v297
        %v568 = vunpack.c.l.b16 %v298
        %v569 = vunpack.c.h.b16 %v298
        %v570 = vunpack.c.l.b16 %v299
        %v571 = vunpack.c.h.b16 %v299
        %v572 = vunpack.c.l.b16 %v300
        %v573 = vunpack.c.h.b16 %v300
        %v574 = vunpack.c.l.b16 %v301
        %v575 = vunpack.c.h.b16 %v301
        %v576 = vunpack.c.l.b16 %v302
        %v577 = vunpack.c.h.b16 %v302
        %v578 = vunpack.c.l.b16 %v303
        %v579 = vunpack.c.h.b16 %v303
        %v580 = vunpack.c.l.b16 %v304
        %v581 = vunpack.c.h.b16 %v304
        %v582 = vunpack.c.l.b16 %v305
        %v583 = vunpack.c.h.b16 %v305
        %v584 = vunpack.c.l.b16 %v306
        %v585 = vunpack.c.h.b16 %v306
        %v586 = vunpack.c.l.b16 %v307
        %v587 = vunpack.c.h.b16 %v307
        %v588 = vunpack.c.l.b16 %v308
        %v589 = vunpack.c.h.b16 %v308
        %v590 = vunpack.c.l.b16 %v309
        %v591 = vunpack.c.h.b16 %v309
        %v592 = vunpack.c.l.b16 %v310
        %v593 = vunpack.c.h.b16 %v310
        %v594 = vunpack.c.l.b16 %v311
        %v595 = vunpack.c.h.b16 %v311
        %v596 = vunpack.c.l.b16 %v312
        %v597 = vunpack.c.h.b16 %v312
        %v598 = vunpack.c.l.b16 %v313
        %v599 = vunpack.c.h.b16 %v313
        %v600 = vunpack.c.l.b16 %v314
        %v601 = vunpack.c.h.b16 %v314
        %v602 = vpack.c.b16 %v574, %v560
        %v603 = vpack.c.b16 %v575, %v561
        %v604 = vpack.c.b16 %v576, %v562
        %v605 = vpack.c.b16 %v577, %v563
        %v606 = vpack.c.b16 %v578, %v564
        %v607 = vpack.c.b16 %v579, %v565
        %v608 = vpack.c.b16 %v580, %v566
        %v609 = vpack.c.b16 %v581, %v567
        %v610 = vpack.c.b16 %v582, %v568
        %v611 = vpack.c.b16 %v583, %v569
        %v612 = vpack.c.b16 %v584, %v570
        %v613 = vpack.c.b16 %v585, %v571
        %v614 = vpack.c.b16 %v586, %v572
        %v615 = vpack.c.b16 %v587, %v573
        %v616 = vpack.c.b16 %v588, %v588
        %v617 = vpack.c.b16 %v589, %v589
        %v618 = vpack.c.b16 %v590, %v590
        %v619 = vpack.c.b16 %v591, %v591
        %v620 = vpack.c.b16 %v592, %v592
        %v621 = vpack.c.b16 %v593, %v593
        %v622 = vpack.c.b16 %v594, %v594
        %v623 = vpack.c.b16 %v595, %v595
        %v624 = vpack.c.b16 %v596, %v596
        %v625 = vpack.c.b16 %v597, %v597
        %v626 = vpack.c.b16 %v598, %v598
        %v627 = vpack.c.b16 %v599, %v599
        %v628 = vpack.c.b16 %v600, %v600
        %v629 = vpack.c.b16 %v601, %v601
        %v882 = vunpack.c.l.b16 %v315
        %v883 = vunpack.c.h.b16 %v315
        %v884 = vunpack.c.l.b16 %v316
        %v885 = vunpack.c.h.b16 %v316
        %v886 = vunpack.c.l.b16 %v317
        %v887 = vunpack.c.h.b16 %v317
        %v888 = vunpack.c.l.b16 %v318
        %v889 = vunpack.c.h.b16 %v318
        %v890 = vunpack.c.l.b16 %v319
        %v891 = vunpack.c.h.b16 %v319
        %v892 = vunpack.c.l.b16 %v320
        %v893 = vunpack.c.h.b16 %v320
        %v894 = vunpack.c.l.b16 %v321
        %v895 = vunpack.c.h.b16 %v321
        %v896 = vunpack.c.l.b16 %v322
        %v897 = vunpack.c.h.b16 %v322
        %v898 = vunpack.c.l.b16 %v323
        %v899 = vunpack.c.h.b16 %v323
        %v900 = vunpack.c.l.b16 %v324
        %v901 = vunpack.c.h.b16 %v324
        %v902 = vunpack.c.l.b16 %v325
        %v903 = vunpack.c.h.b16 %v325
        %v904 = vunpack.c.l.b16 %v326
        %v905 = vunpack.c.h.b16 %v326
        %v906 = vunpack.c.l.b16 %v327
        %v907 = vunpack.c.h.b16 %v327
        %v908 = vunpack.c.l.b16 %v328
        %v909 = vunpack.c.h.b16 %v328
        %v910 = vunpack.c.l.b16 %v329
        %v911 = vunpack.c.h.b16 %v329
        %v912 = vunpack.c.l.b16 %v330
        %v913 = vunpack.c.h.b16 %v330
        %v914 = vunpack.c.l.b16 %v331
        %v915 = vunpack.c.h.b16 %v331
        %v916 = vunpack.c.l.b16 %v332
        %v917 = vunpack.c.h.b16 %v332
        %v918 = vunpack.c.l.b16 %v333
        %v919 = vunpack.c.h.b16 %v333
        %v920 = vunpack.c.l.b16 %v334
        %v921 = vunpack.c.h.b16 %v334
        %v922 = vunpack.c.l.b16 %v335
        %v923 = vunpack.c.h.b16 %v335
        %v924 = vunpack.c.l.b16 %v336
        %v925 = vunpack.c.h.b16 %v336
        %v926 = vunpack.c.l.b16 %v337
        %v927 = vunpack.c.h.b16 %v337
        %v928 = vunpack.c.l.b16 %v338
        %v929 = vunpack.c.h.b16 %v338
        %v930 = vunpack.c.l.b16 %v339
        %v931 = vunpack.c.h.b16 %v339
        %v932 = vunpack.c.l.b16 %v340
        %v933 = vunpack.c.h.b16 %v340
        %v934 = vunpack.c.l.b16 %v341
        %v935 = vunpack.c.h.b16 %v341
        %v936 = vunpack.c.l.b16 %v342
        %v937 = vunpack.c.h.b16 %v342
        %v938 = vunpack.c.l.b16 %v343
        %v939 = vunpack.c.h.b16 %v343
        %v940 = vunpack.c.l.b16 %v344
        %v941 = vunpack.c.h.b16 %v344
        %v942 = vunpack.c.l.b16 %v345
        %v943 = vunpack.c.h.b16 %v345
        %v944 = vunpack.c.l.b16 %v346
        %v945 = vunpack.c.h.b16 %v346
        %v946 = vunpack.c.l.b16 %v347
        %v947 = vunpack.c.h.b16 %v347
        %v948 = vunpack.c.l.b16 %v348
        %v949 = vunpack.c.h.b16 %v348
        %v950 = vunpack.c.l.b16 %v349
        %v951 = vunpack.c.h.b16 %v349
        %v952 = vunpack.c.l.b16 %v350
        %v953 = vunpack.c.h.b16 %v350
        %v954 = vunpack.c.l.b16 %v351
        %v955 = vunpack.c.h.b16 %v351
        %v956 = vunpack.c.l.b16 %v352
        %v957 = vunpack.c.h.b16 %v352
        %v958 = vunpack.c.l.b16 %v353
        %v959 = vunpack.c.h.b16 %v353
        %v960 = vunpack.c.l.b16 %v354
        %v961 = vunpack.c.h.b16 %v354
        %v962 = vunpack.c.l.b16 %v355
        %v963 = vunpack.c.h.b16 %v355
        %v964 = vunpack.c.l.b16 %v356
        %v965 = vunpack.c.h.b16 %v356
        %v966 = vunpack.c.l.b16 %v357
        %v967 = vunpack.c.h.b16 %v357
        %v968 = vunpack.c.l.b16 %v358
        %v969 = vunpack.c.h.b16 %v358
        %v970 = vunpack.c.l.b16 %v359
        %v971 = vunpack.c.h.b16 %v359
        %v972 = vunpack.c.l.b16 %v360
        %v973 = vunpack.c.h.b16 %v360
        %v974 = vunpack.c.l.b16 %v361
        %v975 = vunpack.c.h.b16 %v361
        %v976 = vunpack.c.l.b16 %v362
        %v977 = vunpack.c.h.b16 %v362
        %v978 = vunpack.c.l.b16 %v363
        %v979 = vunpack.c.h.b16 %v363
        %v980 = vunpack.c.l.b16 %v364
        %v981 = vunpack.c.h.b16 %v364
        %v982 = vunpack.c.l.b16 %v365
        %v983 = vunpack.c.h.b16 %v365
        %v984 = vunpack.c.l.b16 %v366
        %v985 = vunpack.c.h.b16 %v366
        %v986 = vunpack.c.l.b16 %v367
        %v987 = vunpack.c.h.b16 %v367
        %v988 = vunpack.c.l.b16 %v368
        %v989 = vunpack.c.h.b16 %v368
        %v990 = vunpack.c.l.b16 %v369
        %v991 = vunpack.c.h.b16 %v369
        %v992 = vunpack.c.l.b16 %v370
        %v993 = vunpack.c.h.b16 %v370
        %v994 = vunpack.c.l.b16 %v371
        %v995 = vunpack.c.h.b16 %v371
        %v996 = vunpack.c.l.b16 %v372
        %v997 = vunpack.c.h.b16 %v372
        %v998 = vunpack.c.l.b16 %v373
        %v999 = vunpack.c.h.b16 %v373
        %v1000 = vunpack.c.l.b16 %v374
        %v1001 = vunpack.c.h.b16 %v374
        %v1002 = vunpack.c.l.b16 %v375
        %v1003 = vunpack.c.h.b16 %v375
        %v1004 = vunpack.c.l.b16 %v376
        %v1005 = vunpack.c.h.b16 %v376
        %v1006 = vunpack.c.l.b16 %v377
        %v1007 = vunpack.c.h.b16 %v377
        %v1008 = vunpack.c.l.b16 %v378
        %v1009 = vunpack.c.h.b16 %v378
        %v1010 = vunpack.c.l.b16 %v379
        %v1011 = vunpack.c.h.b16 %v379
        %v1012 = vunpack.c.l.b16 %v380
        %v1013 = vunpack.c.h.b16 %v380
        %v1014 = vunpack.c.l.b16 %v381
        %v1015 = vunpack.c.h.b16 %v381
        %v1016 = vunpack.c.l.b16 %v382
        %v1017 = vunpack.c.h.b16 %v382
        %v1018 = vunpack.c.l.b16 %v383
        %v1019 = vunpack.c.h.b16 %v383
        %v1020 = vunpack.c.l.b16 %v384
        %v1021 = vunpack.c.h.b16 %v384
        %v1022 = vunpack.c.l.b16 %v385
        %v1023 = vunpack.c.h.b16 %v385
        %v1024 = vunpack.c.l.b16 %v386
        %v1025 = vunpack.c.h.b16 %v386
        %v1026 = vunpack.c.l.b16 %v387
        %v1027 = vunpack.c.h.b16 %v387
        %v1028 = vunpack.c.l.b16 %v388
        %v1029 = vunpack.c.h.b16 %v388
        %v1030 = vunpack.c.l.b16 %v389
        %v1031 = vunpack.c.h.b16 %v389
        %v1032 = vunpack.c.l.b16 %v390
        %v1033 = vunpack.c.h.b16 %v390
        %v1034 = vunpack.c.l.b16 %v391
        %v1035 = vunpack.c.h.b16 %v391
        %v1036 = vunpack.c.l.b16 %v392
        %v1037 = vunpack.c.h.b16 %v392
        %v1038 = vunpack.c.l.b16 %v393
        %v1039 = vunpack.c.h.b16 %v393
        %v1040 = vunpack.c.l.b16 %v394
        %v1041 = vunpack.c.h.b16 %v394
        %v1042 = vunpack.c.l.b16 %v395
        %v1043 = vunpack.c.h.b16 %v395
        %v1044 = vunpack.c.l.b16 %v396
        %v1045 = vunpack.c.h.b16 %v396
        %v1046 = vunpack.c.l.b16 %v397
        %v1047 = vunpack.c.h.b16 %v397
        %v1048 = vunpack.c.l.b16 %v398
        %v1049 = vunpack.c.h.b16 %v398
        %v1050 = vunpack.c.l.b16 %v399
        %v1051 = vunpack.c.h.b16 %v399
        %v1052 = vunpack.c.l.b16 %v400
        %v1053 = vunpack.c.h.b16 %v400
        %v1054 = vunpack.c.l.b16 %v401
        %v1055 = vunpack.c.h.b16 %v401
        %v1056 = vunpack.c.l.b16 %v402
        %v1057 = vunpack.c.h.b16 %v402
        %v1058 = vunpack.c.l.b16 %v403
        %v1059 = vunpack.c.h.b16 %v403
        %v1060 = vunpack.c.l.b16 %v404
        %v1061 = vunpack.c.h.b16 %v404
        %v1062 = vunpack.c.l.b16 %v405
        %v1063 = vunpack.c.h.b16 %v405
        %v1064 = vunpack.c.l.b16 %v406
        %v1065 = vunpack.c.h.b16 %v406
        %v1066 = vunpack.c.l.b16 %v407
        %v1067 = vunpack.c.h.b16 %v407
        %v1068 = vunpack.c.l.b16 %v408
        %v1069 = vunpack.c.h.b16 %v408
        %v1070 = vunpack.c.l.b16 %v409
        %v1071 = vunpack.c.h.b16 %v409
        %v1072 = vunpack.c.l.b16 %v410
        %v1073 = vunpack.c.h.b16 %v410
        %v1074 = vunpack.c.l.b16 %v411
        %v1075 = vunpack.c.h.b16 %v411
        %v1076 = vunpack.c.l.b16 %v412
        %v1077 = vunpack.c.h.b16 %v412
        %v1078 = vunpack.c.l.b16 %v413
        %v1079 = vunpack.c.h.b16 %v413
        %v1080 = vunpack.c.l.b16 %v414
        %v1081 = vunpack.c.h.b16 %v414
        %v1082 = vunpack.c.l.b16 %v415
        %v1083 = vunpack.c.h.b16 %v415
        %v1084 = vunpack.c.l.b16 %v416
        %v1085 = vunpack.c.h.b16 %v416
        %v1086 = vunpack.c.l.b16 %v417
        %v1087 = vunpack.c.h.b16 %v417
        %v1088 = vunpack.c.l.b16 %v418
        %v1089 = vunpack.c.h.b16 %v418
        %v1090 = vunpack.c.l.b16 %v419
        %v1091 = vunpack.c.h.b16 %v419
        %v1092 = vunpack.c.l.b16 %v420
        %v1093 = vunpack.c.h.b16 %v420
        %v1094 = vunpack.c.l.b16 %v421
        %v1095 = vunpack.c.h.b16 %v421
        %v1096 = vunpack.c.l.b16 %v422
        %v1097 = vunpack.c.h.b16 %v422
        %v1098 = vunpack.c.l.b16 %v423
        %v1099 = vunpack.c.h.b16 %v423
        %v1100 = vunpack.c.l.b16 %v424
        %v1101 = vunpack.c.h.b16 %v424
        %v1102 = vunpack.c.l.b16 %v425
        %v1103 = vunpack.c.h.b16 %v425
        %v1104 = vunpack.c.l.b16 %v426
        %v1105 = vunpack.c.h.b16 %v426
        %v1106 = vunpack.c.l.b16 %v427
        %v1107 = vunpack.c.h.b16 %v427
        %v1108 = vunpack.c.l.b16 %v428
        %v1109 = vunpack.c.h.b16 %v428
        %v1110 = vunpack.c.l.b16 %v429
        %v1111 = vunpack.c.h.b16 %v429
        %v1112 = vunpack.c.l.b16 %v430
        %v1113 = vunpack.c.h.b16 %v430
        %v1114 = vunpack.c.l.b16 %v431
        %v1115 = vunpack.c.h.b16 %v431
        %v1116 = vunpack.c.l.b16 %v432
        %v1117 = vunpack.c.h.b16 %v432
        %v1118 = vunpack.c.l.b16 %v433
        %v1119 = vunpack.c.h.b16 %v433
        %v1120 = vunpack.c.l.b16 %v434
        %v1121 = vunpack.c.h.b16 %v434
        %v1122 = vunpack.c.l.b16 %v435
        %v1123 = vunpack.c.h.b16 %v435
        %v1124 = vunpack.c.l.b16 %v436
        %v1125 = vunpack.c.h.b16 %v436
        %v1126 = vunpack.c.l.b16 %v437
        %v1127 = vunpack.c.h.b16 %v437
        %v1128 = vunpack.c.l.b16 %v438
        %v1129 = vunpack.c.h.b16 %v438
        %v1130 = vunpack.c.l.b16 %v439
        %v1131 = vunpack.c.h.b16 %v439
        %v1132 = vunpack.c.l.b16 %v440
        %v1133 = vunpack.c.h.b16 %v440
        %v1134 = vunpack.c.l.b16 %v441
        %v1135 = vunpack.c.h.b16 %v441
        %v1136 = vunpack.c.l.b16 %v442
        %v1137 = vunpack.c.h.b16 %v442
        %v1138 = vunpack.c.l.b16 %v443
        %v1139 = vunpack.c.h.b16 %v443
        %v1140 = vunpack.c.l.b16 %v444
        %v1141 = vunpack.c.h.b16 %v444
        %v1142 = vunpack.c.l.b16 %v445
        %v1143 = vunpack.c.h.b16 %v445
        %v1144 = vunpack.c.l.b16 %v446
        %v1145 = vunpack.c.h.b16 %v446
        %v1146 = vunpack.c.l.b16 %v447
        %v1147 = vunpack.c.h.b16 %v447
        %v1148 = vunpack.c.l.b16 %v448
        %v1149 = vunpack.c.h.b16 %v448
        %v1150 = vunpack.c.l.b16 %v449
        %v1151 = vunpack.c.h.b16 %v449
        %v1152 = vunpack.c.l.b16 %v450
        %v1153 = vunpack.c.h.b16 %v450
        %v1154 = vunpack.c.l.b16 %v451
        %v1155 = vunpack.c.h.b16 %v451
        %v1156 = vunpack.c.l.b16 %v452
        %v1157 = vunpack.c.h.b16 %v452
        %v1158 = vunpack.c.l.b16 %v453
        %v1159 = vunpack.c.h.b16 %v453
        %v1160 = vunpack.c.l.b16 %v454
        %v1161 = vunpack.c.h.b16 %v454
        %v1162 = vunpack.c.l.b16 %v455
        %v1163 = vunpack.c.h.b16 %v455
        %v1164 = vunpack.c.l.b16 %v456
        %v1165 = vunpack.c.h.b16 %v456
        %v1166 = vunpack.c.l.b16 %v457
        %v1167 = vunpack.c.h.b16 %v457
        %v1168 = vunpack.c.l.b16 %v458
        %v1169 = vunpack.c.h.b16 %v458
        %v1170 = vunpack.c.l.b16 %v459
        %v1171 = vunpack.c.h.b16 %v459
        %v1172 = vunpack.c.l.b16 %v460
        %v1173 = vunpack.c.h.b16 %v460
        %v1174 = vunpack.c.l.b16 %v461
        %v1175 = vunpack.c.h.b16 %v461
        %v1176 = vunpack.c.l.b16 %v462
        %v1177 = vunpack.c.h.b16 %v462
        %v1178 = vunpack.c.l.b16 %v463
        %v1179 = vunpack.c.h.b16 %v463
        %v1180 = vunpack.c.l.b16 %v464
        %v1181 = vunpack.c.h.b16 %v464
        %v1182 = vunpack.c.l.b16 %v465
        %v1183 = vunpack.c.h.b16 %v465
        %v1184 = vunpack.c.l.b16 %v466
        %v1185 = vunpack.c.h.b16 %v466
        %v1186 = vunpack.c.l.b16 %v467
        %v1187 = vunpack.c.h.b16 %v467
        %v1188 = vunpack.c.l.b16 %v468
        %v1189 = vunpack.c.h.b16 %v468
        %v1190 = vunpack.c.l.b16 %v469
        %v1191 = vunpack.c.h.b16 %v469
        %v1192 = vunpack.c.l.b16 %v470
        %v1193 = vunpack.c.h.b16 %v470
        %v1194 = vunpack.c.l.b16 %v471
        %v1195 = vunpack.c.h.b16 %v471
        %v1196 = vunpack.c.l.b16 %v472
        %v1197 = vunpack.c.h.b16 %v472
        %v1198 = vunpack.c.l.b16 %v473
        %v1199 = vunpack.c.h.b16 %v473
        %v1200 = vunpack.c.l.b16 %v474
        %v1201 = vunpack.c.h.b16 %v474
        %v1202 = vunpack.c.l.b16 %v475
        %v1203 = vunpack.c.h.b16 %v475
        %v1204 = vunpack.c.l.b16 %v476
        %v1205 = vunpack.c.h.b16 %v476
        %v1206 = vunpack.c.l.b16 %v477
        %v1207 = vunpack.c.h.b16 %v477
        %v1208 = vunpack.c.l.b16 %v478
        %v1209 = vunpack.c.h.b16 %v478
        %v1210 = vunpack.c.l.b16 %v479
        %v1211 = vunpack.c.h.b16 %v479
        %v1212 = vunpack.c.l.b16 %v480
        %v1213 = vunpack.c.h.b16 %v480
        %v1214 = vunpack.c.l.b16 %v481
        %v1215 = vunpack.c.h.b16 %v481
        %v1216 = vunpack.c.l.b16 %v482
        %v1217 = vunpack.c.h.b16 %v482
        %v1218 = vunpack.c.l.b16 %v483
        %v1219 = vunpack.c.h.b16 %v483
        %v1220 = vunpack.c.l.b16 %v484
        %v1221 = vunpack.c.h.b16 %v484
        %v1222 = vunpack.c.l.b16 %v485
        %v1223 = vunpack.c.h.b16 %v485
        %v1224 = vunpack.c.l.b16 %v486
        %v1225 = vunpack.c.h.b16 %v486
        %v1226 = vunpack.c.l.b16 %v487
        %v1227 = vunpack.c.h.b16 %v487
        %v1228 = vunpack.c.l.b16 %v488
        %v1229 = vunpack.c.h.b16 %v488
        %v1230 = vunpack.c.l.b16 %v489
        %v1231 = vunpack.c.h.b16 %v489
        %v1232 = vunpack.c.l.b16 %v490
        %v1233 = vunpack.c.h.b16 %v490
        %v1234 = vunpack.c.l.b16 %v491
        %v1235 = vunpack.c.h.b16 %v491
        %v1236 = vunpack.c.l.b16 %v492
        %v1237 = vunpack.c.h.b16 %v492
        %v1238 = vunpack.c.l.b16 %v493
        %v1239 = vunpack.c.h.b16 %v493
        %v1240 = vunpack.c.l.b16 %v494
        %v1241 = vunpack.c.h.b16 %v494
        %v1242 = vunpack.c.l.b16 %v495
        %v1243 = vunpack.c.h.b16 %v495
        %v1244 = vunpack.c.l.b16 %v496
        %v1245 = vunpack.c.h.b16 %v496
        %v1246 = vunpack.c.l.b16 %v497
        %v1247 = vunpack.c.h.b16 %v497
        %v1248 = vunpack.c.l.b16 %v498
        %v1249 = vunpack.c.h.b16 %v498
        %v1250 = vunpack.c.l.b16 %v499
        %v1251 = vunpack.c.h.b16 %v499
        %v1252 = vunpack.c.l.b16 %v500
        %v1253 = vunpack.c.h.b16 %v500
        %v1254 = vunpack.c.l.b16 %v501
        %v1255 = vunpack.c.h.b16 %v501
        %v1256 = vunpack.c.l.b16 %v502
        %v1257 = vunpack.c.h.b16 %v502
        %v1258 = vunpack.c.l.b16 %v503
        %v1259 = vunpack.c.h.b16 %v503
        %v1260 = vunpack.c.l.b16 %v504
        %v1261 = vunpack.c.h.b16 %v504
        %v1262 = vunpack.c.l.b16 %v505
        %v1263 = vunpack.c.h.b16 %v505
        %v1264 = vunpack.c.l.b16 %v506
        %v1265 = vunpack.c.h.b16 %v506
        %v1266 = vunpack.c.l.b16 %v507
        %v1267 = vunpack.c.h.b16 %v507
        %v1268 = vunpack.c.l.b16 %v508
        %v1269 = vunpack.c.h.b16 %v508
        %v1270 = vunpack.c.l.b16 %v509
        %v1271 = vunpack.c.h.b16 %v509
        %v1272 = vunpack.c.l.b16 %v510
        %v1273 = vunpack.c.h.b16 %v510
        %v1274 = vunpack.c.l.b16 %v511
        %v1275 = vunpack.c.h.b16 %v511
        %v1276 = vunpack.c.l.b16 %v512
        %v1277 = vunpack.c.h.b16 %v512
        %v1278 = vunpack.c.l.b16 %v513
        %v1279 = vunpack.c.h.b16 %v513
        %v1280 = vunpack.c.l.b16 %v514
        %v1281 = vunpack.c.h.b16 %v514
        %v1282 = vunpack.c.l.b16 %v515
        %v1283 = vunpack.c.h.b16 %v515
        %v1284 = vunpack.c.l.b16 %v516
        %v1285 = vunpack.c.h.b16 %v516
        %v1286 = vunpack.c.l.b16 %v517
        %v1287 = vunpack.c.h.b16 %v517
        %v1288 = vunpack.c.l.b16 %v518
        %v1289 = vunpack.c.h.b16 %v518
        %v1290 = vunpack.c.l.b16 %v519
        %v1291 = vunpack.c.h.b16 %v519
        %v1292 = vunpack.c.l.b16 %v520
        %v1293 = vunpack.c.h.b16 %v520
        %v1294 = vunpack.c.l.b16 %v521
        %v1295 = vunpack.c.h.b16 %v521
        %v1296 = vunpack.c.l.b16 %v522
        %v1297 = vunpack.c.h.b16 %v522
        %v1298 = vunpack.c.l.b16 %v523
        %v1299 = vunpack.c.h.b16 %v523
        %v1300 = vunpack.c.l.b16 %v524
        %v1301 = vunpack.c.h.b16 %v524
        %v1302 = vunpack.c.l.b16 %v525
        %v1303 = vunpack.c.h.b16 %v525
        %v1304 = vunpack.c.l.b16 %v526
        %v1305 = vunpack.c.h.b16 %v526
        %v1306 = vunpack.c.l.b16 %v527
        %v1307 = vunpack.c.h.b16 %v527
        %v1308 = vunpack.c.l.b16 %v528
        %v1309 = vunpack.c.h.b16 %v528
        %v1310 = vunpack.c.l.b16 %v529
        %v1311 = vunpack.c.h.b16 %v529
        %v1312 = vunpack.c.l.b16 %v530
        %v1313 = vunpack.c.h.b16 %v530
        %v1314 = vunpack.c.l.b16 %v531
        %v1315 = vunpack.c.h.b16 %v531
        %v1316 = vunpack.c.l.b16 %v532
        %v1317 = vunpack.c.h.b16 %v532
        %v1318 = vunpack.c.l.b16 %v533
        %v1319 = vunpack.c.h.b16 %v533
        %v1320 = vunpack.c.l.b16 %v534
        %v1321 = vunpack.c.h.b16 %v534
        %v1322 = vunpack.c.l.b16 %v535
        %v1323 = vunpack.c.h.b16 %v535
        %v1324 = vunpack.c.l.b16 %v536
        %v1325 = vunpack.c.h.b16 %v536
        %v1326 = vunpack.c.l.b16 %v537
        %v1327 = vunpack.c.h.b16 %v537
        %v1328 = vunpack.c.l.b16 %v538
        %v1329 = vunpack.c.h.b16 %v538
        %v1330 = vpack.c.b16 %v884, %v882
        %v1331 = vpack.c.b16 %v885, %v883
        %v1332 = vpack.c.b16 %v888, %v886
        %v1333 = vpack.c.b16 %v889, %v887
        %v1334 = vpack.c.b16 %v892, %v890
        %v1335 = vpack.c.b16 %v893, %v891
        %v1336 = vpack.c.b16 %v896, %v894
        %v1337 = vpack.c.b16 %v897, %v895
        %v1338 = vpack.c.b16 %v900, %v898
        %v1339 = vpack.c.b16 %v901, %v899
        %v1340 = vpack.c.b16 %v904, %v902
        %v1341 = vpack.c.b16 %v905, %v903
        %v1342 = vpack.c.b16 %v908, %v906
        %v1343 = vpack.c.b16 %v909, %v907
        %v1344 = vpack.c.b16 %v912, %v910
        %v1345 = vpack.c.b16 %v913, %v911
        %v1346 = vpack.c.b16 %v916, %v914
        %v1347 = vpack.c.b16 %v917, %v915
        %v1348 = vpack.c.b16 %v920, %v918
        %v1349 = vpack.c.b16 %v921, %v919
        %v1350 = vpack.c.b16 %v924, %v922
        %v1351 = vpack.c.b16 %v925, %v923
        %v1352 = vpack.c.b16 %v928, %v926
        %v1353 = vpack.c.b16 %v929, %v927
        %v1354 = vpack.c.b16 %v932, %v930
        %v1355 = vpack.c.b16 %v933, %v931
        %v1356 = vpack.c.b16 %v936, %v934
        %v1357 = vpack.c.b16 %v937, %v935
        %v1358 = vpack.c.b16 %v940, %v938
        %v1359 = vpack.c.b16 %v941, %v939
        %v1360 = vpack.c.b16 %v944, %v942
        %v1361 = vpack.c.b16 %v945, %v943
        %v1362 = vpack.c.b16 %v948, %v946
        %v1363 = vpack.c.b16 %v949, %v947
        %v1364 = vpack.c.b16 %v952, %v950
        %v1365 = vpack.c.b16 %v953, %v951
        %v1366 = vpack.c.b16 %v956, %v954
        %v1367 = vpack.c.b16 %v957, %v955
        %v1368 = vpack.c.b16 %v960, %v958
        %v1369 = vpack.c.b16 %v961, %v959
        %v1370 = vpack.c.b16 %v964, %v962
        %v1371 = vpack.c.b16 %v965, %v963
        %v1372 = vpack.c.b16 %v968, %v966
        %v1373 = vpack.c.b16 %v969, %v967
        %v1374 = vpack.c.b16 %v972, %v970
        %v1375 = vpack.c.b16 %v973, %v971
        %v1376 = vpack.c.b16 %v976, %v974
        %v1377 = vpack.c.b16 %v977, %v975
        %v1378 = vpack.c.b16 %v980, %v978
        %v1379 = vpack.c.b16 %v981, %v979
        %v1380 = vpack.c.b16 %v984, %v982
        %v1381 = vpack.c.b16 %v985, %v983
        %v1382 = vpack.c.b16 %v988, %v986
        %v1383 = vpack.c.b16 %v989, %v987
        %v1384 = vpack.c.b16 %v992, %v990
        %v1385 = vpack.c.b16 %v993, %v991
        %v1386 = vpack.c.b16 %v996, %v994
        %v1387 = vpack.c.b16 %v997, %v995
        %v1388 = vpack.c.b16 %v1000, %v998
        %v1389 = vpack.c.b16 %v1001, %v999
        %v1390 = vpack.c.b16 %v1004, %v1002
        %v1391 = vpack.c.b16 %v1005, %v1003
        %v1392 = vpack.c.b16 %v1008, %v1006
        %v1393 = vpack.c.b16 %v1009, %v1007
        %v1394 = vpack.c.b16 %v1012, %v1010
        %v1395 = vpack.c.b16 %v1013, %v1011
        %v1396 = vpack.c.b16 %v1016, %v1014
        %v1397 = vpack.c.b16 %v1017, %v1015
        %v1398 = vpack.c.b16 %v1020, %v1018
        %v1399 = vpack.c.b16 %v1021, %v1019
        %v1400 = vpack.c.b16 %v1024, %v1022
        %v1401 = vpack.c.b16 %v1025, %v1023
        %v1402 = vpack.c.b16 %v1028, %v1026
        %v1403 = vpack.c.b16 %v1029, %v1027
        %v1404 = vpack.c.b16 %v1032, %v1030
        %v1405 = vpack.c.b16 %v1033, %v1031
        %v1406 = vpack.c.b16 %v1036, %v1034
        %v1407 = vpack.c.b16 %v1037, %v1035
        %v1408 = vpack.c.b16 %v1040, %v1038
        %v1409 = vpack.c.b16 %v1041, %v1039
        %v1410 = vpack.c.b16 %v1044, %v1042
        %v1411 = vpack.c.b16 %v1045, %v1043
        %v1412 = vpack.c.b16 %v1048, %v1046
        %v1413 = vpack.c.b16 %v1049, %v1047
        %v1414 = vpack.c.b16 %v1052, %v1050
        %v1415 = vpack.c.b16 %v1053, %v1051
        %v1416 = vpack.c.b16 %v1056, %v1054
        %v1417 = vpack.c.b16 %v1057, %v1055
        %v1418 = vpack.c.b16 %v1060, %v1058
        %v1419 = vpack.c.b16 %v1061, %v1059
        %v1420 = vpack.c.b16 %v1064, %v1062
        %v1421 = vpack.c.b16 %v1065, %v1063
        %v1422 = vpack.c.b16 %v1068, %v1066
        %v1423 = vpack.c.b16 %v1069, %v1067
        %v1424 = vpack.c.b16 %v1072, %v1070
        %v1425 = vpack.c.b16 %v1073, %v1071
        %v1426 = vpack.c.b16 %v1076, %v1074
        %v1427 = vpack.c.b16 %v1077, %v1075
        %v1428 = vpack.c.b16 %v1080, %v1078
        %v1429 = vpack.c.b16 %v1081, %v1079
        %v1430 = vpack.c.b16 %v1084, %v1082
        %v1431 = vpack.c.b16 %v1085, %v1083
        %v1432 = vpack.c.b16 %v1088, %v1086
        %v1433 = vpack.c.b16 %v1089, %v1087
        %v1434 = vpack.c.b16 %v1092, %v1090
        %v1435 = vpack.c.b16 %v1093, %v1091
        %v1436 = vpack.c.b16 %v1096, %v1094
        %v1437 = vpack.c.b16 %v1097, %v1095
        %v1438 = vpack.c.b16 %v1100, %v1098
        %v1439 = vpack.c.b16 %v1101, %v1099
        %v1440 = vpack.c.b16 %v1104, %v1102
        %v1441 = vpack.c.b16 %v1105, %v1103
        %v1442 = vpack.c.b16 %v1108, %v1106
        %v1443 = vpack.c.b16 %v1109, %v1107
        %v1444 = vpack.c.b16 %v1112, %v1110
        %v1445 = vpack.c.b16 %v1113, %v1111
        %v1446 = vpack.c.b16 %v1116, %v1114
        %v1447 = vpack.c.b16 %v1117, %v1115
        %v1448 = vpack.c.b16 %v1120, %v1118
        %v1449 = vpack.c.b16 %v1121, %v1119
        %v1450 = vpack.c.b16 %v1124, %v1122
        %v1451 = vpack.c.b16 %v1125, %v1123
        %v1452 = vpack.c.b16 %v1128, %v1126
        %v1453 = vpack.c.b16 %v1129, %v1127
        %v1454 = vpack.c.b16 %v1132, %v1130
        %v1455 = vpack.c.b16 %v1133, %v1131
        %v1456 = vpack.c.b16 %v1136, %v1134
        %v1457 = vpack.c.b16 %v1137, %v1135
        %v1458 = vpack.c.b16 %v1140, %v1138
        %v1459 = vpack.c.b16 %v1141, %v1139
        %v1460 = vpack.c.b16 %v1144, %v1142
        %v1461 = vpack.c.b16 %v1145, %v1143
        %v1462 = vpack.c.b16 %v1148, %v1146
        %v1463 = vpack.c.b16 %v1149, %v1147
        %v1464 = vpack.c.b16 %v1152, %v1150
        %v1465 = vpack.c.b16 %v1153, %v1151
        %v1466 = vpack.c.b16 %v1156, %v1154
        %v1467 = vpack.c.b16 %v1157, %v1155
        %v1468 = vpack.c.b16 %v1160, %v1158
        %v1469 = vpack.c.b16 %v1161, %v1159
        %v1470 = vpack.c.b16 %v1164, %v1162
        %v1471 = vpack.c.b16 %v1165, %v1163
        %v1472 = vpack.c.b16 %v1168, %v1166
        %v1473 = vpack.c.b16 %v1169, %v1167
        %v1474 = vpack.c.b16 %v1172, %v1170
        %v1475 = vpack.c.b16 %v1173, %v1171
        %v1476 = vpack.c.b16 %v1176, %v1174
        %v1477 = vpack.c.b16 %v1177, %v1175
        %v1478 = vpack.c.b16 %v1180, %v1178
        %v1479 = vpack.c.b16 %v1181, %v1179
        %v1480 = vpack.c.b16 %v1184, %v1182
        %v1481 = vpack.c.b16 %v1185, %v1183
        %v1482 = vpack.c.b16 %v1188, %v1186
        %v1483 = vpack.c.b16 %v1189, %v1187
        %v1484 = vpack.c.b16 %v1192, %v1190
        %v1485 = vpack.c.b16 %v1193, %v1191
        %v1486 = vpack.c.b16 %v1196, %v1194
        %v1487 = vpack.c.b16 %v1197, %v1195
        %v1488 = vpack.c.b16 %v1200, %v1198
        %v1489 = vpack.c.b16 %v1201, %v1199
        %v1490 = vpack.c.b16 %v1204, %v1202
        %v1491 = vpack.c.b16 %v1205, %v1203
        %v1492 = vpack.c.b16 %v1208, %v1206
        %v1493 = vpack.c.b16 %v1209, %v1207
        %v1494 = vpack.c.b16 %v1212, %v1210
        %v1495 = vpack.c.b16 %v1213, %v1211
        %v1496 = vpack.c.b16 %v1216, %v1214
        %v1497 = vpack.c.b16 %v1217, %v1215
        %v1498 = vpack.c.b16 %v1220, %v1218
        %v1499 = vpack.c.b16 %v1221, %v1219
        %v1500 = vpack.c.b16 %v1224, %v1222
        %v1501 = vpack.c.b16 %v1225, %v1223
        %v1502 = vpack.c.b16 %v1228, %v1226
        %v1503 = vpack.c.b16 %v1229, %v1227
        %v1504 = vpack.c.b16 %v1232, %v1230
        %v1505 = vpack.c.b16 %v1233, %v1231
        %v1506 = vpack.c.b16 %v1236, %v1234
        %v1507 = vpack.c.b16 %v1237, %v1235
        %v1508 = vpack.c.b16 %v1240, %v1238
        %v1509 = vpack.c.b16 %v1241, %v1239
        %v1510 = vpack.c.b16 %v1244, %v1242
        %v1511 = vpack.c.b16 %v1245, %v1243
        %v1512 = vpack.c.b16 %v1248, %v1246
        %v1513 = vpack.c.b16 %v1249, %v1247
        %v1514 = vpack.c.b16 %v1252, %v1250
        %v1515 = vpack.c.b16 %v1253, %v1251
        %v1516 = vpack.c.b16 %v1256, %v1254
        %v1517 = vpack.c.b16 %v1257, %v1255
        %v1518 = vpack.c.b16 %v1260, %v1258
        %v1519 = vpack.c.b16 %v1261, %v1259
        %v1520 = vpack.c.b16 %v1264, %v1262
        %v1521 = vpack.c.b16 %v1265, %v1263
        %v1522 = vpack.c.b16 %v1268, %v1266
        %v1523 = vpack.c.b16 %v1269, %v1267
        %v1524 = vpack.c.b16 %v1272, %v1270
        %v1525 = vpack.c.b16 %v1273, %v1271
        %v1526 = vpack.c.b16 %v1276, %v1274
        %v1527 = vpack.c.b16 %v1277, %v1275
        %v1528 = vpack.c.b16 %v1280, %v1278
        %v1529 = vpack.c.b16 %v1281, %v1279
        %v1530 = vpack.c.b16 %v1284, %v1282
        %v1531 = vpack.c.b16 %v1285, %v1283
        %v1532 = vpack.c.b16 %v1288, %v1286
        %v1533 = vpack.c.b16 %v1289, %v1287
        %v1534 = vpack.c.b16 %v1292, %v1290
        %v1535 = vpack.c.b16 %v1293, %v1291
        %v1536 = vpack.c.b16 %v1296, %v1294
        %v1537 = vpack.c.b16 %v1297, %v1295
        %v1538 = vpack.c.b16 %v1300, %v1298
        %v1539 = vpack.c.b16 %v1301, %v1299
        %v1540 = vpack.c.b16 %v1304, %v1302
        %v1541 = vpack.c.b16 %v1305, %v1303
        %v1542 = vpack.c.b16 %v1308, %v1306
        %v1543 = vpack.c.b16 %v1309, %v1307
        %v1544 = vpack.c.b16 %v1312, %v1310
        %v1545 = vpack.c.b16 %v1313, %v1311
        %v1546 = vpack.c.b16 %v1316, %v1314
        %v1547 = vpack.c.b16 %v1317, %v1315
        %v1548 = vpack.c.b16 %v1320, %v1318
        %v1549 = vpack.c.b16 %v1321, %v1319
        %v1550 = vpack.c.b16 %v1324, %v1322
        %v1551 = vpack.c.b16 %v1325, %v1323
        %v1552 = vpack.c.b16 %v1328, %v1326
        %v1553 = vpack.c.b16 %v1329, %v1327
        %1778 = vmatprep.subr.bf16.mxu0 %v1331
        %1779 = vmatpush1.bf16.msra.mxu0 %v1330
        %1780 = vmatprep.subr.bf16.mxu0 %v1333
        %1781 = vmatpush1.bf16.msra.mxu0 %v1332
        %1782 = vmatprep.subr.bf16.mxu0 %v1335
        %1783 = vmatpush1.bf16.msra.mxu0 %v1334
        %1784 = vmatprep.subr.bf16.mxu0 %v1337
        %1785 = vmatpush1.bf16.msra.mxu0 %v1336
        %1786 = vmatprep.subr.bf16.mxu0 %v1339
        %1787 = vmatpush1.bf16.msra.mxu0 %v1338
        %1788 = vmatprep.subr.bf16.mxu0 %v1341
        %1789 = vmatpush1.bf16.msra.mxu0 %v1340
        %1790 = vmatprep.subr.bf16.mxu0 %v1343
        %1791 = vmatpush1.bf16.msra.mxu0 %v1342
        %1792 = vmatprep.subr.bf16.mxu0 %v1345
        %1793 = vmatpush1.bf16.msra.mxu0 %v1344
        %1794 = vmatprep.subr.bf16.mxu0 %v1347
        %1795 = vmatpush1.bf16.msra.mxu0 %v1346
        %1796 = vmatprep.subr.bf16.mxu0 %v1349
        %1797 = vmatpush1.bf16.msra.mxu0 %v1348
        %1798 = vmatprep.subr.bf16.mxu0 %v1351
        %1799 = vmatpush1.bf16.msra.mxu0 %v1350
        %1800 = vmatprep.subr.bf16.mxu0 %v1353
        %1801 = vmatpush1.bf16.msra.mxu0 %v1352
        %1802 = vmatprep.subr.bf16.mxu0 %v1355
        %1803 = vmatpush1.bf16.msra.mxu0 %v1354
        %1804 = vmatprep.subr.bf16.mxu0 %v1357
        %1805 = vmatpush1.bf16.msra.mxu0 %v1356
        %1806 = vmatprep.subr.bf16.mxu0 %v1359
        %1807 = vmatpush1.bf16.msra.mxu0 %v1358
        %1808 = vmatprep.subr.bf16.mxu0 %v1361
        %1809 = vmatpush1.bf16.msra.mxu0 %v1360
        %1810 = vmatprep.mubr.bf16.mxu0 %v603
        %1811 = vmatmul.mubr.bf16.gmra.mrb[0].mxu0 %v602
        %v1812 = vpop.f32.mrb[0].mxu0
        %v1813 = vadd.f32 0.0, %v1812
        %v1814 = vpop.f32.mrb[0].mxu0
        %v1815 = vadd.f32 0.0, %v1814
        %v1816 = vpop.f32.mrb[0].mxu0
        %v1817 = vadd.f32 0.0, %v1816
        %v1818 = vpop.f32.mrb[0].mxu0
        %v1819 = vadd.f32 0.0, %v1818
        %1820 = vmatprep.mubr.bf16.mxu0 %v617
        %1821 = vmatmul.mubr.bf16.gmra.mrb[0].mxu0 %v616
        %v1822 = vpop.f32.mrb[0].mxu0
        %v1823 = vadd.f32 0.0, %v1822
        %v1824 = vpop.f32.mrb[0].mxu0
        %v1825 = vadd.f32 0.0, %v1824
        %v1826 = vpop.f32.mrb[0].mxu0
        %v1827 = vpop.f32.mrb[0].mxu0
        %1828 = vdwg.mxu0
        %1829 = vmatprep.subr.bf16.mxu0 %v1363
        %1830 = vmatpush1.bf16.msra.mxu0 %v1362
        %1831 = vmatprep.subr.bf16.mxu0 %v1365
        %1832 = vmatpush1.bf16.msra.mxu0 %v1364
        %1833 = vmatprep.subr.bf16.mxu0 %v1367
        %1834 = vmatpush1.bf16.msra.mxu0 %v1366
        %1835 = vmatprep.subr.bf16.mxu0 %v1369
        %1836 = vmatpush1.bf16.msra.mxu0 %v1368
        %1837 = vmatprep.subr.bf16.mxu0 %v1371
        %1838 = vmatpush1.bf16.msra.mxu0 %v1370
        %1839 = vmatprep.subr.bf16.mxu0 %v1373
        %1840 = vmatpush1.bf16.msra.mxu0 %v1372
        %1841 = vmatprep.subr.bf16.mxu0 %v1375
        %1842 = vmatpush1.bf16.msra.mxu0 %v1374
        %1843 = vmatprep.subr.bf16.mxu0 %v1377
        %1844 = vmatpush1.bf16.msra.mxu0 %v1376
        %1845 = vmatprep.subr.bf16.mxu0 %v1379
        %1846 = vmatpush1.bf16.msra.mxu0 %v1378
        %1847 = vmatprep.subr.bf16.mxu0 %v1381
        %1848 = vmatpush1.bf16.msra.mxu0 %v1380
        %1849 = vmatprep.subr.bf16.mxu0 %v1383
        %1850 = vmatpush1.bf16.msra.mxu0 %v1382
        %1851 = vmatprep.subr.bf16.mxu0 %v1385
        %1852 = vmatpush1.bf16.msra.mxu0 %v1384
        %1853 = vmatprep.subr.bf16.mxu0 %v1387
        %1854 = vmatpush1.bf16.msra.mxu0 %v1386
        %1855 = vmatprep.subr.bf16.mxu0 %v1389
        %1856 = vmatpush1.bf16.msra.mxu0 %v1388
        %1857 = vmatprep.subr.bf16.mxu0 %v1391
        %1858 = vmatpush1.bf16.msra.mxu0 %v1390
        %1859 = vmatprep.subr.bf16.mxu0 %v1393
        %1860 = vmatpush1.bf16.msra.mxu0 %v1392
        %1861 = vmatprep.mubr.bf16.mxu0 %v605
        %1862 = vmatmul.mubr.bf16.gmra.mrb[0].mxu0 %v604
        %v1863 = vpop.f32.mrb[0].mxu0
        %v1864 = vadd.f32 %v1813, %v1863
        %v1865 = vpop.f32.mrb[0].mxu0
        %v1866 = vadd.f32 %v1815, %v1865
        %v1867 = vpop.f32.mrb[0].mxu0
        %v1868 = vadd.f32 %v1817, %v1867
        %v1869 = vpop.f32.mrb[0].mxu0
        %v1870 = vadd.f32 %v1819, %v1869
        %1871 = vmatprep.mubr.bf16.mxu0 %v619
        %1872 = vmatmul.mubr.bf16.gmra.mrb[0].mxu0 %v618
        %v1873 = vpop.f32.mrb[0].mxu0
        %v1874 = vadd.f32 %v1823, %v1873
        %v1875 = vpop.f32.mrb[0].mxu0
        %v1876 = vadd.f32 %v1825, %v1875
        %v1877 = vpop.f32.mrb[0].mxu0
        %v1878 = vpop.f32.mrb[0].mxu0
        %1879 = vdwg.mxu0
        %1880 = vmatprep.subr.bf16.mxu0 %v1395
        %1881 = vmatpush1.bf16.msra.mxu0 %v1394
        %1882 = vmatprep.subr.bf16.mxu0 %v1397
        %1883 = vmatpush1.bf16.msra.mxu0 %v1396
        %1884 = vmatprep.subr.bf16.mxu0 %v1399
        %1885 = vmatpush1.bf16.msra.mxu0 %v1398
        %1886 = vmatprep.subr.bf16.mxu0 %v1401
        %1887 = vmatpush1.bf16.msra.mxu0 %v1400
        %1888 = vmatprep.subr.bf16.mxu0 %v1403
        %1889 = vmatpush1.bf16.msra.mxu0 %v1402
        %1890 = vmatprep.subr.bf16.mxu0 %v1405
        %1891 = vmatpush1.bf16.msra.mxu0 %v1404
        %1892 = vmatprep.subr.bf16.mxu0 %v1407
        %1893 = vmatpush1.bf16.msra.mxu0 %v1406
        %1894 = vmatprep.subr.bf16.mxu0 %v1409
        %1895 = vmatpush1.bf16.msra.mxu0 %v1408
        %1896 = vmatprep.subr.bf16.mxu0 %v1411
        %1897 = vmatpush1.bf16.msra.mxu0 %v1410
        %1898 = vmatprep.subr.bf16.mxu0 %v1413
        %1899 = vmatpush1.bf16.msra.mxu0 %v1412
        %1900 = vmatprep.subr.bf16.mxu0 %v1415
        %1901 = vmatpush1.bf16.msra.mxu0 %v1414
        %1902 = vmatprep.subr.bf16.mxu0 %v1417
        %1903 = vmatpush1.bf16.msra.mxu0 %v1416
        %1904 = vmatprep.subr.bf16.mxu0 %v1419
        %1905 = vmatpush1.bf16.msra.mxu0 %v1418
        %1906 = vmatprep.subr.bf16.mxu0 %v1421
        %1907 = vmatpush1.bf16.msra.mxu0 %v1420
        %1908 = vmatprep.subr.bf16.mxu0 %v1423
        %1909 = vmatpush1.bf16.msra.mxu0 %v1422
        %1910 = vmatprep.subr.bf16.mxu0 %v1425
        %1911 = vmatpush1.bf16.msra.mxu0 %v1424
        %1912 = vmatprep.mubr.bf16.mxu0 %v607
        %1913 = vmatmul.mubr.bf16.gmra.mrb[0].mxu0 %v606
        %v1914 = vpop.f32.mrb[0].mxu0
        %v1915 = vadd.f32 %v1864, %v1914
        %v1916 = vpop.f32.mrb[0].mxu0
        %v1917 = vadd.f32 %v1866, %v1916
        %v1918 = vpop.f32.mrb[0].mxu0
        %v1919 = vadd.f32 %v1868, %v1918
        %v1920 = vpop.f32.mrb[0].mxu0
        %v1921 = vadd.f32 %v1870, %v1920
        %1922 = vmatprep.mubr.bf16.mxu0 %v621
        %1923 = vmatmul.mubr.bf16.gmra.mrb[0].mxu0 %v620
        %v1924 = vpop.f32.mrb[0].mxu0
        %v1925 = vadd.f32 %v1874, %v1924
        %v1926 = vpop.f32.mrb[0].mxu0
        %v1927 = vadd.f32 %v1876, %v1926
        %v1928 = vpop.f32.mrb[0].mxu0
        %v1929 = vpop.f32.mrb[0].mxu0
        %1930 = vdwg.mxu0
        %1931 = vmatprep.subr.bf16.mxu0 %v1427
        %1932 = vmatpush1.bf16.msra.mxu0 %v1426
        %1933 = vmatprep.subr.bf16.mxu0 %v1429
        %1934 = vmatpush1.bf16.msra.mxu0 %v1428
        %1935 = vmatprep.subr.bf16.mxu0 %v1431
        %1936 = vmatpush1.bf16.msra.mxu0 %v1430
        %1937 = vmatprep.subr.bf16.mxu0 %v1433
        %1938 = vmatpush1.bf16.msra.mxu0 %v1432
        %1939 = vmatprep.subr.bf16.mxu0 %v1435
        %1940 = vmatpush1.bf16.msra.mxu0 %v1434
        %1941 = vmatprep.subr.bf16.mxu0 %v1437
        %1942 = vmatpush1.bf16.msra.mxu0 %v1436
        %1943 = vmatprep.subr.bf16.mxu0 %v1439
        %1944 = vmatpush1.bf16.msra.mxu0 %v1438
        %1945 = vmatprep.subr.bf16.mxu0 %v1441
        %1946 = vmatpush1.bf16.msra.mxu0 %v1440
        %1947 = vmatprep.subr.bf16.mxu0 %v1443
        %1948 = vmatpush1.bf16.msra.mxu0 %v1442
        %1949 = vmatprep.subr.bf16.mxu0 %v1445
        %1950 = vmatpush1.bf16.msra.mxu0 %v1444
        %1951 = vmatprep.subr.bf16.mxu0 %v1447
        %1952 = vmatpush1.bf16.msra.mxu0 %v1446
        %1953 = vmatprep.subr.bf16.mxu0 %v1449
        %1954 = vmatpush1.bf16.msra.mxu0 %v1448
        %1955 = vmatprep.subr.bf16.mxu0 %v1451
        %1956 = vmatpush1.bf16.msra.mxu0 %v1450
        %1957 = vmatprep.subr.bf16.mxu0 %v1453
        %1958 = vmatpush1.bf16.msra.mxu0 %v1452
        %1959 = vmatprep.subr.bf16.mxu0 %v1455
        %1960 = vmatpush1.bf16.msra.mxu0 %v1454
        %1961 = vmatprep.subr.bf16.mxu0 %v1457
        %1962 = vmatpush1.bf16.msra.mxu0 %v1456
        %1963 = vmatprep.mubr.bf16.mxu0 %v609
        %1964 = vmatmul.mubr.bf16.gmra.mrb[0].mxu0 %v608
        %v1965 = vpop.f32.mrb[0].mxu0
        %v1966 = vadd.f32 %v1915, %v1965
        %v1967 = vpop.f32.mrb[0].mxu0
        %v1968 = vadd.f32 %v1917, %v1967
        %v1969 = vpop.f32.mrb[0].mxu0
        %v1970 = vadd.f32 %v1919, %v1969
        %v1971 = vpop.f32.mrb[0].mxu0
        %v1972 = vadd.f32 %v1921, %v1971
        %1973 = vmatprep.mubr.bf16.mxu0 %v623
        %1974 = vmatmul.mubr.bf16.gmra.mrb[0].mxu0 %v622
        %v1975 = vpop.f32.mrb[0].mxu0
        %v1976 = vadd.f32 %v1925, %v1975
        %v1977 = vpop.f32.mrb[0].mxu0
        %v1978 = vadd.f32 %v1927, %v1977
        %v1979 = vpop.f32.mrb[0].mxu0
        %v1980 = vpop.f32.mrb[0].mxu0
        %1981 = vdwg.mxu0
        %1982 = vmatprep.subr.bf16.mxu0 %v1459
        %1983 = vmatpush1.bf16.msra.mxu0 %v1458
        %1984 = vmatprep.subr.bf16.mxu0 %v1461
        %1985 = vmatpush1.bf16.msra.mxu0 %v1460
        %1986 = vmatprep.subr.bf16.mxu0 %v1463
        %1987 = vmatpush1.bf16.msra.mxu0 %v1462
        %1988 = vmatprep.subr.bf16.mxu0 %v1465
        %1989 = vmatpush1.bf16.msra.mxu0 %v1464
        %1990 = vmatprep.subr.bf16.mxu0 %v1467
        %1991 = vmatpush1.bf16.msra.mxu0 %v1466
        %1992 = vmatprep.subr.bf16.mxu0 %v1469
        %1993 = vmatpush1.bf16.msra.mxu0 %v1468
        %1994 = vmatprep.subr.bf16.mxu0 %v1471
        %1995 = vmatpush1.bf16.msra.mxu0 %v1470
        %1996 = vmatprep.subr.bf16.mxu0 %v1473
        %1997 = vmatpush1.bf16.msra.mxu0 %v1472
        %1998 = vmatprep.subr.bf16.mxu0 %v1475
        %1999 = vmatpush1.bf16.msra.mxu0 %v1474
        %2000 = vmatprep.subr.bf16.mxu0 %v1477
        %2001 = vmatpush1.bf16.msra.mxu0 %v1476
        %2002 = vmatprep.subr.bf16.mxu0 %v1479
        %2003 = vmatpush1.bf16.msra.mxu0 %v1478
        %2004 = vmatprep.subr.bf16.mxu0 %v1481
        %2005 = vmatpush1.bf16.msra.mxu0 %v1480
        %2006 = vmatprep.subr.bf16.mxu0 %v1483
        %2007 = vmatpush1.bf16.msra.mxu0 %v1482
        %2008 = vmatprep.subr.bf16.mxu0 %v1485
        %2009 = vmatpush1.bf16.msra.mxu0 %v1484
        %2010 = vmatprep.subr.bf16.mxu0 %v1487
        %2011 = vmatpush1.bf16.msra.mxu0 %v1486
        %2012 = vmatprep.subr.bf16.mxu0 %v1489
        %2013 = vmatpush1.bf16.msra.mxu0 %v1488
        %2014 = vmatprep.mubr.bf16.mxu0 %v611
        %2015 = vmatmul.mubr.bf16.gmra.mrb[0].mxu0 %v610
        %v2016 = vpop.f32.mrb[0].mxu0
        %v2017 = vadd.f32 %v1966, %v2016
        %v2018 = vpop.f32.mrb[0].mxu0
        %v2019 = vadd.f32 %v1968, %v2018
        %v2020 = vpop.f32.mrb[0].mxu0
        %v2021 = vadd.f32 %v1970, %v2020
        %v2022 = vpop.f32.mrb[0].mxu0
        %v2023 = vadd.f32 %v1972, %v2022
        %2024 = vmatprep.mubr.bf16.mxu0 %v625
        %2025 = vmatmul.mubr.bf16.gmra.mrb[0].mxu0 %v624
        %v2026 = vpop.f32.mrb[0].mxu0
        %v2027 = vadd.f32 %v1976, %v2026
        %v2028 = vpop.f32.mrb[0].mxu0
        %v2029 = vadd.f32 %v1978, %v2028
        %v2030 = vpop.f32.mrb[0].mxu0
        %v2031 = vpop.f32.mrb[0].mxu0
        %2032 = vdwg.mxu0
        %2033 = vmatprep.subr.bf16.mxu0 %v1491
        %2034 = vmatpush1.bf16.msra.mxu0 %v1490
        %2035 = vmatprep.subr.bf16.mxu0 %v1493
        %2036 = vmatpush1.bf16.msra.mxu0 %v1492
        %2037 = vmatprep.subr.bf16.mxu0 %v1495
        %2038 = vmatpush1.bf16.msra.mxu0 %v1494
        %2039 = vmatprep.subr.bf16.mxu0 %v1497
        %2040 = vmatpush1.bf16.msra.mxu0 %v1496
        %2041 = vmatprep.subr.bf16.mxu0 %v1499
        %2042 = vmatpush1.bf16.msra.mxu0 %v1498
        %2043 = vmatprep.subr.bf16.mxu0 %v1501
        %2044 = vmatpush1.bf16.msra.mxu0 %v1500
        %2045 = vmatprep.subr.bf16.mxu0 %v1503
        %2046 = vmatpush1.bf16.msra.mxu0 %v1502
        %2047 = vmatprep.subr.bf16.mxu0 %v1505
        %2048 = vmatpush1.bf16.msra.mxu0 %v1504
        %2049 = vmatprep.subr.bf16.mxu0 %v1507
        %2050 = vmatpush1.bf16.msra.mxu0 %v1506
        %2051 = vmatprep.subr.bf16.mxu0 %v1509
        %2052 = vmatpush1.bf16.msra.mxu0 %v1508
        %2053 = vmatprep.subr.bf16.mxu0 %v1511
        %2054 = vmatpush1.bf16.msra.mxu0 %v1510
        %2055 = vmatprep.subr.bf16.mxu0 %v1513
        %2056 = vmatpush1.bf16.msra.mxu0 %v1512
        %2057 = vmatprep.subr.bf16.mxu0 %v1515
        %2058 = vmatpush1.bf16.msra.mxu0 %v1514
        %2059 = vmatprep.subr.bf16.mxu0 %v1517
        %2060 = vmatpush1.bf16.msra.mxu0 %v1516
        %2061 = vmatprep.subr.bf16.mxu0 %v1519
        %2062 = vmatpush1.bf16.msra.mxu0 %v1518
        %2063 = vmatprep.subr.bf16.mxu0 %v1521
        %2064 = vmatpush1.bf16.msra.mxu0 %v1520
        %2065 = vmatprep.mubr.bf16.mxu0 %v613
        %2066 = vmatmul.mubr.bf16.gmra.mrb[0].mxu0 %v612
        %v2067 = vpop.f32.mrb[0].mxu0
        %v2068 = vadd.f32 %v2017, %v2067
        %v2069 = vpop.f32.mrb[0].mxu0
        %v2070 = vadd.f32 %v2019, %v2069
        %v2071 = vpop.f32.mrb[0].mxu0
        %v2072 = vadd.f32 %v2021, %v2071
        %v2073 = vpop.f32.mrb[0].mxu0
        %v2074 = vadd.f32 %v2023, %v2073
        %2075 = vmatprep.mubr.bf16.mxu0 %v627
        %2076 = vmatmul.mubr.bf16.gmra.mrb[0].mxu0 %v626
        %v2077 = vpop.f32.mrb[0].mxu0
        %v2078 = vadd.f32 %v2027, %v2077
        %v2079 = vpop.f32.mrb[0].mxu0
        %v2080 = vadd.f32 %v2029, %v2079
        %v2081 = vpop.f32.mrb[0].mxu0
        %v2082 = vpop.f32.mrb[0].mxu0
        %2083 = vdwg.mxu0
        %2084 = vmatprep.subr.bf16.mxu0 %v1523
        %2085 = vmatpush1.bf16.msra.mxu0 %v1522
        %2086 = vmatprep.subr.bf16.mxu0 %v1525
        %2087 = vmatpush1.bf16.msra.mxu0 %v1524
        %2088 = vmatprep.subr.bf16.mxu0 %v1527
        %2089 = vmatpush1.bf16.msra.mxu0 %v1526
        %2090 = vmatprep.subr.bf16.mxu0 %v1529
        %2091 = vmatpush1.bf16.msra.mxu0 %v1528
        %2092 = vmatprep.subr.bf16.mxu0 %v1531
        %2093 = vmatpush1.bf16.msra.mxu0 %v1530
        %2094 = vmatprep.subr.bf16.mxu0 %v1533
        %2095 = vmatpush1.bf16.msra.mxu0 %v1532
        %2096 = vmatprep.subr.bf16.mxu0 %v1535
        %2097 = vmatpush1.bf16.msra.mxu0 %v1534
        %2098 = vmatprep.subr.bf16.mxu0 %v1537
        %2099 = vmatpush1.bf16.msra.mxu0 %v1536
        %2100 = vmatprep.subr.bf16.mxu0 %v1539
        %2101 = vmatpush1.bf16.msra.mxu0 %v1538
        %2102 = vmatprep.subr.bf16.mxu0 %v1541
        %2103 = vmatpush1.bf16.msra.mxu0 %v1540
        %2104 = vmatprep.subr.bf16.mxu0 %v1543
        %2105 = vmatpush1.bf16.msra.mxu0 %v1542
        %2106 = vmatprep.subr.bf16.mxu0 %v1545
        %2107 = vmatpush1.bf16.msra.mxu0 %v1544
        %2108 = vmatprep.subr.bf16.mxu0 %v1547
        %2109 = vmatpush1.bf16.msra.mxu0 %v1546
        %2110 = vmatprep.subr.bf16.mxu0 %v1549
        %2111 = vmatpush1.bf16.msra.mxu0 %v1548
        %2112 = vmatprep.subr.bf16.mxu0 %v1551
        %2113 = vmatpush1.bf16.msra.mxu0 %v1550
        %2114 = vmatprep.subr.bf16.mxu0 %v1553
        %2115 = vmatpush1.bf16.msra.mxu0 %v1552
        %2116 = vmatprep.mubr.bf16.mxu0 %v615
        %2117 = vmatmul.mubr.bf16.gmra.mrb[0].mxu0 %v614
        %v2118 = vpop.f32.mrb[0].mxu0
        %v2119 = vadd.f32 %v2068, %v2118
        %v2120 = vpop.f32.mrb[0].mxu0
        %v2121 = vadd.f32 %v2070, %v2120
        %v2122 = vpop.f32.mrb[0].mxu0
        %v2123 = vadd.f32 %v2072, %v2122
        %v2124 = vpop.f32.mrb[0].mxu0
        %v2125 = vadd.f32 %v2074, %v2124
        %2126 = vmatprep.mubr.bf16.mxu0 %v629
        %2127 = vmatmul.mubr.bf16.gmra.mrb[0].mxu0 %v628
        %v2128 = vpop.f32.mrb[0].mxu0
        %v2129 = vadd.f32 %v2078, %v2128
        %v2130 = vpop.f32.mrb[0].mxu0
        %v2131 = vadd.f32 %v2080, %v2130
        %v2132 = vpop.f32.mrb[0].mxu0
        %v2133 = vpop.f32.mrb[0].mxu0
        %2134 = vdwg.mxu0
        %v2135 = vadd.f32 %v288, %v2119
        %v2136 = vadd.f32 %v289, %v2121
        %v2137 = vadd.f32 %v290, %v2123
        %v2138 = vadd.f32 %v291, %v2125
        %v2139 = vadd.f32 %v292, %v2129
        %v2140 = vadd.f32 %v293, %v2131
        %2141 = vst [vmem:[#allocation2] sm:$0xff] %v2135
        %2142 = vst [vmem:[#allocation2 + $0x8] sm:$0xff] %v2136
        %2143 = vst [vmem:[#allocation2 + $0x10] sm:$0xff] %v2137
        %2144 = vst [vmem:[#allocation2 + $0x18] sm:$0xff] %v2138
        %2145 = vst [vmem:[#allocation2 + $0x20] sm:$0x3] %v2139
        %2146 = vst [vmem:[#allocation2 + $0x28] sm:$0x3] %v2140
        %p2147 = scmp.eq.s32.totalorder %s19, 1
        // Predicated region
        $region60: #{alexnet_features.13} parent=50 // pred_check
          %p2148 = pneg %p2147
        $region61: #{alexnet_features.13} parent=50 // pred_check_branch
          %2150 = sbr.rel (%p2148) target = $region63
        $region62: #{alexnet_features.13} parent=50 // pred_region
          %v2151 = vld [vmem:[#allocation2] sm:$0xff]
          %v2152 = vld [vmem:[#allocation2 + $0x8] sm:$0xff]
          %v2153 = vld [vmem:[#allocation2 + $0x10] sm:$0xff]
          %v2154 = vld [vmem:[#allocation2 + $0x18] sm:$0xff]
          %v2155 = vld [vmem:[#allocation2 + $0x20] sm:$0x3]
          %v2156 = vld [vmem:[#allocation2 + $0x28] sm:$0x3]
          %v2157 = vld [vmem:[%s2] sm:$0x3]
          %v2159 = vlaneseq
          %v2160 = vshrl.u32 %v2159, 7
          %v2161 = vsub.s32 0, %v2160
          %v2162 = vrot.slane %v2157, %v2161
          %v2163 = vlaneseq
          %v2164 = vshrl.u32 %v2163, 7
          %v2165 = vsub.s32 1, %v2164
          %v2166 = vrot.slane %v2157, %v2165
          %v2169 = vadd.f32 %v2151, %v2162
          %v2170 = vadd.f32 %v2152, %v2166
          %v2171 = vadd.f32 %v2153, %v2162
          %v2172 = vadd.f32 %v2154, %v2166
          %v2173 = vadd.f32 %v2155, %v2162
          %v2174 = vadd.f32 %v2156, %v2166
          %v2175 = vmax.f32 %v2169, 0.0
          %v2176 = vmax.f32 %v2170, 0.0
          %v2177 = vmax.f32 %v2171, 0.0
          %v2178 = vmax.f32 %v2172, 0.0
          %v2179 = vmax.f32 %v2173, 0.0
          %v2180 = vmax.f32 %v2174, 0.0
          %2181 = vst [vmem:[%s276] sm:$0xff] %v2175
          %2182 = vst [vmem:[%s276 + $0x8] sm:$0xff] %v2176
          %2183 = vst [vmem:[%s276 + $0x10] sm:$0xff] %v2177
          %2184 = vst [vmem:[%s276 + $0x18] sm:$0xff] %v2178
          %2185 = vst [vmem:[%s276 + $0x20] sm:$0x3] %v2179
          %2186 = vst [vmem:[%s276 + $0x28] sm:$0x3] %v2180
        $region63: #{alexnet_features.13} parent=50 // pred_fallthru
          _
        %s2187 = smul.u32 3, %s18
        %p2188 = scmp.lt.s32.totalorder %s2187, 2
        %s2189 = scalar_select %p2188, %s2187, 2
        %s2190 = smul.addr %s2189, 2
        %s2191 = smul.addr %s2190, 8
        %s2192 = scalar_lea.vmem %s3, %s2191
        // Predicated region
        $region64: #{alexnet_features.13} parent=50 // pred_check
          %p2193 = pneg %p119
        $region65: #{alexnet_features.13} parent=50 // pred_check_branch
          %2195 = sbr.rel (%p2193) target = $region67
        $region66: #{alexnet_features.13} parent=50 // pred_region
          %s2196 = smul.u32 3, %s18
        $region67: #{alexnet_features.13} parent=50 // pred_fallthru
          _
        // Predicated region
        $region68: #{alexnet_features.13} parent=50 // pred_check
          %p2197 = pneg %p119
        $region69: #{alexnet_features.13} parent=50 // pred_check_branch
          %2199 = sbr.rel (%p2197) target = $region71
        $region70: #{alexnet_features.13} parent=50 // pred_region
          %s2200 = smul.u32 3, %s18
          %p2201 = scmp.lt.s32.totalorder %s2200, 2
          %s2202 = scalar_select %p2201, %s2200, 2
          %s2203 = smul.addr %s2202, 2
          %s2204 = smul.addr %s2203, 8
          %s2205 = scalar_lea.vmem %s3, %s2204
        $region71: #{alexnet_features.13} parent=50 // pred_fallthru
          _
      $region51: #{alexnet_features.13} parent=5 // pred_fallthru
        _
      %p2206 = scmp.le.s32.totalorder 2, %s9
      // Predicated region
      $region72: #{alexnet_features.13} parent=5 // pred_check
        %p2207 = pneg %p2206
      $region73: #{alexnet_features.13} parent=5 // pred_check_branch
        %2209 = sbr.rel (%p2207) target = $region75
      $region74: #{alexnet_features.13} parent=5 // pred_region
        %s2210 = ssub.s32 %s9, 2
      $region75: #{alexnet_features.13} parent=5 // pred_fallthru
        _
    $region6: #{alexnet_features.13} parent=1 // loop_footer
      %s13 = sadd.s32 1, %s9
    $region7: #{alexnet_features.13} parent=1 // loop_footer_branch
      %8 = sbr.rel target = $region3
    $region8: #{alexnet_features.13} parent=1 // loop_exit
      _

// kernel: alexnet_features.14
$region0: #{alexnet_features.14}
  #allocation0 [shape = 'u32[]', space=smem, size = 0x4, offset = 0x4, fixed_abs, tag = 'smem constant byte address 0x4 - core index']
  #allocation1 [shape = 'u32[144,128]{1,0:T(1,128)}', space=vmem, size = 0x12000, scoped, tag = 'internal scratch']
  #allocation2 [shape = 'f32[18,256]{1,0:T(8,128)}', space=vmem, size = 0x6000, scoped, tag = 'scratch operand']
  %s0 = inlined_call_operand.vmem [shape: bf16[18,2304], index: 0, kind: input, shape index: {}]
  %s1 = inlined_call_operand.vmem [shape: bf16[2304,256], index: 1, kind: input, shape index: {}]
  %s2 = inlined_call_operand.vmem [shape: f32[1,256], index: 2, kind: input, shape index: {}]
  %s3 = inlined_call_operand.vmem [shape: f32[18,256], index: 3, kind: output, shape index: {}]
  %s4 = sld [smem:[#allocation0]]
  $region79: #{alexnet_features.14} parent=0
    _
  %s6 = ssub.s32 1, %s4
  %s7 = scalar_select 0, %s6, %s4
  $region1: #{alexnet_features.14} parent=0
    #allocation3 [shape = 'u8[110592]{0}', space=vmem, size = 0x1b000, scoped, tag = 'input window, operand 0']
    loop: start=0, step=1, limit=4
    $region2: #{alexnet_features.14} parent=1 // loop_pre_header
      _
    $region3: #{alexnet_features.14} parent=1 // loop_header
      %s9 = sphi 0, %s13
      %p10 = scmp.ge.s32.totalorder %s9, 4
      %s16 = sphi 0, %s28
      %s17 = sphi 0, %s24
      %s18 = sphi 0, %s16
      %s19 = sphi 0, %s17
      %s20 = sphi 0, %s18
      %s21 = sphi 0, %s19
      %s33 = sphi 0, %s35
      %s36 = sphi 0, %s33
      %s37 = sphi 0, %s36
      %s53 = sphi 0, %s37
      %s59 = sphi 0, %s61
      %s62 = sphi 0, %s59
      %s63 = sphi 0, %s62
      %s79 = sphi 0, %s63
      %s83 = sphi 0, %s83
      %s85 = sphi 0, %s83
      %s86 = sphi 0, %s85
      %s100 = sphi 0, %s86
      %s106 = sphi 0, %s108
      %s109 = sphi 0, %s106
      %s110 = sphi 0, %s109
      %s126 = sphi 0, %s110
    $region4: #{alexnet_features.14} parent=1 // loop_header_branch
      %12 = sbr.rel (%p10) target = $region8
    $region5: #{alexnet_features.14} parent=1 // loop_body
      %s14 = ssub.s32 %s9, 1
      %s15 = ssub.s32 %s9, 2
      %s22 = sadd.s32 1, %s17
      %p23 = scmp.ge.s32.totalorder %s22, 2
      %s24 = scalar_select %p23, 0, %s22
      %s25 = sadd.s32 1, %s16
      %s26 = scalar_select %p23, %s25, %s16
      %p27 = scmp.ge.s32.totalorder %s26, 1
      %s28 = scalar_select %p27, 0, %s26
      %s29 = ssub.s32 %s16, %s28
      %s30 = ssub.s32 %s17, %s24
      %s31 = sor.u32 %s29, %s30
      %p32 = scmp.eq.s32.totalorder %s31, 0
      %s34 = sadd.s32 %s33, 1
      %s35 = scalar_select %p32, %s33, %s34
      %p38 = pneg %p32
      %p39 = scmp.eq.s32.totalorder %s9, 1
      %p40 = por %p38, %p39
      %p41 = scmp.ne.s32.totalorder %s33, %s36
      %p42 = scmp.eq.s32.totalorder %s9, 0
      %p43 = por %p41, %p42
      %p44 = scmp.ne.s32.totalorder %s33, %s36
      %p45 = scmp.eq.s32.totalorder %s14, 1
      %p46 = por %p44, %p45
      %p47 = scmp.ne.s32.totalorder %s36, %s37
      %p48 = scmp.eq.s32.totalorder %s14, 0
      %p49 = por %p47, %p48
      %p50 = scmp.ne.s32.totalorder %s36, %s37
      %p51 = scmp.eq.s32.totalorder %s15, 1
      %p52 = por %p50, %p51
      %p54 = scmp.ne.s32.totalorder %s37, %s53
      %p55 = scmp.eq.s32.totalorder %s15, 0
      %p56 = por %p54, %p55
      %s57 = ssub.s32 %s17, %s24
      %p58 = scmp.eq.s32.totalorder %s57, 0
      %s60 = sadd.s32 %s59, 1
      %s61 = scalar_select %p58, %s59, %s60
      %p64 = pneg %p58
      %p65 = scmp.eq.s32.totalorder %s9, 1
      %p66 = por %p64, %p65
      %p67 = scmp.ne.s32.totalorder %s59, %s62
      %p68 = scmp.eq.s32.totalorder %s9, 0
      %p69 = por %p67, %p68
      %p70 = scmp.ne.s32.totalorder %s59, %s62
      %p71 = scmp.eq.s32.totalorder %s14, 1
      %p72 = por %p70, %p71
      %p73 = scmp.ne.s32.totalorder %s62, %s63
      %p74 = scmp.eq.s32.totalorder %s14, 0
      %p75 = por %p73, %p74
      %p76 = scmp.ne.s32.totalorder %s62, %s63
      %p77 = scmp.eq.s32.totalorder %s15, 1
      %p78 = por %p76, %p77
      %p80 = scmp.ne.s32.totalorder %s63, %s79
      %p81 = scmp.eq.s32.totalorder %s15, 0
      %p82 = por %p80, %p81
      %s84 = sadd.s32 %s83, 1
      %p87 = scmp.eq.s32.totalorder %s9, 1
      %p88 = scmp.ne.s32.totalorder %s83, %s85
      %p89 = scmp.eq.s32.totalorder %s9, 0
      %p90 = por %p88, %p89
      %p91 = scmp.ne.s32.totalorder %s83, %s85
      %p92 = scmp.eq.s32.totalorder %s14, 1
      %p93 = por %p91, %p92
      %p94 = scmp.ne.s32.totalorder %s85, %s86
      %p95 = scmp.eq.s32.totalorder %s14, 0
      %p96 = por %p94, %p95
      %p97 = scmp.ne.s32.totalorder %s85, %s86
      %p98 = scmp.eq.s32.totalorder %s15, 1
      %p99 = por %p97, %p98
      %p101 = scmp.ne.s32.totalorder %s86, %s100
      %p102 = scmp.eq.s32.totalorder %s15, 0
      %p103 = por %p101, %p102
      %s104 = ssub.s32 %s16, %s28
      %p105 = scmp.eq.s32.totalorder %s104, 0
      %s107 = sadd.s32 %s106, 1
      %s108 = scalar_select %p105, %s106, %s107
      %p111 = pneg %p105
      %p112 = scmp.eq.s32.totalorder %s9, 1
      %p113 = por %p111, %p112
      %p114 = scmp.ne.s32.totalorder %s106, %s109
      %p115 = scmp.eq.s32.totalorder %s9, 0
      %p116 = por %p114, %p115
      %p117 = scmp.ne.s32.totalorder %s106, %s109
      %p118 = scmp.eq.s32.totalorder %s14, 1
      %p119 = por %p117, %p118
      %p120 = scmp.ne.s32.totalorder %s109, %s110
      %p121 = scmp.eq.s32.totalorder %s14, 0
      %p122 = por %p120, %p121
      %p123 = scmp.ne.s32.totalorder %s109, %s110
      %p124 = scmp.eq.s32.totalorder %s15, 1
      %p125 = por %p123, %p124
      %p127 = scmp.ne.s32.totalorder %s110, %s126
      %p128 = scmp.eq.s32.totalorder %s15, 0
      %p129 = por %p127, %p128
      %p130 = scmp.le.s32.totalorder 1, %s9
      %p131 = scmp.lt.s32.totalorder %s9, 3
      %p132 = pnand %p130, %p131
      %p133 = pneg %p132
      // Predicated region
      $region9: #{alexnet_features.14} parent=5 // pred_check
        _
      $region10: #{alexnet_features.14} parent=5 // pred_check_branch
        %135 = sbr.rel (%p132) target = $region12
      $region11: #{alexnet_features.14} parent=5 // pred_region
        %s136 = ssub.s32 %s9, 1
        // Predicated region
        $region13: #{alexnet_features.14} parent=11 // pred_check
          %p137 = pneg %p96
        $region14: #{alexnet_features.14} parent=11 // pred_check_branch
          %139 = sbr.rel (%p137) target = $region16
        $region15: #{alexnet_features.14} parent=11 // pred_region
          _
        $region16: #{alexnet_features.14} parent=11 // pred_fallthru
          _
      $region12: #{alexnet_features.14} parent=5 // pred_fallthru
        _
      %p140 = scmp.lt.s32.totalorder %s9, 2
      // Predicated region
      $region17: #{alexnet_features.14} parent=5 // pred_check
        %p141 = pneg %p140
      $region18: #{alexnet_features.14} parent=5 // pred_check_branch
        %143 = sbr.rel (%p141) target = $region20
      $region19: #{alexnet_features.14} parent=5 // pred_region
        // Predicated region
        $region21: #{alexnet_features.14} parent=19 // pred_check
          %p144 = pneg %p43
        $region22: #{alexnet_features.14} parent=19 // pred_check_branch
          %146 = sbr.rel (%p144) target = $region24
        $region23: #{alexnet_features.14} parent=19 // pred_region
          %s147 = sand.u32 %s33, 1
          %s148 = sand.u32 %s33, 1
          %s149 = smul.addr %s148, 108
          %s150 = scalar_lea.vmem [#allocation3], %s149
          %s151 = smul.u32 3, %s16
          %s152 = smul.u32 9, %s17
          %s153 = smul.addr %s151, 18
          %s154 = sadd.s32 %s152, %s153
          %s155 = smul.addr %s154, 4
          %s156 = scalar_lea.vmem %s0, %s155
          // Predicated region
          $region25: #{alexnet_features.14} parent=23 // pred_check
            _
          $region26: #{alexnet_features.14} parent=23 // pred_check_branch
            %158 = sbr.rel (0) target = $region28
          $region27: #{alexnet_features.14} parent=23 // pred_region
            // Predicated region
            $region29: #{alexnet_features.14} parent=27 // pred_check
              _
            $region30: #{alexnet_features.14} parent=27 // pred_check_branch
              %160 = sbr.rel (0) target = $region32
            $region31: #{alexnet_features.14} parent=27 // pred_region
              %s161 = scalar_lea.vmem %s156, 32
              %s162 = scalar_lea.vmem %s150, 32 [#allocation3]
              loop: start=0, step=1, limit=1
              $region33: #{alexnet_features.14} parent=31 // loop_pre_header
                _
              $region34: #{alexnet_features.14} parent=31 // loop_header
                %s164 = sphi 0, %s168
                %p165 = scmp.ge.s32.totalorder %s164, 1
                %s169 = sphi %s156, %s156
                %s170 = sphi %s150, %s150
              $region35: #{alexnet_features.14} parent=31 // loop_header_branch
                %167 = sbr.rel (%p165) target = $region39
              $region36: #{alexnet_features.14} parent=31 // loop_body
                %v171 = vld [vmem:[%s169] sm:$0xff]
                %172 = vst [vmem:[%s170] sm:$0xff] %v171
                %v173 = vld [vmem:[%s169 + $0x8] sm:$0xff]
                %174 = vst [vmem:[%s170 + $0x8] sm:$0xff] %v173
                %v175 = vld [vmem:[%s169 + $0x10] sm:$0xff]
                %176 = vst [vmem:[%s170 + $0x10] sm:$0xff] %v175
                %v177 = vld [vmem:[%s169 + $0x18] sm:$0xff]
                %178 = vst [vmem:[%s170 + $0x18] sm:$0xff] %v177
                %v179 = vld [vmem:[%s169 + $0x48] sm:$0xff]
                %180 = vst [vmem:[%s170 + $0x24] sm:$0xff] %v179
                %v181 = vld [vmem:[%s169 + $0x50] sm:$0xff]
                %182 = vst [vmem:[%s170 + $0x2c] sm:$0xff] %v181
                %v183 = vld [vmem:[%s169 + $0x58] sm:$0xff]
                %184 = vst [vmem:[%s170 + $0x34] sm:$0xff] %v183
                %v185 = vld [vmem:[%s169 + $0x60] sm:$0xff]
                %186 = vst [vmem:[%s170 + $0x3c] sm:$0xff] %v185
                %v187 = vld [vmem:[%s169 + $0x90] sm:$0xff]
                %188 = vst [vmem:[%s170 + $0x48] sm:$0xff] %v187
                %v189 = vld [vmem:[%s169 + $0x98] sm:$0xff]
                %190 = vst [vmem:[%s170 + $0x50] sm:$0xff] %v189
                %v191 = vld [vmem:[%s169 + $0xa0] sm:$0xff]
                %192 = vst [vmem:[%s170 + $0x58] sm:$0xff] %v191
                %v193 = vld [vmem:[%s169 + $0xa8] sm:$0xff]
                %194 = vst [vmem:[%s170 + $0x60] sm:$0xff] %v193
              $region37: #{alexnet_features.14} parent=31 // loop_footer
                %s168 = sadd.s32 1, %s164
              $region38: #{alexnet_features.14} parent=31 // loop_footer_branch
                %163 = sbr.rel target = $region34
              $region39: #{alexnet_features.14} parent=31 // loop_exit
                _
              loop: start=0, step=1, limit=1
              $region40: #{alexnet_features.14} parent=31 // loop_pre_header
                _
              $region41: #{alexnet_features.14} parent=31 // loop_header
                %s197 = sphi 0, %s201
                %p198 = scmp.ge.s32.totalorder %s197, 1
                %s202 = sphi %s161, %s161
                %s203 = sphi %s162, %s162
              $region42: #{alexnet_features.14} parent=31 // loop_header_branch
                %200 = sbr.rel (%p198) target = $region46
              $region43: #{alexnet_features.14} parent=31 // loop_body
                %v204 = vld [vmem:[%s202] sm:$0xf]
                %205 = vst [vmem:[%s203] sm:$0xf] %v204
                %v206 = vld [vmem:[%s202 + $0x48] sm:$0xf]
                %207 = vst [vmem:[%s203 + $0x24] sm:$0xf] %v206
                %v208 = vld [vmem:[%s202 + $0x90] sm:$0xf]
                %209 = vst [vmem:[%s203 + $0x48] sm:$0xf] %v208
              $region44: #{alexnet_features.14} parent=31 // loop_footer
                %s201 = sadd.s32 1, %s197
              $region45: #{alexnet_features.14} parent=31 // loop_footer_branch
                %196 = sbr.rel target = $region41
              $region46: #{alexnet_features.14} parent=31 // loop_exit
                _
            $region32: #{alexnet_features.14} parent=27 // pred_fallthru
              _
          $region28: #{alexnet_features.14} parent=23 // pred_fallthru
            _
          %210 = vnop
        $region24: #{alexnet_features.14} parent=19 // pred_fallthru
          _
        // Predicated region
        $region47: #{alexnet_features.14} parent=19 // pred_check
          %p211 = pneg %p69
        $region48: #{alexnet_features.14} parent=19 // pred_check_branch
          %213 = sbr.rel (%p211) target = $region50
        $region49: #{alexnet_features.14} parent=19 // pred_region
          %s214 = smul.u32 144, %s17
          %p215 = scmp.lt.s32.totalorder %s214, 287
          %s216 = scalar_select %p215, %s214, 287
          %s217 = smul.addr %s216, 2
          %s218 = smul.addr %s217, 4
          %s219 = scalar_lea.vmem %s1, %s218
          %s220 = smul.u32 144, %s17
        $region50: #{alexnet_features.14} parent=19 // pred_fallthru
          _
      $region20: #{alexnet_features.14} parent=5 // pred_fallthru
        _
      %p221 = scmp.le.s32.totalorder 1, %s9
      %p222 = scmp.lt.s32.totalorder %s9, 3
      %p223 = pnand %p221, %p222
      %p224 = pneg %p223
      // Predicated region
      $region51: #{alexnet_features.14} parent=5 // pred_check
        _
      $region52: #{alexnet_features.14} parent=5 // pred_check_branch
        %226 = sbr.rel (%p223) target = $region54
      $region53: #{alexnet_features.14} parent=5 // pred_region
        %s227 = ssub.s32 %s9, 1
        %s228 = sand.u32 %s36, 1
        %s229 = sand.u32 %s36, 1
        %s230 = smul.addr %s229, 108
        %s231 = scalar_lea.vmem [#allocation3], %s230
        // Predicated region
        $region55: #{alexnet_features.14} parent=53 // pred_check
          %p232 = pneg %p49
        $region56: #{alexnet_features.14} parent=53 // pred_check_branch
          %234 = sbr.rel (%p232) target = $region58
        $region57: #{alexnet_features.14} parent=53 // pred_region
          _
        $region58: #{alexnet_features.14} parent=53 // pred_fallthru
          _
        %s235 = sand.u32 %s36, 1
        %s236 = sand.u32 %s36, 1
        %s237 = smul.addr %s236, 108
        %s238 = scalar_lea.vmem [#allocation3], %s237
        %p239 = pneg %p49
        %p240 = pneg %p46
        %s241 = smul.u32 144, %s19
        %p242 = scmp.lt.s32.totalorder %s241, 287
        %s243 = scalar_select %p242, %s241, 287
        %s244 = smul.addr %s243, 2
        %s245 = smul.addr %s244, 4
        %s246 = scalar_lea.vmem %s1, %s245
        %p247 = pneg %p75
        %p248 = pneg %p72
        %p249 = pneg %p96
        %p250 = pneg %p93
        %p251 = pneg %p122
        %p252 = pneg %p119
        %s253 = smul.u32 3, %s18
        %p254 = scmp.lt.s32.totalorder %s253, 2
        %s255 = scalar_select %p254, %s253, 2
        %s256 = smul.addr %s255, 2
        %s257 = smul.addr %s256, 8
        %s258 = scalar_lea.vmem %s3, %s257
        %s259 = smul.u32 3, %s18
        %s260 = smul.u32 9, %s19
        %s261 = smul.u32 144, %s19
        %p262 = scmp.lt.s32.totalorder %s261, 287
        %s263 = scalar_select %p262, %s261, 287
        %s264 = smul.addr %s263, 2
        %s265 = smul.addr %s264, 4
        %s266 = scalar_lea.vmem %s1, %s265
        %s267 = smul.u32 144, %s19
        %s268 = smul.u32 3, %s18
        %p269 = scmp.lt.s32.totalorder %s268, 2
        %s270 = scalar_select %p269, %s268, 2
        %s271 = smul.addr %s270, 2
        %s272 = smul.addr %s271, 8
        %s273 = scalar_lea.vmem %s3, %s272
        %s274 = smul.u32 3, %s18
        %p276 = scmp.eq.s32.totalorder %s19, 0
        // Predicated region
        $region59: #{alexnet_features.14} parent=53 // pred_check
          %p277 = pneg %p276
        $region60: #{alexnet_features.14} parent=53 // pred_check_branch
          %279 = sbr.rel (%p277) target = $region62
        $region61: #{alexnet_features.14} parent=53 // pred_region
          %280 = vst [vmem:[#allocation2] sm:$0xff] 0.0
          %281 = vst [vmem:[#allocation2 + $0x8] sm:$0xff] 0.0
          %282 = vst [vmem:[#allocation2 + $0x10] sm:$0xff] 0.0
          %283 = vst [vmem:[#allocation2 + $0x18] sm:$0xff] 0.0
          %284 = vst [vmem:[#allocation2 + $0x20] sm:$0x3] 0.0
          %285 = vst [vmem:[#allocation2 + $0x28] sm:$0x3] 0.0
        $region62: #{alexnet_features.14} parent=53 // pred_fallthru
          _
        %v286 = vld [vmem:[#allocation2] sm:$0xff]
        %v287 = vld [vmem:[#allocation2 + $0x8] sm:$0xff]
        %v288 = vld [vmem:[#allocation2 + $0x10] sm:$0xff]
        %v289 = vld [vmem:[#allocation2 + $0x18] sm:$0xff]
        %v290 = vld [vmem:[#allocation2 + $0x20] sm:$0x3]
        %v291 = vld [vmem:[#allocation2 + $0x28] sm:$0x3]
        %v292 = vld [vmem:[%s231] sm:$0xff]
        %v293 = vld [vmem:[%s231 + $0x8] sm:$0xff]
        %v294 = vld [vmem:[%s231 + $0x10] sm:$0xff]
        %v295 = vld [vmem:[%s231 + $0x18] sm:$0xff]
        %v296 = vld [vmem:[%s231 + $0x20] sm:$0xf]
        %v297 = vld [vmem:[%s231 + $0x24] sm:$0xff]
        %v298 = vld [vmem:[%s231 + $0x2c] sm:$0xff]
        %v299 = vld [vmem:[%s231 + $0x34] sm:$0xff]
        %v300 = vld [vmem:[%s231 + $0x3c] sm:$0xff]
        %v301 = vld [vmem:[%s231 + $0x44] sm:$0xf]
        %v302 = vld [vmem:[%s231 + $0x48] sm:$0x11]
        %v303 = vld [vmem:[%s231 + $0x50] sm:$0x11]
        %v304 = vld [vmem:[%s231 + $0x58] sm:$0x11]
        %v305 = vld [vmem:[%s231 + $0x60] sm:$0x11]
        %v306 = vld [vmem:[%s231 + $0x68] sm:$0x1]
        %v307 = vld [vmem:[%s266] sm:$0xff]
        %v308 = vld [vmem:[%s266 + $0x8] sm:$0xff]
        %v309 = vld [vmem:[%s266 + $0x10] sm:$0xff]
        %v310 = vld [vmem:[%s266 + $0x18] sm:$0xff]
        %v311 = vld [vmem:[%s266 + $0x20] sm:$0xff]
        %v312 = vld [vmem:[%s266 + $0x28] sm:$0xff]
        %v313 = vld [vmem:[%s266 + $0x30] sm:$0xff]
        %v314 = vld [vmem:[%s266 + $0x38] sm:$0xff]
        %v315 = vld [vmem:[%s266 + $0x40] sm:$0xff]
        %v316 = vld [vmem:[%s266 + $0x48] sm:$0xff]
        %v317 = vld [vmem:[%s266 + $0x50] sm:$0xff]
        %v318 = vld [vmem:[%s266 + $0x58] sm:$0xff]
        %v319 = vld [vmem:[%s266 + $0x60] sm:$0xff]
        %v320 = vld [vmem:[%s266 + $0x68] sm:$0xff]
        %v321 = vld [vmem:[%s266 + $0x70] sm:$0xff]
        %v322 = vld [vmem:[%s266 + $0x78] sm:$0xff]
        %v323 = vld [vmem:[%s266 + $0x80] sm:$0xff]
        %v324 = vld [vmem:[%s266 + $0x88] sm:$0xff]
        %v325 = vld [vmem:[%s266 + $0x90] sm:$0xff]
        %v326 = vld [vmem:[%s266 + $0x98] sm:$0xff]
        %v327 = vld [vmem:[%s266 + $0xa0] sm:$0xff]
        %v328 = vld [vmem:[%s266 + $0xa8] sm:$0xff]
        %v329 = vld [vmem:[%s266 + $0xb0] sm:$0xff]
        %v330 = vld [vmem:[%s266 + $0xb8] sm:$0xff]
        %v331 = vld [vmem:[%s266 + $0xc0] sm:$0xff]
        %v332 = vld [vmem:[%s266 + $0xc8] sm:$0xff]
        %v333 = vld [vmem:[%s266 + $0xd0] sm:$0xff]
        %v334 = vld [vmem:[%s266 + $0xd8] sm:$0xff]
        %v335 = vld [vmem:[%s266 + $0xe0] sm:$0xff]
        %v336 = vld [vmem:[%s266 + $0xe8] sm:$0xff]
        %v337 = vld [vmem:[%s266 + $0xf0] sm:$0xff]
        %v338 = vld [vmem:[%s266 + $0xf8] sm:$0xff]
        %v339 = vld [vmem:[%s266 + $0x100] sm:$0xff]
        %v340 = vld [vmem:[%s266 + $0x108] sm:$0xff]
        %v341 = vld [vmem:[%s266 + $0x110] sm:$0xff]
        %v342 = vld [vmem:[%s266 + $0x118] sm:$0xff]
        %v343 = vld [vmem:[%s266 + $0x120] sm:$0xff]
        %v344 = vld [vmem:[%s266 + $0x128] sm:$0xff]
        %v345 = vld [vmem:[%s266 + $0x130] sm:$0xff]
        %v346 = vld [vmem:[%s266 + $0x138] sm:$0xff]
        %v347 = vld [vmem:[%s266 + $0x140] sm:$0xff]
        %v348 = vld [vmem:[%s266 + $0x148] sm:$0xff]
        %v349 = vld [vmem:[%s266 + $0x150] sm:$0xff]
        %v350 = vld [vmem:[%s266 + $0x158] sm:$0xff]
        %v351 = vld [vmem:[%s266 + $0x160] sm:$0xff]
        %v352 = vld [vmem:[%s266 + $0x168] sm:$0xff]
        %v353 = vld [vmem:[%s266 + $0x170] sm:$0xff]
        %v354 = vld [vmem:[%s266 + $0x178] sm:$0xff]
        %v355 = vld [vmem:[%s266 + $0x180] sm:$0xff]
        %v356 = vld [vmem:[%s266 + $0x188] sm:$0xff]
        %v357 = vld [vmem:[%s266 + $0x190] sm:$0xff]
        %v358 = vld [vmem:[%s266 + $0x198] sm:$0xff]
        %v359 = vld [vmem:[%s266 + $0x1a0] sm:$0xff]
        %v360 = vld [vmem:[%s266 + $0x1a8] sm:$0xff]
        %v361 = vld [vmem:[%s266 + $0x1b0] sm:$0xff]
        %v362 = vld [vmem:[%s266 + $0x1b8] sm:$0xff]
        %v363 = vld [vmem:[%s266 + $0x1c0] sm:$0xff]
        %v364 = vld [vmem:[%s266 + $0x1c8] sm:$0xff]
        %v365 = vld [vmem:[%s266 + $0x1d0] sm:$0xff]
        %v366 = vld [vmem:[%s266 + $0x1d8] sm:$0xff]
        %v367 = vld [vmem:[%s266 + $0x1e0] sm:$0xff]
        %v368 = vld [vmem:[%s266 + $0x1e8] sm:$0xff]
        %v369 = vld [vmem:[%s266 + $0x1f0] sm:$0xff]
        %v370 = vld [vmem:[%s266 + $0x1f8] sm:$0xff]
        %v371 = vld [vmem:[%s266 + $0x200] sm:$0xff]
        %v372 = vld [vmem:[%s266 + $0x208] sm:$0xff]
        %v373 = vld [vmem:[%s266 + $0x210] sm:$0xff]
        %v374 = vld [vmem:[%s266 + $0x218] sm:$0xff]
        %v375 = vld [vmem:[%s266 + $0x220] sm:$0xff]
        %v376 = vld [vmem:[%s266 + $0x228] sm:$0xff]
        %v377 = vld [vmem:[%s266 + $0x230] sm:$0xff]
        %v378 = vld [vmem:[%s266 + $0x238] sm:$0xff]
        %v379 = vld [vmem:[%s266 + $0x240] sm:$0xff]
        %v380 = vld [vmem:[%s266 + $0x248] sm:$0xff]
        %v381 = vld [vmem:[%s266 + $0x250] sm:$0xff]
        %v382 = vld [vmem:[%s266 + $0x258] sm:$0xff]
        %v383 = vld [vmem:[%s266 + $0x260] sm:$0xff]
        %v384 = vld [vmem:[%s266 + $0x268] sm:$0xff]
        %v385 = vld [vmem:[%s266 + $0x270] sm:$0xff]
        %v386 = vld [vmem:[%s266 + $0x278] sm:$0xff]
        %v387 = vld [vmem:[%s266 + $0x280] sm:$0xff]
        %v388 = vld [vmem:[%s266 + $0x288] sm:$0xff]
        %v389 = vld [vmem:[%s266 + $0x290] sm:$0xff]
        %v390 = vld [vmem:[%s266 + $0x298] sm:$0xff]
        %v391 = vld [vmem:[%s266 + $0x2a0] sm:$0xff]
        %v392 = vld [vmem:[%s266 + $0x2a8] sm:$0xff]
        %v393 = vld [vmem:[%s266 + $0x2b0] sm:$0xff]
        %v394 = vld [vmem:[%s266 + $0x2b8] sm:$0xff]
        %v395 = vld [vmem:[%s266 + $0x2c0] sm:$0xff]
        %v396 = vld [vmem:[%s266 + $0x2c8] sm:$0xff]
        %v397 = vld [vmem:[%s266 + $0x2d0] sm:$0xff]
        %v398 = vld [vmem:[%s266 + $0x2d8] sm:$0xff]
        %v399 = vld [vmem:[%s266 + $0x2e0] sm:$0xff]
        %v400 = vld [vmem:[%s266 + $0x2e8] sm:$0xff]
        %v401 = vld [vmem:[%s266 + $0x2f0] sm:$0xff]
        %v402 = vld [vmem:[%s266 + $0x2f8] sm:$0xff]
        %v403 = vld [vmem:[%s266 + $0x300] sm:$0xff]
        %v404 = vld [vmem:[%s266 + $0x308] sm:$0xff]
        %v405 = vld [vmem:[%s266 + $0x310] sm:$0xff]
        %v406 = vld [vmem:[%s266 + $0x318] sm:$0xff]
        %v407 = vld [vmem:[%s266 + $0x320] sm:$0xff]
        %v408 = vld [vmem:[%s266 + $0x328] sm:$0xff]
        %v409 = vld [vmem:[%s266 + $0x330] sm:$0xff]
        %v410 = vld [vmem:[%s266 + $0x338] sm:$0xff]
        %v411 = vld [vmem:[%s266 + $0x340] sm:$0xff]
        %v412 = vld [vmem:[%s266 + $0x348] sm:$0xff]
        %v413 = vld [vmem:[%s266 + $0x350] sm:$0xff]
        %v414 = vld [vmem:[%s266 + $0x358] sm:$0xff]
        %v415 = vld [vmem:[%s266 + $0x360] sm:$0xff]
        %v416 = vld [vmem:[%s266 + $0x368] sm:$0xff]
        %v417 = vld [vmem:[%s266 + $0x370] sm:$0xff]
        %v418 = vld [vmem:[%s266 + $0x378] sm:$0xff]
        %v419 = vld [vmem:[%s266 + $0x380] sm:$0xff]
        %v420 = vld [vmem:[%s266 + $0x388] sm:$0xff]
        %v421 = vld [vmem:[%s266 + $0x390] sm:$0xff]
        %v422 = vld [vmem:[%s266 + $0x398] sm:$0xff]
        %v423 = vld [vmem:[%s266 + $0x3a0] sm:$0xff]
        %v424 = vld [vmem:[%s266 + $0x3a8] sm:$0xff]
        %v425 = vld [vmem:[%s266 + $0x3b0] sm:$0xff]
        %v426 = vld [vmem:[%s266 + $0x3b8] sm:$0xff]
        %v427 = vld [vmem:[%s266 + $0x3c0] sm:$0xff]
        %v428 = vld [vmem:[%s266 + $0x3c8] sm:$0xff]
        %v429 = vld [vmem:[%s266 + $0x3d0] sm:$0xff]
        %v430 = vld [vmem:[%s266 + $0x3d8] sm:$0xff]
        %v431 = vld [vmem:[%s266 + $0x3e0] sm:$0xff]
        %v432 = vld [vmem:[%s266 + $0x3e8] sm:$0xff]
        %v433 = vld [vmem:[%s266 + $0x3f0] sm:$0xff]
        %v434 = vld [vmem:[%s266 + $0x3f8] sm:$0xff]
        %v435 = vld [vmem:[%s266 + $0x400] sm:$0xff]
        %v436 = vld [vmem:[%s266 + $0x408] sm:$0xff]
        %v437 = vld [vmem:[%s266 + $0x410] sm:$0xff]
        %v438 = vld [vmem:[%s266 + $0x418] sm:$0xff]
        %v439 = vld [vmem:[%s266 + $0x420] sm:$0xff]
        %v440 = vld [vmem:[%s266 + $0x428] sm:$0xff]
        %v441 = vld [vmem:[%s266 + $0x430] sm:$0xff]
        %v442 = vld [vmem:[%s266 + $0x438] sm:$0xff]
        %v443 = vld [vmem:[%s266 + $0x440] sm:$0xff]
        %v444 = vld [vmem:[%s266 + $0x448] sm:$0xff]
        %v445 = vld [vmem:[%s266 + $0x450] sm:$0xff]
        %v446 = vld [vmem:[%s266 + $0x458] sm:$0xff]
        %v447 = vld [vmem:[%s266 + $0x460] sm:$0xff]
        %v448 = vld [vmem:[%s266 + $0x468] sm:$0xff]
        %v449 = vld [vmem:[%s266 + $0x470] sm:$0xff]
        %v450 = vld [vmem:[%s266 + $0x478] sm:$0xff]
        %v466 = vunpack.c.l.b16 %v292
        %v467 = vunpack.c.h.b16 %v292
        %v468 = vunpack.c.l.b16 %v293
        %v469 = vunpack.c.h.b16 %v293
        %v470 = vunpack.c.l.b16 %v294
        %v471 = vunpack.c.h.b16 %v294
        %v472 = vunpack.c.l.b16 %v295
        %v473 = vunpack.c.h.b16 %v295
        %v474 = vunpack.c.l.b16 %v296
        %v475 = vunpack.c.l.b16 %v297
        %v476 = vunpack.c.h.b16 %v297
        %v477 = vunpack.c.l.b16 %v298
        %v478 = vunpack.c.h.b16 %v298
        %v479 = vunpack.c.l.b16 %v299
        %v480 = vunpack.c.h.b16 %v299
        %v481 = vunpack.c.l.b16 %v300
        %v482 = vunpack.c.h.b16 %v300
        %v483 = vunpack.c.l.b16 %v301
        %v484 = vunpack.c.l.b16 %v302
        %v485 = vunpack.c.h.b16 %v302
        %v486 = vunpack.c.l.b16 %v303
        %v487 = vunpack.c.h.b16 %v303
        %v488 = vunpack.c.l.b16 %v304
        %v489 = vunpack.c.h.b16 %v304
        %v490 = vunpack.c.l.b16 %v305
        %v491 = vunpack.c.h.b16 %v305
        %v492 = vunpack.c.l.b16 %v306
        %v493 = vpack.c.b16 %v475, %v466
        %v494 = vpack.c.b16 %v476, %v467
        %v495 = vpack.c.b16 %v477, %v468
        %v496 = vpack.c.b16 %v478, %v469
        %v497 = vpack.c.b16 %v479, %v470
        %v498 = vpack.c.b16 %v480, %v471
        %v499 = vpack.c.b16 %v481, %v472
        %v500 = vpack.c.b16 %v482, %v473
        %v501 = vpack.c.b16 %v483, %v474
        %v502 = vpack.c.b16 %v484, %v484
        %v503 = vpack.c.b16 %v485, %v485
        %v504 = vpack.c.b16 %v486, %v486
        %v505 = vpack.c.b16 %v487, %v487
        %v506 = vpack.c.b16 %v488, %v488
        %v507 = vpack.c.b16 %v489, %v489
        %v508 = vpack.c.b16 %v490, %v490
        %v509 = vpack.c.b16 %v491, %v491
        %v510 = vpack.c.b16 %v492, %v492
        %v673 = vunpack.c.l.b16 %v307
        %v674 = vunpack.c.h.b16 %v307
        %v675 = vunpack.c.l.b16 %v308
        %v676 = vunpack.c.h.b16 %v308
        %v677 = vunpack.c.l.b16 %v309
        %v678 = vunpack.c.h.b16 %v309
        %v679 = vunpack.c.l.b16 %v310
        %v680 = vunpack.c.h.b16 %v310
        %v681 = vunpack.c.l.b16 %v311
        %v682 = vunpack.c.h.b16 %v311
        %v683 = vunpack.c.l.b16 %v312
        %v684 = vunpack.c.h.b16 %v312
        %v685 = vunpack.c.l.b16 %v313
        %v686 = vunpack.c.h.b16 %v313
        %v687 = vunpack.c.l.b16 %v314
        %v688 = vunpack.c.h.b16 %v314
        %v689 = vunpack.c.l.b16 %v315
        %v690 = vunpack.c.h.b16 %v315
        %v691 = vunpack.c.l.b16 %v316
        %v692 = vunpack.c.h.b16 %v316
        %v693 = vunpack.c.l.b16 %v317
        %v694 = vunpack.c.h.b16 %v317
        %v695 = vunpack.c.l.b16 %v318
        %v696 = vunpack.c.h.b16 %v318
        %v697 = vunpack.c.l.b16 %v319
        %v698 = vunpack.c.h.b16 %v319
        %v699 = vunpack.c.l.b16 %v320
        %v700 = vunpack.c.h.b16 %v320
        %v701 = vunpack.c.l.b16 %v321
        %v702 = vunpack.c.h.b16 %v321
        %v703 = vunpack.c.l.b16 %v322
        %v704 = vunpack.c.h.b16 %v322
        %v705 = vunpack.c.l.b16 %v323
        %v706 = vunpack.c.h.b16 %v323
        %v707 = vunpack.c.l.b16 %v324
        %v708 = vunpack.c.h.b16 %v324
        %v709 = vunpack.c.l.b16 %v325
        %v710 = vunpack.c.h.b16 %v325
        %v711 = vunpack.c.l.b16 %v326
        %v712 = vunpack.c.h.b16 %v326
        %v713 = vunpack.c.l.b16 %v327
        %v714 = vunpack.c.h.b16 %v327
        %v715 = vunpack.c.l.b16 %v328
        %v716 = vunpack.c.h.b16 %v328
        %v717 = vunpack.c.l.b16 %v329
        %v718 = vunpack.c.h.b16 %v329
        %v719 = vunpack.c.l.b16 %v330
        %v720 = vunpack.c.h.b16 %v330
        %v721 = vunpack.c.l.b16 %v331
        %v722 = vunpack.c.h.b16 %v331
        %v723 = vunpack.c.l.b16 %v332
        %v724 = vunpack.c.h.b16 %v332
        %v725 = vunpack.c.l.b16 %v333
        %v726 = vunpack.c.h.b16 %v333
        %v727 = vunpack.c.l.b16 %v334
        %v728 = vunpack.c.h.b16 %v334
        %v729 = vunpack.c.l.b16 %v335
        %v730 = vunpack.c.h.b16 %v335
        %v731 = vunpack.c.l.b16 %v336
        %v732 = vunpack.c.h.b16 %v336
        %v733 = vunpack.c.l.b16 %v337
        %v734 = vunpack.c.h.b16 %v337
        %v735 = vunpack.c.l.b16 %v338
        %v736 = vunpack.c.h.b16 %v338
        %v737 = vunpack.c.l.b16 %v339
        %v738 = vunpack.c.h.b16 %v339
        %v739 = vunpack.c.l.b16 %v340
        %v740 = vunpack.c.h.b16 %v340
        %v741 = vunpack.c.l.b16 %v341
        %v742 = vunpack.c.h.b16 %v341
        %v743 = vunpack.c.l.b16 %v342
        %v744 = vunpack.c.h.b16 %v342
        %v745 = vunpack.c.l.b16 %v343
        %v746 = vunpack.c.h.b16 %v343
        %v747 = vunpack.c.l.b16 %v344
        %v748 = vunpack.c.h.b16 %v344
        %v749 = vunpack.c.l.b16 %v345
        %v750 = vunpack.c.h.b16 %v345
        %v751 = vunpack.c.l.b16 %v346
        %v752 = vunpack.c.h.b16 %v346
        %v753 = vunpack.c.l.b16 %v347
        %v754 = vunpack.c.h.b16 %v347
        %v755 = vunpack.c.l.b16 %v348
        %v756 = vunpack.c.h.b16 %v348
        %v757 = vunpack.c.l.b16 %v349
        %v758 = vunpack.c.h.b16 %v349
        %v759 = vunpack.c.l.b16 %v350
        %v760 = vunpack.c.h.b16 %v350
        %v761 = vunpack.c.l.b16 %v351
        %v762 = vunpack.c.h.b16 %v351
        %v763 = vunpack.c.l.b16 %v352
        %v764 = vunpack.c.h.b16 %v352
        %v765 = vunpack.c.l.b16 %v353
        %v766 = vunpack.c.h.b16 %v353
        %v767 = vunpack.c.l.b16 %v354
        %v768 = vunpack.c.h.b16 %v354
        %v769 = vunpack.c.l.b16 %v355
        %v770 = vunpack.c.h.b16 %v355
        %v771 = vunpack.c.l.b16 %v356
        %v772 = vunpack.c.h.b16 %v356
        %v773 = vunpack.c.l.b16 %v357
        %v774 = vunpack.c.h.b16 %v357
        %v775 = vunpack.c.l.b16 %v358
        %v776 = vunpack.c.h.b16 %v358
        %v777 = vunpack.c.l.b16 %v359
        %v778 = vunpack.c.h.b16 %v359
        %v779 = vunpack.c.l.b16 %v360
        %v780 = vunpack.c.h.b16 %v360
        %v781 = vunpack.c.l.b16 %v361
        %v782 = vunpack.c.h.b16 %v361
        %v783 = vunpack.c.l.b16 %v362
        %v784 = vunpack.c.h.b16 %v362
        %v785 = vunpack.c.l.b16 %v363
        %v786 = vunpack.c.h.b16 %v363
        %v787 = vunpack.c.l.b16 %v364
        %v788 = vunpack.c.h.b16 %v364
        %v789 = vunpack.c.l.b16 %v365
        %v790 = vunpack.c.h.b16 %v365
        %v791 = vunpack.c.l.b16 %v366
        %v792 = vunpack.c.h.b16 %v366
        %v793 = vunpack.c.l.b16 %v367
        %v794 = vunpack.c.h.b16 %v367
        %v795 = vunpack.c.l.b16 %v368
        %v796 = vunpack.c.h.b16 %v368
        %v797 = vunpack.c.l.b16 %v369
        %v798 = vunpack.c.h.b16 %v369
        %v799 = vunpack.c.l.b16 %v370
        %v800 = vunpack.c.h.b16 %v370
        %v801 = vunpack.c.l.b16 %v371
        %v802 = vunpack.c.h.b16 %v371
        %v803 = vunpack.c.l.b16 %v372
        %v804 = vunpack.c.h.b16 %v372
        %v805 = vunpack.c.l.b16 %v373
        %v806 = vunpack.c.h.b16 %v373
        %v807 = vunpack.c.l.b16 %v374
        %v808 = vunpack.c.h.b16 %v374
        %v809 = vunpack.c.l.b16 %v375
        %v810 = vunpack.c.h.b16 %v375
        %v811 = vunpack.c.l.b16 %v376
        %v812 = vunpack.c.h.b16 %v376
        %v813 = vunpack.c.l.b16 %v377
        %v814 = vunpack.c.h.b16 %v377
        %v815 = vunpack.c.l.b16 %v378
        %v816 = vunpack.c.h.b16 %v378
        %v817 = vunpack.c.l.b16 %v379
        %v818 = vunpack.c.h.b16 %v379
        %v819 = vunpack.c.l.b16 %v380
        %v820 = vunpack.c.h.b16 %v380
        %v821 = vunpack.c.l.b16 %v381
        %v822 = vunpack.c.h.b16 %v381
        %v823 = vunpack.c.l.b16 %v382
        %v824 = vunpack.c.h.b16 %v382
        %v825 = vunpack.c.l.b16 %v383
        %v826 = vunpack.c.h.b16 %v383
        %v827 = vunpack.c.l.b16 %v384
        %v828 = vunpack.c.h.b16 %v384
        %v829 = vunpack.c.l.b16 %v385
        %v830 = vunpack.c.h.b16 %v385
        %v831 = vunpack.c.l.b16 %v386
        %v832 = vunpack.c.h.b16 %v386
        %v833 = vunpack.c.l.b16 %v387
        %v834 = vunpack.c.h.b16 %v387
        %v835 = vunpack.c.l.b16 %v388
        %v836 = vunpack.c.h.b16 %v388
        %v837 = vunpack.c.l.b16 %v389
        %v838 = vunpack.c.h.b16 %v389
        %v839 = vunpack.c.l.b16 %v390
        %v840 = vunpack.c.h.b16 %v390
        %v841 = vunpack.c.l.b16 %v391
        %v842 = vunpack.c.h.b16 %v391
        %v843 = vunpack.c.l.b16 %v392
        %v844 = vunpack.c.h.b16 %v392
        %v845 = vunpack.c.l.b16 %v393
        %v846 = vunpack.c.h.b16 %v393
        %v847 = vunpack.c.l.b16 %v394
        %v848 = vunpack.c.h.b16 %v394
        %v849 = vunpack.c.l.b16 %v395
        %v850 = vunpack.c.h.b16 %v395
        %v851 = vunpack.c.l.b16 %v396
        %v852 = vunpack.c.h.b16 %v396
        %v853 = vunpack.c.l.b16 %v397
        %v854 = vunpack.c.h.b16 %v397
        %v855 = vunpack.c.l.b16 %v398
        %v856 = vunpack.c.h.b16 %v398
        %v857 = vunpack.c.l.b16 %v399
        %v858 = vunpack.c.h.b16 %v399
        %v859 = vunpack.c.l.b16 %v400
        %v860 = vunpack.c.h.b16 %v400
        %v861 = vunpack.c.l.b16 %v401
        %v862 = vunpack.c.h.b16 %v401
        %v863 = vunpack.c.l.b16 %v402
        %v864 = vunpack.c.h.b16 %v402
        %v865 = vunpack.c.l.b16 %v403
        %v866 = vunpack.c.h.b16 %v403
        %v867 = vunpack.c.l.b16 %v404
        %v868 = vunpack.c.h.b16 %v404
        %v869 = vunpack.c.l.b16 %v405
        %v870 = vunpack.c.h.b16 %v405
        %v871 = vunpack.c.l.b16 %v406
        %v872 = vunpack.c.h.b16 %v406
        %v873 = vunpack.c.l.b16 %v407
        %v874 = vunpack.c.h.b16 %v407
        %v875 = vunpack.c.l.b16 %v408
        %v876 = vunpack.c.h.b16 %v408
        %v877 = vunpack.c.l.b16 %v409
        %v878 = vunpack.c.h.b16 %v409
        %v879 = vunpack.c.l.b16 %v410
        %v880 = vunpack.c.h.b16 %v410
        %v881 = vunpack.c.l.b16 %v411
        %v882 = vunpack.c.h.b16 %v411
        %v883 = vunpack.c.l.b16 %v412
        %v884 = vunpack.c.h.b16 %v412
        %v885 = vunpack.c.l.b16 %v413
        %v886 = vunpack.c.h.b16 %v413
        %v887 = vunpack.c.l.b16 %v414
        %v888 = vunpack.c.h.b16 %v414
        %v889 = vunpack.c.l.b16 %v415
        %v890 = vunpack.c.h.b16 %v415
        %v891 = vunpack.c.l.b16 %v416
        %v892 = vunpack.c.h.b16 %v416
        %v893 = vunpack.c.l.b16 %v417
        %v894 = vunpack.c.h.b16 %v417
        %v895 = vunpack.c.l.b16 %v418
        %v896 = vunpack.c.h.b16 %v418
        %v897 = vunpack.c.l.b16 %v419
        %v898 = vunpack.c.h.b16 %v419
        %v899 = vunpack.c.l.b16 %v420
        %v900 = vunpack.c.h.b16 %v420
        %v901 = vunpack.c.l.b16 %v421
        %v902 = vunpack.c.h.b16 %v421
        %v903 = vunpack.c.l.b16 %v422
        %v904 = vunpack.c.h.b16 %v422
        %v905 = vunpack.c.l.b16 %v423
        %v906 = vunpack.c.h.b16 %v423
        %v907 = vunpack.c.l.b16 %v424
        %v908 = vunpack.c.h.b16 %v424
        %v909 = vunpack.c.l.b16 %v425
        %v910 = vunpack.c.h.b16 %v425
        %v911 = vunpack.c.l.b16 %v426
        %v912 = vunpack.c.h.b16 %v426
        %v913 = vunpack.c.l.b16 %v427
        %v914 = vunpack.c.h.b16 %v427
        %v915 = vunpack.c.l.b16 %v428
        %v916 = vunpack.c.h.b16 %v428
        %v917 = vunpack.c.l.b16 %v429
        %v918 = vunpack.c.h.b16 %v429
        %v919 = vunpack.c.l.b16 %v430
        %v920 = vunpack.c.h.b16 %v430
        %v921 = vunpack.c.l.b16 %v431
        %v922 = vunpack.c.h.b16 %v431
        %v923 = vunpack.c.l.b16 %v432
        %v924 = vunpack.c.h.b16 %v432
        %v925 = vunpack.c.l.b16 %v433
        %v926 = vunpack.c.h.b16 %v433
        %v927 = vunpack.c.l.b16 %v434
        %v928 = vunpack.c.h.b16 %v434
        %v929 = vunpack.c.l.b16 %v435
        %v930 = vunpack.c.h.b16 %v435
        %v931 = vunpack.c.l.b16 %v436
        %v932 = vunpack.c.h.b16 %v436
        %v933 = vunpack.c.l.b16 %v437
        %v934 = vunpack.c.h.b16 %v437
        %v935 = vunpack.c.l.b16 %v438
        %v936 = vunpack.c.h.b16 %v438
        %v937 = vunpack.c.l.b16 %v439
        %v938 = vunpack.c.h.b16 %v439
        %v939 = vunpack.c.l.b16 %v440
        %v940 = vunpack.c.h.b16 %v440
        %v941 = vunpack.c.l.b16 %v441
        %v942 = vunpack.c.h.b16 %v441
        %v943 = vunpack.c.l.b16 %v442
        %v944 = vunpack.c.h.b16 %v442
        %v945 = vunpack.c.l.b16 %v443
        %v946 = vunpack.c.h.b16 %v443
        %v947 = vunpack.c.l.b16 %v444
        %v948 = vunpack.c.h.b16 %v444
        %v949 = vunpack.c.l.b16 %v445
        %v950 = vunpack.c.h.b16 %v445
        %v951 = vunpack.c.l.b16 %v446
        %v952 = vunpack.c.h.b16 %v446
        %v953 = vunpack.c.l.b16 %v447
        %v954 = vunpack.c.h.b16 %v447
        %v955 = vunpack.c.l.b16 %v448
        %v956 = vunpack.c.h.b16 %v448
        %v957 = vunpack.c.l.b16 %v449
        %v958 = vunpack.c.h.b16 %v449
        %v959 = vunpack.c.l.b16 %v450
        %v960 = vunpack.c.h.b16 %v450
        %v961 = vpack.c.b16 %v675, %v673
        %v962 = vpack.c.b16 %v676, %v674
        %v963 = vpack.c.b16 %v679, %v677
        %v964 = vpack.c.b16 %v680, %v678
        %v965 = vpack.c.b16 %v683, %v681
        %v966 = vpack.c.b16 %v684, %v682
        %v967 = vpack.c.b16 %v687, %v685
        %v968 = vpack.c.b16 %v688, %v686
        %v969 = vpack.c.b16 %v691, %v689
        %v970 = vpack.c.b16 %v692, %v690
        %v971 = vpack.c.b16 %v695, %v693
        %v972 = vpack.c.b16 %v696, %v694
        %v973 = vpack.c.b16 %v699, %v697
        %v974 = vpack.c.b16 %v700, %v698
        %v975 = vpack.c.b16 %v703, %v701
        %v976 = vpack.c.b16 %v704, %v702
        %v977 = vpack.c.b16 %v707, %v705
        %v978 = vpack.c.b16 %v708, %v706
        %v979 = vpack.c.b16 %v711, %v709
        %v980 = vpack.c.b16 %v712, %v710
        %v981 = vpack.c.b16 %v715, %v713
        %v982 = vpack.c.b16 %v716, %v714
        %v983 = vpack.c.b16 %v719, %v717
        %v984 = vpack.c.b16 %v720, %v718
        %v985 = vpack.c.b16 %v723, %v721
        %v986 = vpack.c.b16 %v724, %v722
        %v987 = vpack.c.b16 %v727, %v725
        %v988 = vpack.c.b16 %v728, %v726
        %v989 = vpack.c.b16 %v731, %v729
        %v990 = vpack.c.b16 %v732, %v730
        %v991 = vpack.c.b16 %v735, %v733
        %v992 = vpack.c.b16 %v736, %v734
        %v993 = vpack.c.b16 %v739, %v737
        %v994 = vpack.c.b16 %v740, %v738
        %v995 = vpack.c.b16 %v743, %v741
        %v996 = vpack.c.b16 %v744, %v742
        %v997 = vpack.c.b16 %v747, %v745
        %v998 = vpack.c.b16 %v748, %v746
        %v999 = vpack.c.b16 %v751, %v749
        %v1000 = vpack.c.b16 %v752, %v750
        %v1001 = vpack.c.b16 %v755, %v753
        %v1002 = vpack.c.b16 %v756, %v754
        %v1003 = vpack.c.b16 %v759, %v757
        %v1004 = vpack.c.b16 %v760, %v758
        %v1005 = vpack.c.b16 %v763, %v761
        %v1006 = vpack.c.b16 %v764, %v762
        %v1007 = vpack.c.b16 %v767, %v765
        %v1008 = vpack.c.b16 %v768, %v766
        %v1009 = vpack.c.b16 %v771, %v769
        %v1010 = vpack.c.b16 %v772, %v770
        %v1011 = vpack.c.b16 %v775, %v773
        %v1012 = vpack.c.b16 %v776, %v774
        %v1013 = vpack.c.b16 %v779, %v777
        %v1014 = vpack.c.b16 %v780, %v778
        %v1015 = vpack.c.b16 %v783, %v781
        %v1016 = vpack.c.b16 %v784, %v782
        %v1017 = vpack.c.b16 %v787, %v785
        %v1018 = vpack.c.b16 %v788, %v786
        %v1019 = vpack.c.b16 %v791, %v789
        %v1020 = vpack.c.b16 %v792, %v790
        %v1021 = vpack.c.b16 %v795, %v793
        %v1022 = vpack.c.b16 %v796, %v794
        %v1023 = vpack.c.b16 %v799, %v797
        %v1024 = vpack.c.b16 %v800, %v798
        %v1025 = vpack.c.b16 %v803, %v801
        %v1026 = vpack.c.b16 %v804, %v802
        %v1027 = vpack.c.b16 %v807, %v805
        %v1028 = vpack.c.b16 %v808, %v806
        %v1029 = vpack.c.b16 %v811, %v809
        %v1030 = vpack.c.b16 %v812, %v810
        %v1031 = vpack.c.b16 %v815, %v813
        %v1032 = vpack.c.b16 %v816, %v814
        %v1033 = vpack.c.b16 %v819, %v817
        %v1034 = vpack.c.b16 %v820, %v818
        %v1035 = vpack.c.b16 %v823, %v821
        %v1036 = vpack.c.b16 %v824, %v822
        %v1037 = vpack.c.b16 %v827, %v825
        %v1038 = vpack.c.b16 %v828, %v826
        %v1039 = vpack.c.b16 %v831, %v829
        %v1040 = vpack.c.b16 %v832, %v830
        %v1041 = vpack.c.b16 %v835, %v833
        %v1042 = vpack.c.b16 %v836, %v834
        %v1043 = vpack.c.b16 %v839, %v837
        %v1044 = vpack.c.b16 %v840, %v838
        %v1045 = vpack.c.b16 %v843, %v841
        %v1046 = vpack.c.b16 %v844, %v842
        %v1047 = vpack.c.b16 %v847, %v845
        %v1048 = vpack.c.b16 %v848, %v846
        %v1049 = vpack.c.b16 %v851, %v849
        %v1050 = vpack.c.b16 %v852, %v850
        %v1051 = vpack.c.b16 %v855, %v853
        %v1052 = vpack.c.b16 %v856, %v854
        %v1053 = vpack.c.b16 %v859, %v857
        %v1054 = vpack.c.b16 %v860, %v858
        %v1055 = vpack.c.b16 %v863, %v861
        %v1056 = vpack.c.b16 %v864, %v862
        %v1057 = vpack.c.b16 %v867, %v865
        %v1058 = vpack.c.b16 %v868, %v866
        %v1059 = vpack.c.b16 %v871, %v869
        %v1060 = vpack.c.b16 %v872, %v870
        %v1061 = vpack.c.b16 %v875, %v873
        %v1062 = vpack.c.b16 %v876, %v874
        %v1063 = vpack.c.b16 %v879, %v877
        %v1064 = vpack.c.b16 %v880, %v878
        %v1065 = vpack.c.b16 %v883, %v881
        %v1066 = vpack.c.b16 %v884, %v882
        %v1067 = vpack.c.b16 %v887, %v885
        %v1068 = vpack.c.b16 %v888, %v886
        %v1069 = vpack.c.b16 %v891, %v889
        %v1070 = vpack.c.b16 %v892, %v890
        %v1071 = vpack.c.b16 %v895, %v893
        %v1072 = vpack.c.b16 %v896, %v894
        %v1073 = vpack.c.b16 %v899, %v897
        %v1074 = vpack.c.b16 %v900, %v898
        %v1075 = vpack.c.b16 %v903, %v901
        %v1076 = vpack.c.b16 %v904, %v902
        %v1077 = vpack.c.b16 %v907, %v905
        %v1078 = vpack.c.b16 %v908, %v906
        %v1079 = vpack.c.b16 %v911, %v909
        %v1080 = vpack.c.b16 %v912, %v910
        %v1081 = vpack.c.b16 %v915, %v913
        %v1082 = vpack.c.b16 %v916, %v914
        %v1083 = vpack.c.b16 %v919, %v917
        %v1084 = vpack.c.b16 %v920, %v918
        %v1085 = vpack.c.b16 %v923, %v921
        %v1086 = vpack.c.b16 %v924, %v922
        %v1087 = vpack.c.b16 %v927, %v925
        %v1088 = vpack.c.b16 %v928, %v926
        %v1089 = vpack.c.b16 %v931, %v929
        %v1090 = vpack.c.b16 %v932, %v930
        %v1091 = vpack.c.b16 %v935, %v933
        %v1092 = vpack.c.b16 %v936, %v934
        %v1093 = vpack.c.b16 %v939, %v937
        %v1094 = vpack.c.b16 %v940, %v938
        %v1095 = vpack.c.b16 %v943, %v941
        %v1096 = vpack.c.b16 %v944, %v942
        %v1097 = vpack.c.b16 %v947, %v945
        %v1098 = vpack.c.b16 %v948, %v946
        %v1099 = vpack.c.b16 %v951, %v949
        %v1100 = vpack.c.b16 %v952, %v950
        %v1101 = vpack.c.b16 %v955, %v953
        %v1102 = vpack.c.b16 %v956, %v954
        %v1103 = vpack.c.b16 %v959, %v957
        %v1104 = vpack.c.b16 %v960, %v958
        %1249 = vmatprep.subr.bf16.mxu0 %v962
        %1250 = vmatpush1.bf16.msra.mxu0 %v961
        %1251 = vmatprep.subr.bf16.mxu0 %v964
        %1252 = vmatpush1.bf16.msra.mxu0 %v963
        %1253 = vmatprep.subr.bf16.mxu0 %v966
        %1254 = vmatpush1.bf16.msra.mxu0 %v965
        %1255 = vmatprep.subr.bf16.mxu0 %v968
        %1256 = vmatpush1.bf16.msra.mxu0 %v967
        %1257 = vmatprep.subr.bf16.mxu0 %v970
        %1258 = vmatpush1.bf16.msra.mxu0 %v969
        %1259 = vmatprep.subr.bf16.mxu0 %v972
        %1260 = vmatpush1.bf16.msra.mxu0 %v971
        %1261 = vmatprep.subr.bf16.mxu0 %v974
        %1262 = vmatpush1.bf16.msra.mxu0 %v973
        %1263 = vmatprep.subr.bf16.mxu0 %v976
        %1264 = vmatpush1.bf16.msra.mxu0 %v975
        %1265 = vmatprep.subr.bf16.mxu0 %v978
        %1266 = vmatpush1.bf16.msra.mxu0 %v977
        %1267 = vmatprep.subr.bf16.mxu0 %v980
        %1268 = vmatpush1.bf16.msra.mxu0 %v979
        %1269 = vmatprep.subr.bf16.mxu0 %v982
        %1270 = vmatpush1.bf16.msra.mxu0 %v981
        %1271 = vmatprep.subr.bf16.mxu0 %v984
        %1272 = vmatpush1.bf16.msra.mxu0 %v983
        %1273 = vmatprep.subr.bf16.mxu0 %v986
        %1274 = vmatpush1.bf16.msra.mxu0 %v985
        %1275 = vmatprep.subr.bf16.mxu0 %v988
        %1276 = vmatpush1.bf16.msra.mxu0 %v987
        %1277 = vmatprep.subr.bf16.mxu0 %v990
        %1278 = vmatpush1.bf16.msra.mxu0 %v989
        %1279 = vmatprep.subr.bf16.mxu0 %v992
        %1280 = vmatpush1.bf16.msra.mxu0 %v991
        %1281 = vmatprep.mubr.bf16.mxu0 %v494
        %1282 = vmatmul.mubr.bf16.gmra.mrb[0].mxu0 %v493
        %v1283 = vpop.f32.mrb[0].mxu0
        %v1284 = vadd.f32 0.0, %v1283
        %v1285 = vpop.f32.mrb[0].mxu0
        %v1286 = vadd.f32 0.0, %v1285
        %v1287 = vpop.f32.mrb[0].mxu0
        %v1288 = vadd.f32 0.0, %v1287
        %v1289 = vpop.f32.mrb[0].mxu0
        %v1290 = vadd.f32 0.0, %v1289
        %1291 = vmatprep.mubr.bf16.mxu0 %v503
        %1292 = vmatmul.mubr.bf16.gmra.mrb[0].mxu0 %v502
        %v1293 = vpop.f32.mrb[0].mxu0
        %v1294 = vadd.f32 0.0, %v1293
        %v1295 = vpop.f32.mrb[0].mxu0
        %v1296 = vadd.f32 0.0, %v1295
        %v1297 = vpop.f32.mrb[0].mxu0
        %v1298 = vpop.f32.mrb[0].mxu0
        %1299 = vdwg.mxu0
        %1300 = vmatprep.subr.bf16.mxu0 %v994
        %1301 = vmatpush1.bf16.msra.mxu0 %v993
        %1302 = vmatprep.subr.bf16.mxu0 %v996
        %1303 = vmatpush1.bf16.msra.mxu0 %v995
        %1304 = vmatprep.subr.bf16.mxu0 %v998
        %1305 = vmatpush1.bf16.msra.mxu0 %v997
        %1306 = vmatprep.subr.bf16.mxu0 %v1000
        %1307 = vmatpush1.bf16.msra.mxu0 %v999
        %1308 = vmatprep.subr.bf16.mxu0 %v1002
        %1309 = vmatpush1.bf16.msra.mxu0 %v1001
        %1310 = vmatprep.subr.bf16.mxu0 %v1004
        %1311 = vmatpush1.bf16.msra.mxu0 %v1003
        %1312 = vmatprep.subr.bf16.mxu0 %v1006
        %1313 = vmatpush1.bf16.msra.mxu0 %v1005
        %1314 = vmatprep.subr.bf16.mxu0 %v1008
        %1315 = vmatpush1.bf16.msra.mxu0 %v1007
        %1316 = vmatprep.subr.bf16.mxu0 %v1010
        %1317 = vmatpush1.bf16.msra.mxu0 %v1009
        %1318 = vmatprep.subr.bf16.mxu0 %v1012
        %1319 = vmatpush1.bf16.msra.mxu0 %v1011
        %1320 = vmatprep.subr.bf16.mxu0 %v1014
        %1321 = vmatpush1.bf16.msra.mxu0 %v1013
        %1322 = vmatprep.subr.bf16.mxu0 %v1016
        %1323 = vmatpush1.bf16.msra.mxu0 %v1015
        %1324 = vmatprep.subr.bf16.mxu0 %v1018
        %1325 = vmatpush1.bf16.msra.mxu0 %v1017
        %1326 = vmatprep.subr.bf16.mxu0 %v1020
        %1327 = vmatpush1.bf16.msra.mxu0 %v1019
        %1328 = vmatprep.subr.bf16.mxu0 %v1022
        %1329 = vmatpush1.bf16.msra.mxu0 %v1021
        %1330 = vmatprep.subr.bf16.mxu0 %v1024
        %1331 = vmatpush1.bf16.msra.mxu0 %v1023
        %1332 = vmatprep.mubr.bf16.mxu0 %v496
        %1333 = vmatmul.mubr.bf16.gmra.mrb[0].mxu0 %v495
        %v1334 = vpop.f32.mrb[0].mxu0
        %v1335 = vadd.f32 %v1284, %v1334
        %v1336 = vpop.f32.mrb[0].mxu0
        %v1337 = vadd.f32 %v1286, %v1336
        %v1338 = vpop.f32.mrb[0].mxu0
        %v1339 = vadd.f32 %v1288, %v1338
        %v1340 = vpop.f32.mrb[0].mxu0
        %v1341 = vadd.f32 %v1290, %v1340
        %1342 = vmatprep.mubr.bf16.mxu0 %v505
        %1343 = vmatmul.mubr.bf16.gmra.mrb[0].mxu0 %v504
        %v1344 = vpop.f32.mrb[0].mxu0
        %v1345 = vadd.f32 %v1294, %v1344
        %v1346 = vpop.f32.mrb[0].mxu0
        %v1347 = vadd.f32 %v1296, %v1346
        %v1348 = vpop.f32.mrb[0].mxu0
        %v1349 = vpop.f32.mrb[0].mxu0
        %1350 = vdwg.mxu0
        %1351 = vmatprep.subr.bf16.mxu0 %v1026
        %1352 = vmatpush1.bf16.msra.mxu0 %v1025
        %1353 = vmatprep.subr.bf16.mxu0 %v1028
        %1354 = vmatpush1.bf16.msra.mxu0 %v1027
        %1355 = vmatprep.subr.bf16.mxu0 %v1030
        %1356 = vmatpush1.bf16.msra.mxu0 %v1029
        %1357 = vmatprep.subr.bf16.mxu0 %v1032
        %1358 = vmatpush1.bf16.msra.mxu0 %v1031
        %1359 = vmatprep.subr.bf16.mxu0 %v1034
        %1360 = vmatpush1.bf16.msra.mxu0 %v1033
        %1361 = vmatprep.subr.bf16.mxu0 %v1036
        %1362 = vmatpush1.bf16.msra.mxu0 %v1035
        %1363 = vmatprep.subr.bf16.mxu0 %v1038
        %1364 = vmatpush1.bf16.msra.mxu0 %v1037
        %1365 = vmatprep.subr.bf16.mxu0 %v1040
        %1366 = vmatpush1.bf16.msra.mxu0 %v1039
        %1367 = vmatprep.subr.bf16.mxu0 %v1042
        %1368 = vmatpush1.bf16.msra.mxu0 %v1041
        %1369 = vmatprep.subr.bf16.mxu0 %v1044
        %1370 = vmatpush1.bf16.msra.mxu0 %v1043
        %1371 = vmatprep.subr.bf16.mxu0 %v1046
        %1372 = vmatpush1.bf16.msra.mxu0 %v1045
        %1373 = vmatprep.subr.bf16.mxu0 %v1048
        %1374 = vmatpush1.bf16.msra.mxu0 %v1047
        %1375 = vmatprep.subr.bf16.mxu0 %v1050
        %1376 = vmatpush1.bf16.msra.mxu0 %v1049
        %1377 = vmatprep.subr.bf16.mxu0 %v1052
        %1378 = vmatpush1.bf16.msra.mxu0 %v1051
        %1379 = vmatprep.subr.bf16.mxu0 %v1054
        %1380 = vmatpush1.bf16.msra.mxu0 %v1053
        %1381 = vmatprep.subr.bf16.mxu0 %v1056
        %1382 = vmatpush1.bf16.msra.mxu0 %v1055
        %1383 = vmatprep.mubr.bf16.mxu0 %v498
        %1384 = vmatmul.mubr.bf16.gmra.mrb[0].mxu0 %v497
        %v1385 = vpop.f32.mrb[0].mxu0
        %v1386 = vadd.f32 %v1335, %v1385
        %v1387 = vpop.f32.mrb[0].mxu0
        %v1388 = vadd.f32 %v1337, %v1387
        %v1389 = vpop.f32.mrb[0].mxu0
        %v1390 = vadd.f32 %v1339, %v1389
        %v1391 = vpop.f32.mrb[0].mxu0
        %v1392 = vadd.f32 %v1341, %v1391
        %1393 = vmatprep.mubr.bf16.mxu0 %v507
        %1394 = vmatmul.mubr.bf16.gmra.mrb[0].mxu0 %v506
        %v1395 = vpop.f32.mrb[0].mxu0
        %v1396 = vadd.f32 %v1345, %v1395
        %v1397 = vpop.f32.mrb[0].mxu0
        %v1398 = vadd.f32 %v1347, %v1397
        %v1399 = vpop.f32.mrb[0].mxu0
        %v1400 = vpop.f32.mrb[0].mxu0
        %1401 = vdwg.mxu0
        %1402 = vmatprep.subr.bf16.mxu0 %v1058
        %1403 = vmatpush1.bf16.msra.mxu0 %v1057
        %1404 = vmatprep.subr.bf16.mxu0 %v1060
        %1405 = vmatpush1.bf16.msra.mxu0 %v1059
        %1406 = vmatprep.subr.bf16.mxu0 %v1062
        %1407 = vmatpush1.bf16.msra.mxu0 %v1061
        %1408 = vmatprep.subr.bf16.mxu0 %v1064
        %1409 = vmatpush1.bf16.msra.mxu0 %v1063
        %1410 = vmatprep.subr.bf16.mxu0 %v1066
        %1411 = vmatpush1.bf16.msra.mxu0 %v1065
        %1412 = vmatprep.subr.bf16.mxu0 %v1068
        %1413 = vmatpush1.bf16.msra.mxu0 %v1067
        %1414 = vmatprep.subr.bf16.mxu0 %v1070
        %1415 = vmatpush1.bf16.msra.mxu0 %v1069
        %1416 = vmatprep.subr.bf16.mxu0 %v1072
        %1417 = vmatpush1.bf16.msra.mxu0 %v1071
        %1418 = vmatprep.subr.bf16.mxu0 %v1074
        %1419 = vmatpush1.bf16.msra.mxu0 %v1073
        %1420 = vmatprep.subr.bf16.mxu0 %v1076
        %1421 = vmatpush1.bf16.msra.mxu0 %v1075
        %1422 = vmatprep.subr.bf16.mxu0 %v1078
        %1423 = vmatpush1.bf16.msra.mxu0 %v1077
        %1424 = vmatprep.subr.bf16.mxu0 %v1080
        %1425 = vmatpush1.bf16.msra.mxu0 %v1079
        %1426 = vmatprep.subr.bf16.mxu0 %v1082
        %1427 = vmatpush1.bf16.msra.mxu0 %v1081
        %1428 = vmatprep.subr.bf16.mxu0 %v1084
        %1429 = vmatpush1.bf16.msra.mxu0 %v1083
        %1430 = vmatprep.subr.bf16.mxu0 %v1086
        %1431 = vmatpush1.bf16.msra.mxu0 %v1085
        %1432 = vmatprep.subr.bf16.mxu0 %v1088
        %1433 = vmatpush1.bf16.msra.mxu0 %v1087
        %1434 = vmatprep.mubr.bf16.mxu0 %v500
        %1435 = vmatmul.mubr.bf16.gmra.mrb[0].mxu0 %v499
        %v1436 = vpop.f32.mrb[0].mxu0
        %v1437 = vadd.f32 %v1386, %v1436
        %v1438 = vpop.f32.mrb[0].mxu0
        %v1439 = vadd.f32 %v1388, %v1438
        %v1440 = vpop.f32.mrb[0].mxu0
        %v1441 = vadd.f32 %v1390, %v1440
        %v1442 = vpop.f32.mrb[0].mxu0
        %v1443 = vadd.f32 %v1392, %v1442
        %1444 = vmatprep.mubr.bf16.mxu0 %v509
        %1445 = vmatmul.mubr.bf16.gmra.mrb[0].mxu0 %v508
        %v1446 = vpop.f32.mrb[0].mxu0
        %v1447 = vadd.f32 %v1396, %v1446
        %v1448 = vpop.f32.mrb[0].mxu0
        %v1449 = vadd.f32 %v1398, %v1448
        %v1450 = vpop.f32.mrb[0].mxu0
        %v1451 = vpop.f32.mrb[0].mxu0
        %1452 = vdwg.mxu0
        %1453 = vmatprep.subr.bf16.mxu0 %v1090
        %1454 = vmatpush1.bf16.msra.mxu0 %v1089
        %1455 = vmatprep.subr.bf16.mxu0 %v1092
        %1456 = vmatpush1.bf16.msra.mxu0 %v1091
        %1457 = vmatprep.subr.bf16.mxu0 %v1094
        %1458 = vmatpush1.bf16.msra.mxu0 %v1093
        %1459 = vmatprep.subr.bf16.mxu0 %v1096
        %1460 = vmatpush1.bf16.msra.mxu0 %v1095
        %1461 = vmatprep.subr.bf16.mxu0 %v1098
        %1462 = vmatpush1.bf16.msra.mxu0 %v1097
        %1463 = vmatprep.subr.bf16.mxu0 %v1100
        %1464 = vmatpush1.bf16.msra.mxu0 %v1099
        %1465 = vmatprep.subr.bf16.mxu0 %v1102
        %1466 = vmatpush1.bf16.msra.mxu0 %v1101
        %1467 = vmatprep.subr.bf16.mxu0 %v1104
        %1468 = vmatpush1.bf16.msra.mxu0 %v1103
        %1469 = vmatprep.subr.bf16.mxu0 0
        %1470 = vmatpush1.bf16.msra.mxu0 0
        %1471 = vmatprep.subr.bf16.mxu0 0
        %1472 = vmatpush1.bf16.msra.mxu0 0
        %1473 = vmatprep.subr.bf16.mxu0 0
        %1474 = vmatpush1.bf16.msra.mxu0 0
        %1475 = vmatprep.subr.bf16.mxu0 0
        %1476 = vmatpush1.bf16.msra.mxu0 0
        %1477 = vmatprep.subr.bf16.mxu0 0
        %1478 = vmatpush1.bf16.msra.mxu0 0
        %1479 = vmatprep.subr.bf16.mxu0 0
        %1480 = vmatpush1.bf16.msra.mxu0 0
        %1481 = vmatprep.subr.bf16.mxu0 0
        %1482 = vmatpush1.bf16.msra.mxu0 0
        %1483 = vmatprep.subr.bf16.mxu0 0
        %1484 = vmatpush1.bf16.msra.mxu0 0
        %1485 = vmatprep.mubr.bf16.mxu0 0
        %1486 = vmatmul.mubr.bf16.gmra.mrb[0].mxu0 %v501
        %v1487 = vpop.f32.mrb[0].mxu0
        %v1488 = vadd.f32 %v1437, %v1487
        %v1489 = vpop.f32.mrb[0].mxu0
        %v1490 = vadd.f32 %v1439, %v1489
        %v1491 = vpop.f32.mrb[0].mxu0
        %v1492 = vadd.f32 %v1441, %v1491
        %v1493 = vpop.f32.mrb[0].mxu0
        %v1494 = vadd.f32 %v1443, %v1493
        %1495 = vmatprep.mubr.bf16.mxu0 0
        %1496 = vmatmul.mubr.bf16.gmra.mrb[0].mxu0 %v510
        %v1497 = vpop.f32.mrb[0].mxu0
        %v1498 = vadd.f32 %v1447, %v1497
        %v1499 = vpop.f32.mrb[0].mxu0
        %v1500 = vadd.f32 %v1449, %v1499
        %v1501 = vpop.f32.mrb[0].mxu0
        %v1502 = vpop.f32.mrb[0].mxu0
        %1503 = vdwg.mxu0
        %v1504 = vadd.f32 %v286, %v1488
        %v1505 = vadd.f32 %v287, %v1490
        %v1506 = vadd.f32 %v288, %v1492
        %v1507 = vadd.f32 %v289, %v1494
        %v1508 = vadd.f32 %v290, %v1498
        %v1509 = vadd.f32 %v291, %v1500
        %1510 = vst [vmem:[#allocation2] sm:$0xff] %v1504
        %1511 = vst [vmem:[#allocation2 + $0x8] sm:$0xff] %v1505
        %1512 = vst [vmem:[#allocation2 + $0x10] sm:$0xff] %v1506
        %1513 = vst [vmem:[#allocation2 + $0x18] sm:$0xff] %v1507
        %1514 = vst [vmem:[#allocation2 + $0x20] sm:$0x3] %v1508
        %1515 = vst [vmem:[#allocation2 + $0x28] sm:$0x3] %v1509
        %p1516 = scmp.eq.s32.totalorder %s19, 1
        // Predicated region
        $region63: #{alexnet_features.14} parent=53 // pred_check
          %p1517 = pneg %p1516
        $region64: #{alexnet_features.14} parent=53 // pred_check_branch
          %1519 = sbr.rel (%p1517) target = $region66
        $region65: #{alexnet_features.14} parent=53 // pred_region
          %v1520 = vld [vmem:[#allocation2] sm:$0xff]
          %v1521 = vld [vmem:[#allocation2 + $0x8] sm:$0xff]
          %v1522 = vld [vmem:[#allocation2 + $0x10] sm:$0xff]
          %v1523 = vld [vmem:[#allocation2 + $0x18] sm:$0xff]
          %v1524 = vld [vmem:[#allocation2 + $0x20] sm:$0x3]
          %v1525 = vld [vmem:[#allocation2 + $0x28] sm:$0x3]
          %v1526 = vld [vmem:[%s2] sm:$0x3]
          %v1528 = vlaneseq
          %v1529 = vshrl.u32 %v1528, 7
          %v1530 = vsub.s32 0, %v1529
          %v1531 = vrot.slane %v1526, %v1530
          %v1532 = vlaneseq
          %v1533 = vshrl.u32 %v1532, 7
          %v1534 = vsub.s32 1, %v1533
          %v1535 = vrot.slane %v1526, %v1534
          %v1538 = vadd.f32 %v1520, %v1531
          %v1539 = vadd.f32 %v1521, %v1535
          %v1540 = vadd.f32 %v1522, %v1531
          %v1541 = vadd.f32 %v1523, %v1535
          %v1542 = vadd.f32 %v1524, %v1531
          %v1543 = vadd.f32 %v1525, %v1535
          %v1544 = vmax.f32 %v1538, 0.0
          %v1545 = vmax.f32 %v1539, 0.0
          %v1546 = vmax.f32 %v1540, 0.0
          %v1547 = vmax.f32 %v1541, 0.0
          %v1548 = vmax.f32 %v1542, 0.0
          %v1549 = vmax.f32 %v1543, 0.0
          %1550 = vst [vmem:[%s273] sm:$0xff] %v1544
          %1551 = vst [vmem:[%s273 + $0x8] sm:$0xff] %v1545
          %1552 = vst [vmem:[%s273 + $0x10] sm:$0xff] %v1546
          %1553 = vst [vmem:[%s273 + $0x18] sm:$0xff] %v1547
          %1554 = vst [vmem:[%s273 + $0x20] sm:$0x3] %v1548
          %1555 = vst [vmem:[%s273 + $0x28] sm:$0x3] %v1549
        $region66: #{alexnet_features.14} parent=53 // pred_fallthru
          _
        %s1556 = smul.u32 3, %s18
        %p1557 = scmp.lt.s32.totalorder %s1556, 2
        %s1558 = scalar_select %p1557, %s1556, 2
        %s1559 = smul.addr %s1558, 2
        %s1560 = smul.addr %s1559, 8
        %s1561 = scalar_lea.vmem %s3, %s1560
        // Predicated region
        $region67: #{alexnet_features.14} parent=53 // pred_check
          %p1562 = pneg %p119
        $region68: #{alexnet_features.14} parent=53 // pred_check_branch
          %1564 = sbr.rel (%p1562) target = $region70
        $region69: #{alexnet_features.14} parent=53 // pred_region
          %s1565 = smul.u32 3, %s18
        $region70: #{alexnet_features.14} parent=53 // pred_fallthru
          _
        // Predicated region
        $region71: #{alexnet_features.14} parent=53 // pred_check
          %p1566 = pneg %p119
        $region72: #{alexnet_features.14} parent=53 // pred_check_branch
          %1568 = sbr.rel (%p1566) target = $region74
        $region73: #{alexnet_features.14} parent=53 // pred_region
          %s1569 = smul.u32 3, %s18
          %p1570 = scmp.lt.s32.totalorder %s1569, 2
          %s1571 = scalar_select %p1570, %s1569, 2
          %s1572 = smul.addr %s1571, 2
          %s1573 = smul.addr %s1572, 8
          %s1574 = scalar_lea.vmem %s3, %s1573
        $region74: #{alexnet_features.14} parent=53 // pred_fallthru
          _
      $region54: #{alexnet_features.14} parent=5 // pred_fallthru
        _
      %p1575 = scmp.le.s32.totalorder 2, %s9
      // Predicated region
      $region75: #{alexnet_features.14} parent=5 // pred_check
        %p1576 = pneg %p1575
      $region76: #{alexnet_features.14} parent=5 // pred_check_branch
        %1578 = sbr.rel (%p1576) target = $region78
      $region77: #{alexnet_features.14} parent=5 // pred_region
        %s1579 = ssub.s32 %s9, 2
      $region78: #{alexnet_features.14} parent=5 // pred_fallthru
        _
    $region6: #{alexnet_features.14} parent=1 // loop_footer
      %s13 = sadd.s32 1, %s9
    $region7: #{alexnet_features.14} parent=1 // loop_footer_branch
      %8 = sbr.rel target = $region3
    $region8: #{alexnet_features.14} parent=1 // loop_exit
      _

// kernel: alexnet_features.15
$region0: #{alexnet_features.15}
  #allocation0 [shape = 'u32[]', space=smem, size = 0x4, offset = 0x4, fixed_abs, tag = 'smem constant byte address 0x4 - core index']
  #allocation1 [shape = 'u32[144,128]{1,0:T(1,128)}', space=vmem, size = 0x12000, scoped, tag = 'internal scratch']
  %s0 = inlined_call_operand.vmem [shape: f32[9,2,1,256], index: 0, kind: input, shape index: {}]
  %s1 = inlined_call_operand.hbm [shape: f32[2,1,256], index: 1, kind: output, shape index: {}]
  %s2 = sld [smem:[#allocation0]]
  $region78: #{alexnet_features.15} parent=0
    _
  %s4 = ssub.s32 1, %s2
  %s5 = scalar_select 0, %s4, %s2
  $region1: #{alexnet_features.15} parent=0
    #allocation2 [shape = 'u8[18432]{0}', space=vmem, size = 0x4800, scoped, tag = 'input window, operand 0']
    #allocation3 [shape = 'u8[2048]{0}', space=vmem, size = 0x800, scoped, tag = 'output window, operand 0']
    #allocation4 [shape = 's32[2]{0}', space=sflag, size = 0x8, scoped, tag = 'scoped memory for alexnet_features.15']
    %6 = vsyncpa [#allocation4], 0
    %s7 = scalar_lea.sflag [#allocation4], 1
    %8 = vsyncpa %s7, 0
    loop: start=0, step=1, limit=4
    $region2: #{alexnet_features.15} parent=1 // loop_pre_header
      _
    $region3: #{alexnet_features.15} parent=1 // loop_header
      %s10 = sphi 0, %s14
      %p11 = scmp.ge.s32.totalorder %s10, 4
      %s20 = sphi 0, %s22
      %s23 = sphi 0, %s20
      %s24 = sphi 0, %s23
      %s40 = sphi 0, %s24
      %s46 = sphi 0, %s48
      %s49 = sphi 0, %s46
      %s50 = sphi 0, %s49
      %s66 = sphi 0, %s50
    $region4: #{alexnet_features.15} parent=1 // loop_header_branch
      %13 = sbr.rel (%p11) target = $region8
    $region5: #{alexnet_features.15} parent=1 // loop_body
      %s15 = ssub.s32 %s10, 1
      %s16 = ssub.s32 %s10, 2
      %s17 = sadd.s32 %s10, 1
      %s18 = ssub.s32 %s10, %s17
      %p19 = scmp.eq.s32.totalorder %s18, 0
      %s21 = sadd.s32 %s20, 1
      %s22 = scalar_select %p19, %s20, %s21
      %p25 = pneg %p19
      %p26 = scmp.eq.s32.totalorder %s10, 1
      %p27 = por %p25, %p26
      %p28 = scmp.ne.s32.totalorder %s20, %s23
      %p29 = scmp.eq.s32.totalorder %s10, 0
      %p30 = por %p28, %p29
      %p31 = scmp.ne.s32.totalorder %s20, %s23
      %p32 = scmp.eq.s32.totalorder %s15, 1
      %p33 = por %p31, %p32
      %p34 = scmp.ne.s32.totalorder %s23, %s24
      %p35 = scmp.eq.s32.totalorder %s15, 0
      %p36 = por %p34, %p35
      %p37 = scmp.ne.s32.totalorder %s23, %s24
      %p38 = scmp.eq.s32.totalorder %s16, 1
      %p39 = por %p37, %p38
      %p41 = scmp.ne.s32.totalorder %s24, %s40
      %p42 = scmp.eq.s32.totalorder %s16, 0
      %p43 = por %p41, %p42
      %s44 = ssub.s32 %s10, %s17
      %p45 = scmp.eq.s32.totalorder %s44, 0
      %s47 = sadd.s32 %s46, 1
      %s48 = scalar_select %p45, %s46, %s47
      %p51 = pneg %p45
      %p52 = scmp.eq.s32.totalorder %s10, 1
      %p53 = por %p51, %p52
      %p54 = scmp.ne.s32.totalorder %s46, %s49
      %p55 = scmp.eq.s32.totalorder %s10, 0
      %p56 = por %p54, %p55
      %p57 = scmp.ne.s32.totalorder %s46, %s49
      %p58 = scmp.eq.s32.totalorder %s15, 1
      %p59 = por %p57, %p58
      %p60 = scmp.ne.s32.totalorder %s49, %s50
      %p61 = scmp.eq.s32.totalorder %s15, 0
      %p62 = por %p60, %p61
      %p63 = scmp.ne.s32.totalorder %s49, %s50
      %p64 = scmp.eq.s32.totalorder %s16, 1
      %p65 = por %p63, %p64
      %p67 = scmp.ne.s32.totalorder %s50, %s66
      %p68 = scmp.eq.s32.totalorder %s16, 0
      %p69 = por %p67, %p68
      %p70 = scmp.le.s32.totalorder 1, %s10
      %p71 = scmp.lt.s32.totalorder %s10, 3
      %p72 = pnand %p70, %p71
      %p73 = pneg %p72
      // Predicated region
      $region9: #{alexnet_features.15} parent=5 // pred_check
        _
      $region10: #{alexnet_features.15} parent=5 // pred_check_branch
        %75 = sbr.rel (%p72) target = $region12
      $region11: #{alexnet_features.15} parent=5 // pred_region
        %s76 = ssub.s32 %s10, 1
      $region12: #{alexnet_features.15} parent=5 // pred_fallthru
        _
      %p77 = scmp.lt.s32.totalorder %s10, 2
      // Predicated region
      $region13: #{alexnet_features.15} parent=5 // pred_check
        %p78 = pneg %p77
      $region14: #{alexnet_features.15} parent=5 // pred_check_branch
        %80 = sbr.rel (%p78) target = $region16
      $region15: #{alexnet_features.15} parent=5 // pred_region
        // Predicated region
        $region17: #{alexnet_features.15} parent=15 // pred_check
          %p81 = pneg %p30
        $region18: #{alexnet_features.15} parent=15 // pred_check_branch
          %83 = sbr.rel (%p81) target = $region20
        $region19: #{alexnet_features.15} parent=15 // pred_region
          %s84 = sand.u32 %s20, 1
          %s85 = sand.u32 %s20, 1
          %s86 = smul.addr %s85, 18
          %s87 = scalar_lea.vmem [#allocation2], %s86
          %s88 = smul.addr %s10, 2
          %s89 = scalar_lea.vmem %s0, %s88
          // Predicated region
          $region21: #{alexnet_features.15} parent=19 // pred_check
            _
          $region22: #{alexnet_features.15} parent=19 // pred_check_branch
            %91 = sbr.rel (0) target = $region24
          $region23: #{alexnet_features.15} parent=19 // pred_region
            // Predicated region
            $region25: #{alexnet_features.15} parent=23 // pred_check
              _
            $region26: #{alexnet_features.15} parent=23 // pred_check_branch
              %93 = sbr.rel target = $region28
            $region27: #{alexnet_features.15} parent=23 // pred_region
              // Predicated region
              $region40: #{alexnet_features.15} parent=27 // pred_check
                _
              $region41: #{alexnet_features.15} parent=27 // pred_check_branch
                %124 = sbr.rel (0) target = $region43
              $region42: #{alexnet_features.15} parent=27 // pred_region
                loop: start=0, step=1, limit=1
                $region44: #{alexnet_features.15} parent=42 // loop_pre_header
                  _
                $region45: #{alexnet_features.15} parent=42 // loop_header
                  %s126 = sphi 0, %s130
                  %p127 = scmp.ge.s32.totalorder %s126, 1
                  %s131 = sphi %s89, %s89
                  %s132 = sphi %s87, %s87
                $region46: #{alexnet_features.15} parent=42 // loop_header_branch
                  %129 = sbr.rel (%p127) target = $region50
                $region47: #{alexnet_features.15} parent=42 // loop_body
                  _
                $region48: #{alexnet_features.15} parent=42 // loop_footer
                  %s130 = sadd.s32 1, %s126
                $region49: #{alexnet_features.15} parent=42 // loop_footer_branch
                  %125 = sbr.rel target = $region45
                $region50: #{alexnet_features.15} parent=42 // loop_exit
                  _
                loop: start=0, step=1, limit=1
                $region51: #{alexnet_features.15} parent=42 // loop_pre_header
                  _
                $region52: #{alexnet_features.15} parent=42 // loop_header
                  %s135 = sphi 0, %s139
                  %p136 = scmp.ge.s32.totalorder %s135, 1
                  %s140 = sphi %s89, %s89
                  %s141 = sphi %s87, %s87
                $region53: #{alexnet_features.15} parent=42 // loop_header_branch
                  %138 = sbr.rel (%p136) target = $region57
                $region54: #{alexnet_features.15} parent=42 // loop_body
                  %v142 = vld [vmem:[%s140] sm:$0x3]
                  %143 = vst [vmem:[%s141] sm:$0x3] %v142
                  %v144 = vld [vmem:[%s140 + $0x4] sm:$0x3]
                  %145 = vst [vmem:[%s141 + $0x2] sm:$0x3] %v144
                  %v146 = vld [vmem:[%s140 + $0x8] sm:$0x3]
                  %147 = vst [vmem:[%s141 + $0x4] sm:$0x3] %v146
                  %v148 = vld [vmem:[%s140 + $0xc] sm:$0x3]
                  %149 = vst [vmem:[%s141 + $0x6] sm:$0x3] %v148
                  %v150 = vld [vmem:[%s140 + $0x10] sm:$0x3]
                  %151 = vst [vmem:[%s141 + $0x8] sm:$0x3] %v150
                  %v152 = vld [vmem:[%s140 + $0x14] sm:$0x3]
                  %153 = vst [vmem:[%s141 + $0xa] sm:$0x3] %v152
                  %v154 = vld [vmem:[%s140 + $0x18] sm:$0x3]
                  %155 = vst [vmem:[%s141 + $0xc] sm:$0x3] %v154
                  %v156 = vld [vmem:[%s140 + $0x1c] sm:$0x3]
                  %157 = vst [vmem:[%s141 + $0xe] sm:$0x3] %v156
                  %v158 = vld [vmem:[%s140 + $0x20] sm:$0x3]
                  %159 = vst [vmem:[%s141 + $0x10] sm:$0x3] %v158
                $region55: #{alexnet_features.15} parent=42 // loop_footer
                  %s139 = sadd.s32 1, %s135
                $region56: #{alexnet_features.15} parent=42 // loop_footer_branch
                  %134 = sbr.rel target = $region52
                $region57: #{alexnet_features.15} parent=42 // loop_exit
                  _
              $region43: #{alexnet_features.15} parent=27 // pred_fallthru
                _
            $region28: #{alexnet_features.15} parent=23 // pred_fallthru
              _
            // Predicated region
            $region29: #{alexnet_features.15} parent=23 // pred_check
              _
            $region30: #{alexnet_features.15} parent=23 // pred_check_branch
              %95 = sbr.rel (0) target = $region32
            $region31: #{alexnet_features.15} parent=23 // pred_region
              loop: start=0, step=1, limit=1
              $region33: #{alexnet_features.15} parent=31 // loop_pre_header
                _
              $region34: #{alexnet_features.15} parent=31 // loop_header
                %s98 = sphi 0, %s102
                %p99 = scmp.ge.s32.totalorder %s98, 1
                %s103 = sphi %s89, %s89
                %s104 = sphi %s87, %s87
              $region35: #{alexnet_features.15} parent=31 // loop_header_branch
                %101 = sbr.rel (%p99) target = $region39
              $region36: #{alexnet_features.15} parent=31 // loop_body
                %v105 = vld [vmem:[%s103] sm:$0x3]
                %106 = vst [vmem:[%s104] sm:$0x3] %v105
                %v107 = vld [vmem:[%s103 + $0x4] sm:$0x3]
                %108 = vst [vmem:[%s104 + $0x2] sm:$0x3] %v107
                %v109 = vld [vmem:[%s103 + $0x8] sm:$0x3]
                %110 = vst [vmem:[%s104 + $0x4] sm:$0x3] %v109
                %v111 = vld [vmem:[%s103 + $0xc] sm:$0x3]
                %112 = vst [vmem:[%s104 + $0x6] sm:$0x3] %v111
                %v113 = vld [vmem:[%s103 + $0x10] sm:$0x3]
                %114 = vst [vmem:[%s104 + $0x8] sm:$0x3] %v113
                %v115 = vld [vmem:[%s103 + $0x14] sm:$0x3]
                %116 = vst [vmem:[%s104 + $0xa] sm:$0x3] %v115
                %v117 = vld [vmem:[%s103 + $0x18] sm:$0x3]
                %118 = vst [vmem:[%s104 + $0xc] sm:$0x3] %v117
                %v119 = vld [vmem:[%s103 + $0x1c] sm:$0x3]
                %120 = vst [vmem:[%s104 + $0xe] sm:$0x3] %v119
                %v121 = vld [vmem:[%s103 + $0x20] sm:$0x3]
                %122 = vst [vmem:[%s104 + $0x10] sm:$0x3] %v121
              $region37: #{alexnet_features.15} parent=31 // loop_footer
                %s102 = sadd.s32 1, %s98
              $region38: #{alexnet_features.15} parent=31 // loop_footer_branch
                %97 = sbr.rel target = $region34
              $region39: #{alexnet_features.15} parent=31 // loop_exit
                _
            $region32: #{alexnet_features.15} parent=23 // pred_fallthru
              _
          $region24: #{alexnet_features.15} parent=19 // pred_fallthru
            _
          %160 = vnop
        $region20: #{alexnet_features.15} parent=15 // pred_fallthru
          _
      $region16: #{alexnet_features.15} parent=5 // pred_fallthru
        _
      %p161 = scmp.le.s32.totalorder 1, %s10
      %p162 = scmp.lt.s32.totalorder %s10, 3
      %p163 = pnand %p161, %p162
      %p164 = pneg %p163
      // Predicated region
      $region58: #{alexnet_features.15} parent=5 // pred_check
        _
      $region59: #{alexnet_features.15} parent=5 // pred_check_branch
        %166 = sbr.rel (%p163) target = $region61
      $region60: #{alexnet_features.15} parent=5 // pred_region
        %s167 = ssub.s32 %s10, 1
        %s168 = sand.u32 %s23, 1
        %s169 = sand.u32 %s23, 1
        %s170 = smul.addr %s169, 18
        %s171 = scalar_lea.vmem [#allocation2], %s170
        // Predicated region
        $region62: #{alexnet_features.15} parent=60 // pred_check
          %p172 = pneg %p36
        $region63: #{alexnet_features.15} parent=60 // pred_check_branch
          %174 = sbr.rel (%p172) target = $region65
        $region64: #{alexnet_features.15} parent=60 // pred_region
          _
        $region65: #{alexnet_features.15} parent=60 // pred_fallthru
          _
        %s175 = sand.u32 %s23, 1
        %s176 = sand.u32 %s23, 1
        %s177 = smul.addr %s176, 18
        %s178 = scalar_lea.vmem [#allocation2], %s177
        %p179 = pneg %p36
        %p180 = pneg %p33
        %p181 = pneg %p62
        %p182 = pneg %p59
        %s183 = sand.u32 %s49, 1
        %s184 = scalar_lea.sflag [#allocation4], %s183
        %s185 = sand.u32 %s49, 1
        %s186 = smul.addr %s185, 2
        %s187 = scalar_lea.vmem [#allocation3], %s186
        %v188 = vld [vmem:[%s171] sm:$0x3]
        %v189 = vld [vmem:[%s171 + $0x2] sm:$0x3]
        %v190 = vld [vmem:[%s171 + $0x4] sm:$0x3]
        %v191 = vld [vmem:[%s171 + $0x6] sm:$0x3]
        %v192 = vld [vmem:[%s171 + $0x8] sm:$0x3]
        %v193 = vld [vmem:[%s171 + $0xa] sm:$0x3]
        %v194 = vld [vmem:[%s171 + $0xc] sm:$0x3]
        %v195 = vld [vmem:[%s171 + $0xe] sm:$0x3]
        %v196 = vld [vmem:[%s171 + $0x10] sm:$0x3]
        %v197 = vlaneseq
        %vm198 = vcmp.ge.s32.totalorder %v197, 0
        %vm199 = vcmp.lt.s32.totalorder %v197, 256
        %vm200 = vmand %vm198, %vm199
        %v201 = vsel %vm200, %v188, -inf
        %v202 = vsel %vm200, %v189, -inf
        %v203 = vsel %vm200, %v190, -inf
        %v204 = vsel %vm200, %v191, -inf
        %v205 = vsel %vm200, %v192, -inf
        %v206 = vmax.f32 %v201, %v205
        %v207 = vsel %vm200, %v193, -inf
        %v208 = vmax.f32 %v202, %v207
        %v209 = vsel %vm200, %v194, -inf
        %v210 = vmax.f32 %v203, %v209
        %v211 = vsel %vm200, %v195, -inf
        %v212 = vmax.f32 %v204, %v211
        %v213 = vsel %vm200, %v196, -inf
        %v214 = vmax.f32 %v206, %v213
        %v215 = vmax.f32 %v214, %v208
        %v216 = vmax.f32 %v210, %v212
        %v217 = vmax.f32 %v215, %v216
        %218 = vst.msk [vmem:[%s187] sm:$0x3] %vm200, %v217
        %s219 = sand.u32 %s49, 1
        %s220 = scalar_lea.sflag [#allocation4], %s219
        %s221 = sand.u32 %s49, 1
        %s222 = smul.addr %s221, 2
        %s223 = scalar_lea.vmem [#allocation3], %s222
        // Predicated region
        $region66: #{alexnet_features.15} parent=60 // pred_check
          %p224 = pneg %p59
        $region67: #{alexnet_features.15} parent=60 // pred_check_branch
          %226 = sbr.rel (%p224) target = $region69
        $region68: #{alexnet_features.15} parent=60 // pred_region
          %s228 = ssub.s32 32, 32
          %229 = vsyncadd %s220, %s228
          %s230 = smul.addr %s15, 2
          %s231 = smul.addr %s230, 16
          %s232 = scalar_lea.hbm %s1, %s231
          %s234 = sshll.u32 %s223, 4
          %s235 = int_to_ptr.vmem [resolvable:$true] %s234
          %237 = dma.vmem_to_hbm [thread:$0]  %s235, 32, %s232, %s220
        $region69: #{alexnet_features.15} parent=60 // pred_fallthru
          _
      $region61: #{alexnet_features.15} parent=5 // pred_fallthru
        _
      %p238 = scmp.le.s32.totalorder 2, %s10
      // Predicated region
      $region70: #{alexnet_features.15} parent=5 // pred_check
        %p239 = pneg %p238
      $region71: #{alexnet_features.15} parent=5 // pred_check_branch
        %241 = sbr.rel (%p239) target = $region73
      $region72: #{alexnet_features.15} parent=5 // pred_region
        %s242 = ssub.s32 %s10, 2
        // Predicated region
        $region74: #{alexnet_features.15} parent=72 // pred_check
          %p243 = pneg %p65
        $region75: #{alexnet_features.15} parent=72 // pred_check_branch
          %245 = sbr.rel (%p243) target = $region77
        $region76: #{alexnet_features.15} parent=72 // pred_region
          %s246 = sand.u32 %s50, 1
          %s247 = scalar_lea.sflag [#allocation4], %s246
          %s248 = sand.u32 %s50, 1
          %s249 = smul.addr %s248, 2
          %s250 = scalar_lea.vmem [#allocation3], %s249
          %251 = dma.done %s247, 32
        $region77: #{alexnet_features.15} parent=72 // pred_fallthru
          _
      $region73: #{alexnet_features.15} parent=5 // pred_fallthru
        _
    $region6: #{alexnet_features.15} parent=1 // loop_footer
      %s14 = sadd.s32 1, %s10
    $region7: #{alexnet_features.15} parent=1 // loop_footer_branch
      %9 = sbr.rel target = $region3
    $region8: #{alexnet_features.15} parent=1 // loop_exit
      _
    %252 = vsyncpa [#allocation4], 1
    %s253 = scalar_lea.sflag [#allocation4], 1
    %254 = vsyncpa %s253, 1

</llo_original>
